<compile_context>
chip_gen: v7x
topology: tpu7x:2x2x1
jax: 0.10.0
libtpu: 0.0.40
codegen_flags: <defaults>
</compile_context>

<pallas_src>
import functools
import math

import numpy as np
import jax
import jax.numpy as jnp
from jax import lax
from jax.experimental import pallas as pl
from jax.experimental.pallas import tpu as pltpu


_MATMUL_BF16 = True  # bf16 MXU operands (f32 accumulate); cov tail stays f32


def _round_up(x, m):
    return -(-x // m) * m


# --------------------------------------------------------------------------- #
# In-kernel math helpers
# --------------------------------------------------------------------------- #
def _gelu(x):
    c = math.sqrt(2.0 / math.pi)
    return 0.5 * x * (1.0 + jnp.tanh(c * (x + 0.044715 * x * x * x)))


def _softplus(x):
    return jnp.maximum(x, 0.0) + jnp.log1p(jnp.exp(-jnp.abs(x)))


def _layernorm(x, eps=1e-5):
    mu = jnp.mean(x, axis=-1, keepdims=True)
    var = jnp.mean((x - mu) ** 2, axis=-1, keepdims=True)
    return (x - mu) * lax.rsqrt(var + eps)


def _dot32(a, b):
    return jnp.dot(a, b, preferred_element_type=jnp.float32)


def _mxu(a, b):
    if _MATMUL_BF16:
        return jnp.dot(a.astype(jnp.bfloat16), b.astype(jnp.bfloat16),
                       preferred_element_type=jnp.float32)
    return _dot32(a, b)


# --------------------------------------------------------------------------- #
# Fused kernel: conv branches + embed MLPs + vector MLP + mean/cov heads
# --------------------------------------------------------------------------- #
def _fused_kernel(*refs, conv_plan, n_vec, n_mean, n_cov, out_dim, min_var, tb):
    n_conv = len(conv_plan)
    idx = 0
    ximg_ref = refs[idx]; idx += 1                     # (2, H, TB, W*C)
    y_ref = refs[idx]; idx += 1                        # (TB, Vin)
    conv_refs = refs[idx: idx + 2 * n_conv]; idx += 2 * n_conv
    w1_ref, b1_ref, w2_ref, b2_ref = refs[idx: idx + 4]; idx += 4
    vec_refs = refs[idx: idx + 2 * n_vec]; idx += 2 * n_vec
    mean_refs = refs[idx: idx + 2 * n_mean]; idx += 2 * n_mean
    cov_refs = refs[idx: idx + 2 * n_cov]; idx += 2 * n_cov
    msel_ref = refs[idx]; idx += 1                     # (ntri, D*D)
    dmask_ref = refs[idx]; idx += 1                    # (1, D*D)
    mean_o, cov_o = refs[idx], refs[idx + 1]

    # ---- image branches: convs (MXU band matmuls) + folded BN + GELU + MLP ---
    embs = []
    for br in range(2):
        x = ximg_ref[br]                               # (H, TB, W*C), H-major
        for l, (hin, win, cin, hout, wout, cout,
                stride, pad, ksz, hp) in enumerate(conv_plan):
            wc_in, wc_out = win * cin, wout * cout
            pieces = []
            if pad > 0:
                pieces.append(jnp.zeros((pad, tb, wc_in), jnp.float32))
            pieces.append(x)
            bot = hp - pad - hin
            if bot > 0:
                pieces.append(jnp.zeros((bot, tb, wc_in), jnp.float32))
            xp = jnp.concatenate(pieces, axis=0) if len(pieces) > 1 else x
            if stride > 1:                             # even/odd row planes
                xp = xp.reshape(hp // stride, stride, tb, wc_in)
            band = conv_refs[2 * l][br]                # (K, win*cin, wout*cout)
            bias = conv_refs[2 * l + 1][br]            # (1, wout*cout) BN shift
            acc = None
            for kh in range(ksz):                      # vertical taps = slices
                if stride == 1:
                    sl = xp[kh:kh + hout]
                else:
                    sl = xp[kh // stride: kh // stride + hout, kh % stride]
                t = _mxu(sl.reshape(hout * tb, wc_in), band[kh])
                acc = t if acc is None else acc + t
            x = _gelu(acc + bias).reshape(hout, tb, wc_out)

        # embed MLP: Linear -> LayerNorm -> GELU -> Linear -> GELU (ext. act)
        hf = conv_plan[-1][3]
        w1 = w1_ref[br]                                # (hf, wf*F, 2E)
        h = b1_ref[br]                                 # (1, 2E)
        for i in range(hf):                            # M = TB per matmul
            h = h + _mxu(x[i], w1[i])
        h = _gelu(_layernorm(h))
        h = _gelu(_mxu(h, w2_ref[br]) + b2_ref[br])
        embs.append(h)                                 # (TB, E)

    # ---- vector MLP (Linear -> LN -> GELU ..., final Linear, ext. GELU) -----
    h = y_ref[...]
    for l in range(n_vec):
        h = _mxu(h, vec_refs[2 * l][...]) + vec_refs[2 * l + 1][...]
        if l < n_vec - 1:
            h = _gelu(_layernorm(h))
    y_out = _gelu(h)                                   # (TB, V)

    vdim = y_out.shape[1]
    edim = embs[0].shape[1]

    def run_head(layer_refs, n_layers, exact_last):
        # concat(y, h1, h2) folded into row-split first-layer weights
        w0 = layer_refs[0][...]
        z = (_mxu(y_out, w0[0:vdim, :])
             + _mxu(embs[0], w0[vdim:vdim + edim, :])
             + _mxu(embs[1], w0[vdim + edim:vdim + 2 * edim, :])
             + layer_refs[1][...])
        if n_layers > 1:
            z = _gelu(z)                               # norm_layer = Identity
        for l in range(1, n_layers):
            w = layer_refs[2 * l][...]
            b = layer_refs[2 * l + 1][...]
            z = (_dot32(z, w) if (exact_last and l == n_layers - 1)
                 else _mxu(z, w)) + b
            if l < n_layers - 1:
                z = _gelu(z)
        return z

    mean = run_head(mean_refs, n_mean, False)          # (TB, D)
    lp = run_head(cov_refs, n_cov, True)               # (TB, ntri), f32 tail

    # tril expansion (one matmul) + softplus/min_var on diag, cov = L L^T
    lflat = _dot32(lp, msel_ref[...])                  # (TB, D*D)
    dmask = dmask_ref[...]
    lflat = jnp.where(dmask > 0.5, _softplus(lflat) + min_var, lflat)
    lmat = lflat.reshape(tb, out_dim, out_dim)
    cov = jnp.einsum('bij,bkj->bik', lmat, lmat,
                     preferred_element_type=jnp.float32)

    mean_o[...] = mean
    cov_o[...] = cov


# --------------------------------------------------------------------------- #
# pallas_call plumbing
# --------------------------------------------------------------------------- #
def _const_spec(arr):
    shape = tuple(arr.shape)
    return pl.BlockSpec(shape, lambda t, _n=len(shape): (0,) * _n)


def _batch_tiling(b):
    if b > 256:
        return _round_up(b, 128), 128
    bp = max(8, _round_up(b, 8))
    if bp >= 16:
        bp = _round_up(bp, 16)
        return bp, bp // 2     # >= 2 grid steps so both v7x TensorCores get work
    return bp, bp


def gaussian_policy_cnn_forward(params, cfg, plan, y, h1, h2):
    C, H, W = cfg["img_size"]
    D = cfg["output_dim"]
    B = y.shape[0]
    Bp, TB = _batch_tiling(B)

    # NCHW -> (H, B, W*C) H-major layout; pad batch to a multiple of the tile.
    def relayout(img):
        x = jnp.transpose(img, (2, 0, 3, 1)).reshape(H, B, W * C)
        if Bp != B:
            x = jnp.concatenate(
                [x, jnp.zeros((H, Bp - B, W * C), x.dtype)], axis=1)
        return x

    ximg = jnp.stack([relayout(h1), relayout(h2)], axis=0)     # (2, H, Bp, W*C)
    yp = y if Bp == B else jnp.concatenate(
        [y, jnp.zeros((Bp - B, y.shape[1]), y.dtype)], axis=0)

    inputs = [ximg, yp]
    in_specs = [
        pl.BlockSpec((2, H, TB, W * C), lambda t: (0, 0, t, 0)),
        pl.BlockSpec((TB, yp.shape[1]), lambda t: (t, 0)),
    ]
    for layer in params["conv"]:
        for nm in ("band", "bias"):
            inputs.append(layer[nm])
            in_specs.append(_const_spec(layer[nm]))
    for nm in ("w1", "b1", "w2", "b2"):
        inputs.append(params["embed"][nm])
        in_specs.append(_const_spec(params["embed"][nm]))
    for grp in ("vec", "mean", "cov"):
        for layer in params[grp]:
            for nm in ("w", "b"):
                inputs.append(layer[nm])
                in_specs.append(_const_spec(layer[nm]))
    for nm in ("msel2", "dmask"):
        inputs.append(params[nm])
        in_specs.append(_const_spec(params[nm]))

    kern = functools.partial(
        _fused_kernel,
        conv_plan=tuple(tuple(lp) for lp in plan),
        n_vec=len(params["vec"]), n_mean=len(params["mean"]),
        n_cov=len(params["cov"]), out_dim=D,
        min_var=cfg["min_variance"], tb=TB)

    mean, cov = pl.pallas_call(
        kern,
        out_shape=(jax.ShapeDtypeStruct((Bp, D), jnp.float32),
                   jax.ShapeDtypeStruct((Bp, D, D), jnp.float32)),
        grid=(Bp // TB,),
        in_specs=in_specs,
        out_specs=(pl.BlockSpec((TB, D), lambda t: (t, 0)),
                   pl.BlockSpec((TB, D, D), lambda t: (t, 0, 0))),
        compiler_params=pltpu.CompilerParams(
            dimension_semantics=("parallel",)),
    )(*inputs)
    return mean[:B], cov[:B]


# --------------------------------------------------------------------------- #
# Host-side: conv plan + synthetic parameter construction (deterministic)
# --------------------------------------------------------------------------- #
def make_conv_plan(cfg):
    C, H, W = cfg["img_size"]
    F, K, depth = cfg["features"], cfg["kernel"], cfg["depth"]
    pad = K // 2
    thr = cfg["size_reduce_threshold"]

    def out_sz(s, stride):
        return (s + 2 * pad - K) // stride + 1

    plan = []
    hin, win, cin = H, W, C

    def add_layer(stride):
        nonlocal hin, win, cin
        cout = F
        hout, wout = out_sz(hin, stride), out_sz(win, stride)
        hp = max(hin + 2 * pad, stride * ((K - 1) // stride) + stride * hout)
        hp = _round_up(hp, stride)
        plan.append((hin, win, cin, hout, wout, cout, stride, pad, K, hp))
        hin, win, cin = hout, wout, cout

    for _ in range(depth):          # CNN_Interpretability_Module (stride 1)
        add_layer(1)
    add_layer(2)                    # CNN_Reduction_Module applies >= 1 layer
    while hin > thr[0] or win > thr[1]:
        add_layer(2)
    return plan, hin, win


def _fold_bn(cout, eps=1e-5):
    gamma = np.ones((cout,), np.float32)
    beta = np.zeros((cout,), np.float32)
    r_mean = np.zeros((cout,), np.float32)
    r_var = np.ones((cout,), np.float32)
    scale = gamma / np.sqrt(r_var + eps)
    shift = beta - r_mean * scale
    return scale, shift


def build_params(key, cfg):
    C, H, W = cfg["img_size"]
    F, K = cfg["features"], cfg["kernel"]
    E = cfg["img_embed_dim"]
    plan, hf, wf = make_conv_plan(cfg)

    state = [key]

    def new_key():
        state[0], sub = jax.random.split(state[0])
        return sub

    def rand(shape, scale):
        return np.asarray(jax.random.normal(new_key(), shape, jnp.float32)) * scale

    # ---- conv layers: block-banded weight matrices with BN scale folded in ----
    conv_layers = []
    for (hin, win, cin, hout, wout, cout, stride, pad, ksz, hp) in plan:
        bands, biases = [], []
        for _branch in range(2):
            wconv = rand((cout, cin, ksz, ksz), 1.0 / math.sqrt(cin * ksz * ksz))
            band = np.zeros((ksz, win * cin, wout * cout), np.float32)
            for kh in range(ksz):
                for kw in range(ksz):
                    for j in range(wout):
                        jin = stride * j + kw - pad
                        if 0 <= jin < win:
                            band[kh, jin * cin:(jin + 1) * cin,
                                 j * cout:(j + 1) * cout] = wconv[:, :, kh, kw].T
            scale, shift = _fold_bn(cout)
            band *= np.tile(scale, wout)[None, None, :]
            bias = np.tile(shift, wout)[None, :]
            bands.append(band)
            biases.append(bias)
        conv_layers.append(dict(band=jnp.asarray(np.stack(bands)),
                                bias=jnp.asarray(np.stack(biases))))

    # ---- per-branch embed MLP (Linear -> LN -> GELU, Linear) ----------------
    embed_in, hid = hf * wf * F, 2 * E
    w1s, b1s, w2s, b2s = [], [], [], []
    for _branch in range(2):
        w1 = rand((embed_in, hid), 1.0 / math.sqrt(embed_in))
        b1 = rand((1, hid), 0.01)
        w2 = rand((hid, E), 1.0 / math.sqrt(hid))
        b2 = rand((1, E), 0.01)
        # reorder rows: torch flatten order (c, i, j) -> kernel layout (i, j, c)
        w1r = np.zeros((hf, wf * F, hid), np.float32)
        for i in range(hf):
            for j in range(wf):
                for c in range(F):
                    w1r[i, j * F + c, :] = w1[(c * hf + i) * wf + j, :]
        w1s.append(w1r); b1s.append(b1); w2s.append(w2); b2s.append(b2)
    embed = dict(w1=jnp.asarray(np.stack(w1s)), b1=jnp.asarray(np.stack(b1s)),
                 w2=jnp.asarray(np.stack(w2s)), b2=jnp.asarray(np.stack(b2s)))

    # ---- dense MLPs ----------------------------------------------------------
    def make_mlp(dims):
        return [dict(w=jnp.asarray(rand((dims[i], dims[i + 1]),
                                        1.0 / math.sqrt(dims[i]))),
                     b=jnp.asarray(rand((1, dims[i + 1]), 0.01)))
                for i in range(len(dims) - 1)]

    vdims = (cfg["input_vector_size"],) + tuple(cfg["vector_feature_list"]) \
            + (cfg["vector_embed_dim"],)
    vec = make_mlp(vdims)

    cat = cfg["vector_embed_dim"] + 2 * E
    D = cfg["output_dim"]
    mean_mlp = make_mlp((cat,) + tuple(cfg["output_feature_list"]) + (D,))

    ntri = D * (D + 1) // 2
    cov_mlp = make_mlp((cat,) + tuple(cfg["output_feature_list"]) + (ntri,))
    # _init_cov_mlp: zero final weight; bias = softplus^-1(1 - min_var) on diag
    tr, tc = np.tril_indices(D)
    bias = np.zeros((1, ntri), np.float32)
    bias[0, tr == tc] = math.log(math.exp(1.0 - cfg["min_variance"]) - 1.0)
    cov_mlp[-1]["w"] = jnp.zeros_like(cov_mlp[-1]["w"])
    cov_mlp[-1]["b"] = jnp.asarray(bias)

    # tril expansion matrix (ntri -> D*D) and diagonal mask
    msel2 = np.zeros((ntri, D * D), np.float32)
    for k_idx, (r, c) in enumerate(zip(tr, tc)):
        msel2[k_idx, r * D + c] = 1.0
    dmask = np.zeros((1, D * D), np.float32)
    dmask[0, np.arange(D) * D + np.arange(D)] = 1.0

    params = dict(conv=conv_layers, embed=embed, vec=vec, mean=mean_mlp,
                  cov=cov_mlp, msel2=jnp.asarray(msel2), dmask=jnp.asarray(dmask))
    return params, plan


# --------------------------------------------------------------------------- #
# Main
# --------------------------------------------------------------------------- #
if __name__ == "__main__":
    cfg = dict(
        img_size=(1, 16, 16),
        input_vector_size=8,
        output_dim=6,
        min_variance=1e-6,
        features=4,
        depth=2,
        kernel=3,
        img_embed_dim=8,
        vector_embed_dim=8,
        size_reduce_threshold=(4, 4),
        vector_feature_list=(16, 16),
        output_feature_list=(16, 32),
    )

    key = jax.random.PRNGKey(0)
    k_params, k_y, k_h1, k_h2 = jax.random.split(key, 4)
    params, plan = build_params(k_params, cfg)

    B = 2
    y = jax.random.normal(k_y, (B, cfg["input_vector_size"]), jnp.float32)
    h1 = jax.random.normal(k_h1, (B,) + cfg["img_size"], jnp.float32)
    h2 = jax.random.normal(k_h2, (B,) + cfg["img_size"], jnp.float32)

    fwd = jax.jit(
        lambda p, yy, a, b: gaussian_policy_cnn_forward(p, cfg, plan, yy, a, b))
    mean, cov = fwd(params, y, h1, h2)
    jax.block_until_ready((mean, cov))

    assert mean.shape == (B, cfg["output_dim"])
    assert cov.shape == (B, cfg["output_dim"], cfg["output_dim"])
    assert np.all(np.isfinite(np.asarray(mean)))
    # cov_mlp is initialized (per _init_cov_mlp) so the covariance is ~identity.
    assert np.allclose(np.asarray(cov),
                       np.eye(cfg["output_dim"])[None], atol=1e-3)
    print("KERNEL_OK")
</pallas_src>

<mosaic_0001>
module attributes {stable_mosaic.version = 11 : i64} {
  func.func @_fused_kernel(%arg0: i32, %arg1: memref<2x16x8x16xf32, #tpu.memory_space<vmem>>, %arg2: memref<8x8xf32, #tpu.memory_space<vmem>>, %arg3: memref<2x3x16x64xf32, #tpu.memory_space<vmem>>, %arg4: memref<2x1x64xf32, #tpu.memory_space<vmem>>, %arg5: memref<2x3x64x64xf32, #tpu.memory_space<vmem>>, %arg6: memref<2x1x64xf32, #tpu.memory_space<vmem>>, %arg7: memref<2x3x64x32xf32, #tpu.memory_space<vmem>>, %arg8: memref<2x1x32xf32, #tpu.memory_space<vmem>>, %arg9: memref<2x3x32x16xf32, #tpu.memory_space<vmem>>, %arg10: memref<2x1x16xf32, #tpu.memory_space<vmem>>, %arg11: memref<2x4x16x16xf32, #tpu.memory_space<vmem>>, %arg12: memref<2x1x16xf32, #tpu.memory_space<vmem>>, %arg13: memref<2x16x8xf32, #tpu.memory_space<vmem>>, %arg14: memref<2x1x8xf32, #tpu.memory_space<vmem>>, %arg15: memref<8x16xf32, #tpu.memory_space<vmem>>, %arg16: memref<1x16xf32, #tpu.memory_space<vmem>>, %arg17: memref<16x16xf32, #tpu.memory_space<vmem>>, %arg18: memref<1x16xf32, #tpu.memory_space<vmem>>, %arg19: memref<16x8xf32, #tpu.memory_space<vmem>>, %arg20: memref<1x8xf32, #tpu.memory_space<vmem>>, %arg21: memref<24x16xf32, #tpu.memory_space<vmem>>, %arg22: memref<1x16xf32, #tpu.memory_space<vmem>>, %arg23: memref<16x32xf32, #tpu.memory_space<vmem>>, %arg24: memref<1x32xf32, #tpu.memory_space<vmem>>, %arg25: memref<32x6xf32, #tpu.memory_space<vmem>>, %arg26: memref<1x6xf32, #tpu.memory_space<vmem>>, %arg27: memref<24x16xf32, #tpu.memory_space<vmem>>, %arg28: memref<1x16xf32, #tpu.memory_space<vmem>>, %arg29: memref<16x32xf32, #tpu.memory_space<vmem>>, %arg30: memref<1x32xf32, #tpu.memory_space<vmem>>, %arg31: memref<32x21xf32, #tpu.memory_space<vmem>>, %arg32: memref<1x21xf32, #tpu.memory_space<vmem>>, %arg33: memref<21x36xf32, #tpu.memory_space<vmem>>, %arg34: memref<1x36xf32, #tpu.memory_space<vmem>>, %arg35: memref<8x6xf32, #tpu.memory_space<vmem>>, %arg36: memref<8x6x6xf32, #tpu.memory_space<vmem>>) attributes {dimension_semantics = [#tpu.dimension_semantics<parallel>], iteration_bounds = array<i64: 1>, scalar_prefetch = 0 : i64, scratch_operands = 0 : i64, tpu.core_type = #tpu.core_type<tc>, window_params = [{transform_indices = @transform_0, window_bounds = array<i64: 2, 16, 8, 16>}, {transform_indices = @transform_1, window_bounds = array<i64: 8, 8>}, {pipeline_mode = #tpu.pipeline_mode<synchronous>, transform_indices = @transform_2, window_bounds = array<i64: 2, 3, 16, 64>}, {pipeline_mode = #tpu.pipeline_mode<synchronous>, transform_indices = @transform_3, window_bounds = array<i64: 2, 1, 64>}, {pipeline_mode = #tpu.pipeline_mode<synchronous>, transform_indices = @transform_4, window_bounds = array<i64: 2, 3, 64, 64>}, {pipeline_mode = #tpu.pipeline_mode<synchronous>, transform_indices = @transform_5, window_bounds = array<i64: 2, 1, 64>}, {pipeline_mode = #tpu.pipeline_mode<synchronous>, transform_indices = @transform_6, window_bounds = array<i64: 2, 3, 64, 32>}, {pipeline_mode = #tpu.pipeline_mode<synchronous>, transform_indices = @transform_7, window_bounds = array<i64: 2, 1, 32>}, {pipeline_mode = #tpu.pipeline_mode<synchronous>, transform_indices = @transform_8, window_bounds = array<i64: 2, 3, 32, 16>}, {pipeline_mode = #tpu.pipeline_mode<synchronous>, transform_indices = @transform_9, window_bounds = array<i64: 2, 1, 16>}, {pipeline_mode = #tpu.pipeline_mode<synchronous>, transform_indices = @transform_10, window_bounds = array<i64: 2, 4, 16, 16>}, {pipeline_mode = #tpu.pipeline_mode<synchronous>, transform_indices = @transform_11, window_bounds = array<i64: 2, 1, 16>}, {pipeline_mode = #tpu.pipeline_mode<synchronous>, transform_indices = @transform_12, window_bounds = array<i64: 2, 16, 8>}, {pipeline_mode = #tpu.pipeline_mode<synchronous>, transform_indices = @transform_13, window_bounds = array<i64: 2, 1, 8>}, {pipeline_mode = #tpu.pipeline_mode<synchronous>, transform_indices = @transform_14, window_bounds = array<i64: 8, 16>}, {pipeline_mode = #tpu.pipeline_mode<synchronous>, transform_indices = @transform_15, window_bounds = array<i64: 1, 16>}, {pipeline_mode = #tpu.pipeline_mode<synchronous>, transform_indices = @transform_16, window_bounds = array<i64: 16, 16>}, {pipeline_mode = #tpu.pipeline_mode<synchronous>, transform_indices = @transform_17, window_bounds = array<i64: 1, 16>}, {pipeline_mode = #tpu.pipeline_mode<synchronous>, transform_indices = @transform_18, window_bounds = array<i64: 16, 8>}, {pipeline_mode = #tpu.pipeline_mode<synchronous>, transform_indices = @transform_19, window_bounds = array<i64: 1, 8>}, {pipeline_mode = #tpu.pipeline_mode<synchronous>, transform_indices = @transform_20, window_bounds = array<i64: 24, 16>}, {pipeline_mode = #tpu.pipeline_mode<synchronous>, transform_indices = @transform_21, window_bounds = array<i64: 1, 16>}, {pipeline_mode = #tpu.pipeline_mode<synchronous>, transform_indices = @transform_22, window_bounds = array<i64: 16, 32>}, {pipeline_mode = #tpu.pipeline_mode<synchronous>, transform_indices = @transform_23, window_bounds = array<i64: 1, 32>}, {pipeline_mode = #tpu.pipeline_mode<synchronous>, transform_indices = @transform_24, window_bounds = array<i64: 32, 6>}, {pipeline_mode = #tpu.pipeline_mode<synchronous>, transform_indices = @transform_25, window_bounds = array<i64: 1, 6>}, {pipeline_mode = #tpu.pipeline_mode<synchronous>, transform_indices = @transform_26, window_bounds = array<i64: 24, 16>}, {pipeline_mode = #tpu.pipeline_mode<synchronous>, transform_indices = @transform_27, window_bounds = array<i64: 1, 16>}, {pipeline_mode = #tpu.pipeline_mode<synchronous>, transform_indices = @transform_28, window_bounds = array<i64: 16, 32>}, {pipeline_mode = #tpu.pipeline_mode<synchronous>, transform_indices = @transform_29, window_bounds = array<i64: 1, 32>}, {pipeline_mode = #tpu.pipeline_mode<synchronous>, transform_indices = @transform_30, window_bounds = array<i64: 32, 21>}, {pipeline_mode = #tpu.pipeline_mode<synchronous>, transform_indices = @transform_31, window_bounds = array<i64: 1, 21>}, {pipeline_mode = #tpu.pipeline_mode<synchronous>, transform_indices = @transform_32, window_bounds = array<i64: 21, 36>}, {pipeline_mode = #tpu.pipeline_mode<synchronous>, transform_indices = @transform_33, window_bounds = array<i64: 1, 36>}, {transform_indices = @transform_34, window_bounds = array<i64: 8, 6>}, {transform_indices = @transform_35, window_bounds = array<i64: 8, 6, 6>}]} {
    %c0 = arith.constant 0 : index
    %c0_0 = arith.constant 0 : index
    %c0_1 = arith.constant 0 : index
    %c0_2 = arith.constant 0 : index
    %0 = vector.load %arg1[%c0, %c0_0, %c0_1, %c0_2] : memref<2x16x8x16xf32, #tpu.memory_space<vmem>>, vector<1x16x8x16xf32>
    %1 = vector.shape_cast %0 : vector<1x16x8x16xf32> to vector<16x8x16xf32>
    %cst = arith.constant 0.000000e+00 : f32
    %2 = vector.broadcast %cst : f32 to vector<1x8x16xf32>
    %cst_3 = arith.constant 0.000000e+00 : f32
    %3 = vector.broadcast %cst_3 : f32 to vector<1x8x16xf32>
    %4 = tpu.concatenate %2, %1, %3 in 0 : vector<1x8x16xf32>, vector<16x8x16xf32>, vector<1x8x16xf32> -> vector<18x8x16xf32>
    %c0_4 = arith.constant 0 : index
    %c0_5 = arith.constant 0 : index
    %c0_6 = arith.constant 0 : index
    %c0_7 = arith.constant 0 : index
    %5 = vector.load %arg3[%c0_4, %c0_5, %c0_6, %c0_7] : memref<2x3x16x64xf32, #tpu.memory_space<vmem>>, vector<1x3x16x64xf32>
    %6 = vector.shape_cast %5 : vector<1x3x16x64xf32> to vector<3x16x64xf32>
    %c0_8 = arith.constant 0 : index
    %c0_9 = arith.constant 0 : index
    %c0_10 = arith.constant 0 : index
    %7 = vector.load %arg4[%c0_8, %c0_9, %c0_10] : memref<2x1x64xf32, #tpu.memory_space<vmem>>, vector<1x1x64xf32>
    %8 = vector.shape_cast %7 : vector<1x1x64xf32> to vector<1x64xf32>
    %9 = vector.extract_strided_slice %4 {offsets = [0, 0, 0], sizes = [16, 8, 16], strides = [1, 1, 1]} : vector<18x8x16xf32> to vector<16x8x16xf32>
    %10 = vector.shape_cast %9 : vector<16x8x16xf32> to vector<128x16xf32>
    %11 = vector.extract_strided_slice %6 {offsets = [0, 0, 0], sizes = [1, 16, 64], strides = [1, 1, 1]} : vector<3x16x64xf32> to vector<1x16x64xf32>
    %12 = vector.shape_cast %11 : vector<1x16x64xf32> to vector<16x64xf32>
    %13 = arith.truncf %10 : vector<128x16xf32> to vector<128x16xbf16>
    %14 = arith.truncf %12 : vector<16x64xf32> to vector<16x64xbf16>
    %cst_11 = arith.constant dense<0.000000e+00> : vector<128x64xf32>
    %15 = tpu.matmul %13, %14, %cst_11 {dimension_numbers = #tpu.dot_dimension_numbers<[1], [0], [0], [1], [0, 0, 1, 1], [], []>} : vector<128x16xbf16>, vector<16x64xbf16>, vector<128x64xf32> -> vector<128x64xf32>
    %16 = vector.extract_strided_slice %4 {offsets = [1, 0, 0], sizes = [16, 8, 16], strides = [1, 1, 1]} : vector<18x8x16xf32> to vector<16x8x16xf32>
    %17 = vector.shape_cast %16 : vector<16x8x16xf32> to vector<128x16xf32>
    %18 = vector.extract_strided_slice %6 {offsets = [1, 0, 0], sizes = [1, 16, 64], strides = [1, 1, 1]} : vector<3x16x64xf32> to vector<1x16x64xf32>
    %19 = vector.shape_cast %18 : vector<1x16x64xf32> to vector<16x64xf32>
    %20 = arith.truncf %17 : vector<128x16xf32> to vector<128x16xbf16>
    %21 = arith.truncf %19 : vector<16x64xf32> to vector<16x64xbf16>
    %cst_12 = arith.constant dense<0.000000e+00> : vector<128x64xf32>
    %22 = tpu.matmul %20, %21, %cst_12 {dimension_numbers = #tpu.dot_dimension_numbers<[1], [0], [0], [1], [0, 0, 1, 1], [], []>} : vector<128x16xbf16>, vector<16x64xbf16>, vector<128x64xf32> -> vector<128x64xf32>
    %23 = arith.addf %15, %22 : vector<128x64xf32>
    %24 = vector.extract_strided_slice %4 {offsets = [2, 0, 0], sizes = [16, 8, 16], strides = [1, 1, 1]} : vector<18x8x16xf32> to vector<16x8x16xf32>
    %25 = vector.shape_cast %24 : vector<16x8x16xf32> to vector<128x16xf32>
    %26 = vector.extract_strided_slice %6 {offsets = [2, 0, 0], sizes = [1, 16, 64], strides = [1, 1, 1]} : vector<3x16x64xf32> to vector<1x16x64xf32>
    %27 = vector.shape_cast %26 : vector<1x16x64xf32> to vector<16x64xf32>
    %28 = arith.truncf %25 : vector<128x16xf32> to vector<128x16xbf16>
    %29 = arith.truncf %27 : vector<16x64xf32> to vector<16x64xbf16>
    %cst_13 = arith.constant dense<0.000000e+00> : vector<128x64xf32>
    %30 = tpu.matmul %28, %29, %cst_13 {dimension_numbers = #tpu.dot_dimension_numbers<[1], [0], [0], [1], [0, 0, 1, 1], [], []>} : vector<128x16xbf16>, vector<16x64xbf16>, vector<128x64xf32> -> vector<128x64xf32>
    %31 = arith.addf %23, %30 : vector<128x64xf32>
    %32 = vector.broadcast %8 : vector<1x64xf32> to vector<128x64xf32>
    %33 = arith.addf %31, %32 : vector<128x64xf32>
    %cst_14 = arith.constant 5.000000e-01 : f32
    %34 = vector.broadcast %cst_14 : f32 to vector<128x64xf32>
    %35 = arith.mulf %34, %33 : vector<128x64xf32>
    %cst_15 = arith.constant 4.471500e-02 : f32
    %36 = vector.broadcast %cst_15 : f32 to vector<128x64xf32>
    %37 = arith.mulf %36, %33 : vector<128x64xf32>
    %38 = arith.mulf %37, %33 : vector<128x64xf32>
    %39 = arith.mulf %38, %33 : vector<128x64xf32>
    %40 = arith.addf %33, %39 : vector<128x64xf32>
    %cst_16 = arith.constant 0.797884583 : f32
    %41 = vector.broadcast %cst_16 : f32 to vector<128x64xf32>
    %42 = arith.mulf %41, %40 : vector<128x64xf32>
    %43 = math.tanh %42 : vector<128x64xf32>
    %cst_17 = arith.constant 1.000000e+00 : f32
    %44 = vector.broadcast %cst_17 : f32 to vector<128x64xf32>
    %45 = arith.addf %44, %43 : vector<128x64xf32>
    %46 = arith.mulf %35, %45 : vector<128x64xf32>
    %47 = vector.shape_cast %46 : vector<128x64xf32> to vector<16x8x64xf32>
    %cst_18 = arith.constant 0.000000e+00 : f32
    %48 = vector.broadcast %cst_18 : f32 to vector<1x8x64xf32>
    %cst_19 = arith.constant 0.000000e+00 : f32
    %49 = vector.broadcast %cst_19 : f32 to vector<1x8x64xf32>
    %50 = tpu.concatenate %48, %47, %49 in 0 : vector<1x8x64xf32>, vector<16x8x64xf32>, vector<1x8x64xf32> -> vector<18x8x64xf32>
    %c0_20 = arith.constant 0 : index
    %c0_21 = arith.constant 0 : index
    %c0_22 = arith.constant 0 : index
    %c0_23 = arith.constant 0 : index
    %51 = vector.load %arg5[%c0_20, %c0_21, %c0_22, %c0_23] : memref<2x3x64x64xf32, #tpu.memory_space<vmem>>, vector<1x3x64x64xf32>
    %52 = vector.shape_cast %51 : vector<1x3x64x64xf32> to vector<3x64x64xf32>
    %c0_24 = arith.constant 0 : index
    %c0_25 = arith.constant 0 : index
    %c0_26 = arith.constant 0 : index
    %53 = vector.load %arg6[%c0_24, %c0_25, %c0_26] : memref<2x1x64xf32, #tpu.memory_space<vmem>>, vector<1x1x64xf32>
    %54 = vector.shape_cast %53 : vector<1x1x64xf32> to vector<1x64xf32>
    %55 = vector.extract_strided_slice %50 {offsets = [0, 0, 0], sizes = [16, 8, 64], strides = [1, 1, 1]} : vector<18x8x64xf32> to vector<16x8x64xf32>
    %56 = vector.shape_cast %55 : vector<16x8x64xf32> to vector<128x64xf32>
    %57 = vector.extract_strided_slice %52 {offsets = [0, 0, 0], sizes = [1, 64, 64], strides = [1, 1, 1]} : vector<3x64x64xf32> to vector<1x64x64xf32>
    %58 = vector.shape_cast %57 : vector<1x64x64xf32> to vector<64x64xf32>
    %59 = arith.truncf %56 : vector<128x64xf32> to vector<128x64xbf16>
    %60 = arith.truncf %58 : vector<64x64xf32> to vector<64x64xbf16>
    %cst_27 = arith.constant dense<0.000000e+00> : vector<128x64xf32>
    %61 = tpu.matmul %59, %60, %cst_27 {dimension_numbers = #tpu.dot_dimension_numbers<[1], [0], [0], [1], [0, 0, 1, 1], [], []>} : vector<128x64xbf16>, vector<64x64xbf16>, vector<128x64xf32> -> vector<128x64xf32>
    %62 = vector.extract_strided_slice %50 {offsets = [1, 0, 0], sizes = [16, 8, 64], strides = [1, 1, 1]} : vector<18x8x64xf32> to vector<16x8x64xf32>
    %63 = vector.shape_cast %62 : vector<16x8x64xf32> to vector<128x64xf32>
    %64 = vector.extract_strided_slice %52 {offsets = [1, 0, 0], sizes = [1, 64, 64], strides = [1, 1, 1]} : vector<3x64x64xf32> to vector<1x64x64xf32>
    %65 = vector.shape_cast %64 : vector<1x64x64xf32> to vector<64x64xf32>
    %66 = arith.truncf %63 : vector<128x64xf32> to vector<128x64xbf16>
    %67 = arith.truncf %65 : vector<64x64xf32> to vector<64x64xbf16>
    %cst_28 = arith.constant dense<0.000000e+00> : vector<128x64xf32>
    %68 = tpu.matmul %66, %67, %cst_28 {dimension_numbers = #tpu.dot_dimension_numbers<[1], [0], [0], [1], [0, 0, 1, 1], [], []>} : vector<128x64xbf16>, vector<64x64xbf16>, vector<128x64xf32> -> vector<128x64xf32>
    %69 = arith.addf %61, %68 : vector<128x64xf32>
    %70 = vector.extract_strided_slice %50 {offsets = [2, 0, 0], sizes = [16, 8, 64], strides = [1, 1, 1]} : vector<18x8x64xf32> to vector<16x8x64xf32>
    %71 = vector.shape_cast %70 : vector<16x8x64xf32> to vector<128x64xf32>
    %72 = vector.extract_strided_slice %52 {offsets = [2, 0, 0], sizes = [1, 64, 64], strides = [1, 1, 1]} : vector<3x64x64xf32> to vector<1x64x64xf32>
    %73 = vector.shape_cast %72 : vector<1x64x64xf32> to vector<64x64xf32>
    %74 = arith.truncf %71 : vector<128x64xf32> to vector<128x64xbf16>
    %75 = arith.truncf %73 : vector<64x64xf32> to vector<64x64xbf16>
    %cst_29 = arith.constant dense<0.000000e+00> : vector<128x64xf32>
    %76 = tpu.matmul %74, %75, %cst_29 {dimension_numbers = #tpu.dot_dimension_numbers<[1], [0], [0], [1], [0, 0, 1, 1], [], []>} : vector<128x64xbf16>, vector<64x64xbf16>, vector<128x64xf32> -> vector<128x64xf32>
    %77 = arith.addf %69, %76 : vector<128x64xf32>
    %78 = vector.broadcast %54 : vector<1x64xf32> to vector<128x64xf32>
    %79 = arith.addf %77, %78 : vector<128x64xf32>
    %cst_30 = arith.constant 5.000000e-01 : f32
    %80 = vector.broadcast %cst_30 : f32 to vector<128x64xf32>
    %81 = arith.mulf %80, %79 : vector<128x64xf32>
    %cst_31 = arith.constant 4.471500e-02 : f32
    %82 = vector.broadcast %cst_31 : f32 to vector<128x64xf32>
    %83 = arith.mulf %82, %79 : vector<128x64xf32>
    %84 = arith.mulf %83, %79 : vector<128x64xf32>
    %85 = arith.mulf %84, %79 : vector<128x64xf32>
    %86 = arith.addf %79, %85 : vector<128x64xf32>
    %cst_32 = arith.constant 0.797884583 : f32
    %87 = vector.broadcast %cst_32 : f32 to vector<128x64xf32>
    %88 = arith.mulf %87, %86 : vector<128x64xf32>
    %89 = math.tanh %88 : vector<128x64xf32>
    %cst_33 = arith.constant 1.000000e+00 : f32
    %90 = vector.broadcast %cst_33 : f32 to vector<128x64xf32>
    %91 = arith.addf %90, %89 : vector<128x64xf32>
    %92 = arith.mulf %81, %91 : vector<128x64xf32>
    %93 = vector.shape_cast %92 : vector<128x64xf32> to vector<16x8x64xf32>
    %cst_34 = arith.constant 0.000000e+00 : f32
    %94 = vector.broadcast %cst_34 : f32 to vector<1x8x64xf32>
    %cst_35 = arith.constant 0.000000e+00 : f32
    %95 = vector.broadcast %cst_35 : f32 to vector<1x8x64xf32>
    %96 = tpu.concatenate %94, %93, %95 in 0 : vector<1x8x64xf32>, vector<16x8x64xf32>, vector<1x8x64xf32> -> vector<18x8x64xf32>
    %97 = vector.shape_cast %96 : vector<18x8x64xf32> to vector<9x2x8x64xf32>
    %c0_36 = arith.constant 0 : index
    %c0_37 = arith.constant 0 : index
    %c0_38 = arith.constant 0 : index
    %c0_39 = arith.constant 0 : index
    %98 = vector.load %arg7[%c0_36, %c0_37, %c0_38, %c0_39] : memref<2x3x64x32xf32, #tpu.memory_space<vmem>>, vector<1x3x64x32xf32>
    %99 = vector.shape_cast %98 : vector<1x3x64x32xf32> to vector<3x64x32xf32>
    %c0_40 = arith.constant 0 : index
    %c0_41 = arith.constant 0 : index
    %c0_42 = arith.constant 0 : index
    %100 = vector.load %arg8[%c0_40, %c0_41, %c0_42] : memref<2x1x32xf32, #tpu.memory_space<vmem>>, vector<1x1x32xf32>
    %101 = vector.shape_cast %100 : vector<1x1x32xf32> to vector<1x32xf32>
    %102 = vector.extract_strided_slice %97 {offsets = [0, 0, 0, 0], sizes = [8, 1, 8, 64], strides = [1, 1, 1, 1]} : vector<9x2x8x64xf32> to vector<8x1x8x64xf32>
    %103 = vector.shape_cast %102 : vector<8x1x8x64xf32> to vector<8x8x64xf32>
    %104 = vector.shape_cast %103 : vector<8x8x64xf32> to vector<64x64xf32>
    %105 = vector.extract_strided_slice %99 {offsets = [0, 0, 0], sizes = [1, 64, 32], strides = [1, 1, 1]} : vector<3x64x32xf32> to vector<1x64x32xf32>
    %106 = vector.shape_cast %105 : vector<1x64x32xf32> to vector<64x32xf32>
    %107 = arith.truncf %104 : vector<64x64xf32> to vector<64x64xbf16>
    %108 = arith.truncf %106 : vector<64x32xf32> to vector<64x32xbf16>
    %cst_43 = arith.constant dense<0.000000e+00> : vector<64x32xf32>
    %109 = tpu.matmul %107, %108, %cst_43 {dimension_numbers = #tpu.dot_dimension_numbers<[1], [0], [0], [1], [0, 0, 1, 1], [], []>} : vector<64x64xbf16>, vector<64x32xbf16>, vector<64x32xf32> -> vector<64x32xf32>
    %110 = vector.extract_strided_slice %97 {offsets = [0, 1, 0, 0], sizes = [8, 1, 8, 64], strides = [1, 1, 1, 1]} : vector<9x2x8x64xf32> to vector<8x1x8x64xf32>
    %111 = vector.shape_cast %110 : vector<8x1x8x64xf32> to vector<8x8x64xf32>
    %112 = vector.shape_cast %111 : vector<8x8x64xf32> to vector<64x64xf32>
    %113 = vector.extract_strided_slice %99 {offsets = [1, 0, 0], sizes = [1, 64, 32], strides = [1, 1, 1]} : vector<3x64x32xf32> to vector<1x64x32xf32>
    %114 = vector.shape_cast %113 : vector<1x64x32xf32> to vector<64x32xf32>
    %115 = arith.truncf %112 : vector<64x64xf32> to vector<64x64xbf16>
    %116 = arith.truncf %114 : vector<64x32xf32> to vector<64x32xbf16>
    %cst_44 = arith.constant dense<0.000000e+00> : vector<64x32xf32>
    %117 = tpu.matmul %115, %116, %cst_44 {dimension_numbers = #tpu.dot_dimension_numbers<[1], [0], [0], [1], [0, 0, 1, 1], [], []>} : vector<64x64xbf16>, vector<64x32xbf16>, vector<64x32xf32> -> vector<64x32xf32>
    %118 = arith.addf %109, %117 : vector<64x32xf32>
    %119 = vector.extract_strided_slice %97 {offsets = [1, 0, 0, 0], sizes = [8, 1, 8, 64], strides = [1, 1, 1, 1]} : vector<9x2x8x64xf32> to vector<8x1x8x64xf32>
    %120 = vector.shape_cast %119 : vector<8x1x8x64xf32> to vector<8x8x64xf32>
    %121 = vector.shape_cast %120 : vector<8x8x64xf32> to vector<64x64xf32>
    %122 = vector.extract_strided_slice %99 {offsets = [2, 0, 0], sizes = [1, 64, 32], strides = [1, 1, 1]} : vector<3x64x32xf32> to vector<1x64x32xf32>
    %123 = vector.shape_cast %122 : vector<1x64x32xf32> to vector<64x32xf32>
    %124 = arith.truncf %121 : vector<64x64xf32> to vector<64x64xbf16>
    %125 = arith.truncf %123 : vector<64x32xf32> to vector<64x32xbf16>
    %cst_45 = arith.constant dense<0.000000e+00> : vector<64x32xf32>
    %126 = tpu.matmul %124, %125, %cst_45 {dimension_numbers = #tpu.dot_dimension_numbers<[1], [0], [0], [1], [0, 0, 1, 1], [], []>} : vector<64x64xbf16>, vector<64x32xbf16>, vector<64x32xf32> -> vector<64x32xf32>
    %127 = arith.addf %118, %126 : vector<64x32xf32>
    %128 = vector.broadcast %101 : vector<1x32xf32> to vector<64x32xf32>
    %129 = arith.addf %127, %128 : vector<64x32xf32>
    %cst_46 = arith.constant 5.000000e-01 : f32
    %130 = vector.broadcast %cst_46 : f32 to vector<64x32xf32>
    %131 = arith.mulf %130, %129 : vector<64x32xf32>
    %cst_47 = arith.constant 4.471500e-02 : f32
    %132 = vector.broadcast %cst_47 : f32 to vector<64x32xf32>
    %133 = arith.mulf %132, %129 : vector<64x32xf32>
    %134 = arith.mulf %133, %129 : vector<64x32xf32>
    %135 = arith.mulf %134, %129 : vector<64x32xf32>
    %136 = arith.addf %129, %135 : vector<64x32xf32>
    %cst_48 = arith.constant 0.797884583 : f32
    %137 = vector.broadcast %cst_48 : f32 to vector<64x32xf32>
    %138 = arith.mulf %137, %136 : vector<64x32xf32>
    %139 = math.tanh %138 : vector<64x32xf32>
    %cst_49 = arith.constant 1.000000e+00 : f32
    %140 = vector.broadcast %cst_49 : f32 to vector<64x32xf32>
    %141 = arith.addf %140, %139 : vector<64x32xf32>
    %142 = arith.mulf %131, %141 : vector<64x32xf32>
    %143 = vector.shape_cast %142 : vector<64x32xf32> to vector<8x8x32xf32>
    %cst_50 = arith.constant 0.000000e+00 : f32
    %144 = vector.broadcast %cst_50 : f32 to vector<1x8x32xf32>
    %cst_51 = arith.constant 0.000000e+00 : f32
    %145 = vector.broadcast %cst_51 : f32 to vector<1x8x32xf32>
    %146 = tpu.concatenate %144, %143, %145 in 0 : vector<1x8x32xf32>, vector<8x8x32xf32>, vector<1x8x32xf32> -> vector<10x8x32xf32>
    %147 = vector.shape_cast %146 : vector<10x8x32xf32> to vector<5x2x8x32xf32>
    %c0_52 = arith.constant 0 : index
    %c0_53 = arith.constant 0 : index
    %c0_54 = arith.constant 0 : index
    %c0_55 = arith.constant 0 : index
    %148 = vector.load %arg9[%c0_52, %c0_53, %c0_54, %c0_55] : memref<2x3x32x16xf32, #tpu.memory_space<vmem>>, vector<1x3x32x16xf32>
    %149 = vector.shape_cast %148 : vector<1x3x32x16xf32> to vector<3x32x16xf32>
    %c0_56 = arith.constant 0 : index
    %c0_57 = arith.constant 0 : index
    %c0_58 = arith.constant 0 : index
    %150 = vector.load %arg10[%c0_56, %c0_57, %c0_58] : memref<2x1x16xf32, #tpu.memory_space<vmem>>, vector<1x1x16xf32>
    %151 = vector.shape_cast %150 : vector<1x1x16xf32> to vector<1x16xf32>
    %152 = vector.extract_strided_slice %147 {offsets = [0, 0, 0, 0], sizes = [4, 1, 8, 32], strides = [1, 1, 1, 1]} : vector<5x2x8x32xf32> to vector<4x1x8x32xf32>
    %153 = vector.shape_cast %152 : vector<4x1x8x32xf32> to vector<4x8x32xf32>
    %154 = vector.shape_cast %153 : vector<4x8x32xf32> to vector<32x32xf32>
    %155 = vector.extract_strided_slice %149 {offsets = [0, 0, 0], sizes = [1, 32, 16], strides = [1, 1, 1]} : vector<3x32x16xf32> to vector<1x32x16xf32>
    %156 = vector.shape_cast %155 : vector<1x32x16xf32> to vector<32x16xf32>
    %157 = arith.truncf %154 : vector<32x32xf32> to vector<32x32xbf16>
    %158 = arith.truncf %156 : vector<32x16xf32> to vector<32x16xbf16>
    %cst_59 = arith.constant dense<0.000000e+00> : vector<32x16xf32>
    %159 = tpu.matmul %157, %158, %cst_59 {dimension_numbers = #tpu.dot_dimension_numbers<[1], [0], [0], [1], [0, 0, 1, 1], [], []>} : vector<32x32xbf16>, vector<32x16xbf16>, vector<32x16xf32> -> vector<32x16xf32>
    %160 = vector.extract_strided_slice %147 {offsets = [0, 1, 0, 0], sizes = [4, 1, 8, 32], strides = [1, 1, 1, 1]} : vector<5x2x8x32xf32> to vector<4x1x8x32xf32>
    %161 = vector.shape_cast %160 : vector<4x1x8x32xf32> to vector<4x8x32xf32>
    %162 = vector.shape_cast %161 : vector<4x8x32xf32> to vector<32x32xf32>
    %163 = vector.extract_strided_slice %149 {offsets = [1, 0, 0], sizes = [1, 32, 16], strides = [1, 1, 1]} : vector<3x32x16xf32> to vector<1x32x16xf32>
    %164 = vector.shape_cast %163 : vector<1x32x16xf32> to vector<32x16xf32>
    %165 = arith.truncf %162 : vector<32x32xf32> to vector<32x32xbf16>
    %166 = arith.truncf %164 : vector<32x16xf32> to vector<32x16xbf16>
    %cst_60 = arith.constant dense<0.000000e+00> : vector<32x16xf32>
    %167 = tpu.matmul %165, %166, %cst_60 {dimension_numbers = #tpu.dot_dimension_numbers<[1], [0], [0], [1], [0, 0, 1, 1], [], []>} : vector<32x32xbf16>, vector<32x16xbf16>, vector<32x16xf32> -> vector<32x16xf32>
    %168 = arith.addf %159, %167 : vector<32x16xf32>
    %169 = vector.extract_strided_slice %147 {offsets = [1, 0, 0, 0], sizes = [4, 1, 8, 32], strides = [1, 1, 1, 1]} : vector<5x2x8x32xf32> to vector<4x1x8x32xf32>
    %170 = vector.shape_cast %169 : vector<4x1x8x32xf32> to vector<4x8x32xf32>
    %171 = vector.shape_cast %170 : vector<4x8x32xf32> to vector<32x32xf32>
    %172 = vector.extract_strided_slice %149 {offsets = [2, 0, 0], sizes = [1, 32, 16], strides = [1, 1, 1]} : vector<3x32x16xf32> to vector<1x32x16xf32>
    %173 = vector.shape_cast %172 : vector<1x32x16xf32> to vector<32x16xf32>
    %174 = arith.truncf %171 : vector<32x32xf32> to vector<32x32xbf16>
    %175 = arith.truncf %173 : vector<32x16xf32> to vector<32x16xbf16>
    %cst_61 = arith.constant dense<0.000000e+00> : vector<32x16xf32>
    %176 = tpu.matmul %174, %175, %cst_61 {dimension_numbers = #tpu.dot_dimension_numbers<[1], [0], [0], [1], [0, 0, 1, 1], [], []>} : vector<32x32xbf16>, vector<32x16xbf16>, vector<32x16xf32> -> vector<32x16xf32>
    %177 = arith.addf %168, %176 : vector<32x16xf32>
    %178 = vector.broadcast %151 : vector<1x16xf32> to vector<32x16xf32>
    %179 = arith.addf %177, %178 : vector<32x16xf32>
    %cst_62 = arith.constant 5.000000e-01 : f32
    %180 = vector.broadcast %cst_62 : f32 to vector<32x16xf32>
    %181 = arith.mulf %180, %179 : vector<32x16xf32>
    %cst_63 = arith.constant 4.471500e-02 : f32
    %182 = vector.broadcast %cst_63 : f32 to vector<32x16xf32>
    %183 = arith.mulf %182, %179 : vector<32x16xf32>
    %184 = arith.mulf %183, %179 : vector<32x16xf32>
    %185 = arith.mulf %184, %179 : vector<32x16xf32>
    %186 = arith.addf %179, %185 : vector<32x16xf32>
    %cst_64 = arith.constant 0.797884583 : f32
    %187 = vector.broadcast %cst_64 : f32 to vector<32x16xf32>
    %188 = arith.mulf %187, %186 : vector<32x16xf32>
    %189 = math.tanh %188 : vector<32x16xf32>
    %cst_65 = arith.constant 1.000000e+00 : f32
    %190 = vector.broadcast %cst_65 : f32 to vector<32x16xf32>
    %191 = arith.addf %190, %189 : vector<32x16xf32>
    %192 = arith.mulf %181, %191 : vector<32x16xf32>
    %193 = vector.shape_cast %192 : vector<32x16xf32> to vector<4x8x16xf32>
    %c0_66 = arith.constant 0 : index
    %c0_67 = arith.constant 0 : index
    %c0_68 = arith.constant 0 : index
    %c0_69 = arith.constant 0 : index
    %194 = vector.load %arg11[%c0_66, %c0_67, %c0_68, %c0_69] : memref<2x4x16x16xf32, #tpu.memory_space<vmem>>, vector<1x4x16x16xf32>
    %195 = vector.shape_cast %194 : vector<1x4x16x16xf32> to vector<4x16x16xf32>
    %c0_70 = arith.constant 0 : index
    %c0_71 = arith.constant 0 : index
    %c0_72 = arith.constant 0 : index
    %196 = vector.load %arg12[%c0_70, %c0_71, %c0_72] : memref<2x1x16xf32, #tpu.memory_space<vmem>>, vector<1x1x16xf32>
    %197 = vector.shape_cast %196 : vector<1x1x16xf32> to vector<1x16xf32>
    %198 = vector.extract_strided_slice %193 {offsets = [0, 0, 0], sizes = [1, 8, 16], strides = [1, 1, 1]} : vector<4x8x16xf32> to vector<1x8x16xf32>
    %199 = vector.shape_cast %198 : vector<1x8x16xf32> to vector<8x16xf32>
    %200 = vector.extract_strided_slice %195 {offsets = [0, 0, 0], sizes = [1, 16, 16], strides = [1, 1, 1]} : vector<4x16x16xf32> to vector<1x16x16xf32>
    %201 = vector.shape_cast %200 : vector<1x16x16xf32> to vector<16x16xf32>
    %202 = arith.truncf %199 : vector<8x16xf32> to vector<8x16xbf16>
    %203 = arith.truncf %201 : vector<16x16xf32> to vector<16x16xbf16>
    %cst_73 = arith.constant dense<0.000000e+00> : vector<8x16xf32>
    %204 = tpu.matmul %202, %203, %cst_73 {dimension_numbers = #tpu.dot_dimension_numbers<[1], [0], [0], [1], [0, 0, 1, 1], [], []>} : vector<8x16xbf16>, vector<16x16xbf16>, vector<8x16xf32> -> vector<8x16xf32>
    %205 = vector.broadcast %197 : vector<1x16xf32> to vector<8x16xf32>
    %206 = arith.addf %205, %204 : vector<8x16xf32>
    %207 = vector.extract_strided_slice %193 {offsets = [1, 0, 0], sizes = [1, 8, 16], strides = [1, 1, 1]} : vector<4x8x16xf32> to vector<1x8x16xf32>
    %208 = vector.shape_cast %207 : vector<1x8x16xf32> to vector<8x16xf32>
    %209 = vector.extract_strided_slice %195 {offsets = [1, 0, 0], sizes = [1, 16, 16], strides = [1, 1, 1]} : vector<4x16x16xf32> to vector<1x16x16xf32>
    %210 = vector.shape_cast %209 : vector<1x16x16xf32> to vector<16x16xf32>
    %211 = arith.truncf %208 : vector<8x16xf32> to vector<8x16xbf16>
    %212 = arith.truncf %210 : vector<16x16xf32> to vector<16x16xbf16>
    %cst_74 = arith.constant dense<0.000000e+00> : vector<8x16xf32>
    %213 = tpu.matmul %211, %212, %cst_74 {dimension_numbers = #tpu.dot_dimension_numbers<[1], [0], [0], [1], [0, 0, 1, 1], [], []>} : vector<8x16xbf16>, vector<16x16xbf16>, vector<8x16xf32> -> vector<8x16xf32>
    %214 = arith.addf %206, %213 : vector<8x16xf32>
    %215 = vector.extract_strided_slice %193 {offsets = [2, 0, 0], sizes = [1, 8, 16], strides = [1, 1, 1]} : vector<4x8x16xf32> to vector<1x8x16xf32>
    %216 = vector.shape_cast %215 : vector<1x8x16xf32> to vector<8x16xf32>
    %217 = vector.extract_strided_slice %195 {offsets = [2, 0, 0], sizes = [1, 16, 16], strides = [1, 1, 1]} : vector<4x16x16xf32> to vector<1x16x16xf32>
    %218 = vector.shape_cast %217 : vector<1x16x16xf32> to vector<16x16xf32>
    %219 = arith.truncf %216 : vector<8x16xf32> to vector<8x16xbf16>
    %220 = arith.truncf %218 : vector<16x16xf32> to vector<16x16xbf16>
    %cst_75 = arith.constant dense<0.000000e+00> : vector<8x16xf32>
    %221 = tpu.matmul %219, %220, %cst_75 {dimension_numbers = #tpu.dot_dimension_numbers<[1], [0], [0], [1], [0, 0, 1, 1], [], []>} : vector<8x16xbf16>, vector<16x16xbf16>, vector<8x16xf32> -> vector<8x16xf32>
    %222 = arith.addf %214, %221 : vector<8x16xf32>
    %223 = vector.extract_strided_slice %193 {offsets = [3, 0, 0], sizes = [1, 8, 16], strides = [1, 1, 1]} : vector<4x8x16xf32> to vector<1x8x16xf32>
    %224 = vector.shape_cast %223 : vector<1x8x16xf32> to vector<8x16xf32>
    %225 = vector.extract_strided_slice %195 {offsets = [3, 0, 0], sizes = [1, 16, 16], strides = [1, 1, 1]} : vector<4x16x16xf32> to vector<1x16x16xf32>
    %226 = vector.shape_cast %225 : vector<1x16x16xf32> to vector<16x16xf32>
    %227 = arith.truncf %224 : vector<8x16xf32> to vector<8x16xbf16>
    %228 = arith.truncf %226 : vector<16x16xf32> to vector<16x16xbf16>
    %cst_76 = arith.constant dense<0.000000e+00> : vector<8x16xf32>
    %229 = tpu.matmul %227, %228, %cst_76 {dimension_numbers = #tpu.dot_dimension_numbers<[1], [0], [0], [1], [0, 0, 1, 1], [], []>} : vector<8x16xbf16>, vector<16x16xbf16>, vector<8x16xf32> -> vector<8x16xf32>
    %230 = arith.addf %222, %229 : vector<8x16xf32>
    %cst_77 = arith.constant dense<0.000000e+00> : vector<8xf32>
    %231 = vector.multi_reduction <add>, %230, %cst_77 [1] : vector<8x16xf32> to vector<8xf32>
    %232 = vector.shape_cast %231 : vector<8xf32> to vector<8x1xf32>
    %cst_78 = arith.constant 1.600000e+01 : f32
    %233 = vector.broadcast %cst_78 : f32 to vector<8x1xf32>
    %234 = arith.divf %232, %233 : vector<8x1xf32>
    %235 = vector.broadcast %234 : vector<8x1xf32> to vector<8x16xf32>
    %236 = arith.subf %230, %235 : vector<8x16xf32>
    %237 = arith.mulf %236, %236 : vector<8x16xf32>
    %cst_79 = arith.constant dense<0.000000e+00> : vector<8xf32>
    %238 = vector.multi_reduction <add>, %237, %cst_79 [1] : vector<8x16xf32> to vector<8xf32>
    %239 = vector.shape_cast %238 : vector<8xf32> to vector<8x1xf32>
    %cst_80 = arith.constant 1.600000e+01 : f32
    %240 = vector.broadcast %cst_80 : f32 to vector<8x1xf32>
    %241 = arith.divf %239, %240 : vector<8x1xf32>
    %242 = vector.broadcast %234 : vector<8x1xf32> to vector<8x16xf32>
    %243 = arith.subf %230, %242 : vector<8x16xf32>
    %cst_81 = arith.constant 9.99999974E-6 : f32
    %244 = vector.broadcast %cst_81 : f32 to vector<8x1xf32>
    %245 = arith.addf %241, %244 : vector<8x1xf32>
    %246 = math.rsqrt %245 : vector<8x1xf32>
    %247 = vector.broadcast %246 : vector<8x1xf32> to vector<8x16xf32>
    %248 = arith.mulf %243, %247 : vector<8x16xf32>
    %cst_82 = arith.constant 5.000000e-01 : f32
    %249 = vector.broadcast %cst_82 : f32 to vector<8x16xf32>
    %250 = arith.mulf %249, %248 : vector<8x16xf32>
    %cst_83 = arith.constant 4.471500e-02 : f32
    %251 = vector.broadcast %cst_83 : f32 to vector<8x16xf32>
    %252 = arith.mulf %251, %248 : vector<8x16xf32>
    %253 = arith.mulf %252, %248 : vector<8x16xf32>
    %254 = arith.mulf %253, %248 : vector<8x16xf32>
    %255 = arith.addf %248, %254 : vector<8x16xf32>
    %cst_84 = arith.constant 0.797884583 : f32
    %256 = vector.broadcast %cst_84 : f32 to vector<8x16xf32>
    %257 = arith.mulf %256, %255 : vector<8x16xf32>
    %258 = math.tanh %257 : vector<8x16xf32>
    %cst_85 = arith.constant 1.000000e+00 : f32
    %259 = vector.broadcast %cst_85 : f32 to vector<8x16xf32>
    %260 = arith.addf %259, %258 : vector<8x16xf32>
    %261 = arith.mulf %250, %260 : vector<8x16xf32>
    %c0_86 = arith.constant 0 : index
    %c0_87 = arith.constant 0 : index
    %c0_88 = arith.constant 0 : index
    %262 = vector.load %arg13[%c0_86, %c0_87, %c0_88] : memref<2x16x8xf32, #tpu.memory_space<vmem>>, vector<1x16x8xf32>
    %263 = vector.shape_cast %262 : vector<1x16x8xf32> to vector<16x8xf32>
    %264 = arith.truncf %261 : vector<8x16xf32> to vector<8x16xbf16>
    %265 = arith.truncf %263 : vector<16x8xf32> to vector<16x8xbf16>
    %cst_89 = arith.constant dense<0.000000e+00> : vector<8x8xf32>
    %266 = tpu.matmul %264, %265, %cst_89 {dimension_numbers = #tpu.dot_dimension_numbers<[1], [0], [0], [1], [0, 0, 1, 1], [], []>} : vector<8x16xbf16>, vector<16x8xbf16>, vector<8x8xf32> -> vector<8x8xf32>
    %c0_90 = arith.constant 0 : index
    %c0_91 = arith.constant 0 : index
    %c0_92 = arith.constant 0 : index
    %267 = vector.load %arg14[%c0_90, %c0_91, %c0_92] : memref<2x1x8xf32, #tpu.memory_space<vmem>>, vector<1x1x8xf32>
    %268 = vector.shape_cast %267 : vector<1x1x8xf32> to vector<1x8xf32>
    %269 = vector.broadcast %268 : vector<1x8xf32> to vector<8x8xf32>
    %270 = arith.addf %266, %269 : vector<8x8xf32>
    %cst_93 = arith.constant 5.000000e-01 : f32
    %271 = vector.broadcast %cst_93 : f32 to vector<8x8xf32>
    %272 = arith.mulf %271, %270 : vector<8x8xf32>
    %cst_94 = arith.constant 4.471500e-02 : f32
    %273 = vector.broadcast %cst_94 : f32 to vector<8x8xf32>
    %274 = arith.mulf %273, %270 : vector<8x8xf32>
    %275 = arith.mulf %274, %270 : vector<8x8xf32>
    %276 = arith.mulf %275, %270 : vector<8x8xf32>
    %277 = arith.addf %270, %276 : vector<8x8xf32>
    %cst_95 = arith.constant 0.797884583 : f32
    %278 = vector.broadcast %cst_95 : f32 to vector<8x8xf32>
    %279 = arith.mulf %278, %277 : vector<8x8xf32>
    %280 = math.tanh %279 : vector<8x8xf32>
    %cst_96 = arith.constant 1.000000e+00 : f32
    %281 = vector.broadcast %cst_96 : f32 to vector<8x8xf32>
    %282 = arith.addf %281, %280 : vector<8x8xf32>
    %283 = arith.mulf %272, %282 : vector<8x8xf32>
    %c1 = arith.constant 1 : index
    %c0_97 = arith.constant 0 : index
    %c0_98 = arith.constant 0 : index
    %c0_99 = arith.constant 0 : index
    %284 = vector.load %arg1[%c1, %c0_97, %c0_98, %c0_99] : memref<2x16x8x16xf32, #tpu.memory_space<vmem>>, vector<1x16x8x16xf32>
    %285 = vector.shape_cast %284 : vector<1x16x8x16xf32> to vector<16x8x16xf32>
    %cst_100 = arith.constant 0.000000e+00 : f32
    %286 = vector.broadcast %cst_100 : f32 to vector<1x8x16xf32>
    %cst_101 = arith.constant 0.000000e+00 : f32
    %287 = vector.broadcast %cst_101 : f32 to vector<1x8x16xf32>
    %288 = tpu.concatenate %286, %285, %287 in 0 : vector<1x8x16xf32>, vector<16x8x16xf32>, vector<1x8x16xf32> -> vector<18x8x16xf32>
    %c1_102 = arith.constant 1 : index
    %c0_103 = arith.constant 0 : index
    %c0_104 = arith.constant 0 : index
    %c0_105 = arith.constant 0 : index
    %289 = vector.load %arg3[%c1_102, %c0_103, %c0_104, %c0_105] : memref<2x3x16x64xf32, #tpu.memory_space<vmem>>, vector<1x3x16x64xf32>
    %290 = vector.shape_cast %289 : vector<1x3x16x64xf32> to vector<3x16x64xf32>
    %c1_106 = arith.constant 1 : index
    %c0_107 = arith.constant 0 : index
    %c0_108 = arith.constant 0 : index
    %291 = vector.load %arg4[%c1_106, %c0_107, %c0_108] : memref<2x1x64xf32, #tpu.memory_space<vmem>>, vector<1x1x64xf32>
    %292 = vector.shape_cast %291 : vector<1x1x64xf32> to vector<1x64xf32>
    %293 = vector.extract_strided_slice %288 {offsets = [0, 0, 0], sizes = [16, 8, 16], strides = [1, 1, 1]} : vector<18x8x16xf32> to vector<16x8x16xf32>
    %294 = vector.shape_cast %293 : vector<16x8x16xf32> to vector<128x16xf32>
    %295 = vector.extract_strided_slice %290 {offsets = [0, 0, 0], sizes = [1, 16, 64], strides = [1, 1, 1]} : vector<3x16x64xf32> to vector<1x16x64xf32>
    %296 = vector.shape_cast %295 : vector<1x16x64xf32> to vector<16x64xf32>
    %297 = arith.truncf %294 : vector<128x16xf32> to vector<128x16xbf16>
    %298 = arith.truncf %296 : vector<16x64xf32> to vector<16x64xbf16>
    %cst_109 = arith.constant dense<0.000000e+00> : vector<128x64xf32>
    %299 = tpu.matmul %297, %298, %cst_109 {dimension_numbers = #tpu.dot_dimension_numbers<[1], [0], [0], [1], [0, 0, 1, 1], [], []>} : vector<128x16xbf16>, vector<16x64xbf16>, vector<128x64xf32> -> vector<128x64xf32>
    %300 = vector.extract_strided_slice %288 {offsets = [1, 0, 0], sizes = [16, 8, 16], strides = [1, 1, 1]} : vector<18x8x16xf32> to vector<16x8x16xf32>
    %301 = vector.shape_cast %300 : vector<16x8x16xf32> to vector<128x16xf32>
    %302 = vector.extract_strided_slice %290 {offsets = [1, 0, 0], sizes = [1, 16, 64], strides = [1, 1, 1]} : vector<3x16x64xf32> to vector<1x16x64xf32>
    %303 = vector.shape_cast %302 : vector<1x16x64xf32> to vector<16x64xf32>
    %304 = arith.truncf %301 : vector<128x16xf32> to vector<128x16xbf16>
    %305 = arith.truncf %303 : vector<16x64xf32> to vector<16x64xbf16>
    %cst_110 = arith.constant dense<0.000000e+00> : vector<128x64xf32>
    %306 = tpu.matmul %304, %305, %cst_110 {dimension_numbers = #tpu.dot_dimension_numbers<[1], [0], [0], [1], [0, 0, 1, 1], [], []>} : vector<128x16xbf16>, vector<16x64xbf16>, vector<128x64xf32> -> vector<128x64xf32>
    %307 = arith.addf %299, %306 : vector<128x64xf32>
    %308 = vector.extract_strided_slice %288 {offsets = [2, 0, 0], sizes = [16, 8, 16], strides = [1, 1, 1]} : vector<18x8x16xf32> to vector<16x8x16xf32>
    %309 = vector.shape_cast %308 : vector<16x8x16xf32> to vector<128x16xf32>
    %310 = vector.extract_strided_slice %290 {offsets = [2, 0, 0], sizes = [1, 16, 64], strides = [1, 1, 1]} : vector<3x16x64xf32> to vector<1x16x64xf32>
    %311 = vector.shape_cast %310 : vector<1x16x64xf32> to vector<16x64xf32>
    %312 = arith.truncf %309 : vector<128x16xf32> to vector<128x16xbf16>
    %313 = arith.truncf %311 : vector<16x64xf32> to vector<16x64xbf16>
    %cst_111 = arith.constant dense<0.000000e+00> : vector<128x64xf32>
    %314 = tpu.matmul %312, %313, %cst_111 {dimension_numbers = #tpu.dot_dimension_numbers<[1], [0], [0], [1], [0, 0, 1, 1], [], []>} : vector<128x16xbf16>, vector<16x64xbf16>, vector<128x64xf32> -> vector<128x64xf32>
    %315 = arith.addf %307, %314 : vector<128x64xf32>
    %316 = vector.broadcast %292 : vector<1x64xf32> to vector<128x64xf32>
    %317 = arith.addf %315, %316 : vector<128x64xf32>
    %cst_112 = arith.constant 5.000000e-01 : f32
    %318 = vector.broadcast %cst_112 : f32 to vector<128x64xf32>
    %319 = arith.mulf %318, %317 : vector<128x64xf32>
    %cst_113 = arith.constant 4.471500e-02 : f32
    %320 = vector.broadcast %cst_113 : f32 to vector<128x64xf32>
    %321 = arith.mulf %320, %317 : vector<128x64xf32>
    %322 = arith.mulf %321, %317 : vector<128x64xf32>
    %323 = arith.mulf %322, %317 : vector<128x64xf32>
    %324 = arith.addf %317, %323 : vector<128x64xf32>
    %cst_114 = arith.constant 0.797884583 : f32
    %325 = vector.broadcast %cst_114 : f32 to vector<128x64xf32>
    %326 = arith.mulf %325, %324 : vector<128x64xf32>
    %327 = math.tanh %326 : vector<128x64xf32>
    %cst_115 = arith.constant 1.000000e+00 : f32
    %328 = vector.broadcast %cst_115 : f32 to vector<128x64xf32>
    %329 = arith.addf %328, %327 : vector<128x64xf32>
    %330 = arith.mulf %319, %329 : vector<128x64xf32>
    %331 = vector.shape_cast %330 : vector<128x64xf32> to vector<16x8x64xf32>
    %cst_116 = arith.constant 0.000000e+00 : f32
    %332 = vector.broadcast %cst_116 : f32 to vector<1x8x64xf32>
    %cst_117 = arith.constant 0.000000e+00 : f32
    %333 = vector.broadcast %cst_117 : f32 to vector<1x8x64xf32>
    %334 = tpu.concatenate %332, %331, %333 in 0 : vector<1x8x64xf32>, vector<16x8x64xf32>, vector<1x8x64xf32> -> vector<18x8x64xf32>
    %c1_118 = arith.constant 1 : index
    %c0_119 = arith.constant 0 : index
    %c0_120 = arith.constant 0 : index
    %c0_121 = arith.constant 0 : index
    %335 = vector.load %arg5[%c1_118, %c0_119, %c0_120, %c0_121] : memref<2x3x64x64xf32, #tpu.memory_space<vmem>>, vector<1x3x64x64xf32>
    %336 = vector.shape_cast %335 : vector<1x3x64x64xf32> to vector<3x64x64xf32>
    %c1_122 = arith.constant 1 : index
    %c0_123 = arith.constant 0 : index
    %c0_124 = arith.constant 0 : index
    %337 = vector.load %arg6[%c1_122, %c0_123, %c0_124] : memref<2x1x64xf32, #tpu.memory_space<vmem>>, vector<1x1x64xf32>
    %338 = vector.shape_cast %337 : vector<1x1x64xf32> to vector<1x64xf32>
    %339 = vector.extract_strided_slice %334 {offsets = [0, 0, 0], sizes = [16, 8, 64], strides = [1, 1, 1]} : vector<18x8x64xf32> to vector<16x8x64xf32>
    %340 = vector.shape_cast %339 : vector<16x8x64xf32> to vector<128x64xf32>
    %341 = vector.extract_strided_slice %336 {offsets = [0, 0, 0], sizes = [1, 64, 64], strides = [1, 1, 1]} : vector<3x64x64xf32> to vector<1x64x64xf32>
    %342 = vector.shape_cast %341 : vector<1x64x64xf32> to vector<64x64xf32>
    %343 = arith.truncf %340 : vector<128x64xf32> to vector<128x64xbf16>
    %344 = arith.truncf %342 : vector<64x64xf32> to vector<64x64xbf16>
    %cst_125 = arith.constant dense<0.000000e+00> : vector<128x64xf32>
    %345 = tpu.matmul %343, %344, %cst_125 {dimension_numbers = #tpu.dot_dimension_numbers<[1], [0], [0], [1], [0, 0, 1, 1], [], []>} : vector<128x64xbf16>, vector<64x64xbf16>, vector<128x64xf32> -> vector<128x64xf32>
    %346 = vector.extract_strided_slice %334 {offsets = [1, 0, 0], sizes = [16, 8, 64], strides = [1, 1, 1]} : vector<18x8x64xf32> to vector<16x8x64xf32>
    %347 = vector.shape_cast %346 : vector<16x8x64xf32> to vector<128x64xf32>
    %348 = vector.extract_strided_slice %336 {offsets = [1, 0, 0], sizes = [1, 64, 64], strides = [1, 1, 1]} : vector<3x64x64xf32> to vector<1x64x64xf32>
    %349 = vector.shape_cast %348 : vector<1x64x64xf32> to vector<64x64xf32>
    %350 = arith.truncf %347 : vector<128x64xf32> to vector<128x64xbf16>
    %351 = arith.truncf %349 : vector<64x64xf32> to vector<64x64xbf16>
    %cst_126 = arith.constant dense<0.000000e+00> : vector<128x64xf32>
    %352 = tpu.matmul %350, %351, %cst_126 {dimension_numbers = #tpu.dot_dimension_numbers<[1], [0], [0], [1], [0, 0, 1, 1], [], []>} : vector<128x64xbf16>, vector<64x64xbf16>, vector<128x64xf32> -> vector<128x64xf32>
    %353 = arith.addf %345, %352 : vector<128x64xf32>
    %354 = vector.extract_strided_slice %334 {offsets = [2, 0, 0], sizes = [16, 8, 64], strides = [1, 1, 1]} : vector<18x8x64xf32> to vector<16x8x64xf32>
    %355 = vector.shape_cast %354 : vector<16x8x64xf32> to vector<128x64xf32>
    %356 = vector.extract_strided_slice %336 {offsets = [2, 0, 0], sizes = [1, 64, 64], strides = [1, 1, 1]} : vector<3x64x64xf32> to vector<1x64x64xf32>
    %357 = vector.shape_cast %356 : vector<1x64x64xf32> to vector<64x64xf32>
    %358 = arith.truncf %355 : vector<128x64xf32> to vector<128x64xbf16>
    %359 = arith.truncf %357 : vector<64x64xf32> to vector<64x64xbf16>
    %cst_127 = arith.constant dense<0.000000e+00> : vector<128x64xf32>
    %360 = tpu.matmul %358, %359, %cst_127 {dimension_numbers = #tpu.dot_dimension_numbers<[1], [0], [0], [1], [0, 0, 1, 1], [], []>} : vector<128x64xbf16>, vector<64x64xbf16>, vector<128x64xf32> -> vector<128x64xf32>
    %361 = arith.addf %353, %360 : vector<128x64xf32>
    %362 = vector.broadcast %338 : vector<1x64xf32> to vector<128x64xf32>
    %363 = arith.addf %361, %362 : vector<128x64xf32>
    %cst_128 = arith.constant 5.000000e-01 : f32
    %364 = vector.broadcast %cst_128 : f32 to vector<128x64xf32>
    %365 = arith.mulf %364, %363 : vector<128x64xf32>
    %cst_129 = arith.constant 4.471500e-02 : f32
    %366 = vector.broadcast %cst_129 : f32 to vector<128x64xf32>
    %367 = arith.mulf %366, %363 : vector<128x64xf32>
    %368 = arith.mulf %367, %363 : vector<128x64xf32>
    %369 = arith.mulf %368, %363 : vector<128x64xf32>
    %370 = arith.addf %363, %369 : vector<128x64xf32>
    %cst_130 = arith.constant 0.797884583 : f32
    %371 = vector.broadcast %cst_130 : f32 to vector<128x64xf32>
    %372 = arith.mulf %371, %370 : vector<128x64xf32>
    %373 = math.tanh %372 : vector<128x64xf32>
    %cst_131 = arith.constant 1.000000e+00 : f32
    %374 = vector.broadcast %cst_131 : f32 to vector<128x64xf32>
    %375 = arith.addf %374, %373 : vector<128x64xf32>
    %376 = arith.mulf %365, %375 : vector<128x64xf32>
    %377 = vector.shape_cast %376 : vector<128x64xf32> to vector<16x8x64xf32>
    %cst_132 = arith.constant 0.000000e+00 : f32
    %378 = vector.broadcast %cst_132 : f32 to vector<1x8x64xf32>
    %cst_133 = arith.constant 0.000000e+00 : f32
    %379 = vector.broadcast %cst_133 : f32 to vector<1x8x64xf32>
    %380 = tpu.concatenate %378, %377, %379 in 0 : vector<1x8x64xf32>, vector<16x8x64xf32>, vector<1x8x64xf32> -> vector<18x8x64xf32>
    %381 = vector.shape_cast %380 : vector<18x8x64xf32> to vector<9x2x8x64xf32>
    %c1_134 = arith.constant 1 : index
    %c0_135 = arith.constant 0 : index
    %c0_136 = arith.constant 0 : index
    %c0_137 = arith.constant 0 : index
    %382 = vector.load %arg7[%c1_134, %c0_135, %c0_136, %c0_137] : memref<2x3x64x32xf32, #tpu.memory_space<vmem>>, vector<1x3x64x32xf32>
    %383 = vector.shape_cast %382 : vector<1x3x64x32xf32> to vector<3x64x32xf32>
    %c1_138 = arith.constant 1 : index
    %c0_139 = arith.constant 0 : index
    %c0_140 = arith.constant 0 : index
    %384 = vector.load %arg8[%c1_138, %c0_139, %c0_140] : memref<2x1x32xf32, #tpu.memory_space<vmem>>, vector<1x1x32xf32>
    %385 = vector.shape_cast %384 : vector<1x1x32xf32> to vector<1x32xf32>
    %386 = vector.extract_strided_slice %381 {offsets = [0, 0, 0, 0], sizes = [8, 1, 8, 64], strides = [1, 1, 1, 1]} : vector<9x2x8x64xf32> to vector<8x1x8x64xf32>
    %387 = vector.shape_cast %386 : vector<8x1x8x64xf32> to vector<8x8x64xf32>
    %388 = vector.shape_cast %387 : vector<8x8x64xf32> to vector<64x64xf32>
    %389 = vector.extract_strided_slice %383 {offsets = [0, 0, 0], sizes = [1, 64, 32], strides = [1, 1, 1]} : vector<3x64x32xf32> to vector<1x64x32xf32>
    %390 = vector.shape_cast %389 : vector<1x64x32xf32> to vector<64x32xf32>
    %391 = arith.truncf %388 : vector<64x64xf32> to vector<64x64xbf16>
    %392 = arith.truncf %390 : vector<64x32xf32> to vector<64x32xbf16>
    %cst_141 = arith.constant dense<0.000000e+00> : vector<64x32xf32>
    %393 = tpu.matmul %391, %392, %cst_141 {dimension_numbers = #tpu.dot_dimension_numbers<[1], [0], [0], [1], [0, 0, 1, 1], [], []>} : vector<64x64xbf16>, vector<64x32xbf16>, vector<64x32xf32> -> vector<64x32xf32>
    %394 = vector.extract_strided_slice %381 {offsets = [0, 1, 0, 0], sizes = [8, 1, 8, 64], strides = [1, 1, 1, 1]} : vector<9x2x8x64xf32> to vector<8x1x8x64xf32>
    %395 = vector.shape_cast %394 : vector<8x1x8x64xf32> to vector<8x8x64xf32>
    %396 = vector.shape_cast %395 : vector<8x8x64xf32> to vector<64x64xf32>
    %397 = vector.extract_strided_slice %383 {offsets = [1, 0, 0], sizes = [1, 64, 32], strides = [1, 1, 1]} : vector<3x64x32xf32> to vector<1x64x32xf32>
    %398 = vector.shape_cast %397 : vector<1x64x32xf32> to vector<64x32xf32>
    %399 = arith.truncf %396 : vector<64x64xf32> to vector<64x64xbf16>
    %400 = arith.truncf %398 : vector<64x32xf32> to vector<64x32xbf16>
    %cst_142 = arith.constant dense<0.000000e+00> : vector<64x32xf32>
    %401 = tpu.matmul %399, %400, %cst_142 {dimension_numbers = #tpu.dot_dimension_numbers<[1], [0], [0], [1], [0, 0, 1, 1], [], []>} : vector<64x64xbf16>, vector<64x32xbf16>, vector<64x32xf32> -> vector<64x32xf32>
    %402 = arith.addf %393, %401 : vector<64x32xf32>
    %403 = vector.extract_strided_slice %381 {offsets = [1, 0, 0, 0], sizes = [8, 1, 8, 64], strides = [1, 1, 1, 1]} : vector<9x2x8x64xf32> to vector<8x1x8x64xf32>
    %404 = vector.shape_cast %403 : vector<8x1x8x64xf32> to vector<8x8x64xf32>
    %405 = vector.shape_cast %404 : vector<8x8x64xf32> to vector<64x64xf32>
    %406 = vector.extract_strided_slice %383 {offsets = [2, 0, 0], sizes = [1, 64, 32], strides = [1, 1, 1]} : vector<3x64x32xf32> to vector<1x64x32xf32>
    %407 = vector.shape_cast %406 : vector<1x64x32xf32> to vector<64x32xf32>
    %408 = arith.truncf %405 : vector<64x64xf32> to vector<64x64xbf16>
    %409 = arith.truncf %407 : vector<64x32xf32> to vector<64x32xbf16>
    %cst_143 = arith.constant dense<0.000000e+00> : vector<64x32xf32>
    %410 = tpu.matmul %408, %409, %cst_143 {dimension_numbers = #tpu.dot_dimension_numbers<[1], [0], [0], [1], [0, 0, 1, 1], [], []>} : vector<64x64xbf16>, vector<64x32xbf16>, vector<64x32xf32> -> vector<64x32xf32>
    %411 = arith.addf %402, %410 : vector<64x32xf32>
    %412 = vector.broadcast %385 : vector<1x32xf32> to vector<64x32xf32>
    %413 = arith.addf %411, %412 : vector<64x32xf32>
    %cst_144 = arith.constant 5.000000e-01 : f32
    %414 = vector.broadcast %cst_144 : f32 to vector<64x32xf32>
    %415 = arith.mulf %414, %413 : vector<64x32xf32>
    %cst_145 = arith.constant 4.471500e-02 : f32
    %416 = vector.broadcast %cst_145 : f32 to vector<64x32xf32>
    %417 = arith.mulf %416, %413 : vector<64x32xf32>
    %418 = arith.mulf %417, %413 : vector<64x32xf32>
    %419 = arith.mulf %418, %413 : vector<64x32xf32>
    %420 = arith.addf %413, %419 : vector<64x32xf32>
    %cst_146 = arith.constant 0.797884583 : f32
    %421 = vector.broadcast %cst_146 : f32 to vector<64x32xf32>
    %422 = arith.mulf %421, %420 : vector<64x32xf32>
    %423 = math.tanh %422 : vector<64x32xf32>
    %cst_147 = arith.constant 1.000000e+00 : f32
    %424 = vector.broadcast %cst_147 : f32 to vector<64x32xf32>
    %425 = arith.addf %424, %423 : vector<64x32xf32>
    %426 = arith.mulf %415, %425 : vector<64x32xf32>
    %427 = vector.shape_cast %426 : vector<64x32xf32> to vector<8x8x32xf32>
    %cst_148 = arith.constant 0.000000e+00 : f32
    %428 = vector.broadcast %cst_148 : f32 to vector<1x8x32xf32>
    %cst_149 = arith.constant 0.000000e+00 : f32
    %429 = vector.broadcast %cst_149 : f32 to vector<1x8x32xf32>
    %430 = tpu.concatenate %428, %427, %429 in 0 : vector<1x8x32xf32>, vector<8x8x32xf32>, vector<1x8x32xf32> -> vector<10x8x32xf32>
    %431 = vector.shape_cast %430 : vector<10x8x32xf32> to vector<5x2x8x32xf32>
    %c1_150 = arith.constant 1 : index
    %c0_151 = arith.constant 0 : index
    %c0_152 = arith.constant 0 : index
    %c0_153 = arith.constant 0 : index
    %432 = vector.load %arg9[%c1_150, %c0_151, %c0_152, %c0_153] : memref<2x3x32x16xf32, #tpu.memory_space<vmem>>, vector<1x3x32x16xf32>
    %433 = vector.shape_cast %432 : vector<1x3x32x16xf32> to vector<3x32x16xf32>
    %c1_154 = arith.constant 1 : index
    %c0_155 = arith.constant 0 : index
    %c0_156 = arith.constant 0 : index
    %434 = vector.load %arg10[%c1_154, %c0_155, %c0_156] : memref<2x1x16xf32, #tpu.memory_space<vmem>>, vector<1x1x16xf32>
    %435 = vector.shape_cast %434 : vector<1x1x16xf32> to vector<1x16xf32>
    %436 = vector.extract_strided_slice %431 {offsets = [0, 0, 0, 0], sizes = [4, 1, 8, 32], strides = [1, 1, 1, 1]} : vector<5x2x8x32xf32> to vector<4x1x8x32xf32>
    %437 = vector.shape_cast %436 : vector<4x1x8x32xf32> to vector<4x8x32xf32>
    %438 = vector.shape_cast %437 : vector<4x8x32xf32> to vector<32x32xf32>
    %439 = vector.extract_strided_slice %433 {offsets = [0, 0, 0], sizes = [1, 32, 16], strides = [1, 1, 1]} : vector<3x32x16xf32> to vector<1x32x16xf32>
    %440 = vector.shape_cast %439 : vector<1x32x16xf32> to vector<32x16xf32>
    %441 = arith.truncf %438 : vector<32x32xf32> to vector<32x32xbf16>
    %442 = arith.truncf %440 : vector<32x16xf32> to vector<32x16xbf16>
    %cst_157 = arith.constant dense<0.000000e+00> : vector<32x16xf32>
    %443 = tpu.matmul %441, %442, %cst_157 {dimension_numbers = #tpu.dot_dimension_numbers<[1], [0], [0], [1], [0, 0, 1, 1], [], []>} : vector<32x32xbf16>, vector<32x16xbf16>, vector<32x16xf32> -> vector<32x16xf32>
    %444 = vector.extract_strided_slice %431 {offsets = [0, 1, 0, 0], sizes = [4, 1, 8, 32], strides = [1, 1, 1, 1]} : vector<5x2x8x32xf32> to vector<4x1x8x32xf32>
    %445 = vector.shape_cast %444 : vector<4x1x8x32xf32> to vector<4x8x32xf32>
    %446 = vector.shape_cast %445 : vector<4x8x32xf32> to vector<32x32xf32>
    %447 = vector.extract_strided_slice %433 {offsets = [1, 0, 0], sizes = [1, 32, 16], strides = [1, 1, 1]} : vector<3x32x16xf32> to vector<1x32x16xf32>
    %448 = vector.shape_cast %447 : vector<1x32x16xf32> to vector<32x16xf32>
    %449 = arith.truncf %446 : vector<32x32xf32> to vector<32x32xbf16>
    %450 = arith.truncf %448 : vector<32x16xf32> to vector<32x16xbf16>
    %cst_158 = arith.constant dense<0.000000e+00> : vector<32x16xf32>
    %451 = tpu.matmul %449, %450, %cst_158 {dimension_numbers = #tpu.dot_dimension_numbers<[1], [0], [0], [1], [0, 0, 1, 1], [], []>} : vector<32x32xbf16>, vector<32x16xbf16>, vector<32x16xf32> -> vector<32x16xf32>
    %452 = arith.addf %443, %451 : vector<32x16xf32>
    %453 = vector.extract_strided_slice %431 {offsets = [1, 0, 0, 0], sizes = [4, 1, 8, 32], strides = [1, 1, 1, 1]} : vector<5x2x8x32xf32> to vector<4x1x8x32xf32>
    %454 = vector.shape_cast %453 : vector<4x1x8x32xf32> to vector<4x8x32xf32>
    %455 = vector.shape_cast %454 : vector<4x8x32xf32> to vector<32x32xf32>
    %456 = vector.extract_strided_slice %433 {offsets = [2, 0, 0], sizes = [1, 32, 16], strides = [1, 1, 1]} : vector<3x32x16xf32> to vector<1x32x16xf32>
    %457 = vector.shape_cast %456 : vector<1x32x16xf32> to vector<32x16xf32>
    %458 = arith.truncf %455 : vector<32x32xf32> to vector<32x32xbf16>
    %459 = arith.truncf %457 : vector<32x16xf32> to vector<32x16xbf16>
    %cst_159 = arith.constant dense<0.000000e+00> : vector<32x16xf32>
    %460 = tpu.matmul %458, %459, %cst_159 {dimension_numbers = #tpu.dot_dimension_numbers<[1], [0], [0], [1], [0, 0, 1, 1], [], []>} : vector<32x32xbf16>, vector<32x16xbf16>, vector<32x16xf32> -> vector<32x16xf32>
    %461 = arith.addf %452, %460 : vector<32x16xf32>
    %462 = vector.broadcast %435 : vector<1x16xf32> to vector<32x16xf32>
    %463 = arith.addf %461, %462 : vector<32x16xf32>
    %cst_160 = arith.constant 5.000000e-01 : f32
    %464 = vector.broadcast %cst_160 : f32 to vector<32x16xf32>
    %465 = arith.mulf %464, %463 : vector<32x16xf32>
    %cst_161 = arith.constant 4.471500e-02 : f32
    %466 = vector.broadcast %cst_161 : f32 to vector<32x16xf32>
    %467 = arith.mulf %466, %463 : vector<32x16xf32>
    %468 = arith.mulf %467, %463 : vector<32x16xf32>
    %469 = arith.mulf %468, %463 : vector<32x16xf32>
    %470 = arith.addf %463, %469 : vector<32x16xf32>
    %cst_162 = arith.constant 0.797884583 : f32
    %471 = vector.broadcast %cst_162 : f32 to vector<32x16xf32>
    %472 = arith.mulf %471, %470 : vector<32x16xf32>
    %473 = math.tanh %472 : vector<32x16xf32>
    %cst_163 = arith.constant 1.000000e+00 : f32
    %474 = vector.broadcast %cst_163 : f32 to vector<32x16xf32>
    %475 = arith.addf %474, %473 : vector<32x16xf32>
    %476 = arith.mulf %465, %475 : vector<32x16xf32>
    %477 = vector.shape_cast %476 : vector<32x16xf32> to vector<4x8x16xf32>
    %c1_164 = arith.constant 1 : index
    %c0_165 = arith.constant 0 : index
    %c0_166 = arith.constant 0 : index
    %c0_167 = arith.constant 0 : index
    %478 = vector.load %arg11[%c1_164, %c0_165, %c0_166, %c0_167] : memref<2x4x16x16xf32, #tpu.memory_space<vmem>>, vector<1x4x16x16xf32>
    %479 = vector.shape_cast %478 : vector<1x4x16x16xf32> to vector<4x16x16xf32>
    %c1_168 = arith.constant 1 : index
    %c0_169 = arith.constant 0 : index
    %c0_170 = arith.constant 0 : index
    %480 = vector.load %arg12[%c1_168, %c0_169, %c0_170] : memref<2x1x16xf32, #tpu.memory_space<vmem>>, vector<1x1x16xf32>
    %481 = vector.shape_cast %480 : vector<1x1x16xf32> to vector<1x16xf32>
    %482 = vector.extract_strided_slice %477 {offsets = [0, 0, 0], sizes = [1, 8, 16], strides = [1, 1, 1]} : vector<4x8x16xf32> to vector<1x8x16xf32>
    %483 = vector.shape_cast %482 : vector<1x8x16xf32> to vector<8x16xf32>
    %484 = vector.extract_strided_slice %479 {offsets = [0, 0, 0], sizes = [1, 16, 16], strides = [1, 1, 1]} : vector<4x16x16xf32> to vector<1x16x16xf32>
    %485 = vector.shape_cast %484 : vector<1x16x16xf32> to vector<16x16xf32>
    %486 = arith.truncf %483 : vector<8x16xf32> to vector<8x16xbf16>
    %487 = arith.truncf %485 : vector<16x16xf32> to vector<16x16xbf16>
    %cst_171 = arith.constant dense<0.000000e+00> : vector<8x16xf32>
    %488 = tpu.matmul %486, %487, %cst_171 {dimension_numbers = #tpu.dot_dimension_numbers<[1], [0], [0], [1], [0, 0, 1, 1], [], []>} : vector<8x16xbf16>, vector<16x16xbf16>, vector<8x16xf32> -> vector<8x16xf32>
    %489 = vector.broadcast %481 : vector<1x16xf32> to vector<8x16xf32>
    %490 = arith.addf %489, %488 : vector<8x16xf32>
    %491 = vector.extract_strided_slice %477 {offsets = [1, 0, 0], sizes = [1, 8, 16], strides = [1, 1, 1]} : vector<4x8x16xf32> to vector<1x8x16xf32>
    %492 = vector.shape_cast %491 : vector<1x8x16xf32> to vector<8x16xf32>
    %493 = vector.extract_strided_slice %479 {offsets = [1, 0, 0], sizes = [1, 16, 16], strides = [1, 1, 1]} : vector<4x16x16xf32> to vector<1x16x16xf32>
    %494 = vector.shape_cast %493 : vector<1x16x16xf32> to vector<16x16xf32>
    %495 = arith.truncf %492 : vector<8x16xf32> to vector<8x16xbf16>
    %496 = arith.truncf %494 : vector<16x16xf32> to vector<16x16xbf16>
    %cst_172 = arith.constant dense<0.000000e+00> : vector<8x16xf32>
    %497 = tpu.matmul %495, %496, %cst_172 {dimension_numbers = #tpu.dot_dimension_numbers<[1], [0], [0], [1], [0, 0, 1, 1], [], []>} : vector<8x16xbf16>, vector<16x16xbf16>, vector<8x16xf32> -> vector<8x16xf32>
    %498 = arith.addf %490, %497 : vector<8x16xf32>
    %499 = vector.extract_strided_slice %477 {offsets = [2, 0, 0], sizes = [1, 8, 16], strides = [1, 1, 1]} : vector<4x8x16xf32> to vector<1x8x16xf32>
    %500 = vector.shape_cast %499 : vector<1x8x16xf32> to vector<8x16xf32>
    %501 = vector.extract_strided_slice %479 {offsets = [2, 0, 0], sizes = [1, 16, 16], strides = [1, 1, 1]} : vector<4x16x16xf32> to vector<1x16x16xf32>
    %502 = vector.shape_cast %501 : vector<1x16x16xf32> to vector<16x16xf32>
    %503 = arith.truncf %500 : vector<8x16xf32> to vector<8x16xbf16>
    %504 = arith.truncf %502 : vector<16x16xf32> to vector<16x16xbf16>
    %cst_173 = arith.constant dense<0.000000e+00> : vector<8x16xf32>
    %505 = tpu.matmul %503, %504, %cst_173 {dimension_numbers = #tpu.dot_dimension_numbers<[1], [0], [0], [1], [0, 0, 1, 1], [], []>} : vector<8x16xbf16>, vector<16x16xbf16>, vector<8x16xf32> -> vector<8x16xf32>
    %506 = arith.addf %498, %505 : vector<8x16xf32>
    %507 = vector.extract_strided_slice %477 {offsets = [3, 0, 0], sizes = [1, 8, 16], strides = [1, 1, 1]} : vector<4x8x16xf32> to vector<1x8x16xf32>
    %508 = vector.shape_cast %507 : vector<1x8x16xf32> to vector<8x16xf32>
    %509 = vector.extract_strided_slice %479 {offsets = [3, 0, 0], sizes = [1, 16, 16], strides = [1, 1, 1]} : vector<4x16x16xf32> to vector<1x16x16xf32>
    %510 = vector.shape_cast %509 : vector<1x16x16xf32> to vector<16x16xf32>
    %511 = arith.truncf %508 : vector<8x16xf32> to vector<8x16xbf16>
    %512 = arith.truncf %510 : vector<16x16xf32> to vector<16x16xbf16>
    %cst_174 = arith.constant dense<0.000000e+00> : vector<8x16xf32>
    %513 = tpu.matmul %511, %512, %cst_174 {dimension_numbers = #tpu.dot_dimension_numbers<[1], [0], [0], [1], [0, 0, 1, 1], [], []>} : vector<8x16xbf16>, vector<16x16xbf16>, vector<8x16xf32> -> vector<8x16xf32>
    %514 = arith.addf %506, %513 : vector<8x16xf32>
    %cst_175 = arith.constant dense<0.000000e+00> : vector<8xf32>
    %515 = vector.multi_reduction <add>, %514, %cst_175 [1] : vector<8x16xf32> to vector<8xf32>
    %516 = vector.shape_cast %515 : vector<8xf32> to vector<8x1xf32>
    %cst_176 = arith.constant 1.600000e+01 : f32
    %517 = vector.broadcast %cst_176 : f32 to vector<8x1xf32>
    %518 = arith.divf %516, %517 : vector<8x1xf32>
    %519 = vector.broadcast %518 : vector<8x1xf32> to vector<8x16xf32>
    %520 = arith.subf %514, %519 : vector<8x16xf32>
    %521 = arith.mulf %520, %520 : vector<8x16xf32>
    %cst_177 = arith.constant dense<0.000000e+00> : vector<8xf32>
    %522 = vector.multi_reduction <add>, %521, %cst_177 [1] : vector<8x16xf32> to vector<8xf32>
    %523 = vector.shape_cast %522 : vector<8xf32> to vector<8x1xf32>
    %cst_178 = arith.constant 1.600000e+01 : f32
    %524 = vector.broadcast %cst_178 : f32 to vector<8x1xf32>
    %525 = arith.divf %523, %524 : vector<8x1xf32>
    %526 = vector.broadcast %518 : vector<8x1xf32> to vector<8x16xf32>
    %527 = arith.subf %514, %526 : vector<8x16xf32>
    %cst_179 = arith.constant 9.99999974E-6 : f32
    %528 = vector.broadcast %cst_179 : f32 to vector<8x1xf32>
    %529 = arith.addf %525, %528 : vector<8x1xf32>
    %530 = math.rsqrt %529 : vector<8x1xf32>
    %531 = vector.broadcast %530 : vector<8x1xf32> to vector<8x16xf32>
    %532 = arith.mulf %527, %531 : vector<8x16xf32>
    %cst_180 = arith.constant 5.000000e-01 : f32
    %533 = vector.broadcast %cst_180 : f32 to vector<8x16xf32>
    %534 = arith.mulf %533, %532 : vector<8x16xf32>
    %cst_181 = arith.constant 4.471500e-02 : f32
    %535 = vector.broadcast %cst_181 : f32 to vector<8x16xf32>
    %536 = arith.mulf %535, %532 : vector<8x16xf32>
    %537 = arith.mulf %536, %532 : vector<8x16xf32>
    %538 = arith.mulf %537, %532 : vector<8x16xf32>
    %539 = arith.addf %532, %538 : vector<8x16xf32>
    %cst_182 = arith.constant 0.797884583 : f32
    %540 = vector.broadcast %cst_182 : f32 to vector<8x16xf32>
    %541 = arith.mulf %540, %539 : vector<8x16xf32>
    %542 = math.tanh %541 : vector<8x16xf32>
    %cst_183 = arith.constant 1.000000e+00 : f32
    %543 = vector.broadcast %cst_183 : f32 to vector<8x16xf32>
    %544 = arith.addf %543, %542 : vector<8x16xf32>
    %545 = arith.mulf %534, %544 : vector<8x16xf32>
    %c1_184 = arith.constant 1 : index
    %c0_185 = arith.constant 0 : index
    %c0_186 = arith.constant 0 : index
    %546 = vector.load %arg13[%c1_184, %c0_185, %c0_186] : memref<2x16x8xf32, #tpu.memory_space<vmem>>, vector<1x16x8xf32>
    %547 = vector.shape_cast %546 : vector<1x16x8xf32> to vector<16x8xf32>
    %548 = arith.truncf %545 : vector<8x16xf32> to vector<8x16xbf16>
    %549 = arith.truncf %547 : vector<16x8xf32> to vector<16x8xbf16>
    %cst_187 = arith.constant dense<0.000000e+00> : vector<8x8xf32>
    %550 = tpu.matmul %548, %549, %cst_187 {dimension_numbers = #tpu.dot_dimension_numbers<[1], [0], [0], [1], [0, 0, 1, 1], [], []>} : vector<8x16xbf16>, vector<16x8xbf16>, vector<8x8xf32> -> vector<8x8xf32>
    %c1_188 = arith.constant 1 : index
    %c0_189 = arith.constant 0 : index
    %c0_190 = arith.constant 0 : index
    %551 = vector.load %arg14[%c1_188, %c0_189, %c0_190] : memref<2x1x8xf32, #tpu.memory_space<vmem>>, vector<1x1x8xf32>
    %552 = vector.shape_cast %551 : vector<1x1x8xf32> to vector<1x8xf32>
    %553 = vector.broadcast %552 : vector<1x8xf32> to vector<8x8xf32>
    %554 = arith.addf %550, %553 : vector<8x8xf32>
    %cst_191 = arith.constant 5.000000e-01 : f32
    %555 = vector.broadcast %cst_191 : f32 to vector<8x8xf32>
    %556 = arith.mulf %555, %554 : vector<8x8xf32>
    %cst_192 = arith.constant 4.471500e-02 : f32
    %557 = vector.broadcast %cst_192 : f32 to vector<8x8xf32>
    %558 = arith.mulf %557, %554 : vector<8x8xf32>
    %559 = arith.mulf %558, %554 : vector<8x8xf32>
    %560 = arith.mulf %559, %554 : vector<8x8xf32>
    %561 = arith.addf %554, %560 : vector<8x8xf32>
    %cst_193 = arith.constant 0.797884583 : f32
    %562 = vector.broadcast %cst_193 : f32 to vector<8x8xf32>
    %563 = arith.mulf %562, %561 : vector<8x8xf32>
    %564 = math.tanh %563 : vector<8x8xf32>
    %cst_194 = arith.constant 1.000000e+00 : f32
    %565 = vector.broadcast %cst_194 : f32 to vector<8x8xf32>
    %566 = arith.addf %565, %564 : vector<8x8xf32>
    %567 = arith.mulf %556, %566 : vector<8x8xf32>
    %c0_195 = arith.constant 0 : index
    %c0_196 = arith.constant 0 : index
    %568 = vector.load %arg2[%c0_195, %c0_196] : memref<8x8xf32, #tpu.memory_space<vmem>>, vector<8x8xf32>
    %c0_197 = arith.constant 0 : index
    %c0_198 = arith.constant 0 : index
    %569 = vector.load %arg15[%c0_197, %c0_198] : memref<8x16xf32, #tpu.memory_space<vmem>>, vector<8x16xf32>
    %570 = arith.truncf %568 : vector<8x8xf32> to vector<8x8xbf16>
    %571 = arith.truncf %569 : vector<8x16xf32> to vector<8x16xbf16>
    %cst_199 = arith.constant dense<0.000000e+00> : vector<8x16xf32>
    %572 = tpu.matmul %570, %571, %cst_199 {dimension_numbers = #tpu.dot_dimension_numbers<[1], [0], [0], [1], [0, 0, 1, 1], [], []>} : vector<8x8xbf16>, vector<8x16xbf16>, vector<8x16xf32> -> vector<8x16xf32>
    %c0_200 = arith.constant 0 : index
    %c0_201 = arith.constant 0 : index
    %573 = vector.load %arg16[%c0_200, %c0_201] : memref<1x16xf32, #tpu.memory_space<vmem>>, vector<1x16xf32>
    %574 = vector.broadcast %573 : vector<1x16xf32> to vector<8x16xf32>
    %575 = arith.addf %572, %574 : vector<8x16xf32>
    %cst_202 = arith.constant dense<0.000000e+00> : vector<8xf32>
    %576 = vector.multi_reduction <add>, %575, %cst_202 [1] : vector<8x16xf32> to vector<8xf32>
    %577 = vector.shape_cast %576 : vector<8xf32> to vector<8x1xf32>
    %cst_203 = arith.constant 1.600000e+01 : f32
    %578 = vector.broadcast %cst_203 : f32 to vector<8x1xf32>
    %579 = arith.divf %577, %578 : vector<8x1xf32>
    %580 = vector.broadcast %579 : vector<8x1xf32> to vector<8x16xf32>
    %581 = arith.subf %575, %580 : vector<8x16xf32>
    %582 = arith.mulf %581, %581 : vector<8x16xf32>
    %cst_204 = arith.constant dense<0.000000e+00> : vector<8xf32>
    %583 = vector.multi_reduction <add>, %582, %cst_204 [1] : vector<8x16xf32> to vector<8xf32>
    %584 = vector.shape_cast %583 : vector<8xf32> to vector<8x1xf32>
    %cst_205 = arith.constant 1.600000e+01 : f32
    %585 = vector.broadcast %cst_205 : f32 to vector<8x1xf32>
    %586 = arith.divf %584, %585 : vector<8x1xf32>
    %587 = vector.broadcast %579 : vector<8x1xf32> to vector<8x16xf32>
    %588 = arith.subf %575, %587 : vector<8x16xf32>
    %cst_206 = arith.constant 9.99999974E-6 : f32
    %589 = vector.broadcast %cst_206 : f32 to vector<8x1xf32>
    %590 = arith.addf %586, %589 : vector<8x1xf32>
    %591 = math.rsqrt %590 : vector<8x1xf32>
    %592 = vector.broadcast %591 : vector<8x1xf32> to vector<8x16xf32>
    %593 = arith.mulf %588, %592 : vector<8x16xf32>
    %cst_207 = arith.constant 5.000000e-01 : f32
    %594 = vector.broadcast %cst_207 : f32 to vector<8x16xf32>
    %595 = arith.mulf %594, %593 : vector<8x16xf32>
    %cst_208 = arith.constant 4.471500e-02 : f32
    %596 = vector.broadcast %cst_208 : f32 to vector<8x16xf32>
    %597 = arith.mulf %596, %593 : vector<8x16xf32>
    %598 = arith.mulf %597, %593 : vector<8x16xf32>
    %599 = arith.mulf %598, %593 : vector<8x16xf32>
    %600 = arith.addf %593, %599 : vector<8x16xf32>
    %cst_209 = arith.constant 0.797884583 : f32
    %601 = vector.broadcast %cst_209 : f32 to vector<8x16xf32>
    %602 = arith.mulf %601, %600 : vector<8x16xf32>
    %603 = math.tanh %602 : vector<8x16xf32>
    %cst_210 = arith.constant 1.000000e+00 : f32
    %604 = vector.broadcast %cst_210 : f32 to vector<8x16xf32>
    %605 = arith.addf %604, %603 : vector<8x16xf32>
    %606 = arith.mulf %595, %605 : vector<8x16xf32>
    %c0_211 = arith.constant 0 : index
    %c0_212 = arith.constant 0 : index
    %607 = vector.load %arg17[%c0_211, %c0_212] : memref<16x16xf32, #tpu.memory_space<vmem>>, vector<16x16xf32>
    %608 = arith.truncf %606 : vector<8x16xf32> to vector<8x16xbf16>
    %609 = arith.truncf %607 : vector<16x16xf32> to vector<16x16xbf16>
    %cst_213 = arith.constant dense<0.000000e+00> : vector<8x16xf32>
    %610 = tpu.matmul %608, %609, %cst_213 {dimension_numbers = #tpu.dot_dimension_numbers<[1], [0], [0], [1], [0, 0, 1, 1], [], []>} : vector<8x16xbf16>, vector<16x16xbf16>, vector<8x16xf32> -> vector<8x16xf32>
    %c0_214 = arith.constant 0 : index
    %c0_215 = arith.constant 0 : index
    %611 = vector.load %arg18[%c0_214, %c0_215] : memref<1x16xf32, #tpu.memory_space<vmem>>, vector<1x16xf32>
    %612 = vector.broadcast %611 : vector<1x16xf32> to vector<8x16xf32>
    %613 = arith.addf %610, %612 : vector<8x16xf32>
    %cst_216 = arith.constant dense<0.000000e+00> : vector<8xf32>
    %614 = vector.multi_reduction <add>, %613, %cst_216 [1] : vector<8x16xf32> to vector<8xf32>
    %615 = vector.shape_cast %614 : vector<8xf32> to vector<8x1xf32>
    %cst_217 = arith.constant 1.600000e+01 : f32
    %616 = vector.broadcast %cst_217 : f32 to vector<8x1xf32>
    %617 = arith.divf %615, %616 : vector<8x1xf32>
    %618 = vector.broadcast %617 : vector<8x1xf32> to vector<8x16xf32>
    %619 = arith.subf %613, %618 : vector<8x16xf32>
    %620 = arith.mulf %619, %619 : vector<8x16xf32>
    %cst_218 = arith.constant dense<0.000000e+00> : vector<8xf32>
    %621 = vector.multi_reduction <add>, %620, %cst_218 [1] : vector<8x16xf32> to vector<8xf32>
    %622 = vector.shape_cast %621 : vector<8xf32> to vector<8x1xf32>
    %cst_219 = arith.constant 1.600000e+01 : f32
    %623 = vector.broadcast %cst_219 : f32 to vector<8x1xf32>
    %624 = arith.divf %622, %623 : vector<8x1xf32>
    %625 = vector.broadcast %617 : vector<8x1xf32> to vector<8x16xf32>
    %626 = arith.subf %613, %625 : vector<8x16xf32>
    %cst_220 = arith.constant 9.99999974E-6 : f32
    %627 = vector.broadcast %cst_220 : f32 to vector<8x1xf32>
    %628 = arith.addf %624, %627 : vector<8x1xf32>
    %629 = math.rsqrt %628 : vector<8x1xf32>
    %630 = vector.broadcast %629 : vector<8x1xf32> to vector<8x16xf32>
    %631 = arith.mulf %626, %630 : vector<8x16xf32>
    %cst_221 = arith.constant 5.000000e-01 : f32
    %632 = vector.broadcast %cst_221 : f32 to vector<8x16xf32>
    %633 = arith.mulf %632, %631 : vector<8x16xf32>
    %cst_222 = arith.constant 4.471500e-02 : f32
    %634 = vector.broadcast %cst_222 : f32 to vector<8x16xf32>
    %635 = arith.mulf %634, %631 : vector<8x16xf32>
    %636 = arith.mulf %635, %631 : vector<8x16xf32>
    %637 = arith.mulf %636, %631 : vector<8x16xf32>
    %638 = arith.addf %631, %637 : vector<8x16xf32>
    %cst_223 = arith.constant 0.797884583 : f32
    %639 = vector.broadcast %cst_223 : f32 to vector<8x16xf32>
    %640 = arith.mulf %639, %638 : vector<8x16xf32>
    %641 = math.tanh %640 : vector<8x16xf32>
    %cst_224 = arith.constant 1.000000e+00 : f32
    %642 = vector.broadcast %cst_224 : f32 to vector<8x16xf32>
    %643 = arith.addf %642, %641 : vector<8x16xf32>
    %644 = arith.mulf %633, %643 : vector<8x16xf32>
    %c0_225 = arith.constant 0 : index
    %c0_226 = arith.constant 0 : index
    %645 = vector.load %arg19[%c0_225, %c0_226] : memref<16x8xf32, #tpu.memory_space<vmem>>, vector<16x8xf32>
    %646 = arith.truncf %644 : vector<8x16xf32> to vector<8x16xbf16>
    %647 = arith.truncf %645 : vector<16x8xf32> to vector<16x8xbf16>
    %cst_227 = arith.constant dense<0.000000e+00> : vector<8x8xf32>
    %648 = tpu.matmul %646, %647, %cst_227 {dimension_numbers = #tpu.dot_dimension_numbers<[1], [0], [0], [1], [0, 0, 1, 1], [], []>} : vector<8x16xbf16>, vector<16x8xbf16>, vector<8x8xf32> -> vector<8x8xf32>
    %c0_228 = arith.constant 0 : index
    %c0_229 = arith.constant 0 : index
    %649 = vector.load %arg20[%c0_228, %c0_229] : memref<1x8xf32, #tpu.memory_space<vmem>>, vector<1x8xf32>
    %650 = vector.broadcast %649 : vector<1x8xf32> to vector<8x8xf32>
    %651 = arith.addf %648, %650 : vector<8x8xf32>
    %cst_230 = arith.constant 5.000000e-01 : f32
    %652 = vector.broadcast %cst_230 : f32 to vector<8x8xf32>
    %653 = arith.mulf %652, %651 : vector<8x8xf32>
    %cst_231 = arith.constant 4.471500e-02 : f32
    %654 = vector.broadcast %cst_231 : f32 to vector<8x8xf32>
    %655 = arith.mulf %654, %651 : vector<8x8xf32>
    %656 = arith.mulf %655, %651 : vector<8x8xf32>
    %657 = arith.mulf %656, %651 : vector<8x8xf32>
    %658 = arith.addf %651, %657 : vector<8x8xf32>
    %cst_232 = arith.constant 0.797884583 : f32
    %659 = vector.broadcast %cst_232 : f32 to vector<8x8xf32>
    %660 = arith.mulf %659, %658 : vector<8x8xf32>
    %661 = math.tanh %660 : vector<8x8xf32>
    %cst_233 = arith.constant 1.000000e+00 : f32
    %662 = vector.broadcast %cst_233 : f32 to vector<8x8xf32>
    %663 = arith.addf %662, %661 : vector<8x8xf32>
    %664 = arith.mulf %653, %663 : vector<8x8xf32>
    %c0_234 = arith.constant 0 : index
    %c0_235 = arith.constant 0 : index
    %665 = vector.load %arg21[%c0_234, %c0_235] : memref<24x16xf32, #tpu.memory_space<vmem>>, vector<24x16xf32>
    %666 = vector.extract_strided_slice %665 {offsets = [0, 0], sizes = [8, 16], strides = [1, 1]} : vector<24x16xf32> to vector<8x16xf32>
    %667 = arith.truncf %664 : vector<8x8xf32> to vector<8x8xbf16>
    %668 = arith.truncf %666 : vector<8x16xf32> to vector<8x16xbf16>
    %cst_236 = arith.constant dense<0.000000e+00> : vector<8x16xf32>
    %669 = tpu.matmul %667, %668, %cst_236 {dimension_numbers = #tpu.dot_dimension_numbers<[1], [0], [0], [1], [0, 0, 1, 1], [], []>} : vector<8x8xbf16>, vector<8x16xbf16>, vector<8x16xf32> -> vector<8x16xf32>
    %670 = vector.extract_strided_slice %665 {offsets = [8, 0], sizes = [8, 16], strides = [1, 1]} : vector<24x16xf32> to vector<8x16xf32>
    %671 = arith.truncf %283 : vector<8x8xf32> to vector<8x8xbf16>
    %672 = arith.truncf %670 : vector<8x16xf32> to vector<8x16xbf16>
    %cst_237 = arith.constant dense<0.000000e+00> : vector<8x16xf32>
    %673 = tpu.matmul %671, %672, %cst_237 {dimension_numbers = #tpu.dot_dimension_numbers<[1], [0], [0], [1], [0, 0, 1, 1], [], []>} : vector<8x8xbf16>, vector<8x16xbf16>, vector<8x16xf32> -> vector<8x16xf32>
    %674 = arith.addf %669, %673 : vector<8x16xf32>
    %675 = vector.extract_strided_slice %665 {offsets = [16, 0], sizes = [8, 16], strides = [1, 1]} : vector<24x16xf32> to vector<8x16xf32>
    %676 = arith.truncf %567 : vector<8x8xf32> to vector<8x8xbf16>
    %677 = arith.truncf %675 : vector<8x16xf32> to vector<8x16xbf16>
    %cst_238 = arith.constant dense<0.000000e+00> : vector<8x16xf32>
    %678 = tpu.matmul %676, %677, %cst_238 {dimension_numbers = #tpu.dot_dimension_numbers<[1], [0], [0], [1], [0, 0, 1, 1], [], []>} : vector<8x8xbf16>, vector<8x16xbf16>, vector<8x16xf32> -> vector<8x16xf32>
    %679 = arith.addf %674, %678 : vector<8x16xf32>
    %c0_239 = arith.constant 0 : index
    %c0_240 = arith.constant 0 : index
    %680 = vector.load %arg22[%c0_239, %c0_240] : memref<1x16xf32, #tpu.memory_space<vmem>>, vector<1x16xf32>
    %681 = vector.broadcast %680 : vector<1x16xf32> to vector<8x16xf32>
    %682 = arith.addf %679, %681 : vector<8x16xf32>
    %cst_241 = arith.constant 5.000000e-01 : f32
    %683 = vector.broadcast %cst_241 : f32 to vector<8x16xf32>
    %684 = arith.mulf %683, %682 : vector<8x16xf32>
    %cst_242 = arith.constant 4.471500e-02 : f32
    %685 = vector.broadcast %cst_242 : f32 to vector<8x16xf32>
    %686 = arith.mulf %685, %682 : vector<8x16xf32>
    %687 = arith.mulf %686, %682 : vector<8x16xf32>
    %688 = arith.mulf %687, %682 : vector<8x16xf32>
    %689 = arith.addf %682, %688 : vector<8x16xf32>
    %cst_243 = arith.constant 0.797884583 : f32
    %690 = vector.broadcast %cst_243 : f32 to vector<8x16xf32>
    %691 = arith.mulf %690, %689 : vector<8x16xf32>
    %692 = math.tanh %691 : vector<8x16xf32>
    %cst_244 = arith.constant 1.000000e+00 : f32
    %693 = vector.broadcast %cst_244 : f32 to vector<8x16xf32>
    %694 = arith.addf %693, %692 : vector<8x16xf32>
    %695 = arith.mulf %684, %694 : vector<8x16xf32>
    %c0_245 = arith.constant 0 : index
    %c0_246 = arith.constant 0 : index
    %696 = vector.load %arg23[%c0_245, %c0_246] : memref<16x32xf32, #tpu.memory_space<vmem>>, vector<16x32xf32>
    %c0_247 = arith.constant 0 : index
    %c0_248 = arith.constant 0 : index
    %697 = vector.load %arg24[%c0_247, %c0_248] : memref<1x32xf32, #tpu.memory_space<vmem>>, vector<1x32xf32>
    %698 = arith.truncf %695 : vector<8x16xf32> to vector<8x16xbf16>
    %699 = arith.truncf %696 : vector<16x32xf32> to vector<16x32xbf16>
    %cst_249 = arith.constant dense<0.000000e+00> : vector<8x32xf32>
    %700 = tpu.matmul %698, %699, %cst_249 {dimension_numbers = #tpu.dot_dimension_numbers<[1], [0], [0], [1], [0, 0, 1, 1], [], []>} : vector<8x16xbf16>, vector<16x32xbf16>, vector<8x32xf32> -> vector<8x32xf32>
    %701 = vector.broadcast %697 : vector<1x32xf32> to vector<8x32xf32>
    %702 = arith.addf %700, %701 : vector<8x32xf32>
    %cst_250 = arith.constant 5.000000e-01 : f32
    %703 = vector.broadcast %cst_250 : f32 to vector<8x32xf32>
    %704 = arith.mulf %703, %702 : vector<8x32xf32>
    %cst_251 = arith.constant 4.471500e-02 : f32
    %705 = vector.broadcast %cst_251 : f32 to vector<8x32xf32>
    %706 = arith.mulf %705, %702 : vector<8x32xf32>
    %707 = arith.mulf %706, %702 : vector<8x32xf32>
    %708 = arith.mulf %707, %702 : vector<8x32xf32>
    %709 = arith.addf %702, %708 : vector<8x32xf32>
    %cst_252 = arith.constant 0.797884583 : f32
    %710 = vector.broadcast %cst_252 : f32 to vector<8x32xf32>
    %711 = arith.mulf %710, %709 : vector<8x32xf32>
    %712 = math.tanh %711 : vector<8x32xf32>
    %cst_253 = arith.constant 1.000000e+00 : f32
    %713 = vector.broadcast %cst_253 : f32 to vector<8x32xf32>
    %714 = arith.addf %713, %712 : vector<8x32xf32>
    %715 = arith.mulf %704, %714 : vector<8x32xf32>
    %c0_254 = arith.constant 0 : index
    %c0_255 = arith.constant 0 : index
    %716 = vector.load %arg25[%c0_254, %c0_255] : memref<32x6xf32, #tpu.memory_space<vmem>>, vector<32x6xf32>
    %c0_256 = arith.constant 0 : index
    %c0_257 = arith.constant 0 : index
    %717 = vector.load %arg26[%c0_256, %c0_257] : memref<1x6xf32, #tpu.memory_space<vmem>>, vector<1x6xf32>
    %718 = arith.truncf %715 : vector<8x32xf32> to vector<8x32xbf16>
    %719 = arith.truncf %716 : vector<32x6xf32> to vector<32x6xbf16>
    %cst_258 = arith.constant dense<0.000000e+00> : vector<8x6xf32>
    %720 = tpu.matmul %718, %719, %cst_258 {dimension_numbers = #tpu.dot_dimension_numbers<[1], [0], [0], [1], [0, 0, 1, 1], [], []>} : vector<8x32xbf16>, vector<32x6xbf16>, vector<8x6xf32> -> vector<8x6xf32>
    %721 = vector.broadcast %717 : vector<1x6xf32> to vector<8x6xf32>
    %722 = arith.addf %720, %721 : vector<8x6xf32>
    %c0_259 = arith.constant 0 : index
    %c0_260 = arith.constant 0 : index
    %723 = vector.load %arg27[%c0_259, %c0_260] : memref<24x16xf32, #tpu.memory_space<vmem>>, vector<24x16xf32>
    %724 = vector.extract_strided_slice %723 {offsets = [0, 0], sizes = [8, 16], strides = [1, 1]} : vector<24x16xf32> to vector<8x16xf32>
    %725 = arith.truncf %664 : vector<8x8xf32> to vector<8x8xbf16>
    %726 = arith.truncf %724 : vector<8x16xf32> to vector<8x16xbf16>
    %cst_261 = arith.constant dense<0.000000e+00> : vector<8x16xf32>
    %727 = tpu.matmul %725, %726, %cst_261 {dimension_numbers = #tpu.dot_dimension_numbers<[1], [0], [0], [1], [0, 0, 1, 1], [], []>} : vector<8x8xbf16>, vector<8x16xbf16>, vector<8x16xf32> -> vector<8x16xf32>
    %728 = vector.extract_strided_slice %723 {offsets = [8, 0], sizes = [8, 16], strides = [1, 1]} : vector<24x16xf32> to vector<8x16xf32>
    %729 = arith.truncf %283 : vector<8x8xf32> to vector<8x8xbf16>
    %730 = arith.truncf %728 : vector<8x16xf32> to vector<8x16xbf16>
    %cst_262 = arith.constant dense<0.000000e+00> : vector<8x16xf32>
    %731 = tpu.matmul %729, %730, %cst_262 {dimension_numbers = #tpu.dot_dimension_numbers<[1], [0], [0], [1], [0, 0, 1, 1], [], []>} : vector<8x8xbf16>, vector<8x16xbf16>, vector<8x16xf32> -> vector<8x16xf32>
    %732 = arith.addf %727, %731 : vector<8x16xf32>
    %733 = vector.extract_strided_slice %723 {offsets = [16, 0], sizes = [8, 16], strides = [1, 1]} : vector<24x16xf32> to vector<8x16xf32>
    %734 = arith.truncf %567 : vector<8x8xf32> to vector<8x8xbf16>
    %735 = arith.truncf %733 : vector<8x16xf32> to vector<8x16xbf16>
    %cst_263 = arith.constant dense<0.000000e+00> : vector<8x16xf32>
    %736 = tpu.matmul %734, %735, %cst_263 {dimension_numbers = #tpu.dot_dimension_numbers<[1], [0], [0], [1], [0, 0, 1, 1], [], []>} : vector<8x8xbf16>, vector<8x16xbf16>, vector<8x16xf32> -> vector<8x16xf32>
    %737 = arith.addf %732, %736 : vector<8x16xf32>
    %c0_264 = arith.constant 0 : index
    %c0_265 = arith.constant 0 : index
    %738 = vector.load %arg28[%c0_264, %c0_265] : memref<1x16xf32, #tpu.memory_space<vmem>>, vector<1x16xf32>
    %739 = vector.broadcast %738 : vector<1x16xf32> to vector<8x16xf32>
    %740 = arith.addf %737, %739 : vector<8x16xf32>
    %cst_266 = arith.constant 5.000000e-01 : f32
    %741 = vector.broadcast %cst_266 : f32 to vector<8x16xf32>
    %742 = arith.mulf %741, %740 : vector<8x16xf32>
    %cst_267 = arith.constant 4.471500e-02 : f32
    %743 = vector.broadcast %cst_267 : f32 to vector<8x16xf32>
    %744 = arith.mulf %743, %740 : vector<8x16xf32>
    %745 = arith.mulf %744, %740 : vector<8x16xf32>
    %746 = arith.mulf %745, %740 : vector<8x16xf32>
    %747 = arith.addf %740, %746 : vector<8x16xf32>
    %cst_268 = arith.constant 0.797884583 : f32
    %748 = vector.broadcast %cst_268 : f32 to vector<8x16xf32>
    %749 = arith.mulf %748, %747 : vector<8x16xf32>
    %750 = math.tanh %749 : vector<8x16xf32>
    %cst_269 = arith.constant 1.000000e+00 : f32
    %751 = vector.broadcast %cst_269 : f32 to vector<8x16xf32>
    %752 = arith.addf %751, %750 : vector<8x16xf32>
    %753 = arith.mulf %742, %752 : vector<8x16xf32>
    %c0_270 = arith.constant 0 : index
    %c0_271 = arith.constant 0 : index
    %754 = vector.load %arg29[%c0_270, %c0_271] : memref<16x32xf32, #tpu.memory_space<vmem>>, vector<16x32xf32>
    %c0_272 = arith.constant 0 : index
    %c0_273 = arith.constant 0 : index
    %755 = vector.load %arg30[%c0_272, %c0_273] : memref<1x32xf32, #tpu.memory_space<vmem>>, vector<1x32xf32>
    %756 = arith.truncf %753 : vector<8x16xf32> to vector<8x16xbf16>
    %757 = arith.truncf %754 : vector<16x32xf32> to vector<16x32xbf16>
    %cst_274 = arith.constant dense<0.000000e+00> : vector<8x32xf32>
    %758 = tpu.matmul %756, %757, %cst_274 {dimension_numbers = #tpu.dot_dimension_numbers<[1], [0], [0], [1], [0, 0, 1, 1], [], []>} : vector<8x16xbf16>, vector<16x32xbf16>, vector<8x32xf32> -> vector<8x32xf32>
    %759 = vector.broadcast %755 : vector<1x32xf32> to vector<8x32xf32>
    %760 = arith.addf %758, %759 : vector<8x32xf32>
    %cst_275 = arith.constant 5.000000e-01 : f32
    %761 = vector.broadcast %cst_275 : f32 to vector<8x32xf32>
    %762 = arith.mulf %761, %760 : vector<8x32xf32>
    %cst_276 = arith.constant 4.471500e-02 : f32
    %763 = vector.broadcast %cst_276 : f32 to vector<8x32xf32>
    %764 = arith.mulf %763, %760 : vector<8x32xf32>
    %765 = arith.mulf %764, %760 : vector<8x32xf32>
    %766 = arith.mulf %765, %760 : vector<8x32xf32>
    %767 = arith.addf %760, %766 : vector<8x32xf32>
    %cst_277 = arith.constant 0.797884583 : f32
    %768 = vector.broadcast %cst_277 : f32 to vector<8x32xf32>
    %769 = arith.mulf %768, %767 : vector<8x32xf32>
    %770 = math.tanh %769 : vector<8x32xf32>
    %cst_278 = arith.constant 1.000000e+00 : f32
    %771 = vector.broadcast %cst_278 : f32 to vector<8x32xf32>
    %772 = arith.addf %771, %770 : vector<8x32xf32>
    %773 = arith.mulf %762, %772 : vector<8x32xf32>
    %c0_279 = arith.constant 0 : index
    %c0_280 = arith.constant 0 : index
    %774 = vector.load %arg31[%c0_279, %c0_280] : memref<32x21xf32, #tpu.memory_space<vmem>>, vector<32x21xf32>
    %c0_281 = arith.constant 0 : index
    %c0_282 = arith.constant 0 : index
    %775 = vector.load %arg32[%c0_281, %c0_282] : memref<1x21xf32, #tpu.memory_space<vmem>>, vector<1x21xf32>
    %cst_283 = arith.constant dense<0.000000e+00> : vector<8x21xf32>
    %776 = tpu.matmul %773, %774, %cst_283 {dimension_numbers = #tpu.dot_dimension_numbers<[1], [0], [0], [1], [0, 0, 1, 1], [], []>} : vector<8x32xf32>, vector<32x21xf32>, vector<8x21xf32> -> vector<8x21xf32>
    %777 = vector.broadcast %775 : vector<1x21xf32> to vector<8x21xf32>
    %778 = arith.addf %776, %777 : vector<8x21xf32>
    %c0_284 = arith.constant 0 : index
    %c0_285 = arith.constant 0 : index
    %779 = vector.load %arg33[%c0_284, %c0_285] : memref<21x36xf32, #tpu.memory_space<vmem>>, vector<21x36xf32>
    %cst_286 = arith.constant dense<0.000000e+00> : vector<8x36xf32>
    %780 = tpu.matmul %778, %779, %cst_286 {dimension_numbers = #tpu.dot_dimension_numbers<[1], [0], [0], [1], [0, 0, 1, 1], [], []>} : vector<8x21xf32>, vector<21x36xf32>, vector<8x36xf32> -> vector<8x36xf32>
    %c0_287 = arith.constant 0 : index
    %c0_288 = arith.constant 0 : index
    %781 = vector.load %arg34[%c0_287, %c0_288] : memref<1x36xf32, #tpu.memory_space<vmem>>, vector<1x36xf32>
    %cst_289 = arith.constant 5.000000e-01 : f32
    %782 = vector.broadcast %cst_289 : f32 to vector<1x36xf32>
    %783 = arith.cmpf ogt, %781, %782 : vector<1x36xf32>
    %cst_290 = arith.constant 0.000000e+00 : f32
    %784 = vector.broadcast %cst_290 : f32 to vector<8x36xf32>
    %785 = arith.maximumf %780, %784 : vector<8x36xf32>
    %786 = math.absf %780 : vector<8x36xf32>
    %cst_291 = arith.constant 0.000000e+00 : f32
    %787 = vector.broadcast %cst_291 : f32 to vector<8x36xf32>
    %788 = arith.subf %787, %786 : vector<8x36xf32>
    %789 = math.exp %788 : vector<8x36xf32>
    %790 = math.log1p %789 : vector<8x36xf32>
    %791 = arith.addf %785, %790 : vector<8x36xf32>
    %cst_292 = arith.constant 9.99999997E-7 : f32
    %792 = vector.broadcast %cst_292 : f32 to vector<8x36xf32>
    %793 = arith.addf %791, %792 : vector<8x36xf32>
    %794 = vector.shape_cast %783 : vector<1x36xi1> to vector<1x36xi1>
    %795 = vector.broadcast %794 : vector<1x36xi1> to vector<8x36xi1>
    %796 = arith.select %795, %793, %780 : vector<8x36xi1>, vector<8x36xf32>
    %797 = vector.shape_cast %796 : vector<8x36xf32> to vector<8x6x6xf32>
    "tpu.trace_start"() <{level = 10 : i32, message = "bij,bkj->bik"}> : () -> ()
    %cst_293 = arith.constant dense<0.000000e+00> : vector<8x6x6xf32>
    %798 = tpu.matmul %797, %797, %cst_293 {dimension_numbers = #tpu.dot_dimension_numbers<[2], [2], [1], [1], [0, 0, 0, 1, 1, 1], [0], [0]>} : vector<8x6x6xf32>, vector<8x6x6xf32>, vector<8x6x6xf32> -> vector<8x6x6xf32>
    "tpu.trace_stop"() : () -> ()
    %c0_294 = arith.constant 0 : index
    %c0_295 = arith.constant 0 : index
    %799 = vector.load %arg35[%c0_294, %c0_295] : memref<8x6xf32, #tpu.memory_space<vmem>>, vector<8x6xf32>
    tpu.vector_store %arg35[%c0_294, %c0_295], %722 {strides = array<i32>} : memref<8x6xf32, #tpu.memory_space<vmem>>, vector<8x6xf32>,
    %c0_296 = arith.constant 0 : index
    %c0_297 = arith.constant 0 : index
    %c0_298 = arith.constant 0 : index
    %800 = vector.load %arg36[%c0_296, %c0_297, %c0_298] : memref<8x6x6xf32, #tpu.memory_space<vmem>>, vector<8x6x6xf32>
    tpu.vector_store %arg36[%c0_296, %c0_297, %c0_298], %798 {strides = array<i32>} : memref<8x6x6xf32, #tpu.memory_space<vmem>>, vector<8x6x6xf32>,
    return
  }
  func.func @transform_0(%arg0: i32) -> (i32, i32, i32, i32) {
    %c0_i32 = arith.constant 0 : i32
    %c0_i32_0 = arith.constant 0 : i32
    %c0_i32_1 = arith.constant 0 : i32
    %c0_i32_2 = arith.constant 0 : i32
    return %c0_i32, %c0_i32_0, %arg0, %c0_i32_1 : i32, i32, i32, i32
  }
  func.func @transform_1(%arg0: i32) -> (i32, i32) {
    %c0_i32 = arith.constant 0 : i32
    %c0_i32_0 = arith.constant 0 : i32
    return %arg0, %c0_i32 : i32, i32
  }
  func.func @transform_2(%arg0: i32) -> (i32, i32, i32, i32) {
    %c0_i32 = arith.constant 0 : i32
    %c0_i32_0 = arith.constant 0 : i32
    %c0_i32_1 = arith.constant 0 : i32
    %c0_i32_2 = arith.constant 0 : i32
    %c0_i32_3 = arith.constant 0 : i32
    return %c0_i32, %c0_i32_0, %c0_i32_1, %c0_i32_2 : i32, i32, i32, i32
  }
  func.func @transform_3(%arg0: i32) -> (i32, i32, i32) {
    %c0_i32 = arith.constant 0 : i32
    %c0_i32_0 = arith.constant 0 : i32
    %c0_i32_1 = arith.constant 0 : i32
    %c0_i32_2 = arith.constant 0 : i32
    return %c0_i32, %c0_i32_0, %c0_i32_1 : i32, i32, i32
  }
  func.func @transform_4(%arg0: i32) -> (i32, i32, i32, i32) {
    %c0_i32 = arith.constant 0 : i32
    %c0_i32_0 = arith.constant 0 : i32
    %c0_i32_1 = arith.constant 0 : i32
    %c0_i32_2 = arith.constant 0 : i32
    %c0_i32_3 = arith.constant 0 : i32
    return %c0_i32, %c0_i32_0, %c0_i32_1, %c0_i32_2 : i32, i32, i32, i32
  }
  func.func @transform_5(%arg0: i32) -> (i32, i32, i32) {
    %c0_i32 = arith.constant 0 : i32
    %c0_i32_0 = arith.constant 0 : i32
    %c0_i32_1 = arith.constant 0 : i32
    %c0_i32_2 = arith.constant 0 : i32
    return %c0_i32, %c0_i32_0, %c0_i32_1 : i32, i32, i32
  }
  func.func @transform_6(%arg0: i32) -> (i32, i32, i32, i32) {
    %c0_i32 = arith.constant 0 : i32
    %c0_i32_0 = arith.constant 0 : i32
    %c0_i32_1 = arith.constant 0 : i32
    %c0_i32_2 = arith.constant 0 : i32
    %c0_i32_3 = arith.constant 0 : i32
    return %c0_i32, %c0_i32_0, %c0_i32_1, %c0_i32_2 : i32, i32, i32, i32
  }
  func.func @transform_7(%arg0: i32) -> (i32, i32, i32) {
    %c0_i32 = arith.constant 0 : i32
    %c0_i32_0 = arith.constant 0 : i32
    %c0_i32_1 = arith.constant 0 : i32
    %c0_i32_2 = arith.constant 0 : i32
    return %c0_i32, %c0_i32_0, %c0_i32_1 : i32, i32, i32
  }
  func.func @transform_8(%arg0: i32) -> (i32, i32, i32, i32) {
    %c0_i32 = arith.constant 0 : i32
    %c0_i32_0 = arith.constant 0 : i32
    %c0_i32_1 = arith.constant 0 : i32
    %c0_i32_2 = arith.constant 0 : i32
    %c0_i32_3 = arith.constant 0 : i32
    return %c0_i32, %c0_i32_0, %c0_i32_1, %c0_i32_2 : i32, i32, i32, i32
  }
  func.func @transform_9(%arg0: i32) -> (i32, i32, i32) {
    %c0_i32 = arith.constant 0 : i32
    %c0_i32_0 = arith.constant 0 : i32
    %c0_i32_1 = arith.constant 0 : i32
    %c0_i32_2 = arith.constant 0 : i32
    return %c0_i32, %c0_i32_0, %c0_i32_1 : i32, i32, i32
  }
  func.func @transform_10(%arg0: i32) -> (i32, i32, i32, i32) {
    %c0_i32 = arith.constant 0 : i32
    %c0_i32_0 = arith.constant 0 : i32
    %c0_i32_1 = arith.constant 0 : i32
    %c0_i32_2 = arith.constant 0 : i32
    %c0_i32_3 = arith.constant 0 : i32
    return %c0_i32, %c0_i32_0, %c0_i32_1, %c0_i32_2 : i32, i32, i32, i32
  }
  func.func @transform_11(%arg0: i32) -> (i32, i32, i32) {
    %c0_i32 = arith.constant 0 : i32
    %c0_i32_0 = arith.constant 0 : i32
    %c0_i32_1 = arith.constant 0 : i32
    %c0_i32_2 = arith.constant 0 : i32
    return %c0_i32, %c0_i32_0, %c0_i32_1 : i32, i32, i32
  }
  func.func @transform_12(%arg0: i32) -> (i32, i32, i32) {
    %c0_i32 = arith.constant 0 : i32
    %c0_i32_0 = arith.constant 0 : i32
    %c0_i32_1 = arith.constant 0 : i32
    %c0_i32_2 = arith.constant 0 : i32
    return %c0_i32, %c0_i32_0, %c0_i32_1 : i32, i32, i32
  }
  func.func @transform_13(%arg0: i32) -> (i32, i32, i32) {
    %c0_i32 = arith.constant 0 : i32
    %c0_i32_0 = arith.constant 0 : i32
    %c0_i32_1 = arith.constant 0 : i32
    %c0_i32_2 = arith.constant 0 : i32
    return %c0_i32, %c0_i32_0, %c0_i32_1 : i32, i32, i32
  }
  func.func @transform_14(%arg0: i32) -> (i32, i32) {
    %c0_i32 = arith.constant 0 : i32
    %c0_i32_0 = arith.constant 0 : i32
    %c0_i32_1 = arith.constant 0 : i32
    return %c0_i32, %c0_i32_0 : i32, i32
  }
  func.func @transform_15(%arg0: i32) -> (i32, i32) {
    %c0_i32 = arith.constant 0 : i32
    %c0_i32_0 = arith.constant 0 : i32
    %c0_i32_1 = arith.constant 0 : i32
    return %c0_i32, %c0_i32_0 : i32, i32
  }
  func.func @transform_16(%arg0: i32) -> (i32, i32) {
    %c0_i32 = arith.constant 0 : i32
    %c0_i32_0 = arith.constant 0 : i32
    %c0_i32_1 = arith.constant 0 : i32
    return %c0_i32, %c0_i32_0 : i32, i32
  }
  func.func @transform_17(%arg0: i32) -> (i32, i32) {
    %c0_i32 = arith.constant 0 : i32
    %c0_i32_0 = arith.constant 0 : i32
    %c0_i32_1 = arith.constant 0 : i32
    return %c0_i32, %c0_i32_0 : i32, i32
  }
  func.func @transform_18(%arg0: i32) -> (i32, i32) {
    %c0_i32 = arith.constant 0 : i32
    %c0_i32_0 = arith.constant 0 : i32
    %c0_i32_1 = arith.constant 0 : i32
    return %c0_i32, %c0_i32_0 : i32, i32
  }
  func.func @transform_19(%arg0: i32) -> (i32, i32) {
    %c0_i32 = arith.constant 0 : i32
    %c0_i32_0 = arith.constant 0 : i32
    %c0_i32_1 = arith.constant 0 : i32
    return %c0_i32, %c0_i32_0 : i32, i32
  }
  func.func @transform_20(%arg0: i32) -> (i32, i32) {
    %c0_i32 = arith.constant 0 : i32
    %c0_i32_0 = arith.constant 0 : i32
    %c0_i32_1 = arith.constant 0 : i32
    return %c0_i32, %c0_i32_0 : i32, i32
  }
  func.func @transform_21(%arg0: i32) -> (i32, i32) {
    %c0_i32 = arith.constant 0 : i32
    %c0_i32_0 = arith.constant 0 : i32
    %c0_i32_1 = arith.constant 0 : i32
    return %c0_i32, %c0_i32_0 : i32, i32
  }
  func.func @transform_22(%arg0: i32) -> (i32, i32) {
    %c0_i32 = arith.constant 0 : i32
    %c0_i32_0 = arith.constant 0 : i32
    %c0_i32_1 = arith.constant 0 : i32
    return %c0_i32, %c0_i32_0 : i32, i32
  }
  func.func @transform_23(%arg0: i32) -> (i32, i32) {
    %c0_i32 = arith.constant 0 : i32
    %c0_i32_0 = arith.constant 0 : i32
    %c0_i32_1 = arith.constant 0 : i32
    return %c0_i32, %c0_i32_0 : i32, i32
  }
  func.func @transform_24(%arg0: i32) -> (i32, i32) {
    %c0_i32 = arith.constant 0 : i32
    %c0_i32_0 = arith.constant 0 : i32
    %c0_i32_1 = arith.constant 0 : i32
    return %c0_i32, %c0_i32_0 : i32, i32
  }
  func.func @transform_25(%arg0: i32) -> (i32, i32) {
    %c0_i32 = arith.constant 0 : i32
    %c0_i32_0 = arith.constant 0 : i32
    %c0_i32_1 = arith.constant 0 : i32
    return %c0_i32, %c0_i32_0 : i32, i32
  }
  func.func @transform_26(%arg0: i32) -> (i32, i32) {
    %c0_i32 = arith.constant 0 : i32
    %c0_i32_0 = arith.constant 0 : i32
    %c0_i32_1 = arith.constant 0 : i32
    return %c0_i32, %c0_i32_0 : i32, i32
  }
  func.func @transform_27(%arg0: i32) -> (i32, i32) {
    %c0_i32 = arith.constant 0 : i32
    %c0_i32_0 = arith.constant 0 : i32
    %c0_i32_1 = arith.constant 0 : i32
    return %c0_i32, %c0_i32_0 : i32, i32
  }
  func.func @transform_28(%arg0: i32) -> (i32, i32) {
    %c0_i32 = arith.constant 0 : i32
    %c0_i32_0 = arith.constant 0 : i32
    %c0_i32_1 = arith.constant 0 : i32
    return %c0_i32, %c0_i32_0 : i32, i32
  }
  func.func @transform_29(%arg0: i32) -> (i32, i32) {
    %c0_i32 = arith.constant 0 : i32
    %c0_i32_0 = arith.constant 0 : i32
    %c0_i32_1 = arith.constant 0 : i32
    return %c0_i32, %c0_i32_0 : i32, i32
  }
  func.func @transform_30(%arg0: i32) -> (i32, i32) {
    %c0_i32 = arith.constant 0 : i32
    %c0_i32_0 = arith.constant 0 : i32
    %c0_i32_1 = arith.constant 0 : i32
    return %c0_i32, %c0_i32_0 : i32, i32
  }
  func.func @transform_31(%arg0: i32) -> (i32, i32) {
    %c0_i32 = arith.constant 0 : i32
    %c0_i32_0 = arith.constant 0 : i32
    %c0_i32_1 = arith.constant 0 : i32
    return %c0_i32, %c0_i32_0 : i32, i32
  }
  func.func @transform_32(%arg0: i32) -> (i32, i32) {
    %c0_i32 = arith.constant 0 : i32
    %c0_i32_0 = arith.constant 0 : i32
    %c0_i32_1 = arith.constant 0 : i32
    return %c0_i32, %c0_i32_0 : i32, i32
  }
  func.func @transform_33(%arg0: i32) -> (i32, i32) {
    %c0_i32 = arith.constant 0 : i32
    %c0_i32_0 = arith.constant 0 : i32
    %c0_i32_1 = arith.constant 0 : i32
    return %c0_i32, %c0_i32_0 : i32, i32
  }
  func.func @transform_34(%arg0: i32) -> (i32, i32) {
    %c0_i32 = arith.constant 0 : i32
    %c0_i32_0 = arith.constant 0 : i32
    return %arg0, %c0_i32 : i32, i32
  }
  func.func @transform_35(%arg0: i32) -> (i32, i32, i32) {
    %c0_i32 = arith.constant 0 : i32
    %c0_i32_0 = arith.constant 0 : i32
    %c0_i32_1 = arith.constant 0 : i32
    return %arg0, %c0_i32, %c0_i32_0 : i32, i32, i32
  }
}

</mosaic_0001>

<llo_original>
// kernel: _lambda_.1
$region0: #{_lambda_.1}
  #allocation0 [shape = 'u32[]', space=smem, size = 0x4, offset = 0x4, fixed_abs, tag = 'smem constant byte address 0x4 - core index']
  #allocation1 [shape = 'u32[144,128]{1,0:T(1,128)}', space=vmem, size = 0x12000, scoped, tag = 'internal scratch']
  %s0 = inlined_call_operand.smem [shape: u32[36], index: -1, kind: input, shape index: {}]
  %s1 = sld [smem:[%s0]]
  %s2 = scalar_lea.smem %s0, 1
  %s3 = sld [smem:[%s2]]
  %s4 = scalar_lea.smem %s0, 2
  %s5 = sld [smem:[%s4]]
  %s6 = scalar_lea.smem %s0, 3
  %s7 = sld [smem:[%s6]]
  %s8 = scalar_lea.smem %s0, 4
  %s9 = sld [smem:[%s8]]
  %s10 = scalar_lea.smem %s0, 5
  %s11 = sld [smem:[%s10]]
  %s12 = scalar_lea.smem %s0, 6
  %s13 = sld [smem:[%s12]]
  %s14 = scalar_lea.smem %s0, 7
  %s15 = sld [smem:[%s14]]
  %s16 = scalar_lea.smem %s0, 8
  %s17 = sld [smem:[%s16]]
  %s18 = scalar_lea.smem %s0, 9
  %s19 = sld [smem:[%s18]]
  %s20 = scalar_lea.smem %s0, 10
  %s21 = sld [smem:[%s20]]
  %s22 = scalar_lea.smem %s0, 11
  %s23 = sld [smem:[%s22]]
  %s24 = scalar_lea.smem %s0, 12
  %s25 = sld [smem:[%s24]]
  %s26 = scalar_lea.smem %s0, 13
  %s27 = sld [smem:[%s26]]
  %s28 = scalar_lea.smem %s0, 14
  %s29 = sld [smem:[%s28]]
  %s30 = scalar_lea.smem %s0, 15
  %s31 = sld [smem:[%s30]]
  %s32 = scalar_lea.smem %s0, 16
  %s33 = sld [smem:[%s32]]
  %s34 = scalar_lea.smem %s0, 17
  %s35 = sld [smem:[%s34]]
  %s36 = scalar_lea.smem %s0, 18
  %s37 = sld [smem:[%s36]]
  %s38 = scalar_lea.smem %s0, 19
  %s39 = sld [smem:[%s38]]
  %s40 = scalar_lea.smem %s0, 20
  %s41 = sld [smem:[%s40]]
  %s42 = scalar_lea.smem %s0, 21
  %s43 = sld [smem:[%s42]]
  %s44 = scalar_lea.smem %s0, 22
  %s45 = sld [smem:[%s44]]
  %s46 = scalar_lea.smem %s0, 23
  %s47 = sld [smem:[%s46]]
  %s48 = scalar_lea.smem %s0, 24
  %s49 = sld [smem:[%s48]]
  %s50 = scalar_lea.smem %s0, 25
  %s51 = sld [smem:[%s50]]
  %s52 = scalar_lea.smem %s0, 26
  %s53 = sld [smem:[%s52]]
  %s54 = scalar_lea.smem %s0, 27
  %s55 = sld [smem:[%s54]]
  %s56 = scalar_lea.smem %s0, 28
  %s57 = sld [smem:[%s56]]
  %s58 = scalar_lea.smem %s0, 29
  %s59 = sld [smem:[%s58]]
  %s60 = scalar_lea.smem %s0, 30
  %s61 = sld [smem:[%s60]]
  %s62 = scalar_lea.smem %s0, 31
  %s63 = sld [smem:[%s62]]
  %s64 = scalar_lea.smem %s0, 32
  %s65 = sld [smem:[%s64]]
  %s66 = scalar_lea.smem %s0, 33
  %s67 = sld [smem:[%s66]]
  %s68 = scalar_lea.smem %s0, 34
  %s69 = sld [smem:[%s68]]
  %s70 = scalar_lea.smem %s0, 35
  %s71 = sld [smem:[%s70]]
  %72 = xla_tuple %s69, %s71
  %s73 = sld [smem:[#allocation0]]
  $region154: #{_lambda_.1} parent=0
    _
  %s75 = ssub.s32 1, %s73
  %s76 = scalar_select 0, %s75, %s73
  // Predicated region
  $region2: #{_lambda_.1} parent=0 // pred_check
    _
  $region3: #{_lambda_.1} parent=0 // pred_check_branch
    %78 = sbr.rel (0) target = $region5
  $region4: #{_lambda_.1} parent=0 // pred_region
    _
  $region5: #{_lambda_.1} parent=0 // pred_fallthru
    _
  // Predicated region
  $region6: #{_lambda_.1} parent=0 // pred_check
    _
  $region7: #{_lambda_.1} parent=0 // pred_check_branch
    %80 = sbr.rel (0) target = $region9
  $region8: #{_lambda_.1} parent=0 // pred_region
    _
  $region9: #{_lambda_.1} parent=0 // pred_fallthru
    _
  // Predicated region
  $region10: #{_lambda_.1} parent=0 // pred_check
    _
  $region11: #{_lambda_.1} parent=0 // pred_check_branch
    %82 = sbr.rel (0) target = $region13
  $region12: #{_lambda_.1} parent=0 // pred_region
    _
  $region13: #{_lambda_.1} parent=0 // pred_fallthru
    _
  // Predicated region
  $region14: #{_lambda_.1} parent=0 // pred_check
    _
  $region15: #{_lambda_.1} parent=0 // pred_check_branch
    %84 = sbr.rel (0) target = $region17
  $region16: #{_lambda_.1} parent=0 // pred_region
    _
  $region17: #{_lambda_.1} parent=0 // pred_fallthru
    _
  // Predicated region
  $region18: #{_lambda_.1} parent=0 // pred_check
    _
  $region19: #{_lambda_.1} parent=0 // pred_check_branch
    %86 = sbr.rel (0) target = $region21
  $region20: #{_lambda_.1} parent=0 // pred_region
    _
  $region21: #{_lambda_.1} parent=0 // pred_fallthru
    _
  // Predicated region
  $region22: #{_lambda_.1} parent=0 // pred_check
    _
  $region23: #{_lambda_.1} parent=0 // pred_check_branch
    %88 = sbr.rel (0) target = $region25
  $region24: #{_lambda_.1} parent=0 // pred_region
    _
  $region25: #{_lambda_.1} parent=0 // pred_fallthru
    _
  // Predicated region
  $region26: #{_lambda_.1} parent=0 // pred_check
    _
  $region27: #{_lambda_.1} parent=0 // pred_check_branch
    %90 = sbr.rel (0) target = $region29
  $region28: #{_lambda_.1} parent=0 // pred_region
    _
  $region29: #{_lambda_.1} parent=0 // pred_fallthru
    _
  // Predicated region
  $region30: #{_lambda_.1} parent=0 // pred_check
    _
  $region31: #{_lambda_.1} parent=0 // pred_check_branch
    %92 = sbr.rel (0) target = $region33
  $region32: #{_lambda_.1} parent=0 // pred_region
    _
  $region33: #{_lambda_.1} parent=0 // pred_fallthru
    _
  // Predicated region
  $region34: #{_lambda_.1} parent=0 // pred_check
    _
  $region35: #{_lambda_.1} parent=0 // pred_check_branch
    %94 = sbr.rel (0) target = $region37
  $region36: #{_lambda_.1} parent=0 // pred_region
    _
  $region37: #{_lambda_.1} parent=0 // pred_fallthru
    _
  // Predicated region
  $region38: #{_lambda_.1} parent=0 // pred_check
    _
  $region39: #{_lambda_.1} parent=0 // pred_check_branch
    %96 = sbr.rel (0) target = $region41
  $region40: #{_lambda_.1} parent=0 // pred_region
    _
  $region41: #{_lambda_.1} parent=0 // pred_fallthru
    _
  // Predicated region
  $region42: #{_lambda_.1} parent=0 // pred_check
    _
  $region43: #{_lambda_.1} parent=0 // pred_check_branch
    %98 = sbr.rel (0) target = $region45
  $region44: #{_lambda_.1} parent=0 // pred_region
    _
  $region45: #{_lambda_.1} parent=0 // pred_fallthru
    _
  // Predicated region
  $region46: #{_lambda_.1} parent=0 // pred_check
    _
  $region47: #{_lambda_.1} parent=0 // pred_check_branch
    %100 = sbr.rel (0) target = $region49
  $region48: #{_lambda_.1} parent=0 // pred_region
    _
  $region49: #{_lambda_.1} parent=0 // pred_fallthru
    _
  // Predicated region
  $region50: #{_lambda_.1} parent=0 // pred_check
    _
  $region51: #{_lambda_.1} parent=0 // pred_check_branch
    %102 = sbr.rel (0) target = $region53
  $region52: #{_lambda_.1} parent=0 // pred_region
    _
  $region53: #{_lambda_.1} parent=0 // pred_fallthru
    _
  // Predicated region
  $region54: #{_lambda_.1} parent=0 // pred_check
    _
  $region55: #{_lambda_.1} parent=0 // pred_check_branch
    %104 = sbr.rel (0) target = $region57
  $region56: #{_lambda_.1} parent=0 // pred_region
    _
  $region57: #{_lambda_.1} parent=0 // pred_fallthru
    _
  // Predicated region
  $region58: #{_lambda_.1} parent=0 // pred_check
    _
  $region59: #{_lambda_.1} parent=0 // pred_check_branch
    %106 = sbr.rel (0) target = $region61
  $region60: #{_lambda_.1} parent=0 // pred_region
    _
  $region61: #{_lambda_.1} parent=0 // pred_fallthru
    _
  // Predicated region
  $region62: #{_lambda_.1} parent=0 // pred_check
    _
  $region63: #{_lambda_.1} parent=0 // pred_check_branch
    %108 = sbr.rel (0) target = $region65
  $region64: #{_lambda_.1} parent=0 // pred_region
    _
  $region65: #{_lambda_.1} parent=0 // pred_fallthru
    _
  // Predicated region
  $region66: #{_lambda_.1} parent=0 // pred_check
    _
  $region67: #{_lambda_.1} parent=0 // pred_check_branch
    %110 = sbr.rel (0) target = $region69
  $region68: #{_lambda_.1} parent=0 // pred_region
    _
  $region69: #{_lambda_.1} parent=0 // pred_fallthru
    _
  // Predicated region
  $region70: #{_lambda_.1} parent=0 // pred_check
    _
  $region71: #{_lambda_.1} parent=0 // pred_check_branch
    %112 = sbr.rel (0) target = $region73
  $region72: #{_lambda_.1} parent=0 // pred_region
    _
  $region73: #{_lambda_.1} parent=0 // pred_fallthru
    _
  // Predicated region
  $region74: #{_lambda_.1} parent=0 // pred_check
    _
  $region75: #{_lambda_.1} parent=0 // pred_check_branch
    %114 = sbr.rel (0) target = $region77
  $region76: #{_lambda_.1} parent=0 // pred_region
    _
  $region77: #{_lambda_.1} parent=0 // pred_fallthru
    _
  // Predicated region
  $region78: #{_lambda_.1} parent=0 // pred_check
    _
  $region79: #{_lambda_.1} parent=0 // pred_check_branch
    %116 = sbr.rel (0) target = $region81
  $region80: #{_lambda_.1} parent=0 // pred_region
    _
  $region81: #{_lambda_.1} parent=0 // pred_fallthru
    _
  // Predicated region
  $region82: #{_lambda_.1} parent=0 // pred_check
    _
  $region83: #{_lambda_.1} parent=0 // pred_check_branch
    %118 = sbr.rel (0) target = $region85
  $region84: #{_lambda_.1} parent=0 // pred_region
    _
  $region85: #{_lambda_.1} parent=0 // pred_fallthru
    _
  // Predicated region
  $region86: #{_lambda_.1} parent=0 // pred_check
    _
  $region87: #{_lambda_.1} parent=0 // pred_check_branch
    %120 = sbr.rel (0) target = $region89
  $region88: #{_lambda_.1} parent=0 // pred_region
    _
  $region89: #{_lambda_.1} parent=0 // pred_fallthru
    _
  // Predicated region
  $region90: #{_lambda_.1} parent=0 // pred_check
    _
  $region91: #{_lambda_.1} parent=0 // pred_check_branch
    %122 = sbr.rel (0) target = $region93
  $region92: #{_lambda_.1} parent=0 // pred_region
    _
  $region93: #{_lambda_.1} parent=0 // pred_fallthru
    _
  // Predicated region
  $region94: #{_lambda_.1} parent=0 // pred_check
    _
  $region95: #{_lambda_.1} parent=0 // pred_check_branch
    %124 = sbr.rel (0) target = $region97
  $region96: #{_lambda_.1} parent=0 // pred_region
    _
  $region97: #{_lambda_.1} parent=0 // pred_fallthru
    _
  // Predicated region
  $region98: #{_lambda_.1} parent=0 // pred_check
    _
  $region99: #{_lambda_.1} parent=0 // pred_check_branch
    %126 = sbr.rel (0) target = $region101
  $region100: #{_lambda_.1} parent=0 // pred_region
    _
  $region101: #{_lambda_.1} parent=0 // pred_fallthru
    _
  // Predicated region
  $region102: #{_lambda_.1} parent=0 // pred_check
    _
  $region103: #{_lambda_.1} parent=0 // pred_check_branch
    %128 = sbr.rel (0) target = $region105
  $region104: #{_lambda_.1} parent=0 // pred_region
    _
  $region105: #{_lambda_.1} parent=0 // pred_fallthru
    _
  // Predicated region
  $region106: #{_lambda_.1} parent=0 // pred_check
    _
  $region107: #{_lambda_.1} parent=0 // pred_check_branch
    %130 = sbr.rel (0) target = $region109
  $region108: #{_lambda_.1} parent=0 // pred_region
    _
  $region109: #{_lambda_.1} parent=0 // pred_fallthru
    _
  // Predicated region
  $region110: #{_lambda_.1} parent=0 // pred_check
    _
  $region111: #{_lambda_.1} parent=0 // pred_check_branch
    %132 = sbr.rel (0) target = $region113
  $region112: #{_lambda_.1} parent=0 // pred_region
    _
  $region113: #{_lambda_.1} parent=0 // pred_fallthru
    _
  // Predicated region
  $region114: #{_lambda_.1} parent=0 // pred_check
    _
  $region115: #{_lambda_.1} parent=0 // pred_check_branch
    %134 = sbr.rel (0) target = $region117
  $region116: #{_lambda_.1} parent=0 // pred_region
    _
  $region117: #{_lambda_.1} parent=0 // pred_fallthru
    _
  // Predicated region
  $region118: #{_lambda_.1} parent=0 // pred_check
    _
  $region119: #{_lambda_.1} parent=0 // pred_check_branch
    %136 = sbr.rel (0) target = $region121
  $region120: #{_lambda_.1} parent=0 // pred_region
    _
  $region121: #{_lambda_.1} parent=0 // pred_fallthru
    _
  // Predicated region
  $region122: #{_lambda_.1} parent=0 // pred_check
    _
  $region123: #{_lambda_.1} parent=0 // pred_check_branch
    %138 = sbr.rel (0) target = $region125
  $region124: #{_lambda_.1} parent=0 // pred_region
    _
  $region125: #{_lambda_.1} parent=0 // pred_fallthru
    _
  // Predicated region
  $region126: #{_lambda_.1} parent=0 // pred_check
    _
  $region127: #{_lambda_.1} parent=0 // pred_check_branch
    %140 = sbr.rel (0) target = $region129
  $region128: #{_lambda_.1} parent=0 // pred_region
    _
  $region129: #{_lambda_.1} parent=0 // pred_fallthru
    _
  // Predicated region
  $region130: #{_lambda_.1} parent=0 // pred_check
    _
  $region131: #{_lambda_.1} parent=0 // pred_check_branch
    %142 = sbr.rel (0) target = $region133
  $region132: #{_lambda_.1} parent=0 // pred_region
    _
  $region133: #{_lambda_.1} parent=0 // pred_fallthru
    _
  // Predicated region
  $region134: #{_lambda_.1} parent=0 // pred_check
    _
  $region135: #{_lambda_.1} parent=0 // pred_check_branch
    %144 = sbr.rel (0) target = $region137
  $region136: #{_lambda_.1} parent=0 // pred_region
    _
  $region137: #{_lambda_.1} parent=0 // pred_fallthru
    _
  %v146 = vld [vmem:[%s1] sm:$0xff]
  %v147 = vld [vmem:[%s1 + $0x8] sm:$0xff]
  %v148 = vld [vmem:[%s1 + $0x10] sm:$0xff]
  %v149 = vld [vmem:[%s1 + $0x18] sm:$0xff]
  %v150 = vld [vmem:[%s1 + $0x20] sm:$0xff]
  %v151 = vld [vmem:[%s1 + $0x28] sm:$0xff]
  %v152 = vld [vmem:[%s1 + $0x30] sm:$0xff]
  %v153 = vld [vmem:[%s1 + $0x38] sm:$0xff]
  %v154 = vld [vmem:[%s1 + $0x40] sm:$0xff]
  %v155 = vld [vmem:[%s1 + $0x48] sm:$0xff]
  %v156 = vld [vmem:[%s1 + $0x50] sm:$0xff]
  %v157 = vld [vmem:[%s1 + $0x58] sm:$0xff]
  %v158 = vld [vmem:[%s1 + $0x60] sm:$0xff]
  %v159 = vld [vmem:[%s1 + $0x68] sm:$0xff]
  %v160 = vld [vmem:[%s1 + $0x70] sm:$0xff]
  %v161 = vld [vmem:[%s1 + $0x78] sm:$0xff]
  %v162 = vld [vmem:[%s5] sm:$0xff]
  %v163 = vld [vmem:[%s5 + $0x8] sm:$0xff]
  %v164 = vld [vmem:[%s5 + $0x10] sm:$0xff]
  %v165 = vld [vmem:[%s5 + $0x18] sm:$0xff]
  %v166 = vld [vmem:[%s5 + $0x20] sm:$0xff]
  %v167 = vld [vmem:[%s5 + $0x28] sm:$0xff]
  %v168 = vld [vmem:[%s7] sm:$0x1]
  %v169 = vpack.c.bf16 %v146, 0.0
  %v170 = vpack.c.bf16 %v148, %v147
  %v171 = vpack.c.bf16 %v150, %v149
  %v172 = vpack.c.bf16 %v152, %v151
  %v173 = vpack.c.bf16 %v154, %v153
  %v174 = vpack.c.bf16 %v156, %v155
  %v175 = vpack.c.bf16 %v158, %v157
  %v176 = vpack.c.bf16 %v160, %v159
  %v177 = vpack.c.bf16 %v163, %v162
  %v178 = vpack.c.bf16 %v147, %v146
  %v179 = vpack.c.bf16 %v149, %v148
  %v180 = vpack.c.bf16 %v151, %v150
  %v181 = vpack.c.bf16 %v153, %v152
  %v182 = vpack.c.bf16 %v155, %v154
  %v183 = vpack.c.bf16 %v157, %v156
  %v184 = vpack.c.bf16 %v159, %v158
  %v185 = vpack.c.bf16 %v161, %v160
  %v186 = vpack.c.bf16 %v165, %v164
  %vm187 = vcmask 130048
  %v189 = vsel %vm187, %v178, 0
  %v192 = vsel %vm187, %v179, 0
  %v195 = vsel %vm187, %v180, 0
  %v198 = vsel %vm187, %v181, 0
  %v201 = vsel %vm187, %v182, 0
  %v204 = vsel %vm187, %v183, 0
  %v207 = vsel %vm187, %v184, 0
  %v210 = vsel %vm187, %v185, 0
  %212 = vmatprep.subr.bf16.mxu0 0
  %213 = vmatpush1.bf16.msra.mxu0 %v186
  %214 = vmatprep.subr.bf16.mxu0 0
  %215 = vmatpush1.bf16.msra.mxu0 0
  %216 = vmatprep.subr.bf16.mxu0 0
  %217 = vmatpush1.bf16.msra.mxu0 0
  %218 = vmatprep.subr.bf16.mxu0 0
  %219 = vmatpush1.bf16.msra.mxu0 0
  %220 = vmatprep.subr.bf16.mxu0 0
  %221 = vmatpush1.bf16.msra.mxu0 0
  %222 = vmatprep.subr.bf16.mxu0 0
  %223 = vmatpush1.bf16.msra.mxu0 0
  %224 = vmatprep.subr.bf16.mxu0 0
  %225 = vmatpush1.bf16.msra.mxu0 0
  %226 = vmatprep.subr.bf16.mxu0 0
  %227 = vmatpush1.bf16.msra.mxu0 0
  %228 = vmatprep.subr.bf16.mxu0 0
  %229 = vmatpush1.bf16.msra.mxu0 0
  %230 = vmatprep.subr.bf16.mxu0 0
  %231 = vmatpush1.bf16.msra.mxu0 0
  %232 = vmatprep.subr.bf16.mxu0 0
  %233 = vmatpush1.bf16.msra.mxu0 0
  %234 = vmatprep.subr.bf16.mxu0 0
  %235 = vmatpush1.bf16.msra.mxu0 0
  %236 = vmatprep.subr.bf16.mxu0 0
  %237 = vmatpush1.bf16.msra.mxu0 0
  %238 = vmatprep.subr.bf16.mxu0 0
  %239 = vmatpush1.bf16.msra.mxu0 0
  %240 = vmatprep.subr.bf16.mxu0 0
  %241 = vmatpush1.bf16.msra.mxu0 0
  %242 = vmatprep.subr.bf16.mxu0 0
  %243 = vmatpush1.bf16.msra.mxu0 0
  %244 = vmatprep.mubr.bf16.mxu0 0
  %245 = vmatmul.mubr.bf16.gmra.mrb[0].mxu0 %v189
  %v246 = vpop.f32.mrb[0].mxu0
  %v247 = vadd.f32 0.0, %v246
  %v248 = vpop.f32.mrb[0].mxu0
  %v249 = vpop.f32.mrb[0].mxu0
  %v250 = vadd.f32 0.0, %v249
  %v251 = vpop.f32.mrb[0].mxu0
  %252 = vmatprep.mubr.bf16.mxu0 0
  %253 = vmatmul.mubr.bf16.gmra.mrb[0].mxu0 %v192
  %v254 = vpop.f32.mrb[0].mxu0
  %v255 = vadd.f32 0.0, %v254
  %v256 = vpop.f32.mrb[0].mxu0
  %v257 = vpop.f32.mrb[0].mxu0
  %v258 = vadd.f32 0.0, %v257
  %v259 = vpop.f32.mrb[0].mxu0
  %260 = vmatprep.mubr.bf16.mxu0 0
  %261 = vmatmul.mubr.bf16.gmra.mrb[0].mxu0 %v195
  %v262 = vpop.f32.mrb[0].mxu0
  %v263 = vadd.f32 0.0, %v262
  %v264 = vpop.f32.mrb[0].mxu0
  %v265 = vpop.f32.mrb[0].mxu0
  %v266 = vadd.f32 0.0, %v265
  %v267 = vpop.f32.mrb[0].mxu0
  %268 = vmatprep.mubr.bf16.mxu0 0
  %269 = vmatmul.mubr.bf16.gmra.mrb[0].mxu0 %v198
  %v270 = vpop.f32.mrb[0].mxu0
  %v271 = vadd.f32 0.0, %v270
  %v272 = vpop.f32.mrb[0].mxu0
  %v273 = vpop.f32.mrb[0].mxu0
  %v274 = vadd.f32 0.0, %v273
  %v275 = vpop.f32.mrb[0].mxu0
  %276 = vmatprep.mubr.bf16.mxu0 0
  %277 = vmatmul.mubr.bf16.gmra.mrb[0].mxu0 %v201
  %v278 = vpop.f32.mrb[0].mxu0
  %v279 = vadd.f32 0.0, %v278
  %v280 = vpop.f32.mrb[0].mxu0
  %v281 = vpop.f32.mrb[0].mxu0
  %v282 = vadd.f32 0.0, %v281
  %v283 = vpop.f32.mrb[0].mxu0
  %284 = vmatprep.mubr.bf16.mxu0 0
  %285 = vmatmul.mubr.bf16.gmra.mrb[0].mxu0 %v204
  %v286 = vpop.f32.mrb[0].mxu0
  %v287 = vadd.f32 0.0, %v286
  %v288 = vpop.f32.mrb[0].mxu0
  %v289 = vpop.f32.mrb[0].mxu0
  %v290 = vadd.f32 0.0, %v289
  %v291 = vpop.f32.mrb[0].mxu0
  %292 = vmatprep.mubr.bf16.mxu0 0
  %293 = vmatmul.mubr.bf16.gmra.mrb[0].mxu0 %v207
  %v294 = vpop.f32.mrb[0].mxu0
  %v295 = vadd.f32 0.0, %v294
  %v296 = vpop.f32.mrb[0].mxu0
  %v297 = vpop.f32.mrb[0].mxu0
  %v298 = vadd.f32 0.0, %v297
  %v299 = vpop.f32.mrb[0].mxu0
  %300 = vmatprep.mubr.bf16.mxu0 0
  %301 = vmatmul.mubr.bf16.gmra.mrb[0].mxu0 %v210
  %v302 = vpop.f32.mrb[0].mxu0
  %v303 = vadd.f32 0.0, %v302
  %v304 = vpop.f32.mrb[0].mxu0
  %v305 = vpop.f32.mrb[0].mxu0
  %v306 = vadd.f32 0.0, %v305
  %v307 = vpop.f32.mrb[0].mxu0
  %308 = vdwg.mxu0
  %v310 = vsel %vm187, %v169, 0
  %v313 = vsel %vm187, %v170, 0
  %v316 = vsel %vm187, %v171, 0
  %v319 = vsel %vm187, %v172, 0
  %v322 = vsel %vm187, %v173, 0
  %v325 = vsel %vm187, %v174, 0
  %v328 = vsel %vm187, %v175, 0
  %v331 = vsel %vm187, %v176, 0
  %333 = vmatprep.subr.bf16.mxu0 0
  %334 = vmatpush1.bf16.msra.mxu0 %v177
  %335 = vmatprep.subr.bf16.mxu0 0
  %336 = vmatpush1.bf16.msra.mxu0 0
  %337 = vmatprep.subr.bf16.mxu0 0
  %338 = vmatpush1.bf16.msra.mxu0 0
  %339 = vmatprep.subr.bf16.mxu0 0
  %340 = vmatpush1.bf16.msra.mxu0 0
  %341 = vmatprep.subr.bf16.mxu0 0
  %342 = vmatpush1.bf16.msra.mxu0 0
  %343 = vmatprep.subr.bf16.mxu0 0
  %344 = vmatpush1.bf16.msra.mxu0 0
  %345 = vmatprep.subr.bf16.mxu0 0
  %346 = vmatpush1.bf16.msra.mxu0 0
  %347 = vmatprep.subr.bf16.mxu0 0
  %348 = vmatpush1.bf16.msra.mxu0 0
  %349 = vmatprep.subr.bf16.mxu0 0
  %350 = vmatpush1.bf16.msra.mxu0 0
  %351 = vmatprep.subr.bf16.mxu0 0
  %352 = vmatpush1.bf16.msra.mxu0 0
  %353 = vmatprep.subr.bf16.mxu0 0
  %354 = vmatpush1.bf16.msra.mxu0 0
  %355 = vmatprep.subr.bf16.mxu0 0
  %356 = vmatpush1.bf16.msra.mxu0 0
  %357 = vmatprep.subr.bf16.mxu0 0
  %358 = vmatpush1.bf16.msra.mxu0 0
  %359 = vmatprep.subr.bf16.mxu0 0
  %360 = vmatpush1.bf16.msra.mxu0 0
  %361 = vmatprep.subr.bf16.mxu0 0
  %362 = vmatpush1.bf16.msra.mxu0 0
  %363 = vmatprep.subr.bf16.mxu0 0
  %364 = vmatpush1.bf16.msra.mxu0 0
  %365 = vmatprep.mubr.bf16.mxu0 0
  %366 = vmatmul.mubr.bf16.gmra.mrb[0].mxu0 %v310
  %v367 = vpop.f32.mrb[0].mxu0
  %v368 = vadd.f32 %v247, %v367
  %v369 = vpop.f32.mrb[0].mxu0
  %v370 = vpop.f32.mrb[0].mxu0
  %v371 = vadd.f32 %v250, %v370
  %v372 = vpop.f32.mrb[0].mxu0
  %373 = vmatprep.mubr.bf16.mxu0 0
  %374 = vmatmul.mubr.bf16.gmra.mrb[0].mxu0 %v313
  %v375 = vpop.f32.mrb[0].mxu0
  %v376 = vadd.f32 %v255, %v375
  %v377 = vpop.f32.mrb[0].mxu0
  %v378 = vpop.f32.mrb[0].mxu0
  %v379 = vadd.f32 %v258, %v378
  %v380 = vpop.f32.mrb[0].mxu0
  %381 = vmatprep.mubr.bf16.mxu0 0
  %382 = vmatmul.mubr.bf16.gmra.mrb[0].mxu0 %v316
  %v383 = vpop.f32.mrb[0].mxu0
  %v384 = vadd.f32 %v263, %v383
  %v385 = vpop.f32.mrb[0].mxu0
  %v386 = vpop.f32.mrb[0].mxu0
  %v387 = vadd.f32 %v266, %v386
  %v388 = vpop.f32.mrb[0].mxu0
  %389 = vmatprep.mubr.bf16.mxu0 0
  %390 = vmatmul.mubr.bf16.gmra.mrb[0].mxu0 %v319
  %v391 = vpop.f32.mrb[0].mxu0
  %v392 = vadd.f32 %v271, %v391
  %v393 = vpop.f32.mrb[0].mxu0
  %v394 = vpop.f32.mrb[0].mxu0
  %v395 = vadd.f32 %v274, %v394
  %v396 = vpop.f32.mrb[0].mxu0
  %397 = vmatprep.mubr.bf16.mxu0 0
  %398 = vmatmul.mubr.bf16.gmra.mrb[0].mxu0 %v322
  %v399 = vpop.f32.mrb[0].mxu0
  %v400 = vadd.f32 %v279, %v399
  %v401 = vpop.f32.mrb[0].mxu0
  %v402 = vpop.f32.mrb[0].mxu0
  %v403 = vadd.f32 %v282, %v402
  %v404 = vpop.f32.mrb[0].mxu0
  %405 = vmatprep.mubr.bf16.mxu0 0
  %406 = vmatmul.mubr.bf16.gmra.mrb[0].mxu0 %v325
  %v407 = vpop.f32.mrb[0].mxu0
  %v408 = vadd.f32 %v287, %v407
  %v409 = vpop.f32.mrb[0].mxu0
  %v410 = vpop.f32.mrb[0].mxu0
  %v411 = vadd.f32 %v290, %v410
  %v412 = vpop.f32.mrb[0].mxu0
  %413 = vmatprep.mubr.bf16.mxu0 0
  %414 = vmatmul.mubr.bf16.gmra.mrb[0].mxu0 %v328
  %v415 = vpop.f32.mrb[0].mxu0
  %v416 = vadd.f32 %v295, %v415
  %v417 = vpop.f32.mrb[0].mxu0
  %v418 = vpop.f32.mrb[0].mxu0
  %v419 = vadd.f32 %v298, %v418
  %v420 = vpop.f32.mrb[0].mxu0
  %421 = vmatprep.mubr.bf16.mxu0 0
  %422 = vmatmul.mubr.bf16.gmra.mrb[0].mxu0 %v331
  %v423 = vpop.f32.mrb[0].mxu0
  %v424 = vadd.f32 %v303, %v423
  %v425 = vpop.f32.mrb[0].mxu0
  %v426 = vpop.f32.mrb[0].mxu0
  %v427 = vadd.f32 %v306, %v426
  %v428 = vpop.f32.mrb[0].mxu0
  %429 = vdwg.mxu0
  %v430 = vpack.c.bf16 0.0, %v161
  %v431 = vpack.c.bf16 %v167, %v166
  %v433 = vsel %vm187, %v430, 0
  %435 = vmatprep.subr.bf16.mxu0 0
  %436 = vmatpush1.bf16.msra.mxu0 %v431
  %437 = vmatprep.subr.bf16.mxu0 0
  %438 = vmatpush1.bf16.msra.mxu0 0
  %439 = vmatprep.subr.bf16.mxu0 0
  %440 = vmatpush1.bf16.msra.mxu0 0
  %441 = vmatprep.subr.bf16.mxu0 0
  %442 = vmatpush1.bf16.msra.mxu0 0
  %443 = vmatprep.subr.bf16.mxu0 0
  %444 = vmatpush1.bf16.msra.mxu0 0
  %445 = vmatprep.subr.bf16.mxu0 0
  %446 = vmatpush1.bf16.msra.mxu0 0
  %447 = vmatprep.subr.bf16.mxu0 0
  %448 = vmatpush1.bf16.msra.mxu0 0
  %449 = vmatprep.subr.bf16.mxu0 0
  %450 = vmatpush1.bf16.msra.mxu0 0
  %451 = vmatprep.subr.bf16.mxu0 0
  %452 = vmatpush1.bf16.msra.mxu0 0
  %453 = vmatprep.subr.bf16.mxu0 0
  %454 = vmatpush1.bf16.msra.mxu0 0
  %455 = vmatprep.subr.bf16.mxu0 0
  %456 = vmatpush1.bf16.msra.mxu0 0
  %457 = vmatprep.subr.bf16.mxu0 0
  %458 = vmatpush1.bf16.msra.mxu0 0
  %459 = vmatprep.subr.bf16.mxu0 0
  %460 = vmatpush1.bf16.msra.mxu0 0
  %461 = vmatprep.subr.bf16.mxu0 0
  %462 = vmatpush1.bf16.msra.mxu0 0
  %463 = vmatprep.subr.bf16.mxu0 0
  %464 = vmatpush1.bf16.msra.mxu0 0
  %465 = vmatprep.subr.bf16.mxu0 0
  %466 = vmatpush1.bf16.msra.mxu0 0
  %467 = vmatprep.mubr.bf16.mxu0 0
  %468 = vmatmul.mubr.bf16.gmra.mrb[0].mxu0 %v313
  %v469 = vpop.f32.mrb[0].mxu0
  %v470 = vadd.f32 0.0, %v469
  %v471 = vpop.f32.mrb[0].mxu0
  %v472 = vpop.f32.mrb[0].mxu0
  %v473 = vadd.f32 0.0, %v472
  %v474 = vpop.f32.mrb[0].mxu0
  %475 = vmatprep.mubr.bf16.mxu0 0
  %476 = vmatmul.mubr.bf16.gmra.mrb[0].mxu0 %v316
  %v477 = vpop.f32.mrb[0].mxu0
  %v478 = vadd.f32 0.0, %v477
  %v479 = vpop.f32.mrb[0].mxu0
  %v480 = vpop.f32.mrb[0].mxu0
  %v481 = vadd.f32 0.0, %v480
  %v482 = vpop.f32.mrb[0].mxu0
  %483 = vmatprep.mubr.bf16.mxu0 0
  %484 = vmatmul.mubr.bf16.gmra.mrb[0].mxu0 %v319
  %v485 = vpop.f32.mrb[0].mxu0
  %v486 = vadd.f32 0.0, %v485
  %v487 = vpop.f32.mrb[0].mxu0
  %v488 = vpop.f32.mrb[0].mxu0
  %v489 = vadd.f32 0.0, %v488
  %v490 = vpop.f32.mrb[0].mxu0
  %491 = vmatprep.mubr.bf16.mxu0 0
  %492 = vmatmul.mubr.bf16.gmra.mrb[0].mxu0 %v322
  %v493 = vpop.f32.mrb[0].mxu0
  %v494 = vadd.f32 0.0, %v493
  %v495 = vpop.f32.mrb[0].mxu0
  %v496 = vpop.f32.mrb[0].mxu0
  %v497 = vadd.f32 0.0, %v496
  %v498 = vpop.f32.mrb[0].mxu0
  %499 = vmatprep.mubr.bf16.mxu0 0
  %500 = vmatmul.mubr.bf16.gmra.mrb[0].mxu0 %v325
  %v501 = vpop.f32.mrb[0].mxu0
  %v502 = vadd.f32 0.0, %v501
  %v503 = vpop.f32.mrb[0].mxu0
  %v504 = vpop.f32.mrb[0].mxu0
  %v505 = vadd.f32 0.0, %v504
  %v506 = vpop.f32.mrb[0].mxu0
  %507 = vmatprep.mubr.bf16.mxu0 0
  %508 = vmatmul.mubr.bf16.gmra.mrb[0].mxu0 %v328
  %v509 = vpop.f32.mrb[0].mxu0
  %v510 = vadd.f32 0.0, %v509
  %v511 = vpop.f32.mrb[0].mxu0
  %v512 = vpop.f32.mrb[0].mxu0
  %v513 = vadd.f32 0.0, %v512
  %v514 = vpop.f32.mrb[0].mxu0
  %515 = vmatprep.mubr.bf16.mxu0 0
  %516 = vmatmul.mubr.bf16.gmra.mrb[0].mxu0 %v331
  %v517 = vpop.f32.mrb[0].mxu0
  %v518 = vadd.f32 0.0, %v517
  %v519 = vpop.f32.mrb[0].mxu0
  %v520 = vpop.f32.mrb[0].mxu0
  %v521 = vadd.f32 0.0, %v520
  %v522 = vpop.f32.mrb[0].mxu0
  %523 = vmatprep.mubr.bf16.mxu0 0
  %524 = vmatmul.mubr.bf16.gmra.mrb[0].mxu0 %v433
  %v525 = vpop.f32.mrb[0].mxu0
  %v526 = vadd.f32 0.0, %v525
  %v527 = vpop.f32.mrb[0].mxu0
  %v528 = vpop.f32.mrb[0].mxu0
  %v529 = vadd.f32 0.0, %v528
  %v530 = vpop.f32.mrb[0].mxu0
  %531 = vdwg.mxu0
  %v532 = vadd.f32 %v368, %v470
  %v533 = vadd.f32 %v371, %v473
  %v534 = vadd.f32 %v376, %v478
  %v535 = vadd.f32 %v379, %v481
  %v536 = vadd.f32 %v384, %v486
  %v537 = vadd.f32 %v387, %v489
  %v538 = vadd.f32 %v392, %v494
  %v539 = vadd.f32 %v395, %v497
  %v540 = vadd.f32 %v400, %v502
  %v541 = vadd.f32 %v403, %v505
  %v542 = vadd.f32 %v408, %v510
  %v543 = vadd.f32 %v411, %v513
  %v544 = vadd.f32 %v416, %v518
  %v545 = vadd.f32 %v419, %v521
  %v546 = vadd.f32 %v424, %v526
  %v547 = vadd.f32 %v427, %v529
  %v549 = vlaneseq
  %v550 = vshrl.u32 %v549, 7
  %v551 = vsub.s32 0, %v550
  %v552 = vrot.slane %v168, %v551
  %v554 = vadd.f32 %v532, %v552
  %v555 = vadd.f32 %v533, %v552
  %v556 = vadd.f32 %v534, %v552
  %v557 = vadd.f32 %v535, %v552
  %v558 = vadd.f32 %v536, %v552
  %v559 = vadd.f32 %v537, %v552
  %v560 = vadd.f32 %v538, %v552
  %v561 = vadd.f32 %v539, %v552
  %v562 = vadd.f32 %v540, %v552
  %v563 = vadd.f32 %v541, %v552
  %v564 = vadd.f32 %v542, %v552
  %v565 = vadd.f32 %v543, %v552
  %v566 = vadd.f32 %v544, %v552
  %v567 = vadd.f32 %v545, %v552
  %v568 = vadd.f32 %v546, %v552
  %v569 = vadd.f32 %v547, %v552
  %v570 = vmul.f32 %v554, 0.5
  %v571 = vmul.f32 %v555, 0.5
  %v572 = vmul.f32 %v556, 0.5
  %v573 = vmul.f32 %v557, 0.5
  %v574 = vmul.f32 %v558, 0.5
  %v575 = vmul.f32 %v559, 0.5
  %v576 = vmul.f32 %v560, 0.5
  %v577 = vmul.f32 %v561, 0.5
  %v578 = vmul.f32 %v562, 0.5
  %v579 = vmul.f32 %v563, 0.5
  %v580 = vmul.f32 %v564, 0.5
  %v581 = vmul.f32 %v565, 0.5
  %v582 = vmul.f32 %v566, 0.5
  %v583 = vmul.f32 %v567, 0.5
  %v584 = vmul.f32 %v568, 0.5
  %v585 = vmul.f32 %v569, 0.5
  %v586 = vmul.f32 %v554, 0.044715
  %v587 = vmul.f32 %v555, 0.044715
  %v588 = vmul.f32 %v556, 0.044715
  %v589 = vmul.f32 %v557, 0.044715
  %v590 = vmul.f32 %v558, 0.044715
  %v591 = vmul.f32 %v559, 0.044715
  %v592 = vmul.f32 %v560, 0.044715
  %v593 = vmul.f32 %v561, 0.044715
  %v594 = vmul.f32 %v562, 0.044715
  %v595 = vmul.f32 %v563, 0.044715
  %v596 = vmul.f32 %v564, 0.044715
  %v597 = vmul.f32 %v565, 0.044715
  %v598 = vmul.f32 %v566, 0.044715
  %v599 = vmul.f32 %v567, 0.044715
  %v600 = vmul.f32 %v568, 0.044715
  %v601 = vmul.f32 %v569, 0.044715
  %v602 = vmul.f32 %v586, %v554
  %v603 = vmul.f32 %v587, %v555
  %v604 = vmul.f32 %v588, %v556
  %v605 = vmul.f32 %v589, %v557
  %v606 = vmul.f32 %v590, %v558
  %v607 = vmul.f32 %v591, %v559
  %v608 = vmul.f32 %v592, %v560
  %v609 = vmul.f32 %v593, %v561
  %v610 = vmul.f32 %v594, %v562
  %v611 = vmul.f32 %v595, %v563
  %v612 = vmul.f32 %v596, %v564
  %v613 = vmul.f32 %v597, %v565
  %v614 = vmul.f32 %v598, %v566
  %v615 = vmul.f32 %v599, %v567
  %v616 = vmul.f32 %v600, %v568
  %v617 = vmul.f32 %v601, %v569
  %v618 = vmul.f32 %v602, %v554
  %v619 = vmul.f32 %v603, %v555
  %v620 = vmul.f32 %v604, %v556
  %v621 = vmul.f32 %v605, %v557
  %v622 = vmul.f32 %v606, %v558
  %v623 = vmul.f32 %v607, %v559
  %v624 = vmul.f32 %v608, %v560
  %v625 = vmul.f32 %v609, %v561
  %v626 = vmul.f32 %v610, %v562
  %v627 = vmul.f32 %v611, %v563
  %v628 = vmul.f32 %v612, %v564
  %v629 = vmul.f32 %v613, %v565
  %v630 = vmul.f32 %v614, %v566
  %v631 = vmul.f32 %v615, %v567
  %v632 = vmul.f32 %v616, %v568
  %v633 = vmul.f32 %v617, %v569
  %v634 = vadd.f32 %v554, %v618
  %v635 = vadd.f32 %v555, %v619
  %v636 = vadd.f32 %v556, %v620
  %v637 = vadd.f32 %v557, %v621
  %v638 = vadd.f32 %v558, %v622
  %v639 = vadd.f32 %v559, %v623
  %v640 = vadd.f32 %v560, %v624
  %v641 = vadd.f32 %v561, %v625
  %v642 = vadd.f32 %v562, %v626
  %v643 = vadd.f32 %v563, %v627
  %v644 = vadd.f32 %v564, %v628
  %v645 = vadd.f32 %v565, %v629
  %v646 = vadd.f32 %v566, %v630
  %v647 = vadd.f32 %v567, %v631
  %v648 = vadd.f32 %v568, %v632
  %v649 = vadd.f32 %v569, %v633
  %v650 = vmul.f32 %v634, 0.7978846
  %v651 = vmul.f32 %v635, 0.7978846
  %v652 = vmul.f32 %v636, 0.7978846
  %v653 = vmul.f32 %v637, 0.7978846
  %v654 = vmul.f32 %v638, 0.7978846
  %v655 = vmul.f32 %v639, 0.7978846
  %v656 = vmul.f32 %v640, 0.7978846
  %v657 = vmul.f32 %v641, 0.7978846
  %v658 = vmul.f32 %v642, 0.7978846
  %v659 = vmul.f32 %v643, 0.7978846
  %v660 = vmul.f32 %v644, 0.7978846
  %v661 = vmul.f32 %v645, 0.7978846
  %v662 = vmul.f32 %v646, 0.7978846
  %v663 = vmul.f32 %v647, 0.7978846
  %v664 = vmul.f32 %v648, 0.7978846
  %v665 = vmul.f32 %v649, 0.7978846
  %v666 = vtanh.pop %v650
  %v667 = vtanh.pop %v651
  %v668 = vtanh.pop %v652
  %v669 = vtanh.pop %v653
  %v670 = vtanh.pop %v654
  %v671 = vtanh.pop %v655
  %v672 = vtanh.pop %v656
  %v673 = vtanh.pop %v657
  %v674 = vtanh.pop %v658
  %v675 = vtanh.pop %v659
  %v676 = vtanh.pop %v660
  %v677 = vtanh.pop %v661
  %v678 = vtanh.pop %v662
  %v679 = vtanh.pop %v663
  %v680 = vtanh.pop %v664
  %v681 = vtanh.pop %v665
  %v682 = vadd.f32 %v666, 1.0
  %v683 = vadd.f32 %v667, 1.0
  %v684 = vadd.f32 %v668, 1.0
  %v685 = vadd.f32 %v669, 1.0
  %v686 = vadd.f32 %v670, 1.0
  %v687 = vadd.f32 %v671, 1.0
  %v688 = vadd.f32 %v672, 1.0
  %v689 = vadd.f32 %v673, 1.0
  %v690 = vadd.f32 %v674, 1.0
  %v691 = vadd.f32 %v675, 1.0
  %v692 = vadd.f32 %v676, 1.0
  %v693 = vadd.f32 %v677, 1.0
  %v694 = vadd.f32 %v678, 1.0
  %v695 = vadd.f32 %v679, 1.0
  %v696 = vadd.f32 %v680, 1.0
  %v697 = vadd.f32 %v681, 1.0
  %v698 = vmul.f32 %v570, %v682
  %v699 = vmul.f32 %v571, %v683
  %v700 = vmul.f32 %v572, %v684
  %v701 = vmul.f32 %v573, %v685
  %v702 = vmul.f32 %v574, %v686
  %v703 = vmul.f32 %v575, %v687
  %v704 = vmul.f32 %v576, %v688
  %v705 = vmul.f32 %v577, %v689
  %v706 = vmul.f32 %v578, %v690
  %v707 = vmul.f32 %v579, %v691
  %v708 = vmul.f32 %v580, %v692
  %v709 = vmul.f32 %v581, %v693
  %v710 = vmul.f32 %v582, %v694
  %v711 = vmul.f32 %v583, %v695
  %v712 = vmul.f32 %v584, %v696
  %v713 = vmul.f32 %v585, %v697
  %v714 = vld [vmem:[%s9] sm:$0xff]
  %v715 = vld [vmem:[%s9 + $0x8] sm:$0xff]
  %v716 = vld [vmem:[%s9 + $0x10] sm:$0xff]
  %v717 = vld [vmem:[%s9 + $0x18] sm:$0xff]
  %v718 = vld [vmem:[%s9 + $0x20] sm:$0xff]
  %v719 = vld [vmem:[%s9 + $0x28] sm:$0xff]
  %v720 = vld [vmem:[%s9 + $0x30] sm:$0xff]
  %v721 = vld [vmem:[%s9 + $0x38] sm:$0xff]
  %v722 = vld [vmem:[%s9 + $0x40] sm:$0xff]
  %v723 = vld [vmem:[%s9 + $0x48] sm:$0xff]
  %v724 = vld [vmem:[%s9 + $0x50] sm:$0xff]
  %v725 = vld [vmem:[%s9 + $0x58] sm:$0xff]
  %v726 = vld [vmem:[%s9 + $0x60] sm:$0xff]
  %v727 = vld [vmem:[%s9 + $0x68] sm:$0xff]
  %v728 = vld [vmem:[%s9 + $0x70] sm:$0xff]
  %v729 = vld [vmem:[%s9 + $0x78] sm:$0xff]
  %v730 = vld [vmem:[%s9 + $0x80] sm:$0xff]
  %v731 = vld [vmem:[%s9 + $0x88] sm:$0xff]
  %v732 = vld [vmem:[%s9 + $0x90] sm:$0xff]
  %v733 = vld [vmem:[%s9 + $0x98] sm:$0xff]
  %v734 = vld [vmem:[%s9 + $0xa0] sm:$0xff]
  %v735 = vld [vmem:[%s9 + $0xa8] sm:$0xff]
  %v736 = vld [vmem:[%s9 + $0xb0] sm:$0xff]
  %v737 = vld [vmem:[%s9 + $0xb8] sm:$0xff]
  %v738 = vld [vmem:[%s11] sm:$0x1]
  %v739 = vpack.c.bf16 %v698, 0.0
  %v740 = vpack.c.bf16 %v700, %v699
  %v741 = vpack.c.bf16 %v702, %v701
  %v742 = vpack.c.bf16 %v704, %v703
  %v743 = vpack.c.bf16 %v706, %v705
  %v744 = vpack.c.bf16 %v708, %v707
  %v745 = vpack.c.bf16 %v710, %v709
  %v746 = vpack.c.bf16 %v712, %v711
  %v747 = vpack.c.bf16 %v715, %v714
  %v748 = vpack.c.bf16 %v717, %v716
  %v749 = vpack.c.bf16 %v719, %v718
  %v750 = vpack.c.bf16 %v721, %v720
  %v751 = vpack.c.bf16 %v699, %v698
  %v752 = vpack.c.bf16 %v701, %v700
  %v753 = vpack.c.bf16 %v703, %v702
  %v754 = vpack.c.bf16 %v705, %v704
  %v755 = vpack.c.bf16 %v707, %v706
  %v756 = vpack.c.bf16 %v709, %v708
  %v757 = vpack.c.bf16 %v711, %v710
  %v758 = vpack.c.bf16 %v713, %v712
  %v759 = vpack.c.bf16 %v723, %v722
  %v760 = vpack.c.bf16 %v725, %v724
  %v761 = vpack.c.bf16 %v727, %v726
  %v762 = vpack.c.bf16 %v729, %v728
  %vm763 = vcmask 523264
  %v765 = vsel %vm763, %v751, 0
  %v768 = vsel %vm763, %v752, 0
  %v771 = vsel %vm763, %v753, 0
  %v774 = vsel %vm763, %v754, 0
  %v777 = vsel %vm763, %v755, 0
  %v780 = vsel %vm763, %v756, 0
  %v783 = vsel %vm763, %v757, 0
  %v786 = vsel %vm763, %v758, 0
  %788 = vmatprep.subr.bf16.mxu0 0
  %789 = vmatpush1.bf16.msra.mxu0 %v759
  %790 = vmatprep.subr.bf16.mxu0 0
  %791 = vmatpush1.bf16.msra.mxu0 %v760
  %792 = vmatprep.subr.bf16.mxu0 0
  %793 = vmatpush1.bf16.msra.mxu0 %v761
  %794 = vmatprep.subr.bf16.mxu0 0
  %795 = vmatpush1.bf16.msra.mxu0 %v762
  %796 = vmatprep.subr.bf16.mxu0 0
  %797 = vmatpush1.bf16.msra.mxu0 0
  %798 = vmatprep.subr.bf16.mxu0 0
  %799 = vmatpush1.bf16.msra.mxu0 0
  %800 = vmatprep.subr.bf16.mxu0 0
  %801 = vmatpush1.bf16.msra.mxu0 0
  %802 = vmatprep.subr.bf16.mxu0 0
  %803 = vmatpush1.bf16.msra.mxu0 0
  %804 = vmatprep.subr.bf16.mxu0 0
  %805 = vmatpush1.bf16.msra.mxu0 0
  %806 = vmatprep.subr.bf16.mxu0 0
  %807 = vmatpush1.bf16.msra.mxu0 0
  %808 = vmatprep.subr.bf16.mxu0 0
  %809 = vmatpush1.bf16.msra.mxu0 0
  %810 = vmatprep.subr.bf16.mxu0 0
  %811 = vmatpush1.bf16.msra.mxu0 0
  %812 = vmatprep.subr.bf16.mxu0 0
  %813 = vmatpush1.bf16.msra.mxu0 0
  %814 = vmatprep.subr.bf16.mxu0 0
  %815 = vmatpush1.bf16.msra.mxu0 0
  %816 = vmatprep.subr.bf16.mxu0 0
  %817 = vmatpush1.bf16.msra.mxu0 0
  %818 = vmatprep.subr.bf16.mxu0 0
  %819 = vmatpush1.bf16.msra.mxu0 0
  %820 = vmatprep.mubr.bf16.mxu0 0
  %821 = vmatmul.mubr.bf16.gmra.mrb[0].mxu0 %v765
  %v822 = vpop.f32.mrb[0].mxu0
  %v823 = vadd.f32 0.0, %v822
  %v824 = vpop.f32.mrb[0].mxu0
  %v825 = vpop.f32.mrb[0].mxu0
  %v826 = vadd.f32 0.0, %v825
  %v827 = vpop.f32.mrb[0].mxu0
  %828 = vmatprep.mubr.bf16.mxu0 0
  %829 = vmatmul.mubr.bf16.gmra.mrb[0].mxu0 %v768
  %v830 = vpop.f32.mrb[0].mxu0
  %v831 = vadd.f32 0.0, %v830
  %v832 = vpop.f32.mrb[0].mxu0
  %v833 = vpop.f32.mrb[0].mxu0
  %v834 = vadd.f32 0.0, %v833
  %v835 = vpop.f32.mrb[0].mxu0
  %836 = vmatprep.mubr.bf16.mxu0 0
  %837 = vmatmul.mubr.bf16.gmra.mrb[0].mxu0 %v771
  %v838 = vpop.f32.mrb[0].mxu0
  %v839 = vadd.f32 0.0, %v838
  %v840 = vpop.f32.mrb[0].mxu0
  %v841 = vpop.f32.mrb[0].mxu0
  %v842 = vadd.f32 0.0, %v841
  %v843 = vpop.f32.mrb[0].mxu0
  %844 = vmatprep.mubr.bf16.mxu0 0
  %845 = vmatmul.mubr.bf16.gmra.mrb[0].mxu0 %v774
  %v846 = vpop.f32.mrb[0].mxu0
  %v847 = vadd.f32 0.0, %v846
  %v848 = vpop.f32.mrb[0].mxu0
  %v849 = vpop.f32.mrb[0].mxu0
  %v850 = vadd.f32 0.0, %v849
  %v851 = vpop.f32.mrb[0].mxu0
  %852 = vmatprep.mubr.bf16.mxu0 0
  %853 = vmatmul.mubr.bf16.gmra.mrb[0].mxu0 %v777
  %v854 = vpop.f32.mrb[0].mxu0
  %v855 = vadd.f32 0.0, %v854
  %v856 = vpop.f32.mrb[0].mxu0
  %v857 = vpop.f32.mrb[0].mxu0
  %v858 = vadd.f32 0.0, %v857
  %v859 = vpop.f32.mrb[0].mxu0
  %860 = vmatprep.mubr.bf16.mxu0 0
  %861 = vmatmul.mubr.bf16.gmra.mrb[0].mxu0 %v780
  %v862 = vpop.f32.mrb[0].mxu0
  %v863 = vadd.f32 0.0, %v862
  %v864 = vpop.f32.mrb[0].mxu0
  %v865 = vpop.f32.mrb[0].mxu0
  %v866 = vadd.f32 0.0, %v865
  %v867 = vpop.f32.mrb[0].mxu0
  %868 = vmatprep.mubr.bf16.mxu0 0
  %869 = vmatmul.mubr.bf16.gmra.mrb[0].mxu0 %v783
  %v870 = vpop.f32.mrb[0].mxu0
  %v871 = vadd.f32 0.0, %v870
  %v872 = vpop.f32.mrb[0].mxu0
  %v873 = vpop.f32.mrb[0].mxu0
  %v874 = vadd.f32 0.0, %v873
  %v875 = vpop.f32.mrb[0].mxu0
  %876 = vmatprep.mubr.bf16.mxu0 0
  %877 = vmatmul.mubr.bf16.gmra.mrb[0].mxu0 %v786
  %v878 = vpop.f32.mrb[0].mxu0
  %v879 = vadd.f32 0.0, %v878
  %v880 = vpop.f32.mrb[0].mxu0
  %v881 = vpop.f32.mrb[0].mxu0
  %v882 = vadd.f32 0.0, %v881
  %v883 = vpop.f32.mrb[0].mxu0
  %884 = vdwg.mxu0
  %v886 = vsel %vm763, %v739, 0
  %v889 = vsel %vm763, %v740, 0
  %v892 = vsel %vm763, %v741, 0
  %v895 = vsel %vm763, %v742, 0
  %v898 = vsel %vm763, %v743, 0
  %v901 = vsel %vm763, %v744, 0
  %v904 = vsel %vm763, %v745, 0
  %v907 = vsel %vm763, %v746, 0
  %909 = vmatprep.subr.bf16.mxu0 0
  %910 = vmatpush1.bf16.msra.mxu0 %v747
  %911 = vmatprep.subr.bf16.mxu0 0
  %912 = vmatpush1.bf16.msra.mxu0 %v748
  %913 = vmatprep.subr.bf16.mxu0 0
  %914 = vmatpush1.bf16.msra.mxu0 %v749
  %915 = vmatprep.subr.bf16.mxu0 0
  %916 = vmatpush1.bf16.msra.mxu0 %v750
  %917 = vmatprep.subr.bf16.mxu0 0
  %918 = vmatpush1.bf16.msra.mxu0 0
  %919 = vmatprep.subr.bf16.mxu0 0
  %920 = vmatpush1.bf16.msra.mxu0 0
  %921 = vmatprep.subr.bf16.mxu0 0
  %922 = vmatpush1.bf16.msra.mxu0 0
  %923 = vmatprep.subr.bf16.mxu0 0
  %924 = vmatpush1.bf16.msra.mxu0 0
  %925 = vmatprep.subr.bf16.mxu0 0
  %926 = vmatpush1.bf16.msra.mxu0 0
  %927 = vmatprep.subr.bf16.mxu0 0
  %928 = vmatpush1.bf16.msra.mxu0 0
  %929 = vmatprep.subr.bf16.mxu0 0
  %930 = vmatpush1.bf16.msra.mxu0 0
  %931 = vmatprep.subr.bf16.mxu0 0
  %932 = vmatpush1.bf16.msra.mxu0 0
  %933 = vmatprep.subr.bf16.mxu0 0
  %934 = vmatpush1.bf16.msra.mxu0 0
  %935 = vmatprep.subr.bf16.mxu0 0
  %936 = vmatpush1.bf16.msra.mxu0 0
  %937 = vmatprep.subr.bf16.mxu0 0
  %938 = vmatpush1.bf16.msra.mxu0 0
  %939 = vmatprep.subr.bf16.mxu0 0
  %940 = vmatpush1.bf16.msra.mxu0 0
  %941 = vmatprep.mubr.bf16.mxu0 0
  %942 = vmatmul.mubr.bf16.gmra.mrb[0].mxu0 %v886
  %v943 = vpop.f32.mrb[0].mxu0
  %v944 = vadd.f32 %v823, %v943
  %v945 = vpop.f32.mrb[0].mxu0
  %v946 = vpop.f32.mrb[0].mxu0
  %v947 = vadd.f32 %v826, %v946
  %v948 = vpop.f32.mrb[0].mxu0
  %949 = vmatprep.mubr.bf16.mxu0 0
  %950 = vmatmul.mubr.bf16.gmra.mrb[0].mxu0 %v889
  %v951 = vpop.f32.mrb[0].mxu0
  %v952 = vadd.f32 %v831, %v951
  %v953 = vpop.f32.mrb[0].mxu0
  %v954 = vpop.f32.mrb[0].mxu0
  %v955 = vadd.f32 %v834, %v954
  %v956 = vpop.f32.mrb[0].mxu0
  %957 = vmatprep.mubr.bf16.mxu0 0
  %958 = vmatmul.mubr.bf16.gmra.mrb[0].mxu0 %v892
  %v959 = vpop.f32.mrb[0].mxu0
  %v960 = vadd.f32 %v839, %v959
  %v961 = vpop.f32.mrb[0].mxu0
  %v962 = vpop.f32.mrb[0].mxu0
  %v963 = vadd.f32 %v842, %v962
  %v964 = vpop.f32.mrb[0].mxu0
  %965 = vmatprep.mubr.bf16.mxu0 0
  %966 = vmatmul.mubr.bf16.gmra.mrb[0].mxu0 %v895
  %v967 = vpop.f32.mrb[0].mxu0
  %v968 = vadd.f32 %v847, %v967
  %v969 = vpop.f32.mrb[0].mxu0
  %v970 = vpop.f32.mrb[0].mxu0
  %v971 = vadd.f32 %v850, %v970
  %v972 = vpop.f32.mrb[0].mxu0
  %973 = vmatprep.mubr.bf16.mxu0 0
  %974 = vmatmul.mubr.bf16.gmra.mrb[0].mxu0 %v898
  %v975 = vpop.f32.mrb[0].mxu0
  %v976 = vadd.f32 %v855, %v975
  %v977 = vpop.f32.mrb[0].mxu0
  %v978 = vpop.f32.mrb[0].mxu0
  %v979 = vadd.f32 %v858, %v978
  %v980 = vpop.f32.mrb[0].mxu0
  %981 = vmatprep.mubr.bf16.mxu0 0
  %982 = vmatmul.mubr.bf16.gmra.mrb[0].mxu0 %v901
  %v983 = vpop.f32.mrb[0].mxu0
  %v984 = vadd.f32 %v863, %v983
  %v985 = vpop.f32.mrb[0].mxu0
  %v986 = vpop.f32.mrb[0].mxu0
  %v987 = vadd.f32 %v866, %v986
  %v988 = vpop.f32.mrb[0].mxu0
  %989 = vmatprep.mubr.bf16.mxu0 0
  %990 = vmatmul.mubr.bf16.gmra.mrb[0].mxu0 %v904
  %v991 = vpop.f32.mrb[0].mxu0
  %v992 = vadd.f32 %v871, %v991
  %v993 = vpop.f32.mrb[0].mxu0
  %v994 = vpop.f32.mrb[0].mxu0
  %v995 = vadd.f32 %v874, %v994
  %v996 = vpop.f32.mrb[0].mxu0
  %997 = vmatprep.mubr.bf16.mxu0 0
  %998 = vmatmul.mubr.bf16.gmra.mrb[0].mxu0 %v907
  %v999 = vpop.f32.mrb[0].mxu0
  %v1000 = vadd.f32 %v879, %v999
  %v1001 = vpop.f32.mrb[0].mxu0
  %v1002 = vpop.f32.mrb[0].mxu0
  %v1003 = vadd.f32 %v882, %v1002
  %v1004 = vpop.f32.mrb[0].mxu0
  %1005 = vdwg.mxu0
  %v1006 = vpack.c.bf16 0.0, %v713
  %v1007 = vpack.c.bf16 %v731, %v730
  %v1008 = vpack.c.bf16 %v733, %v732
  %v1009 = vpack.c.bf16 %v735, %v734
  %v1010 = vpack.c.bf16 %v737, %v736
  %v1012 = vsel %vm763, %v1006, 0
  %1014 = vmatprep.subr.bf16.mxu0 0
  %1015 = vmatpush1.bf16.msra.mxu0 %v1007
  %1016 = vmatprep.subr.bf16.mxu0 0
  %1017 = vmatpush1.bf16.msra.mxu0 %v1008
  %1018 = vmatprep.subr.bf16.mxu0 0
  %1019 = vmatpush1.bf16.msra.mxu0 %v1009
  %1020 = vmatprep.subr.bf16.mxu0 0
  %1021 = vmatpush1.bf16.msra.mxu0 %v1010
  %1022 = vmatprep.subr.bf16.mxu0 0
  %1023 = vmatpush1.bf16.msra.mxu0 0
  %1024 = vmatprep.subr.bf16.mxu0 0
  %1025 = vmatpush1.bf16.msra.mxu0 0
  %1026 = vmatprep.subr.bf16.mxu0 0
  %1027 = vmatpush1.bf16.msra.mxu0 0
  %1028 = vmatprep.subr.bf16.mxu0 0
  %1029 = vmatpush1.bf16.msra.mxu0 0
  %1030 = vmatprep.subr.bf16.mxu0 0
  %1031 = vmatpush1.bf16.msra.mxu0 0
  %1032 = vmatprep.subr.bf16.mxu0 0
  %1033 = vmatpush1.bf16.msra.mxu0 0
  %1034 = vmatprep.subr.bf16.mxu0 0
  %1035 = vmatpush1.bf16.msra.mxu0 0
  %1036 = vmatprep.subr.bf16.mxu0 0
  %1037 = vmatpush1.bf16.msra.mxu0 0
  %1038 = vmatprep.subr.bf16.mxu0 0
  %1039 = vmatpush1.bf16.msra.mxu0 0
  %1040 = vmatprep.subr.bf16.mxu0 0
  %1041 = vmatpush1.bf16.msra.mxu0 0
  %1042 = vmatprep.subr.bf16.mxu0 0
  %1043 = vmatpush1.bf16.msra.mxu0 0
  %1044 = vmatprep.subr.bf16.mxu0 0
  %1045 = vmatpush1.bf16.msra.mxu0 0
  %1046 = vmatprep.mubr.bf16.mxu0 0
  %1047 = vmatmul.mubr.bf16.gmra.mrb[0].mxu0 %v889
  %v1048 = vpop.f32.mrb[0].mxu0
  %v1049 = vadd.f32 0.0, %v1048
  %v1050 = vpop.f32.mrb[0].mxu0
  %v1051 = vpop.f32.mrb[0].mxu0
  %v1052 = vadd.f32 0.0, %v1051
  %v1053 = vpop.f32.mrb[0].mxu0
  %1054 = vmatprep.mubr.bf16.mxu0 0
  %1055 = vmatmul.mubr.bf16.gmra.mrb[0].mxu0 %v892
  %v1056 = vpop.f32.mrb[0].mxu0
  %v1057 = vadd.f32 0.0, %v1056
  %v1058 = vpop.f32.mrb[0].mxu0
  %v1059 = vpop.f32.mrb[0].mxu0
  %v1060 = vadd.f32 0.0, %v1059
  %v1061 = vpop.f32.mrb[0].mxu0
  %1062 = vmatprep.mubr.bf16.mxu0 0
  %1063 = vmatmul.mubr.bf16.gmra.mrb[0].mxu0 %v895
  %v1064 = vpop.f32.mrb[0].mxu0
  %v1065 = vadd.f32 0.0, %v1064
  %v1066 = vpop.f32.mrb[0].mxu0
  %v1067 = vpop.f32.mrb[0].mxu0
  %v1068 = vadd.f32 0.0, %v1067
  %v1069 = vpop.f32.mrb[0].mxu0
  %1070 = vmatprep.mubr.bf16.mxu0 0
  %1071 = vmatmul.mubr.bf16.gmra.mrb[0].mxu0 %v898
  %v1072 = vpop.f32.mrb[0].mxu0
  %v1073 = vadd.f32 0.0, %v1072
  %v1074 = vpop.f32.mrb[0].mxu0
  %v1075 = vpop.f32.mrb[0].mxu0
  %v1076 = vadd.f32 0.0, %v1075
  %v1077 = vpop.f32.mrb[0].mxu0
  %1078 = vmatprep.mubr.bf16.mxu0 0
  %1079 = vmatmul.mubr.bf16.gmra.mrb[0].mxu0 %v901
  %v1080 = vpop.f32.mrb[0].mxu0
  %v1081 = vadd.f32 0.0, %v1080
  %v1082 = vpop.f32.mrb[0].mxu0
  %v1083 = vpop.f32.mrb[0].mxu0
  %v1084 = vadd.f32 0.0, %v1083
  %v1085 = vpop.f32.mrb[0].mxu0
  %1086 = vmatprep.mubr.bf16.mxu0 0
  %1087 = vmatmul.mubr.bf16.gmra.mrb[0].mxu0 %v904
  %v1088 = vpop.f32.mrb[0].mxu0
  %v1089 = vadd.f32 0.0, %v1088
  %v1090 = vpop.f32.mrb[0].mxu0
  %v1091 = vpop.f32.mrb[0].mxu0
  %v1092 = vadd.f32 0.0, %v1091
  %v1093 = vpop.f32.mrb[0].mxu0
  %1094 = vmatprep.mubr.bf16.mxu0 0
  %1095 = vmatmul.mubr.bf16.gmra.mrb[0].mxu0 %v907
  %v1096 = vpop.f32.mrb[0].mxu0
  %v1097 = vadd.f32 0.0, %v1096
  %v1098 = vpop.f32.mrb[0].mxu0
  %v1099 = vpop.f32.mrb[0].mxu0
  %v1100 = vadd.f32 0.0, %v1099
  %v1101 = vpop.f32.mrb[0].mxu0
  %1102 = vmatprep.mubr.bf16.mxu0 0
  %1103 = vmatmul.mubr.bf16.gmra.mrb[0].mxu0 %v1012
  %v1104 = vpop.f32.mrb[0].mxu0
  %v1105 = vadd.f32 0.0, %v1104
  %v1106 = vpop.f32.mrb[0].mxu0
  %v1107 = vpop.f32.mrb[0].mxu0
  %v1108 = vadd.f32 0.0, %v1107
  %v1109 = vpop.f32.mrb[0].mxu0
  %1110 = vdwg.mxu0
  %v1111 = vadd.f32 %v944, %v1049
  %v1112 = vadd.f32 %v947, %v1052
  %v1113 = vadd.f32 %v952, %v1057
  %v1114 = vadd.f32 %v955, %v1060
  %v1115 = vadd.f32 %v960, %v1065
  %v1116 = vadd.f32 %v963, %v1068
  %v1117 = vadd.f32 %v968, %v1073
  %v1118 = vadd.f32 %v971, %v1076
  %v1119 = vadd.f32 %v976, %v1081
  %v1120 = vadd.f32 %v979, %v1084
  %v1121 = vadd.f32 %v984, %v1089
  %v1122 = vadd.f32 %v987, %v1092
  %v1123 = vadd.f32 %v992, %v1097
  %v1124 = vadd.f32 %v995, %v1100
  %v1125 = vadd.f32 %v1000, %v1105
  %v1126 = vadd.f32 %v1003, %v1108
  %v1128 = vlaneseq
  %v1129 = vshrl.u32 %v1128, 7
  %v1130 = vsub.s32 0, %v1129
  %v1131 = vrot.slane %v738, %v1130
  %v1133 = vadd.f32 %v1111, %v1131
  %v1134 = vadd.f32 %v1112, %v1131
  %v1135 = vadd.f32 %v1113, %v1131
  %v1136 = vadd.f32 %v1114, %v1131
  %v1137 = vadd.f32 %v1115, %v1131
  %v1138 = vadd.f32 %v1116, %v1131
  %v1139 = vadd.f32 %v1117, %v1131
  %v1140 = vadd.f32 %v1118, %v1131
  %v1141 = vadd.f32 %v1119, %v1131
  %v1142 = vadd.f32 %v1120, %v1131
  %v1143 = vadd.f32 %v1121, %v1131
  %v1144 = vadd.f32 %v1122, %v1131
  %v1145 = vadd.f32 %v1123, %v1131
  %v1146 = vadd.f32 %v1124, %v1131
  %v1147 = vadd.f32 %v1125, %v1131
  %v1148 = vadd.f32 %v1126, %v1131
  %v1149 = vmul.f32 %v1133, 0.5
  %v1150 = vmul.f32 %v1134, 0.5
  %v1151 = vmul.f32 %v1135, 0.5
  %v1152 = vmul.f32 %v1136, 0.5
  %v1153 = vmul.f32 %v1137, 0.5
  %v1154 = vmul.f32 %v1138, 0.5
  %v1155 = vmul.f32 %v1139, 0.5
  %v1156 = vmul.f32 %v1140, 0.5
  %v1157 = vmul.f32 %v1141, 0.5
  %v1158 = vmul.f32 %v1142, 0.5
  %v1159 = vmul.f32 %v1143, 0.5
  %v1160 = vmul.f32 %v1144, 0.5
  %v1161 = vmul.f32 %v1145, 0.5
  %v1162 = vmul.f32 %v1146, 0.5
  %v1163 = vmul.f32 %v1147, 0.5
  %v1164 = vmul.f32 %v1148, 0.5
  %v1165 = vmul.f32 %v1133, 0.044715
  %v1166 = vmul.f32 %v1134, 0.044715
  %v1167 = vmul.f32 %v1135, 0.044715
  %v1168 = vmul.f32 %v1136, 0.044715
  %v1169 = vmul.f32 %v1137, 0.044715
  %v1170 = vmul.f32 %v1138, 0.044715
  %v1171 = vmul.f32 %v1139, 0.044715
  %v1172 = vmul.f32 %v1140, 0.044715
  %v1173 = vmul.f32 %v1141, 0.044715
  %v1174 = vmul.f32 %v1142, 0.044715
  %v1175 = vmul.f32 %v1143, 0.044715
  %v1176 = vmul.f32 %v1144, 0.044715
  %v1177 = vmul.f32 %v1145, 0.044715
  %v1178 = vmul.f32 %v1146, 0.044715
  %v1179 = vmul.f32 %v1147, 0.044715
  %v1180 = vmul.f32 %v1148, 0.044715
  %v1181 = vmul.f32 %v1165, %v1133
  %v1182 = vmul.f32 %v1166, %v1134
  %v1183 = vmul.f32 %v1167, %v1135
  %v1184 = vmul.f32 %v1168, %v1136
  %v1185 = vmul.f32 %v1169, %v1137
  %v1186 = vmul.f32 %v1170, %v1138
  %v1187 = vmul.f32 %v1171, %v1139
  %v1188 = vmul.f32 %v1172, %v1140
  %v1189 = vmul.f32 %v1173, %v1141
  %v1190 = vmul.f32 %v1174, %v1142
  %v1191 = vmul.f32 %v1175, %v1143
  %v1192 = vmul.f32 %v1176, %v1144
  %v1193 = vmul.f32 %v1177, %v1145
  %v1194 = vmul.f32 %v1178, %v1146
  %v1195 = vmul.f32 %v1179, %v1147
  %v1196 = vmul.f32 %v1180, %v1148
  %v1197 = vmul.f32 %v1181, %v1133
  %v1198 = vmul.f32 %v1182, %v1134
  %v1199 = vmul.f32 %v1183, %v1135
  %v1200 = vmul.f32 %v1184, %v1136
  %v1201 = vmul.f32 %v1185, %v1137
  %v1202 = vmul.f32 %v1186, %v1138
  %v1203 = vmul.f32 %v1187, %v1139
  %v1204 = vmul.f32 %v1188, %v1140
  %v1205 = vmul.f32 %v1189, %v1141
  %v1206 = vmul.f32 %v1190, %v1142
  %v1207 = vmul.f32 %v1191, %v1143
  %v1208 = vmul.f32 %v1192, %v1144
  %v1209 = vmul.f32 %v1193, %v1145
  %v1210 = vmul.f32 %v1194, %v1146
  %v1211 = vmul.f32 %v1195, %v1147
  %v1212 = vmul.f32 %v1196, %v1148
  %v1213 = vadd.f32 %v1133, %v1197
  %v1214 = vadd.f32 %v1134, %v1198
  %v1215 = vadd.f32 %v1135, %v1199
  %v1216 = vadd.f32 %v1136, %v1200
  %v1217 = vadd.f32 %v1137, %v1201
  %v1218 = vadd.f32 %v1138, %v1202
  %v1219 = vadd.f32 %v1139, %v1203
  %v1220 = vadd.f32 %v1140, %v1204
  %v1221 = vadd.f32 %v1141, %v1205
  %v1222 = vadd.f32 %v1142, %v1206
  %v1223 = vadd.f32 %v1143, %v1207
  %v1224 = vadd.f32 %v1144, %v1208
  %v1225 = vadd.f32 %v1145, %v1209
  %v1226 = vadd.f32 %v1146, %v1210
  %v1227 = vadd.f32 %v1147, %v1211
  %v1228 = vadd.f32 %v1148, %v1212
  %v1229 = vmul.f32 %v1213, 0.7978846
  %v1230 = vmul.f32 %v1214, 0.7978846
  %v1231 = vmul.f32 %v1215, 0.7978846
  %v1232 = vmul.f32 %v1216, 0.7978846
  %v1233 = vmul.f32 %v1217, 0.7978846
  %v1234 = vmul.f32 %v1218, 0.7978846
  %v1235 = vmul.f32 %v1219, 0.7978846
  %v1236 = vmul.f32 %v1220, 0.7978846
  %v1237 = vmul.f32 %v1221, 0.7978846
  %v1238 = vmul.f32 %v1222, 0.7978846
  %v1239 = vmul.f32 %v1223, 0.7978846
  %v1240 = vmul.f32 %v1224, 0.7978846
  %v1241 = vmul.f32 %v1225, 0.7978846
  %v1242 = vmul.f32 %v1226, 0.7978846
  %v1243 = vmul.f32 %v1227, 0.7978846
  %v1244 = vmul.f32 %v1228, 0.7978846
  %v1245 = vtanh.pop %v1229
  %v1246 = vtanh.pop %v1230
  %v1247 = vtanh.pop %v1231
  %v1248 = vtanh.pop %v1232
  %v1249 = vtanh.pop %v1233
  %v1250 = vtanh.pop %v1234
  %v1251 = vtanh.pop %v1235
  %v1252 = vtanh.pop %v1236
  %v1253 = vtanh.pop %v1237
  %v1254 = vtanh.pop %v1238
  %v1255 = vtanh.pop %v1239
  %v1256 = vtanh.pop %v1240
  %v1257 = vtanh.pop %v1241
  %v1258 = vtanh.pop %v1242
  %v1259 = vtanh.pop %v1243
  %v1260 = vtanh.pop %v1244
  %v1261 = vadd.f32 %v1245, 1.0
  %v1262 = vadd.f32 %v1246, 1.0
  %v1263 = vadd.f32 %v1247, 1.0
  %v1264 = vadd.f32 %v1248, 1.0
  %v1265 = vadd.f32 %v1249, 1.0
  %v1266 = vadd.f32 %v1250, 1.0
  %v1267 = vadd.f32 %v1251, 1.0
  %v1268 = vadd.f32 %v1252, 1.0
  %v1269 = vadd.f32 %v1253, 1.0
  %v1270 = vadd.f32 %v1254, 1.0
  %v1271 = vadd.f32 %v1255, 1.0
  %v1272 = vadd.f32 %v1256, 1.0
  %v1273 = vadd.f32 %v1257, 1.0
  %v1274 = vadd.f32 %v1258, 1.0
  %v1275 = vadd.f32 %v1259, 1.0
  %v1276 = vadd.f32 %v1260, 1.0
  %v1277 = vmul.f32 %v1149, %v1261
  %v1278 = vmul.f32 %v1150, %v1262
  %v1279 = vmul.f32 %v1151, %v1263
  %v1280 = vmul.f32 %v1152, %v1264
  %v1281 = vmul.f32 %v1153, %v1265
  %v1282 = vmul.f32 %v1154, %v1266
  %v1283 = vmul.f32 %v1155, %v1267
  %v1284 = vmul.f32 %v1156, %v1268
  %v1285 = vmul.f32 %v1157, %v1269
  %v1286 = vmul.f32 %v1158, %v1270
  %v1287 = vmul.f32 %v1159, %v1271
  %v1288 = vmul.f32 %v1160, %v1272
  %v1289 = vmul.f32 %v1161, %v1273
  %v1290 = vmul.f32 %v1162, %v1274
  %v1291 = vmul.f32 %v1163, %v1275
  %v1292 = vmul.f32 %v1164, %v1276
  %v1293 = vld [vmem:[%s13] sm:$0xff]
  %v1294 = vld [vmem:[%s13 + $0x8] sm:$0xff]
  %v1295 = vld [vmem:[%s13 + $0x10] sm:$0xff]
  %v1296 = vld [vmem:[%s13 + $0x18] sm:$0xff]
  %v1297 = vld [vmem:[%s13 + $0x20] sm:$0xff]
  %v1298 = vld [vmem:[%s13 + $0x28] sm:$0xff]
  %v1299 = vld [vmem:[%s13 + $0x30] sm:$0xff]
  %v1300 = vld [vmem:[%s13 + $0x38] sm:$0xff]
  %v1301 = vld [vmem:[%s13 + $0x40] sm:$0xff]
  %v1302 = vld [vmem:[%s13 + $0x48] sm:$0xff]
  %v1303 = vld [vmem:[%s13 + $0x50] sm:$0xff]
  %v1304 = vld [vmem:[%s13 + $0x58] sm:$0xff]
  %v1305 = vld [vmem:[%s13 + $0x60] sm:$0xff]
  %v1306 = vld [vmem:[%s13 + $0x68] sm:$0xff]
  %v1307 = vld [vmem:[%s13 + $0x70] sm:$0xff]
  %v1308 = vld [vmem:[%s13 + $0x78] sm:$0xff]
  %v1309 = vld [vmem:[%s13 + $0x80] sm:$0xff]
  %v1310 = vld [vmem:[%s13 + $0x88] sm:$0xff]
  %v1311 = vld [vmem:[%s13 + $0x90] sm:$0xff]
  %v1312 = vld [vmem:[%s13 + $0x98] sm:$0xff]
  %v1313 = vld [vmem:[%s13 + $0xa0] sm:$0xff]
  %v1314 = vld [vmem:[%s13 + $0xa8] sm:$0xff]
  %v1315 = vld [vmem:[%s13 + $0xb0] sm:$0xff]
  %v1316 = vld [vmem:[%s13 + $0xb8] sm:$0xff]
  %v1317 = vld [vmem:[%s15] sm:$0x1]
  %v1318 = vpack.c.bf16 %v1278, 0.0
  %v1319 = vpack.c.bf16 %v1282, %v1280
  %v1320 = vpack.c.bf16 %v1286, %v1284
  %v1321 = vpack.c.bf16 %v1290, %v1288
  %v1322 = vpack.c.bf16 %v1294, %v1293
  %v1323 = vpack.c.bf16 %v1296, %v1295
  %v1324 = vpack.c.bf16 %v1298, %v1297
  %v1325 = vpack.c.bf16 %v1300, %v1299
  %v1326 = vpack.c.bf16 %v1279, %v1277
  %v1327 = vpack.c.bf16 %v1283, %v1281
  %v1328 = vpack.c.bf16 %v1287, %v1285
  %v1329 = vpack.c.bf16 %v1291, %v1289
  %v1330 = vpack.c.bf16 %v1302, %v1301
  %v1331 = vpack.c.bf16 %v1304, %v1303
  %v1332 = vpack.c.bf16 %v1306, %v1305
  %v1333 = vpack.c.bf16 %v1308, %v1307
  %v1335 = vsel %vm763, %v1326, 0
  %v1338 = vsel %vm763, %v1327, 0
  %v1341 = vsel %vm763, %v1328, 0
  %v1344 = vsel %vm763, %v1329, 0
  %1346 = vmatprep.subr.bf16.mxu0 0
  %1347 = vmatpush1.bf16.msra.mxu0 %v1330
  %1348 = vmatprep.subr.bf16.mxu0 0
  %1349 = vmatpush1.bf16.msra.mxu0 %v1331
  %1350 = vmatprep.subr.bf16.mxu0 0
  %1351 = vmatpush1.bf16.msra.mxu0 %v1332
  %1352 = vmatprep.subr.bf16.mxu0 0
  %1353 = vmatpush1.bf16.msra.mxu0 %v1333
  %1354 = vmatprep.subr.bf16.mxu0 0
  %1355 = vmatpush1.bf16.msra.mxu0 0
  %1356 = vmatprep.subr.bf16.mxu0 0
  %1357 = vmatpush1.bf16.msra.mxu0 0
  %1358 = vmatprep.subr.bf16.mxu0 0
  %1359 = vmatpush1.bf16.msra.mxu0 0
  %1360 = vmatprep.subr.bf16.mxu0 0
  %1361 = vmatpush1.bf16.msra.mxu0 0
  %1362 = vmatprep.subr.bf16.mxu0 0
  %1363 = vmatpush1.bf16.msra.mxu0 0
  %1364 = vmatprep.subr.bf16.mxu0 0
  %1365 = vmatpush1.bf16.msra.mxu0 0
  %1366 = vmatprep.subr.bf16.mxu0 0
  %1367 = vmatpush1.bf16.msra.mxu0 0
  %1368 = vmatprep.subr.bf16.mxu0 0
  %1369 = vmatpush1.bf16.msra.mxu0 0
  %1370 = vmatprep.subr.bf16.mxu0 0
  %1371 = vmatpush1.bf16.msra.mxu0 0
  %1372 = vmatprep.subr.bf16.mxu0 0
  %1373 = vmatpush1.bf16.msra.mxu0 0
  %1374 = vmatprep.subr.bf16.mxu0 0
  %1375 = vmatpush1.bf16.msra.mxu0 0
  %1376 = vmatprep.subr.bf16.mxu0 0
  %1377 = vmatpush1.bf16.msra.mxu0 0
  %1378 = vmatprep.mubr.bf16.mxu0 0
  %1379 = vmatmul.mubr.bf16.gmra.mrb[0].mxu0 %v1335
  %v1380 = vpop.f32.mrb[0].mxu0
  %v1381 = vadd.f32 0.0, %v1380
  %v1382 = vpop.f32.mrb[0].mxu0
  %v1383 = vpop.f32.mrb[0].mxu0
  %v1384 = vadd.f32 0.0, %v1383
  %v1385 = vpop.f32.mrb[0].mxu0
  %1386 = vmatprep.mubr.bf16.mxu0 0
  %1387 = vmatmul.mubr.bf16.gmra.mrb[0].mxu0 %v1338
  %v1388 = vpop.f32.mrb[0].mxu0
  %v1389 = vadd.f32 0.0, %v1388
  %v1390 = vpop.f32.mrb[0].mxu0
  %v1391 = vpop.f32.mrb[0].mxu0
  %v1392 = vadd.f32 0.0, %v1391
  %v1393 = vpop.f32.mrb[0].mxu0
  %1394 = vmatprep.mubr.bf16.mxu0 0
  %1395 = vmatmul.mubr.bf16.gmra.mrb[0].mxu0 %v1341
  %v1396 = vpop.f32.mrb[0].mxu0
  %v1397 = vadd.f32 0.0, %v1396
  %v1398 = vpop.f32.mrb[0].mxu0
  %v1399 = vpop.f32.mrb[0].mxu0
  %v1400 = vadd.f32 0.0, %v1399
  %v1401 = vpop.f32.mrb[0].mxu0
  %1402 = vmatprep.mubr.bf16.mxu0 0
  %1403 = vmatmul.mubr.bf16.gmra.mrb[0].mxu0 %v1344
  %v1404 = vpop.f32.mrb[0].mxu0
  %v1405 = vadd.f32 0.0, %v1404
  %v1406 = vpop.f32.mrb[0].mxu0
  %v1407 = vpop.f32.mrb[0].mxu0
  %v1408 = vadd.f32 0.0, %v1407
  %v1409 = vpop.f32.mrb[0].mxu0
  %1410 = vdwg.mxu0
  %v1412 = vsel %vm763, %v1318, 0
  %v1415 = vsel %vm763, %v1319, 0
  %v1418 = vsel %vm763, %v1320, 0
  %v1421 = vsel %vm763, %v1321, 0
  %1423 = vmatprep.subr.bf16.mxu0 0
  %1424 = vmatpush1.bf16.msra.mxu0 %v1322
  %1425 = vmatprep.subr.bf16.mxu0 0
  %1426 = vmatpush1.bf16.msra.mxu0 %v1323
  %1427 = vmatprep.subr.bf16.mxu0 0
  %1428 = vmatpush1.bf16.msra.mxu0 %v1324
  %1429 = vmatprep.subr.bf16.mxu0 0
  %1430 = vmatpush1.bf16.msra.mxu0 %v1325
  %1431 = vmatprep.subr.bf16.mxu0 0
  %1432 = vmatpush1.bf16.msra.mxu0 0
  %1433 = vmatprep.subr.bf16.mxu0 0
  %1434 = vmatpush1.bf16.msra.mxu0 0
  %1435 = vmatprep.subr.bf16.mxu0 0
  %1436 = vmatpush1.bf16.msra.mxu0 0
  %1437 = vmatprep.subr.bf16.mxu0 0
  %1438 = vmatpush1.bf16.msra.mxu0 0
  %1439 = vmatprep.subr.bf16.mxu0 0
  %1440 = vmatpush1.bf16.msra.mxu0 0
  %1441 = vmatprep.subr.bf16.mxu0 0
  %1442 = vmatpush1.bf16.msra.mxu0 0
  %1443 = vmatprep.subr.bf16.mxu0 0
  %1444 = vmatpush1.bf16.msra.mxu0 0
  %1445 = vmatprep.subr.bf16.mxu0 0
  %1446 = vmatpush1.bf16.msra.mxu0 0
  %1447 = vmatprep.subr.bf16.mxu0 0
  %1448 = vmatpush1.bf16.msra.mxu0 0
  %1449 = vmatprep.subr.bf16.mxu0 0
  %1450 = vmatpush1.bf16.msra.mxu0 0
  %1451 = vmatprep.subr.bf16.mxu0 0
  %1452 = vmatpush1.bf16.msra.mxu0 0
  %1453 = vmatprep.subr.bf16.mxu0 0
  %1454 = vmatpush1.bf16.msra.mxu0 0
  %1455 = vmatprep.mubr.bf16.mxu0 0
  %1456 = vmatmul.mubr.bf16.gmra.mrb[0].mxu0 %v1412
  %v1457 = vpop.f32.mrb[0].mxu0
  %v1458 = vadd.f32 %v1381, %v1457
  %v1459 = vpop.f32.mrb[0].mxu0
  %v1460 = vpop.f32.mrb[0].mxu0
  %v1461 = vadd.f32 %v1384, %v1460
  %v1462 = vpop.f32.mrb[0].mxu0
  %1463 = vmatprep.mubr.bf16.mxu0 0
  %1464 = vmatmul.mubr.bf16.gmra.mrb[0].mxu0 %v1415
  %v1465 = vpop.f32.mrb[0].mxu0
  %v1466 = vadd.f32 %v1389, %v1465
  %v1467 = vpop.f32.mrb[0].mxu0
  %v1468 = vpop.f32.mrb[0].mxu0
  %v1469 = vadd.f32 %v1392, %v1468
  %v1470 = vpop.f32.mrb[0].mxu0
  %1471 = vmatprep.mubr.bf16.mxu0 0
  %1472 = vmatmul.mubr.bf16.gmra.mrb[0].mxu0 %v1418
  %v1473 = vpop.f32.mrb[0].mxu0
  %v1474 = vadd.f32 %v1397, %v1473
  %v1475 = vpop.f32.mrb[0].mxu0
  %v1476 = vpop.f32.mrb[0].mxu0
  %v1477 = vadd.f32 %v1400, %v1476
  %v1478 = vpop.f32.mrb[0].mxu0
  %1479 = vmatprep.mubr.bf16.mxu0 0
  %1480 = vmatmul.mubr.bf16.gmra.mrb[0].mxu0 %v1421
  %v1481 = vpop.f32.mrb[0].mxu0
  %v1482 = vadd.f32 %v1405, %v1481
  %v1483 = vpop.f32.mrb[0].mxu0
  %v1484 = vpop.f32.mrb[0].mxu0
  %v1485 = vadd.f32 %v1408, %v1484
  %v1486 = vpop.f32.mrb[0].mxu0
  %1487 = vdwg.mxu0
  %v1488 = vpack.c.bf16 %v1280, %v1278
  %v1489 = vpack.c.bf16 %v1284, %v1282
  %v1490 = vpack.c.bf16 %v1288, %v1286
  %v1491 = vpack.c.bf16 %v1292, %v1290
  %v1492 = vpack.c.bf16 %v1310, %v1309
  %v1493 = vpack.c.bf16 %v1312, %v1311
  %v1494 = vpack.c.bf16 %v1314, %v1313
  %v1495 = vpack.c.bf16 %v1316, %v1315
  %v1497 = vsel %vm763, %v1488, 0
  %v1500 = vsel %vm763, %v1489, 0
  %v1503 = vsel %vm763, %v1490, 0
  %v1506 = vsel %vm763, %v1491, 0
  %1508 = vmatprep.subr.bf16.mxu0 0
  %1509 = vmatpush1.bf16.msra.mxu0 %v1492
  %1510 = vmatprep.subr.bf16.mxu0 0
  %1511 = vmatpush1.bf16.msra.mxu0 %v1493
  %1512 = vmatprep.subr.bf16.mxu0 0
  %1513 = vmatpush1.bf16.msra.mxu0 %v1494
  %1514 = vmatprep.subr.bf16.mxu0 0
  %1515 = vmatpush1.bf16.msra.mxu0 %v1495
  %1516 = vmatprep.subr.bf16.mxu0 0
  %1517 = vmatpush1.bf16.msra.mxu0 0
  %1518 = vmatprep.subr.bf16.mxu0 0
  %1519 = vmatpush1.bf16.msra.mxu0 0
  %1520 = vmatprep.subr.bf16.mxu0 0
  %1521 = vmatpush1.bf16.msra.mxu0 0
  %1522 = vmatprep.subr.bf16.mxu0 0
  %1523 = vmatpush1.bf16.msra.mxu0 0
  %1524 = vmatprep.subr.bf16.mxu0 0
  %1525 = vmatpush1.bf16.msra.mxu0 0
  %1526 = vmatprep.subr.bf16.mxu0 0
  %1527 = vmatpush1.bf16.msra.mxu0 0
  %1528 = vmatprep.subr.bf16.mxu0 0
  %1529 = vmatpush1.bf16.msra.mxu0 0
  %1530 = vmatprep.subr.bf16.mxu0 0
  %1531 = vmatpush1.bf16.msra.mxu0 0
  %1532 = vmatprep.subr.bf16.mxu0 0
  %1533 = vmatpush1.bf16.msra.mxu0 0
  %1534 = vmatprep.subr.bf16.mxu0 0
  %1535 = vmatpush1.bf16.msra.mxu0 0
  %1536 = vmatprep.subr.bf16.mxu0 0
  %1537 = vmatpush1.bf16.msra.mxu0 0
  %1538 = vmatprep.subr.bf16.mxu0 0
  %1539 = vmatpush1.bf16.msra.mxu0 0
  %1540 = vmatprep.mubr.bf16.mxu0 0
  %1541 = vmatmul.mubr.bf16.gmra.mrb[0].mxu0 %v1497
  %v1542 = vpop.f32.mrb[0].mxu0
  %v1543 = vadd.f32 0.0, %v1542
  %v1544 = vpop.f32.mrb[0].mxu0
  %v1545 = vpop.f32.mrb[0].mxu0
  %v1546 = vadd.f32 0.0, %v1545
  %v1547 = vpop.f32.mrb[0].mxu0
  %1548 = vmatprep.mubr.bf16.mxu0 0
  %1549 = vmatmul.mubr.bf16.gmra.mrb[0].mxu0 %v1500
  %v1550 = vpop.f32.mrb[0].mxu0
  %v1551 = vadd.f32 0.0, %v1550
  %v1552 = vpop.f32.mrb[0].mxu0
  %v1553 = vpop.f32.mrb[0].mxu0
  %v1554 = vadd.f32 0.0, %v1553
  %v1555 = vpop.f32.mrb[0].mxu0
  %1556 = vmatprep.mubr.bf16.mxu0 0
  %1557 = vmatmul.mubr.bf16.gmra.mrb[0].mxu0 %v1503
  %v1558 = vpop.f32.mrb[0].mxu0
  %v1559 = vadd.f32 0.0, %v1558
  %v1560 = vpop.f32.mrb[0].mxu0
  %v1561 = vpop.f32.mrb[0].mxu0
  %v1562 = vadd.f32 0.0, %v1561
  %v1563 = vpop.f32.mrb[0].mxu0
  %1564 = vmatprep.mubr.bf16.mxu0 0
  %1565 = vmatmul.mubr.bf16.gmra.mrb[0].mxu0 %v1506
  %v1566 = vpop.f32.mrb[0].mxu0
  %v1567 = vadd.f32 0.0, %v1566
  %v1568 = vpop.f32.mrb[0].mxu0
  %v1569 = vpop.f32.mrb[0].mxu0
  %v1570 = vadd.f32 0.0, %v1569
  %v1571 = vpop.f32.mrb[0].mxu0
  %1572 = vdwg.mxu0
  %v1573 = vadd.f32 %v1458, %v1543
  %v1574 = vadd.f32 %v1461, %v1546
  %v1575 = vadd.f32 %v1466, %v1551
  %v1576 = vadd.f32 %v1469, %v1554
  %v1577 = vadd.f32 %v1474, %v1559
  %v1578 = vadd.f32 %v1477, %v1562
  %v1579 = vadd.f32 %v1482, %v1567
  %v1580 = vadd.f32 %v1485, %v1570
  %v1582 = vlaneseq
  %v1583 = vshrl.u32 %v1582, 7
  %v1584 = vsub.s32 0, %v1583
  %v1585 = vrot.slane %v1317, %v1584
  %v1587 = vadd.f32 %v1573, %v1585
  %v1588 = vadd.f32 %v1574, %v1585
  %v1589 = vadd.f32 %v1575, %v1585
  %v1590 = vadd.f32 %v1576, %v1585
  %v1591 = vadd.f32 %v1577, %v1585
  %v1592 = vadd.f32 %v1578, %v1585
  %v1593 = vadd.f32 %v1579, %v1585
  %v1594 = vadd.f32 %v1580, %v1585
  %v1595 = vmul.f32 %v1587, 0.5
  %v1596 = vmul.f32 %v1588, 0.5
  %v1597 = vmul.f32 %v1589, 0.5
  %v1598 = vmul.f32 %v1590, 0.5
  %v1599 = vmul.f32 %v1591, 0.5
  %v1600 = vmul.f32 %v1592, 0.5
  %v1601 = vmul.f32 %v1593, 0.5
  %v1602 = vmul.f32 %v1594, 0.5
  %v1603 = vmul.f32 %v1587, 0.044715
  %v1604 = vmul.f32 %v1588, 0.044715
  %v1605 = vmul.f32 %v1589, 0.044715
  %v1606 = vmul.f32 %v1590, 0.044715
  %v1607 = vmul.f32 %v1591, 0.044715
  %v1608 = vmul.f32 %v1592, 0.044715
  %v1609 = vmul.f32 %v1593, 0.044715
  %v1610 = vmul.f32 %v1594, 0.044715
  %v1611 = vmul.f32 %v1603, %v1587
  %v1612 = vmul.f32 %v1604, %v1588
  %v1613 = vmul.f32 %v1605, %v1589
  %v1614 = vmul.f32 %v1606, %v1590
  %v1615 = vmul.f32 %v1607, %v1591
  %v1616 = vmul.f32 %v1608, %v1592
  %v1617 = vmul.f32 %v1609, %v1593
  %v1618 = vmul.f32 %v1610, %v1594
  %v1619 = vmul.f32 %v1611, %v1587
  %v1620 = vmul.f32 %v1612, %v1588
  %v1621 = vmul.f32 %v1613, %v1589
  %v1622 = vmul.f32 %v1614, %v1590
  %v1623 = vmul.f32 %v1615, %v1591
  %v1624 = vmul.f32 %v1616, %v1592
  %v1625 = vmul.f32 %v1617, %v1593
  %v1626 = vmul.f32 %v1618, %v1594
  %v1627 = vadd.f32 %v1587, %v1619
  %v1628 = vadd.f32 %v1588, %v1620
  %v1629 = vadd.f32 %v1589, %v1621
  %v1630 = vadd.f32 %v1590, %v1622
  %v1631 = vadd.f32 %v1591, %v1623
  %v1632 = vadd.f32 %v1592, %v1624
  %v1633 = vadd.f32 %v1593, %v1625
  %v1634 = vadd.f32 %v1594, %v1626
  %v1635 = vmul.f32 %v1627, 0.7978846
  %v1636 = vmul.f32 %v1628, 0.7978846
  %v1637 = vmul.f32 %v1629, 0.7978846
  %v1638 = vmul.f32 %v1630, 0.7978846
  %v1639 = vmul.f32 %v1631, 0.7978846
  %v1640 = vmul.f32 %v1632, 0.7978846
  %v1641 = vmul.f32 %v1633, 0.7978846
  %v1642 = vmul.f32 %v1634, 0.7978846
  %v1643 = vtanh.pop %v1635
  %v1644 = vtanh.pop %v1636
  %v1645 = vtanh.pop %v1637
  %v1646 = vtanh.pop %v1638
  %v1647 = vtanh.pop %v1639
  %v1648 = vtanh.pop %v1640
  %v1649 = vtanh.pop %v1641
  %v1650 = vtanh.pop %v1642
  %v1651 = vadd.f32 %v1643, 1.0
  %v1652 = vadd.f32 %v1644, 1.0
  %v1653 = vadd.f32 %v1645, 1.0
  %v1654 = vadd.f32 %v1646, 1.0
  %v1655 = vadd.f32 %v1647, 1.0
  %v1656 = vadd.f32 %v1648, 1.0
  %v1657 = vadd.f32 %v1649, 1.0
  %v1658 = vadd.f32 %v1650, 1.0
  %v1659 = vmul.f32 %v1595, %v1651
  %v1660 = vmul.f32 %v1596, %v1652
  %v1661 = vmul.f32 %v1597, %v1653
  %v1662 = vmul.f32 %v1598, %v1654
  %v1663 = vmul.f32 %v1599, %v1655
  %v1664 = vmul.f32 %v1600, %v1656
  %v1665 = vmul.f32 %v1601, %v1657
  %v1666 = vmul.f32 %v1602, %v1658
  %v1667 = vld [vmem:[%s17] sm:$0xff]
  %v1668 = vld [vmem:[%s17 + $0x8] sm:$0xff]
  %v1669 = vld [vmem:[%s17 + $0x10] sm:$0xff]
  %v1670 = vld [vmem:[%s17 + $0x18] sm:$0xff]
  %v1671 = vld [vmem:[%s17 + $0x20] sm:$0xff]
  %v1672 = vld [vmem:[%s17 + $0x28] sm:$0xff]
  %v1673 = vld [vmem:[%s17 + $0x30] sm:$0xff]
  %v1674 = vld [vmem:[%s17 + $0x38] sm:$0xff]
  %v1675 = vld [vmem:[%s17 + $0x40] sm:$0xff]
  %v1676 = vld [vmem:[%s17 + $0x48] sm:$0xff]
  %v1677 = vld [vmem:[%s17 + $0x50] sm:$0xff]
  %v1678 = vld [vmem:[%s17 + $0x58] sm:$0xff]
  %v1679 = vld [vmem:[%s19] sm:$0x1]
  %v1680 = vpack.c.bf16 %v1660, 0.0
  %v1681 = vpack.c.bf16 %v1664, %v1662
  %v1682 = vpack.c.bf16 %v1668, %v1667
  %v1683 = vpack.c.bf16 %v1670, %v1669
  %v1684 = vpack.c.bf16 %v1661, %v1659
  %v1685 = vpack.c.bf16 %v1665, %v1663
  %v1686 = vpack.c.bf16 %v1672, %v1671
  %v1687 = vpack.c.bf16 %v1674, %v1673
  %vm1688 = vcmask 261120
  %v1690 = vsel %vm1688, %v1684, 0
  %v1693 = vsel %vm1688, %v1685, 0
  %1695 = vmatprep.subr.bf16.mxu0 0
  %1696 = vmatpush1.bf16.msra.mxu0 %v1686
  %1697 = vmatprep.subr.bf16.mxu0 0
  %1698 = vmatpush1.bf16.msra.mxu0 %v1687
  %1699 = vmatprep.subr.bf16.mxu0 0
  %1700 = vmatpush1.bf16.msra.mxu0 0
  %1701 = vmatprep.subr.bf16.mxu0 0
  %1702 = vmatpush1.bf16.msra.mxu0 0
  %1703 = vmatprep.subr.bf16.mxu0 0
  %1704 = vmatpush1.bf16.msra.mxu0 0
  %1705 = vmatprep.subr.bf16.mxu0 0
  %1706 = vmatpush1.bf16.msra.mxu0 0
  %1707 = vmatprep.subr.bf16.mxu0 0
  %1708 = vmatpush1.bf16.msra.mxu0 0
  %1709 = vmatprep.subr.bf16.mxu0 0
  %1710 = vmatpush1.bf16.msra.mxu0 0
  %1711 = vmatprep.subr.bf16.mxu0 0
  %1712 = vmatpush1.bf16.msra.mxu0 0
  %1713 = vmatprep.subr.bf16.mxu0 0
  %1714 = vmatpush1.bf16.msra.mxu0 0
  %1715 = vmatprep.subr.bf16.mxu0 0
  %1716 = vmatpush1.bf16.msra.mxu0 0
  %1717 = vmatprep.subr.bf16.mxu0 0
  %1718 = vmatpush1.bf16.msra.mxu0 0
  %1719 = vmatprep.subr.bf16.mxu0 0
  %1720 = vmatpush1.bf16.msra.mxu0 0
  %1721 = vmatprep.subr.bf16.mxu0 0
  %1722 = vmatpush1.bf16.msra.mxu0 0
  %1723 = vmatprep.subr.bf16.mxu0 0
  %1724 = vmatpush1.bf16.msra.mxu0 0
  %1725 = vmatprep.subr.bf16.mxu0 0
  %1726 = vmatpush1.bf16.msra.mxu0 0
  %1727 = vmatprep.mubr.bf16.mxu0 0
  %1728 = vmatmul.mubr.bf16.gmra.mrb[0].mxu0 %v1690
  %v1729 = vpop.f32.mrb[0].mxu0
  %v1730 = vadd.f32 0.0, %v1729
  %v1731 = vpop.f32.mrb[0].mxu0
  %v1732 = vpop.f32.mrb[0].mxu0
  %v1733 = vadd.f32 0.0, %v1732
  %v1734 = vpop.f32.mrb[0].mxu0
  %1735 = vmatprep.mubr.bf16.mxu0 0
  %1736 = vmatmul.mubr.bf16.gmra.mrb[0].mxu0 %v1693
  %v1737 = vpop.f32.mrb[0].mxu0
  %v1738 = vadd.f32 0.0, %v1737
  %v1739 = vpop.f32.mrb[0].mxu0
  %v1740 = vpop.f32.mrb[0].mxu0
  %v1741 = vadd.f32 0.0, %v1740
  %v1742 = vpop.f32.mrb[0].mxu0
  %1743 = vdwg.mxu0
  %v1745 = vsel %vm1688, %v1680, 0
  %v1748 = vsel %vm1688, %v1681, 0
  %1750 = vmatprep.subr.bf16.mxu0 0
  %1751 = vmatpush1.bf16.msra.mxu0 %v1682
  %1752 = vmatprep.subr.bf16.mxu0 0
  %1753 = vmatpush1.bf16.msra.mxu0 %v1683
  %1754 = vmatprep.subr.bf16.mxu0 0
  %1755 = vmatpush1.bf16.msra.mxu0 0
  %1756 = vmatprep.subr.bf16.mxu0 0
  %1757 = vmatpush1.bf16.msra.mxu0 0
  %1758 = vmatprep.subr.bf16.mxu0 0
  %1759 = vmatpush1.bf16.msra.mxu0 0
  %1760 = vmatprep.subr.bf16.mxu0 0
  %1761 = vmatpush1.bf16.msra.mxu0 0
  %1762 = vmatprep.subr.bf16.mxu0 0
  %1763 = vmatpush1.bf16.msra.mxu0 0
  %1764 = vmatprep.subr.bf16.mxu0 0
  %1765 = vmatpush1.bf16.msra.mxu0 0
  %1766 = vmatprep.subr.bf16.mxu0 0
  %1767 = vmatpush1.bf16.msra.mxu0 0
  %1768 = vmatprep.subr.bf16.mxu0 0
  %1769 = vmatpush1.bf16.msra.mxu0 0
  %1770 = vmatprep.subr.bf16.mxu0 0
  %1771 = vmatpush1.bf16.msra.mxu0 0
  %1772 = vmatprep.subr.bf16.mxu0 0
  %1773 = vmatpush1.bf16.msra.mxu0 0
  %1774 = vmatprep.subr.bf16.mxu0 0
  %1775 = vmatpush1.bf16.msra.mxu0 0
  %1776 = vmatprep.subr.bf16.mxu0 0
  %1777 = vmatpush1.bf16.msra.mxu0 0
  %1778 = vmatprep.subr.bf16.mxu0 0
  %1779 = vmatpush1.bf16.msra.mxu0 0
  %1780 = vmatprep.subr.bf16.mxu0 0
  %1781 = vmatpush1.bf16.msra.mxu0 0
  %1782 = vmatprep.mubr.bf16.mxu0 0
  %1783 = vmatmul.mubr.bf16.gmra.mrb[0].mxu0 %v1745
  %v1784 = vpop.f32.mrb[0].mxu0
  %v1785 = vadd.f32 %v1730, %v1784
  %v1786 = vpop.f32.mrb[0].mxu0
  %v1787 = vpop.f32.mrb[0].mxu0
  %v1788 = vadd.f32 %v1733, %v1787
  %v1789 = vpop.f32.mrb[0].mxu0
  %1790 = vmatprep.mubr.bf16.mxu0 0
  %1791 = vmatmul.mubr.bf16.gmra.mrb[0].mxu0 %v1748
  %v1792 = vpop.f32.mrb[0].mxu0
  %v1793 = vadd.f32 %v1738, %v1792
  %v1794 = vpop.f32.mrb[0].mxu0
  %v1795 = vpop.f32.mrb[0].mxu0
  %v1796 = vadd.f32 %v1741, %v1795
  %v1797 = vpop.f32.mrb[0].mxu0
  %1798 = vdwg.mxu0
  %v1799 = vpack.c.bf16 %v1662, %v1660
  %v1800 = vpack.c.bf16 %v1666, %v1664
  %v1801 = vpack.c.bf16 %v1676, %v1675
  %v1802 = vpack.c.bf16 %v1678, %v1677
  %v1804 = vsel %vm1688, %v1799, 0
  %v1807 = vsel %vm1688, %v1800, 0
  %1809 = vmatprep.subr.bf16.mxu0 0
  %1810 = vmatpush1.bf16.msra.mxu0 %v1801
  %1811 = vmatprep.subr.bf16.mxu0 0
  %1812 = vmatpush1.bf16.msra.mxu0 %v1802
  %1813 = vmatprep.subr.bf16.mxu0 0
  %1814 = vmatpush1.bf16.msra.mxu0 0
  %1815 = vmatprep.subr.bf16.mxu0 0
  %1816 = vmatpush1.bf16.msra.mxu0 0
  %1817 = vmatprep.subr.bf16.mxu0 0
  %1818 = vmatpush1.bf16.msra.mxu0 0
  %1819 = vmatprep.subr.bf16.mxu0 0
  %1820 = vmatpush1.bf16.msra.mxu0 0
  %1821 = vmatprep.subr.bf16.mxu0 0
  %1822 = vmatpush1.bf16.msra.mxu0 0
  %1823 = vmatprep.subr.bf16.mxu0 0
  %1824 = vmatpush1.bf16.msra.mxu0 0
  %1825 = vmatprep.subr.bf16.mxu0 0
  %1826 = vmatpush1.bf16.msra.mxu0 0
  %1827 = vmatprep.subr.bf16.mxu0 0
  %1828 = vmatpush1.bf16.msra.mxu0 0
  %1829 = vmatprep.subr.bf16.mxu0 0
  %1830 = vmatpush1.bf16.msra.mxu0 0
  %1831 = vmatprep.subr.bf16.mxu0 0
  %1832 = vmatpush1.bf16.msra.mxu0 0
  %1833 = vmatprep.subr.bf16.mxu0 0
  %1834 = vmatpush1.bf16.msra.mxu0 0
  %1835 = vmatprep.subr.bf16.mxu0 0
  %1836 = vmatpush1.bf16.msra.mxu0 0
  %1837 = vmatprep.subr.bf16.mxu0 0
  %1838 = vmatpush1.bf16.msra.mxu0 0
  %1839 = vmatprep.subr.bf16.mxu0 0
  %1840 = vmatpush1.bf16.msra.mxu0 0
  %1841 = vmatprep.mubr.bf16.mxu0 0
  %1842 = vmatmul.mubr.bf16.gmra.mrb[0].mxu0 %v1804
  %v1843 = vpop.f32.mrb[0].mxu0
  %v1844 = vadd.f32 0.0, %v1843
  %v1845 = vpop.f32.mrb[0].mxu0
  %v1846 = vpop.f32.mrb[0].mxu0
  %v1847 = vadd.f32 0.0, %v1846
  %v1848 = vpop.f32.mrb[0].mxu0
  %1849 = vmatprep.mubr.bf16.mxu0 0
  %1850 = vmatmul.mubr.bf16.gmra.mrb[0].mxu0 %v1807
  %v1851 = vpop.f32.mrb[0].mxu0
  %v1852 = vadd.f32 0.0, %v1851
  %v1853 = vpop.f32.mrb[0].mxu0
  %v1854 = vpop.f32.mrb[0].mxu0
  %v1855 = vadd.f32 0.0, %v1854
  %v1856 = vpop.f32.mrb[0].mxu0
  %1857 = vdwg.mxu0
  %v1858 = vadd.f32 %v1785, %v1844
  %v1859 = vadd.f32 %v1788, %v1847
  %v1860 = vadd.f32 %v1793, %v1852
  %v1861 = vadd.f32 %v1796, %v1855
  %v1863 = vlaneseq
  %v1864 = vshrl.u32 %v1863, 7
  %v1865 = vsub.s32 0, %v1864
  %v1866 = vrot.slane %v1679, %v1865
  %v1868 = vadd.f32 %v1858, %v1866
  %v1869 = vadd.f32 %v1859, %v1866
  %v1870 = vadd.f32 %v1860, %v1866
  %v1871 = vadd.f32 %v1861, %v1866
  %v1872 = vmul.f32 %v1868, 0.5
  %v1873 = vmul.f32 %v1869, 0.5
  %v1874 = vmul.f32 %v1870, 0.5
  %v1875 = vmul.f32 %v1871, 0.5
  %v1876 = vmul.f32 %v1868, 0.044715
  %v1877 = vmul.f32 %v1869, 0.044715
  %v1878 = vmul.f32 %v1870, 0.044715
  %v1879 = vmul.f32 %v1871, 0.044715
  %v1880 = vmul.f32 %v1876, %v1868
  %v1881 = vmul.f32 %v1877, %v1869
  %v1882 = vmul.f32 %v1878, %v1870
  %v1883 = vmul.f32 %v1879, %v1871
  %v1884 = vmul.f32 %v1880, %v1868
  %v1885 = vmul.f32 %v1881, %v1869
  %v1886 = vmul.f32 %v1882, %v1870
  %v1887 = vmul.f32 %v1883, %v1871
  %v1888 = vadd.f32 %v1868, %v1884
  %v1889 = vadd.f32 %v1869, %v1885
  %v1890 = vadd.f32 %v1870, %v1886
  %v1891 = vadd.f32 %v1871, %v1887
  %v1892 = vmul.f32 %v1888, 0.7978846
  %v1893 = vmul.f32 %v1889, 0.7978846
  %v1894 = vmul.f32 %v1890, 0.7978846
  %v1895 = vmul.f32 %v1891, 0.7978846
  %v1896 = vtanh.pop %v1892
  %v1897 = vtanh.pop %v1893
  %v1898 = vtanh.pop %v1894
  %v1899 = vtanh.pop %v1895
  %v1900 = vadd.f32 %v1896, 1.0
  %v1901 = vadd.f32 %v1897, 1.0
  %v1902 = vadd.f32 %v1898, 1.0
  %v1903 = vadd.f32 %v1899, 1.0
  %v1904 = vmul.f32 %v1872, %v1900
  %v1905 = vmul.f32 %v1873, %v1901
  %v1906 = vmul.f32 %v1874, %v1902
  %v1907 = vmul.f32 %v1875, %v1903
  %v1908 = vld [vmem:[%s21] sm:$0xff]
  %v1909 = vld [vmem:[%s21 + $0x8] sm:$0xff]
  %v1910 = vld [vmem:[%s21 + $0x10] sm:$0xff]
  %v1911 = vld [vmem:[%s21 + $0x18] sm:$0xff]
  %v1912 = vld [vmem:[%s21 + $0x20] sm:$0xff]
  %v1913 = vld [vmem:[%s21 + $0x28] sm:$0xff]
  %v1914 = vld [vmem:[%s21 + $0x30] sm:$0xff]
  %v1915 = vld [vmem:[%s21 + $0x38] sm:$0xff]
  %v1916 = vld [vmem:[%s23] sm:$0x1]
  %v1917 = vpack.c.bf16 %v1904, %v1904
  %v1918 = vpack.c.bf16 %v1909, %v1908
  %v1920 = vsel %vm187, %v1917, 0
  %1922 = vmatprep.subr.bf16.mxu0 0
  %1923 = vmatpush1.bf16.msra.mxu0 %v1918
  %1924 = vmatprep.subr.bf16.mxu0 0
  %1925 = vmatpush1.bf16.msra.mxu0 0
  %1926 = vmatprep.subr.bf16.mxu0 0
  %1927 = vmatpush1.bf16.msra.mxu0 0
  %1928 = vmatprep.subr.bf16.mxu0 0
  %1929 = vmatpush1.bf16.msra.mxu0 0
  %1930 = vmatprep.subr.bf16.mxu0 0
  %1931 = vmatpush1.bf16.msra.mxu0 0
  %1932 = vmatprep.subr.bf16.mxu0 0
  %1933 = vmatpush1.bf16.msra.mxu0 0
  %1934 = vmatprep.subr.bf16.mxu0 0
  %1935 = vmatpush1.bf16.msra.mxu0 0
  %1936 = vmatprep.subr.bf16.mxu0 0
  %1937 = vmatpush1.bf16.msra.mxu0 0
  %1938 = vmatprep.subr.bf16.mxu0 0
  %1939 = vmatpush1.bf16.msra.mxu0 0
  %1940 = vmatprep.subr.bf16.mxu0 0
  %1941 = vmatpush1.bf16.msra.mxu0 0
  %1942 = vmatprep.subr.bf16.mxu0 0
  %1943 = vmatpush1.bf16.msra.mxu0 0
  %1944 = vmatprep.subr.bf16.mxu0 0
  %1945 = vmatpush1.bf16.msra.mxu0 0
  %1946 = vmatprep.subr.bf16.mxu0 0
  %1947 = vmatpush1.bf16.msra.mxu0 0
  %1948 = vmatprep.subr.bf16.mxu0 0
  %1949 = vmatpush1.bf16.msra.mxu0 0
  %1950 = vmatprep.subr.bf16.mxu0 0
  %1951 = vmatpush1.bf16.msra.mxu0 0
  %1952 = vmatprep.subr.bf16.mxu0 0
  %1953 = vmatpush1.bf16.msra.mxu0 0
  %1954 = vmatprep.mubr.bf16.mxu0 0
  %1955 = vmatmul.mubr.bf16.gmra.mrb[0].mxu0 %v1920
  %v1956 = vpop.f32.mrb[0].mxu0
  %v1957 = vadd.f32 0.0, %v1956
  %v1958 = vpop.f32.mrb[0].mxu0
  %v1959 = vpop.f32.mrb[0].mxu0
  %v1960 = vpop.f32.mrb[0].mxu0
  %1961 = vdwg.mxu0
  %v1963 = vlaneseq
  %v1964 = vshrl.u32 %v1963, 7
  %v1965 = vsub.s32 0, %v1964
  %v1966 = vrot.slane %v1916, %v1965
  %v1968 = vadd.f32 %v1966, %v1957
  %v1969 = vpack.c.bf16 %v1905, %v1905
  %v1970 = vpack.c.bf16 %v1911, %v1910
  %v1972 = vsel %vm187, %v1969, 0
  %1974 = vmatprep.subr.bf16.mxu0 0
  %1975 = vmatpush1.bf16.msra.mxu0 %v1970
  %1976 = vmatprep.subr.bf16.mxu0 0
  %1977 = vmatpush1.bf16.msra.mxu0 0
  %1978 = vmatprep.subr.bf16.mxu0 0
  %1979 = vmatpush1.bf16.msra.mxu0 0
  %1980 = vmatprep.subr.bf16.mxu0 0
  %1981 = vmatpush1.bf16.msra.mxu0 0
  %1982 = vmatprep.subr.bf16.mxu0 0
  %1983 = vmatpush1.bf16.msra.mxu0 0
  %1984 = vmatprep.subr.bf16.mxu0 0
  %1985 = vmatpush1.bf16.msra.mxu0 0
  %1986 = vmatprep.subr.bf16.mxu0 0
  %1987 = vmatpush1.bf16.msra.mxu0 0
  %1988 = vmatprep.subr.bf16.mxu0 0
  %1989 = vmatpush1.bf16.msra.mxu0 0
  %1990 = vmatprep.subr.bf16.mxu0 0
  %1991 = vmatpush1.bf16.msra.mxu0 0
  %1992 = vmatprep.subr.bf16.mxu0 0
  %1993 = vmatpush1.bf16.msra.mxu0 0
  %1994 = vmatprep.subr.bf16.mxu0 0
  %1995 = vmatpush1.bf16.msra.mxu0 0
  %1996 = vmatprep.subr.bf16.mxu0 0
  %1997 = vmatpush1.bf16.msra.mxu0 0
  %1998 = vmatprep.subr.bf16.mxu0 0
  %1999 = vmatpush1.bf16.msra.mxu0 0
  %2000 = vmatprep.subr.bf16.mxu0 0
  %2001 = vmatpush1.bf16.msra.mxu0 0
  %2002 = vmatprep.subr.bf16.mxu0 0
  %2003 = vmatpush1.bf16.msra.mxu0 0
  %2004 = vmatprep.subr.bf16.mxu0 0
  %2005 = vmatpush1.bf16.msra.mxu0 0
  %2006 = vmatprep.mubr.bf16.mxu0 0
  %2007 = vmatmul.mubr.bf16.gmra.mrb[0].mxu0 %v1972
  %v2008 = vpop.f32.mrb[0].mxu0
  %v2009 = vadd.f32 0.0, %v2008
  %v2010 = vpop.f32.mrb[0].mxu0
  %v2011 = vpop.f32.mrb[0].mxu0
  %v2012 = vpop.f32.mrb[0].mxu0
  %2013 = vdwg.mxu0
  %v2014 = vadd.f32 %v1968, %v2009
  %v2015 = vpack.c.bf16 %v1906, %v1906
  %v2016 = vpack.c.bf16 %v1913, %v1912
  %v2018 = vsel %vm187, %v2015, 0
  %2020 = vmatprep.subr.bf16.mxu0 0
  %2021 = vmatpush1.bf16.msra.mxu0 %v2016
  %2022 = vmatprep.subr.bf16.mxu0 0
  %2023 = vmatpush1.bf16.msra.mxu0 0
  %2024 = vmatprep.subr.bf16.mxu0 0
  %2025 = vmatpush1.bf16.msra.mxu0 0
  %2026 = vmatprep.subr.bf16.mxu0 0
  %2027 = vmatpush1.bf16.msra.mxu0 0
  %2028 = vmatprep.subr.bf16.mxu0 0
  %2029 = vmatpush1.bf16.msra.mxu0 0
  %2030 = vmatprep.subr.bf16.mxu0 0
  %2031 = vmatpush1.bf16.msra.mxu0 0
  %2032 = vmatprep.subr.bf16.mxu0 0
  %2033 = vmatpush1.bf16.msra.mxu0 0
  %2034 = vmatprep.subr.bf16.mxu0 0
  %2035 = vmatpush1.bf16.msra.mxu0 0
  %2036 = vmatprep.subr.bf16.mxu0 0
  %2037 = vmatpush1.bf16.msra.mxu0 0
  %2038 = vmatprep.subr.bf16.mxu0 0
  %2039 = vmatpush1.bf16.msra.mxu0 0
  %2040 = vmatprep.subr.bf16.mxu0 0
  %2041 = vmatpush1.bf16.msra.mxu0 0
  %2042 = vmatprep.subr.bf16.mxu0 0
  %2043 = vmatpush1.bf16.msra.mxu0 0
  %2044 = vmatprep.subr.bf16.mxu0 0
  %2045 = vmatpush1.bf16.msra.mxu0 0
  %2046 = vmatprep.subr.bf16.mxu0 0
  %2047 = vmatpush1.bf16.msra.mxu0 0
  %2048 = vmatprep.subr.bf16.mxu0 0
  %2049 = vmatpush1.bf16.msra.mxu0 0
  %2050 = vmatprep.subr.bf16.mxu0 0
  %2051 = vmatpush1.bf16.msra.mxu0 0
  %2052 = vmatprep.mubr.bf16.mxu0 0
  %2053 = vmatmul.mubr.bf16.gmra.mrb[0].mxu0 %v2018
  %v2054 = vpop.f32.mrb[0].mxu0
  %v2055 = vadd.f32 0.0, %v2054
  %v2056 = vpop.f32.mrb[0].mxu0
  %v2057 = vpop.f32.mrb[0].mxu0
  %v2058 = vpop.f32.mrb[0].mxu0
  %2059 = vdwg.mxu0
  %v2060 = vadd.f32 %v2014, %v2055
  %v2061 = vpack.c.bf16 %v1907, %v1907
  %v2062 = vpack.c.bf16 %v1915, %v1914
  %v2064 = vsel %vm187, %v2061, 0
  %2066 = vmatprep.subr.bf16.mxu0 0
  %2067 = vmatpush1.bf16.msra.mxu0 %v2062
  %2068 = vmatprep.subr.bf16.mxu0 0
  %2069 = vmatpush1.bf16.msra.mxu0 0
  %2070 = vmatprep.subr.bf16.mxu0 0
  %2071 = vmatpush1.bf16.msra.mxu0 0
  %2072 = vmatprep.subr.bf16.mxu0 0
  %2073 = vmatpush1.bf16.msra.mxu0 0
  %2074 = vmatprep.subr.bf16.mxu0 0
  %2075 = vmatpush1.bf16.msra.mxu0 0
  %2076 = vmatprep.subr.bf16.mxu0 0
  %2077 = vmatpush1.bf16.msra.mxu0 0
  %2078 = vmatprep.subr.bf16.mxu0 0
  %2079 = vmatpush1.bf16.msra.mxu0 0
  %2080 = vmatprep.subr.bf16.mxu0 0
  %2081 = vmatpush1.bf16.msra.mxu0 0
  %2082 = vmatprep.subr.bf16.mxu0 0
  %2083 = vmatpush1.bf16.msra.mxu0 0
  %2084 = vmatprep.subr.bf16.mxu0 0
  %2085 = vmatpush1.bf16.msra.mxu0 0
  %2086 = vmatprep.subr.bf16.mxu0 0
  %2087 = vmatpush1.bf16.msra.mxu0 0
  %2088 = vmatprep.subr.bf16.mxu0 0
  %2089 = vmatpush1.bf16.msra.mxu0 0
  %2090 = vmatprep.subr.bf16.mxu0 0
  %2091 = vmatpush1.bf16.msra.mxu0 0
  %2092 = vmatprep.subr.bf16.mxu0 0
  %2093 = vmatpush1.bf16.msra.mxu0 0
  %2094 = vmatprep.subr.bf16.mxu0 0
  %2095 = vmatpush1.bf16.msra.mxu0 0
  %2096 = vmatprep.subr.bf16.mxu0 0
  %2097 = vmatpush1.bf16.msra.mxu0 0
  %2098 = vmatprep.mubr.bf16.mxu0 0
  %2099 = vmatmul.mubr.bf16.gmra.mrb[0].mxu0 %v2064
  %v2100 = vpop.f32.mrb[0].mxu0
  %v2101 = vadd.f32 0.0, %v2100
  %v2102 = vpop.f32.mrb[0].mxu0
  %v2103 = vpop.f32.mrb[0].mxu0
  %v2104 = vpop.f32.mrb[0].mxu0
  %2105 = vdwg.mxu0
  %v2106 = vadd.f32 %v2060, %v2101
  %v2107 = vsel %vm187, %v2106, 0.0
  %2108 = vadd.xlane.f32.xlu0 %v2107
  %v2109 = vpop.xlane.xlu0 %2108
  %v2110 = vrcp.pop 16.0
  %v2111 = vmul.f32 %v2109, %v2110
  %v2112 = vsub.f32 %v2106, %v2111
  %v2113 = vmul.f32 %v2112, %v2112
  %v2114 = vsel %vm187, %v2113, 0.0
  %2115 = vadd.xlane.f32.xlu0 %v2114
  %v2116 = vpop.xlane.xlu0 %2115
  %v2117 = vmul.f32 %v2116, %v2110
  %v2118 = vadd.f32 %v2117, 1e-05
  %v2119 = vrsqrt.pop %v2118
  %v2120 = vmul.f32 %v2112, %v2119
  %v2121 = vmul.f32 %v2120, 0.5
  %v2122 = vmul.f32 %v2120, 0.044715
  %v2123 = vmul.f32 %v2122, %v2120
  %v2124 = vmul.f32 %v2123, %v2120
  %v2125 = vadd.f32 %v2120, %v2124
  %v2126 = vmul.f32 %v2125, 0.7978846
  %v2127 = vtanh.pop %v2126
  %v2128 = vadd.f32 %v2127, 1.0
  %v2129 = vmul.f32 %v2121, %v2128
  %v2130 = vld [vmem:[%s25] sm:$0xff]
  %v2131 = vld [vmem:[%s25 + $0x8] sm:$0xff]
  %v2132 = vpack.c.bf16 %v2129, %v2129
  %v2133 = vpack.c.bf16 %v2131, %v2130
  %v2134 = vld [vmem:[%s27] sm:$0x1]
  %v2136 = vlaneseq
  %v2137 = vshrl.u32 %v2136, 7
  %v2138 = vsub.s32 0, %v2137
  %v2139 = vrot.slane %v2134, %v2138
  %v2142 = vsel %vm187, %v2132, 0
  %2144 = vmatprep.subr.bf16.mxu0 0
  %2145 = vmatpush1.bf16.msra.mxu0 %v2133
  %2146 = vmatprep.subr.bf16.mxu0 0
  %2147 = vmatpush1.bf16.msra.mxu0 0
  %2148 = vmatprep.subr.bf16.mxu0 0
  %2149 = vmatpush1.bf16.msra.mxu0 0
  %2150 = vmatprep.subr.bf16.mxu0 0
  %2151 = vmatpush1.bf16.msra.mxu0 0
  %2152 = vmatprep.subr.bf16.mxu0 0
  %2153 = vmatpush1.bf16.msra.mxu0 0
  %2154 = vmatprep.subr.bf16.mxu0 0
  %2155 = vmatpush1.bf16.msra.mxu0 0
  %2156 = vmatprep.subr.bf16.mxu0 0
  %2157 = vmatpush1.bf16.msra.mxu0 0
  %2158 = vmatprep.subr.bf16.mxu0 0
  %2159 = vmatpush1.bf16.msra.mxu0 0
  %2160 = vmatprep.subr.bf16.mxu0 0
  %2161 = vmatpush1.bf16.msra.mxu0 0
  %2162 = vmatprep.subr.bf16.mxu0 0
  %2163 = vmatpush1.bf16.msra.mxu0 0
  %2164 = vmatprep.subr.bf16.mxu0 0
  %2165 = vmatpush1.bf16.msra.mxu0 0
  %2166 = vmatprep.subr.bf16.mxu0 0
  %2167 = vmatpush1.bf16.msra.mxu0 0
  %2168 = vmatprep.subr.bf16.mxu0 0
  %2169 = vmatpush1.bf16.msra.mxu0 0
  %2170 = vmatprep.subr.bf16.mxu0 0
  %2171 = vmatpush1.bf16.msra.mxu0 0
  %2172 = vmatprep.subr.bf16.mxu0 0
  %2173 = vmatpush1.bf16.msra.mxu0 0
  %2174 = vmatprep.subr.bf16.mxu0 0
  %2175 = vmatpush1.bf16.msra.mxu0 0
  %2176 = vmatprep.mubr.bf16.mxu0 0
  %2177 = vmatmul.mubr.bf16.gmra.mrb[0].mxu0 %v2142
  %v2178 = vpop.f32.mrb[0].mxu0
  %v2179 = vadd.f32 %v2139, %v2178
  %v2180 = vpop.f32.mrb[0].mxu0
  %v2181 = vpop.f32.mrb[0].mxu0
  %v2182 = vpop.f32.mrb[0].mxu0
  %2183 = vdwg.mxu0
  %v2184 = vmul.f32 %v2179, 0.5
  %v2185 = vmul.f32 %v2179, 0.044715
  %v2186 = vmul.f32 %v2185, %v2179
  %v2187 = vmul.f32 %v2186, %v2179
  %v2188 = vadd.f32 %v2179, %v2187
  %v2189 = vmul.f32 %v2188, 0.7978846
  %v2190 = vtanh.pop %v2189
  %v2191 = vadd.f32 %v2190, 1.0
  %v2192 = vmul.f32 %v2184, %v2191
  %s2193 = scalar_lea.vmem %s1, 128
  %v2194 = vld [vmem:[%s2193] sm:$0xff]
  %v2195 = vld [vmem:[%s2193 + $0x8] sm:$0xff]
  %v2196 = vld [vmem:[%s2193 + $0x10] sm:$0xff]
  %v2197 = vld [vmem:[%s2193 + $0x18] sm:$0xff]
  %v2198 = vld [vmem:[%s2193 + $0x20] sm:$0xff]
  %v2199 = vld [vmem:[%s2193 + $0x28] sm:$0xff]
  %v2200 = vld [vmem:[%s2193 + $0x30] sm:$0xff]
  %v2201 = vld [vmem:[%s2193 + $0x38] sm:$0xff]
  %v2202 = vld [vmem:[%s2193 + $0x40] sm:$0xff]
  %v2203 = vld [vmem:[%s2193 + $0x48] sm:$0xff]
  %v2204 = vld [vmem:[%s2193 + $0x50] sm:$0xff]
  %v2205 = vld [vmem:[%s2193 + $0x58] sm:$0xff]
  %v2206 = vld [vmem:[%s2193 + $0x60] sm:$0xff]
  %v2207 = vld [vmem:[%s2193 + $0x68] sm:$0xff]
  %v2208 = vld [vmem:[%s2193 + $0x70] sm:$0xff]
  %v2209 = vld [vmem:[%s2193 + $0x78] sm:$0xff]
  %s2210 = scalar_lea.vmem %s5, 48
  %v2211 = vld [vmem:[%s2210] sm:$0xff]
  %v2212 = vld [vmem:[%s2210 + $0x8] sm:$0xff]
  %v2213 = vld [vmem:[%s2210 + $0x10] sm:$0xff]
  %v2214 = vld [vmem:[%s2210 + $0x18] sm:$0xff]
  %v2215 = vld [vmem:[%s2210 + $0x20] sm:$0xff]
  %v2216 = vld [vmem:[%s2210 + $0x28] sm:$0xff]
  %s2217 = scalar_lea.vmem %s7, 1
  %v2218 = vld [vmem:[%s2217] sm:$0x1]
  %v2219 = vpack.c.bf16 %v2194, 0.0
  %v2220 = vpack.c.bf16 %v2196, %v2195
  %v2221 = vpack.c.bf16 %v2198, %v2197
  %v2222 = vpack.c.bf16 %v2200, %v2199
  %v2223 = vpack.c.bf16 %v2202, %v2201
  %v2224 = vpack.c.bf16 %v2204, %v2203
  %v2225 = vpack.c.bf16 %v2206, %v2205
  %v2226 = vpack.c.bf16 %v2208, %v2207
  %v2227 = vpack.c.bf16 %v2212, %v2211
  %v2228 = vpack.c.bf16 %v2195, %v2194
  %v2229 = vpack.c.bf16 %v2197, %v2196
  %v2230 = vpack.c.bf16 %v2199, %v2198
  %v2231 = vpack.c.bf16 %v2201, %v2200
  %v2232 = vpack.c.bf16 %v2203, %v2202
  %v2233 = vpack.c.bf16 %v2205, %v2204
  %v2234 = vpack.c.bf16 %v2207, %v2206
  %v2235 = vpack.c.bf16 %v2209, %v2208
  %v2236 = vpack.c.bf16 %v2214, %v2213
  %v2238 = vsel %vm187, %v2228, 0
  %v2241 = vsel %vm187, %v2229, 0
  %v2244 = vsel %vm187, %v2230, 0
  %v2247 = vsel %vm187, %v2231, 0
  %v2250 = vsel %vm187, %v2232, 0
  %v2253 = vsel %vm187, %v2233, 0
  %v2256 = vsel %vm187, %v2234, 0
  %v2259 = vsel %vm187, %v2235, 0
  %2261 = vmatprep.subr.bf16.mxu0 0
  %2262 = vmatpush1.bf16.msra.mxu0 %v2236
  %2263 = vmatprep.subr.bf16.mxu0 0
  %2264 = vmatpush1.bf16.msra.mxu0 0
  %2265 = vmatprep.subr.bf16.mxu0 0
  %2266 = vmatpush1.bf16.msra.mxu0 0
  %2267 = vmatprep.subr.bf16.mxu0 0
  %2268 = vmatpush1.bf16.msra.mxu0 0
  %2269 = vmatprep.subr.bf16.mxu0 0
  %2270 = vmatpush1.bf16.msra.mxu0 0
  %2271 = vmatprep.subr.bf16.mxu0 0
  %2272 = vmatpush1.bf16.msra.mxu0 0
  %2273 = vmatprep.subr.bf16.mxu0 0
  %2274 = vmatpush1.bf16.msra.mxu0 0
  %2275 = vmatprep.subr.bf16.mxu0 0
  %2276 = vmatpush1.bf16.msra.mxu0 0
  %2277 = vmatprep.subr.bf16.mxu0 0
  %2278 = vmatpush1.bf16.msra.mxu0 0
  %2279 = vmatprep.subr.bf16.mxu0 0
  %2280 = vmatpush1.bf16.msra.mxu0 0
  %2281 = vmatprep.subr.bf16.mxu0 0
  %2282 = vmatpush1.bf16.msra.mxu0 0
  %2283 = vmatprep.subr.bf16.mxu0 0
  %2284 = vmatpush1.bf16.msra.mxu0 0
  %2285 = vmatprep.subr.bf16.mxu0 0
  %2286 = vmatpush1.bf16.msra.mxu0 0
  %2287 = vmatprep.subr.bf16.mxu0 0
  %2288 = vmatpush1.bf16.msra.mxu0 0
  %2289 = vmatprep.subr.bf16.mxu0 0
  %2290 = vmatpush1.bf16.msra.mxu0 0
  %2291 = vmatprep.subr.bf16.mxu0 0
  %2292 = vmatpush1.bf16.msra.mxu0 0
  %2293 = vmatprep.mubr.bf16.mxu0 0
  %2294 = vmatmul.mubr.bf16.gmra.mrb[0].mxu0 %v2238
  %v2295 = vpop.f32.mrb[0].mxu0
  %v2296 = vadd.f32 0.0, %v2295
  %v2297 = vpop.f32.mrb[0].mxu0
  %v2298 = vpop.f32.mrb[0].mxu0
  %v2299 = vadd.f32 0.0, %v2298
  %v2300 = vpop.f32.mrb[0].mxu0
  %2301 = vmatprep.mubr.bf16.mxu0 0
  %2302 = vmatmul.mubr.bf16.gmra.mrb[0].mxu0 %v2241
  %v2303 = vpop.f32.mrb[0].mxu0
  %v2304 = vadd.f32 0.0, %v2303
  %v2305 = vpop.f32.mrb[0].mxu0
  %v2306 = vpop.f32.mrb[0].mxu0
  %v2307 = vadd.f32 0.0, %v2306
  %v2308 = vpop.f32.mrb[0].mxu0
  %2309 = vmatprep.mubr.bf16.mxu0 0
  %2310 = vmatmul.mubr.bf16.gmra.mrb[0].mxu0 %v2244
  %v2311 = vpop.f32.mrb[0].mxu0
  %v2312 = vadd.f32 0.0, %v2311
  %v2313 = vpop.f32.mrb[0].mxu0
  %v2314 = vpop.f32.mrb[0].mxu0
  %v2315 = vadd.f32 0.0, %v2314
  %v2316 = vpop.f32.mrb[0].mxu0
  %2317 = vmatprep.mubr.bf16.mxu0 0
  %2318 = vmatmul.mubr.bf16.gmra.mrb[0].mxu0 %v2247
  %v2319 = vpop.f32.mrb[0].mxu0
  %v2320 = vadd.f32 0.0, %v2319
  %v2321 = vpop.f32.mrb[0].mxu0
  %v2322 = vpop.f32.mrb[0].mxu0
  %v2323 = vadd.f32 0.0, %v2322
  %v2324 = vpop.f32.mrb[0].mxu0
  %2325 = vmatprep.mubr.bf16.mxu0 0
  %2326 = vmatmul.mubr.bf16.gmra.mrb[0].mxu0 %v2250
  %v2327 = vpop.f32.mrb[0].mxu0
  %v2328 = vadd.f32 0.0, %v2327
  %v2329 = vpop.f32.mrb[0].mxu0
  %v2330 = vpop.f32.mrb[0].mxu0
  %v2331 = vadd.f32 0.0, %v2330
  %v2332 = vpop.f32.mrb[0].mxu0
  %2333 = vmatprep.mubr.bf16.mxu0 0
  %2334 = vmatmul.mubr.bf16.gmra.mrb[0].mxu0 %v2253
  %v2335 = vpop.f32.mrb[0].mxu0
  %v2336 = vadd.f32 0.0, %v2335
  %v2337 = vpop.f32.mrb[0].mxu0
  %v2338 = vpop.f32.mrb[0].mxu0
  %v2339 = vadd.f32 0.0, %v2338
  %v2340 = vpop.f32.mrb[0].mxu0
  %2341 = vmatprep.mubr.bf16.mxu0 0
  %2342 = vmatmul.mubr.bf16.gmra.mrb[0].mxu0 %v2256
  %v2343 = vpop.f32.mrb[0].mxu0
  %v2344 = vadd.f32 0.0, %v2343
  %v2345 = vpop.f32.mrb[0].mxu0
  %v2346 = vpop.f32.mrb[0].mxu0
  %v2347 = vadd.f32 0.0, %v2346
  %v2348 = vpop.f32.mrb[0].mxu0
  %2349 = vmatprep.mubr.bf16.mxu0 0
  %2350 = vmatmul.mubr.bf16.gmra.mrb[0].mxu0 %v2259
  %v2351 = vpop.f32.mrb[0].mxu0
  %v2352 = vadd.f32 0.0, %v2351
  %v2353 = vpop.f32.mrb[0].mxu0
  %v2354 = vpop.f32.mrb[0].mxu0
  %v2355 = vadd.f32 0.0, %v2354
  %v2356 = vpop.f32.mrb[0].mxu0
  %2357 = vdwg.mxu0
  %v2359 = vsel %vm187, %v2219, 0
  %v2362 = vsel %vm187, %v2220, 0
  %v2365 = vsel %vm187, %v2221, 0
  %v2368 = vsel %vm187, %v2222, 0
  %v2371 = vsel %vm187, %v2223, 0
  %v2374 = vsel %vm187, %v2224, 0
  %v2377 = vsel %vm187, %v2225, 0
  %v2380 = vsel %vm187, %v2226, 0
  %2382 = vmatprep.subr.bf16.mxu0 0
  %2383 = vmatpush1.bf16.msra.mxu0 %v2227
  %2384 = vmatprep.subr.bf16.mxu0 0
  %2385 = vmatpush1.bf16.msra.mxu0 0
  %2386 = vmatprep.subr.bf16.mxu0 0
  %2387 = vmatpush1.bf16.msra.mxu0 0
  %2388 = vmatprep.subr.bf16.mxu0 0
  %2389 = vmatpush1.bf16.msra.mxu0 0
  %2390 = vmatprep.subr.bf16.mxu0 0
  %2391 = vmatpush1.bf16.msra.mxu0 0
  %2392 = vmatprep.subr.bf16.mxu0 0
  %2393 = vmatpush1.bf16.msra.mxu0 0
  %2394 = vmatprep.subr.bf16.mxu0 0
  %2395 = vmatpush1.bf16.msra.mxu0 0
  %2396 = vmatprep.subr.bf16.mxu0 0
  %2397 = vmatpush1.bf16.msra.mxu0 0
  %2398 = vmatprep.subr.bf16.mxu0 0
  %2399 = vmatpush1.bf16.msra.mxu0 0
  %2400 = vmatprep.subr.bf16.mxu0 0
  %2401 = vmatpush1.bf16.msra.mxu0 0
  %2402 = vmatprep.subr.bf16.mxu0 0
  %2403 = vmatpush1.bf16.msra.mxu0 0
  %2404 = vmatprep.subr.bf16.mxu0 0
  %2405 = vmatpush1.bf16.msra.mxu0 0
  %2406 = vmatprep.subr.bf16.mxu0 0
  %2407 = vmatpush1.bf16.msra.mxu0 0
  %2408 = vmatprep.subr.bf16.mxu0 0
  %2409 = vmatpush1.bf16.msra.mxu0 0
  %2410 = vmatprep.subr.bf16.mxu0 0
  %2411 = vmatpush1.bf16.msra.mxu0 0
  %2412 = vmatprep.subr.bf16.mxu0 0
  %2413 = vmatpush1.bf16.msra.mxu0 0
  %2414 = vmatprep.mubr.bf16.mxu0 0
  %2415 = vmatmul.mubr.bf16.gmra.mrb[0].mxu0 %v2359
  %v2416 = vpop.f32.mrb[0].mxu0
  %v2417 = vadd.f32 %v2296, %v2416
  %v2418 = vpop.f32.mrb[0].mxu0
  %v2419 = vpop.f32.mrb[0].mxu0
  %v2420 = vadd.f32 %v2299, %v2419
  %v2421 = vpop.f32.mrb[0].mxu0
  %2422 = vmatprep.mubr.bf16.mxu0 0
  %2423 = vmatmul.mubr.bf16.gmra.mrb[0].mxu0 %v2362
  %v2424 = vpop.f32.mrb[0].mxu0
  %v2425 = vadd.f32 %v2304, %v2424
  %v2426 = vpop.f32.mrb[0].mxu0
  %v2427 = vpop.f32.mrb[0].mxu0
  %v2428 = vadd.f32 %v2307, %v2427
  %v2429 = vpop.f32.mrb[0].mxu0
  %2430 = vmatprep.mubr.bf16.mxu0 0
  %2431 = vmatmul.mubr.bf16.gmra.mrb[0].mxu0 %v2365
  %v2432 = vpop.f32.mrb[0].mxu0
  %v2433 = vadd.f32 %v2312, %v2432
  %v2434 = vpop.f32.mrb[0].mxu0
  %v2435 = vpop.f32.mrb[0].mxu0
  %v2436 = vadd.f32 %v2315, %v2435
  %v2437 = vpop.f32.mrb[0].mxu0
  %2438 = vmatprep.mubr.bf16.mxu0 0
  %2439 = vmatmul.mubr.bf16.gmra.mrb[0].mxu0 %v2368
  %v2440 = vpop.f32.mrb[0].mxu0
  %v2441 = vadd.f32 %v2320, %v2440
  %v2442 = vpop.f32.mrb[0].mxu0
  %v2443 = vpop.f32.mrb[0].mxu0
  %v2444 = vadd.f32 %v2323, %v2443
  %v2445 = vpop.f32.mrb[0].mxu0
  %2446 = vmatprep.mubr.bf16.mxu0 0
  %2447 = vmatmul.mubr.bf16.gmra.mrb[0].mxu0 %v2371
  %v2448 = vpop.f32.mrb[0].mxu0
  %v2449 = vadd.f32 %v2328, %v2448
  %v2450 = vpop.f32.mrb[0].mxu0
  %v2451 = vpop.f32.mrb[0].mxu0
  %v2452 = vadd.f32 %v2331, %v2451
  %v2453 = vpop.f32.mrb[0].mxu0
  %2454 = vmatprep.mubr.bf16.mxu0 0
  %2455 = vmatmul.mubr.bf16.gmra.mrb[0].mxu0 %v2374
  %v2456 = vpop.f32.mrb[0].mxu0
  %v2457 = vadd.f32 %v2336, %v2456
  %v2458 = vpop.f32.mrb[0].mxu0
  %v2459 = vpop.f32.mrb[0].mxu0
  %v2460 = vadd.f32 %v2339, %v2459
  %v2461 = vpop.f32.mrb[0].mxu0
  %2462 = vmatprep.mubr.bf16.mxu0 0
  %2463 = vmatmul.mubr.bf16.gmra.mrb[0].mxu0 %v2377
  %v2464 = vpop.f32.mrb[0].mxu0
  %v2465 = vadd.f32 %v2344, %v2464
  %v2466 = vpop.f32.mrb[0].mxu0
  %v2467 = vpop.f32.mrb[0].mxu0
  %v2468 = vadd.f32 %v2347, %v2467
  %v2469 = vpop.f32.mrb[0].mxu0
  %2470 = vmatprep.mubr.bf16.mxu0 0
  %2471 = vmatmul.mubr.bf16.gmra.mrb[0].mxu0 %v2380
  %v2472 = vpop.f32.mrb[0].mxu0
  %v2473 = vadd.f32 %v2352, %v2472
  %v2474 = vpop.f32.mrb[0].mxu0
  %v2475 = vpop.f32.mrb[0].mxu0
  %v2476 = vadd.f32 %v2355, %v2475
  %v2477 = vpop.f32.mrb[0].mxu0
  %2478 = vdwg.mxu0
  %v2479 = vpack.c.bf16 0.0, %v2209
  %v2480 = vpack.c.bf16 %v2216, %v2215
  %v2482 = vsel %vm187, %v2479, 0
  %2484 = vmatprep.subr.bf16.mxu0 0
  %2485 = vmatpush1.bf16.msra.mxu0 %v2480
  %2486 = vmatprep.subr.bf16.mxu0 0
  %2487 = vmatpush1.bf16.msra.mxu0 0
  %2488 = vmatprep.subr.bf16.mxu0 0
  %2489 = vmatpush1.bf16.msra.mxu0 0
  %2490 = vmatprep.subr.bf16.mxu0 0
  %2491 = vmatpush1.bf16.msra.mxu0 0
  %2492 = vmatprep.subr.bf16.mxu0 0
  %2493 = vmatpush1.bf16.msra.mxu0 0
  %2494 = vmatprep.subr.bf16.mxu0 0
  %2495 = vmatpush1.bf16.msra.mxu0 0
  %2496 = vmatprep.subr.bf16.mxu0 0
  %2497 = vmatpush1.bf16.msra.mxu0 0
  %2498 = vmatprep.subr.bf16.mxu0 0
  %2499 = vmatpush1.bf16.msra.mxu0 0
  %2500 = vmatprep.subr.bf16.mxu0 0
  %2501 = vmatpush1.bf16.msra.mxu0 0
  %2502 = vmatprep.subr.bf16.mxu0 0
  %2503 = vmatpush1.bf16.msra.mxu0 0
  %2504 = vmatprep.subr.bf16.mxu0 0
  %2505 = vmatpush1.bf16.msra.mxu0 0
  %2506 = vmatprep.subr.bf16.mxu0 0
  %2507 = vmatpush1.bf16.msra.mxu0 0
  %2508 = vmatprep.subr.bf16.mxu0 0
  %2509 = vmatpush1.bf16.msra.mxu0 0
  %2510 = vmatprep.subr.bf16.mxu0 0
  %2511 = vmatpush1.bf16.msra.mxu0 0
  %2512 = vmatprep.subr.bf16.mxu0 0
  %2513 = vmatpush1.bf16.msra.mxu0 0
  %2514 = vmatprep.subr.bf16.mxu0 0
  %2515 = vmatpush1.bf16.msra.mxu0 0
  %2516 = vmatprep.mubr.bf16.mxu0 0
  %2517 = vmatmul.mubr.bf16.gmra.mrb[0].mxu0 %v2362
  %v2518 = vpop.f32.mrb[0].mxu0
  %v2519 = vadd.f32 0.0, %v2518
  %v2520 = vpop.f32.mrb[0].mxu0
  %v2521 = vpop.f32.mrb[0].mxu0
  %v2522 = vadd.f32 0.0, %v2521
  %v2523 = vpop.f32.mrb[0].mxu0
  %2524 = vmatprep.mubr.bf16.mxu0 0
  %2525 = vmatmul.mubr.bf16.gmra.mrb[0].mxu0 %v2365
  %v2526 = vpop.f32.mrb[0].mxu0
  %v2527 = vadd.f32 0.0, %v2526
  %v2528 = vpop.f32.mrb[0].mxu0
  %v2529 = vpop.f32.mrb[0].mxu0
  %v2530 = vadd.f32 0.0, %v2529
  %v2531 = vpop.f32.mrb[0].mxu0
  %2532 = vmatprep.mubr.bf16.mxu0 0
  %2533 = vmatmul.mubr.bf16.gmra.mrb[0].mxu0 %v2368
  %v2534 = vpop.f32.mrb[0].mxu0
  %v2535 = vadd.f32 0.0, %v2534
  %v2536 = vpop.f32.mrb[0].mxu0
  %v2537 = vpop.f32.mrb[0].mxu0
  %v2538 = vadd.f32 0.0, %v2537
  %v2539 = vpop.f32.mrb[0].mxu0
  %2540 = vmatprep.mubr.bf16.mxu0 0
  %2541 = vmatmul.mubr.bf16.gmra.mrb[0].mxu0 %v2371
  %v2542 = vpop.f32.mrb[0].mxu0
  %v2543 = vadd.f32 0.0, %v2542
  %v2544 = vpop.f32.mrb[0].mxu0
  %v2545 = vpop.f32.mrb[0].mxu0
  %v2546 = vadd.f32 0.0, %v2545
  %v2547 = vpop.f32.mrb[0].mxu0
  %2548 = vmatprep.mubr.bf16.mxu0 0
  %2549 = vmatmul.mubr.bf16.gmra.mrb[0].mxu0 %v2374
  %v2550 = vpop.f32.mrb[0].mxu0
  %v2551 = vadd.f32 0.0, %v2550
  %v2552 = vpop.f32.mrb[0].mxu0
  %v2553 = vpop.f32.mrb[0].mxu0
  %v2554 = vadd.f32 0.0, %v2553
  %v2555 = vpop.f32.mrb[0].mxu0
  %2556 = vmatprep.mubr.bf16.mxu0 0
  %2557 = vmatmul.mubr.bf16.gmra.mrb[0].mxu0 %v2377
  %v2558 = vpop.f32.mrb[0].mxu0
  %v2559 = vadd.f32 0.0, %v2558
  %v2560 = vpop.f32.mrb[0].mxu0
  %v2561 = vpop.f32.mrb[0].mxu0
  %v2562 = vadd.f32 0.0, %v2561
  %v2563 = vpop.f32.mrb[0].mxu0
  %2564 = vmatprep.mubr.bf16.mxu0 0
  %2565 = vmatmul.mubr.bf16.gmra.mrb[0].mxu0 %v2380
  %v2566 = vpop.f32.mrb[0].mxu0
  %v2567 = vadd.f32 0.0, %v2566
  %v2568 = vpop.f32.mrb[0].mxu0
  %v2569 = vpop.f32.mrb[0].mxu0
  %v2570 = vadd.f32 0.0, %v2569
  %v2571 = vpop.f32.mrb[0].mxu0
  %2572 = vmatprep.mubr.bf16.mxu0 0
  %2573 = vmatmul.mubr.bf16.gmra.mrb[0].mxu0 %v2482
  %v2574 = vpop.f32.mrb[0].mxu0
  %v2575 = vadd.f32 0.0, %v2574
  %v2576 = vpop.f32.mrb[0].mxu0
  %v2577 = vpop.f32.mrb[0].mxu0
  %v2578 = vadd.f32 0.0, %v2577
  %v2579 = vpop.f32.mrb[0].mxu0
  %2580 = vdwg.mxu0
  %v2581 = vadd.f32 %v2417, %v2519
  %v2582 = vadd.f32 %v2420, %v2522
  %v2583 = vadd.f32 %v2425, %v2527
  %v2584 = vadd.f32 %v2428, %v2530
  %v2585 = vadd.f32 %v2433, %v2535
  %v2586 = vadd.f32 %v2436, %v2538
  %v2587 = vadd.f32 %v2441, %v2543
  %v2588 = vadd.f32 %v2444, %v2546
  %v2589 = vadd.f32 %v2449, %v2551
  %v2590 = vadd.f32 %v2452, %v2554
  %v2591 = vadd.f32 %v2457, %v2559
  %v2592 = vadd.f32 %v2460, %v2562
  %v2593 = vadd.f32 %v2465, %v2567
  %v2594 = vadd.f32 %v2468, %v2570
  %v2595 = vadd.f32 %v2473, %v2575
  %v2596 = vadd.f32 %v2476, %v2578
  %v2598 = vlaneseq
  %v2599 = vshrl.u32 %v2598, 7
  %v2600 = vsub.s32 0, %v2599
  %v2601 = vrot.slane %v2218, %v2600
  %v2603 = vadd.f32 %v2581, %v2601
  %v2604 = vadd.f32 %v2582, %v2601
  %v2605 = vadd.f32 %v2583, %v2601
  %v2606 = vadd.f32 %v2584, %v2601
  %v2607 = vadd.f32 %v2585, %v2601
  %v2608 = vadd.f32 %v2586, %v2601
  %v2609 = vadd.f32 %v2587, %v2601
  %v2610 = vadd.f32 %v2588, %v2601
  %v2611 = vadd.f32 %v2589, %v2601
  %v2612 = vadd.f32 %v2590, %v2601
  %v2613 = vadd.f32 %v2591, %v2601
  %v2614 = vadd.f32 %v2592, %v2601
  %v2615 = vadd.f32 %v2593, %v2601
  %v2616 = vadd.f32 %v2594, %v2601
  %v2617 = vadd.f32 %v2595, %v2601
  %v2618 = vadd.f32 %v2596, %v2601
  %v2619 = vmul.f32 %v2603, 0.5
  %v2620 = vmul.f32 %v2604, 0.5
  %v2621 = vmul.f32 %v2605, 0.5
  %v2622 = vmul.f32 %v2606, 0.5
  %v2623 = vmul.f32 %v2607, 0.5
  %v2624 = vmul.f32 %v2608, 0.5
  %v2625 = vmul.f32 %v2609, 0.5
  %v2626 = vmul.f32 %v2610, 0.5
  %v2627 = vmul.f32 %v2611, 0.5
  %v2628 = vmul.f32 %v2612, 0.5
  %v2629 = vmul.f32 %v2613, 0.5
  %v2630 = vmul.f32 %v2614, 0.5
  %v2631 = vmul.f32 %v2615, 0.5
  %v2632 = vmul.f32 %v2616, 0.5
  %v2633 = vmul.f32 %v2617, 0.5
  %v2634 = vmul.f32 %v2618, 0.5
  %v2635 = vmul.f32 %v2603, 0.044715
  %v2636 = vmul.f32 %v2604, 0.044715
  %v2637 = vmul.f32 %v2605, 0.044715
  %v2638 = vmul.f32 %v2606, 0.044715
  %v2639 = vmul.f32 %v2607, 0.044715
  %v2640 = vmul.f32 %v2608, 0.044715
  %v2641 = vmul.f32 %v2609, 0.044715
  %v2642 = vmul.f32 %v2610, 0.044715
  %v2643 = vmul.f32 %v2611, 0.044715
  %v2644 = vmul.f32 %v2612, 0.044715
  %v2645 = vmul.f32 %v2613, 0.044715
  %v2646 = vmul.f32 %v2614, 0.044715
  %v2647 = vmul.f32 %v2615, 0.044715
  %v2648 = vmul.f32 %v2616, 0.044715
  %v2649 = vmul.f32 %v2617, 0.044715
  %v2650 = vmul.f32 %v2618, 0.044715
  %v2651 = vmul.f32 %v2635, %v2603
  %v2652 = vmul.f32 %v2636, %v2604
  %v2653 = vmul.f32 %v2637, %v2605
  %v2654 = vmul.f32 %v2638, %v2606
  %v2655 = vmul.f32 %v2639, %v2607
  %v2656 = vmul.f32 %v2640, %v2608
  %v2657 = vmul.f32 %v2641, %v2609
  %v2658 = vmul.f32 %v2642, %v2610
  %v2659 = vmul.f32 %v2643, %v2611
  %v2660 = vmul.f32 %v2644, %v2612
  %v2661 = vmul.f32 %v2645, %v2613
  %v2662 = vmul.f32 %v2646, %v2614
  %v2663 = vmul.f32 %v2647, %v2615
  %v2664 = vmul.f32 %v2648, %v2616
  %v2665 = vmul.f32 %v2649, %v2617
  %v2666 = vmul.f32 %v2650, %v2618
  %v2667 = vmul.f32 %v2651, %v2603
  %v2668 = vmul.f32 %v2652, %v2604
  %v2669 = vmul.f32 %v2653, %v2605
  %v2670 = vmul.f32 %v2654, %v2606
  %v2671 = vmul.f32 %v2655, %v2607
  %v2672 = vmul.f32 %v2656, %v2608
  %v2673 = vmul.f32 %v2657, %v2609
  %v2674 = vmul.f32 %v2658, %v2610
  %v2675 = vmul.f32 %v2659, %v2611
  %v2676 = vmul.f32 %v2660, %v2612
  %v2677 = vmul.f32 %v2661, %v2613
  %v2678 = vmul.f32 %v2662, %v2614
  %v2679 = vmul.f32 %v2663, %v2615
  %v2680 = vmul.f32 %v2664, %v2616
  %v2681 = vmul.f32 %v2665, %v2617
  %v2682 = vmul.f32 %v2666, %v2618
  %v2683 = vadd.f32 %v2603, %v2667
  %v2684 = vadd.f32 %v2604, %v2668
  %v2685 = vadd.f32 %v2605, %v2669
  %v2686 = vadd.f32 %v2606, %v2670
  %v2687 = vadd.f32 %v2607, %v2671
  %v2688 = vadd.f32 %v2608, %v2672
  %v2689 = vadd.f32 %v2609, %v2673
  %v2690 = vadd.f32 %v2610, %v2674
  %v2691 = vadd.f32 %v2611, %v2675
  %v2692 = vadd.f32 %v2612, %v2676
  %v2693 = vadd.f32 %v2613, %v2677
  %v2694 = vadd.f32 %v2614, %v2678
  %v2695 = vadd.f32 %v2615, %v2679
  %v2696 = vadd.f32 %v2616, %v2680
  %v2697 = vadd.f32 %v2617, %v2681
  %v2698 = vadd.f32 %v2618, %v2682
  %v2699 = vmul.f32 %v2683, 0.7978846
  %v2700 = vmul.f32 %v2684, 0.7978846
  %v2701 = vmul.f32 %v2685, 0.7978846
  %v2702 = vmul.f32 %v2686, 0.7978846
  %v2703 = vmul.f32 %v2687, 0.7978846
  %v2704 = vmul.f32 %v2688, 0.7978846
  %v2705 = vmul.f32 %v2689, 0.7978846
  %v2706 = vmul.f32 %v2690, 0.7978846
  %v2707 = vmul.f32 %v2691, 0.7978846
  %v2708 = vmul.f32 %v2692, 0.7978846
  %v2709 = vmul.f32 %v2693, 0.7978846
  %v2710 = vmul.f32 %v2694, 0.7978846
  %v2711 = vmul.f32 %v2695, 0.7978846
  %v2712 = vmul.f32 %v2696, 0.7978846
  %v2713 = vmul.f32 %v2697, 0.7978846
  %v2714 = vmul.f32 %v2698, 0.7978846
  %v2715 = vtanh.pop %v2699
  %v2716 = vtanh.pop %v2700
  %v2717 = vtanh.pop %v2701
  %v2718 = vtanh.pop %v2702
  %v2719 = vtanh.pop %v2703
  %v2720 = vtanh.pop %v2704
  %v2721 = vtanh.pop %v2705
  %v2722 = vtanh.pop %v2706
  %v2723 = vtanh.pop %v2707
  %v2724 = vtanh.pop %v2708
  %v2725 = vtanh.pop %v2709
  %v2726 = vtanh.pop %v2710
  %v2727 = vtanh.pop %v2711
  %v2728 = vtanh.pop %v2712
  %v2729 = vtanh.pop %v2713
  %v2730 = vtanh.pop %v2714
  %v2731 = vadd.f32 %v2715, 1.0
  %v2732 = vadd.f32 %v2716, 1.0
  %v2733 = vadd.f32 %v2717, 1.0
  %v2734 = vadd.f32 %v2718, 1.0
  %v2735 = vadd.f32 %v2719, 1.0
  %v2736 = vadd.f32 %v2720, 1.0
  %v2737 = vadd.f32 %v2721, 1.0
  %v2738 = vadd.f32 %v2722, 1.0
  %v2739 = vadd.f32 %v2723, 1.0
  %v2740 = vadd.f32 %v2724, 1.0
  %v2741 = vadd.f32 %v2725, 1.0
  %v2742 = vadd.f32 %v2726, 1.0
  %v2743 = vadd.f32 %v2727, 1.0
  %v2744 = vadd.f32 %v2728, 1.0
  %v2745 = vadd.f32 %v2729, 1.0
  %v2746 = vadd.f32 %v2730, 1.0
  %v2747 = vmul.f32 %v2619, %v2731
  %v2748 = vmul.f32 %v2620, %v2732
  %v2749 = vmul.f32 %v2621, %v2733
  %v2750 = vmul.f32 %v2622, %v2734
  %v2751 = vmul.f32 %v2623, %v2735
  %v2752 = vmul.f32 %v2624, %v2736
  %v2753 = vmul.f32 %v2625, %v2737
  %v2754 = vmul.f32 %v2626, %v2738
  %v2755 = vmul.f32 %v2627, %v2739
  %v2756 = vmul.f32 %v2628, %v2740
  %v2757 = vmul.f32 %v2629, %v2741
  %v2758 = vmul.f32 %v2630, %v2742
  %v2759 = vmul.f32 %v2631, %v2743
  %v2760 = vmul.f32 %v2632, %v2744
  %v2761 = vmul.f32 %v2633, %v2745
  %v2762 = vmul.f32 %v2634, %v2746
  %s2763 = scalar_lea.vmem %s9, 192
  %v2764 = vld [vmem:[%s2763] sm:$0xff]
  %v2765 = vld [vmem:[%s2763 + $0x8] sm:$0xff]
  %v2766 = vld [vmem:[%s2763 + $0x10] sm:$0xff]
  %v2767 = vld [vmem:[%s2763 + $0x18] sm:$0xff]
  %v2768 = vld [vmem:[%s2763 + $0x20] sm:$0xff]
  %v2769 = vld [vmem:[%s2763 + $0x28] sm:$0xff]
  %v2770 = vld [vmem:[%s2763 + $0x30] sm:$0xff]
  %v2771 = vld [vmem:[%s2763 + $0x38] sm:$0xff]
  %v2772 = vld [vmem:[%s2763 + $0x40] sm:$0xff]
  %v2773 = vld [vmem:[%s2763 + $0x48] sm:$0xff]
  %v2774 = vld [vmem:[%s2763 + $0x50] sm:$0xff]
  %v2775 = vld [vmem:[%s2763 + $0x58] sm:$0xff]
  %v2776 = vld [vmem:[%s2763 + $0x60] sm:$0xff]
  %v2777 = vld [vmem:[%s2763 + $0x68] sm:$0xff]
  %v2778 = vld [vmem:[%s2763 + $0x70] sm:$0xff]
  %v2779 = vld [vmem:[%s2763 + $0x78] sm:$0xff]
  %v2780 = vld [vmem:[%s2763 + $0x80] sm:$0xff]
  %v2781 = vld [vmem:[%s2763 + $0x88] sm:$0xff]
  %v2782 = vld [vmem:[%s2763 + $0x90] sm:$0xff]
  %v2783 = vld [vmem:[%s2763 + $0x98] sm:$0xff]
  %v2784 = vld [vmem:[%s2763 + $0xa0] sm:$0xff]
  %v2785 = vld [vmem:[%s2763 + $0xa8] sm:$0xff]
  %v2786 = vld [vmem:[%s2763 + $0xb0] sm:$0xff]
  %v2787 = vld [vmem:[%s2763 + $0xb8] sm:$0xff]
  %s2788 = scalar_lea.vmem %s11, 1
  %v2789 = vld [vmem:[%s2788] sm:$0x1]
  %v2790 = vpack.c.bf16 %v2747, 0.0
  %v2791 = vpack.c.bf16 %v2749, %v2748
  %v2792 = vpack.c.bf16 %v2751, %v2750
  %v2793 = vpack.c.bf16 %v2753, %v2752
  %v2794 = vpack.c.bf16 %v2755, %v2754
  %v2795 = vpack.c.bf16 %v2757, %v2756
  %v2796 = vpack.c.bf16 %v2759, %v2758
  %v2797 = vpack.c.bf16 %v2761, %v2760
  %v2798 = vpack.c.bf16 %v2765, %v2764
  %v2799 = vpack.c.bf16 %v2767, %v2766
  %v2800 = vpack.c.bf16 %v2769, %v2768
  %v2801 = vpack.c.bf16 %v2771, %v2770
  %v2802 = vpack.c.bf16 %v2748, %v2747
  %v2803 = vpack.c.bf16 %v2750, %v2749
  %v2804 = vpack.c.bf16 %v2752, %v2751
  %v2805 = vpack.c.bf16 %v2754, %v2753
  %v2806 = vpack.c.bf16 %v2756, %v2755
  %v2807 = vpack.c.bf16 %v2758, %v2757
  %v2808 = vpack.c.bf16 %v2760, %v2759
  %v2809 = vpack.c.bf16 %v2762, %v2761
  %v2810 = vpack.c.bf16 %v2773, %v2772
  %v2811 = vpack.c.bf16 %v2775, %v2774
  %v2812 = vpack.c.bf16 %v2777, %v2776
  %v2813 = vpack.c.bf16 %v2779, %v2778
  %v2815 = vsel %vm763, %v2802, 0
  %v2818 = vsel %vm763, %v2803, 0
  %v2821 = vsel %vm763, %v2804, 0
  %v2824 = vsel %vm763, %v2805, 0
  %v2827 = vsel %vm763, %v2806, 0
  %v2830 = vsel %vm763, %v2807, 0
  %v2833 = vsel %vm763, %v2808, 0
  %v2836 = vsel %vm763, %v2809, 0
  %2838 = vmatprep.subr.bf16.mxu0 0
  %2839 = vmatpush1.bf16.msra.mxu0 %v2810
  %2840 = vmatprep.subr.bf16.mxu0 0
  %2841 = vmatpush1.bf16.msra.mxu0 %v2811
  %2842 = vmatprep.subr.bf16.mxu0 0
  %2843 = vmatpush1.bf16.msra.mxu0 %v2812
  %2844 = vmatprep.subr.bf16.mxu0 0
  %2845 = vmatpush1.bf16.msra.mxu0 %v2813
  %2846 = vmatprep.subr.bf16.mxu0 0
  %2847 = vmatpush1.bf16.msra.mxu0 0
  %2848 = vmatprep.subr.bf16.mxu0 0
  %2849 = vmatpush1.bf16.msra.mxu0 0
  %2850 = vmatprep.subr.bf16.mxu0 0
  %2851 = vmatpush1.bf16.msra.mxu0 0
  %2852 = vmatprep.subr.bf16.mxu0 0
  %2853 = vmatpush1.bf16.msra.mxu0 0
  %2854 = vmatprep.subr.bf16.mxu0 0
  %2855 = vmatpush1.bf16.msra.mxu0 0
  %2856 = vmatprep.subr.bf16.mxu0 0
  %2857 = vmatpush1.bf16.msra.mxu0 0
  %2858 = vmatprep.subr.bf16.mxu0 0
  %2859 = vmatpush1.bf16.msra.mxu0 0
  %2860 = vmatprep.subr.bf16.mxu0 0
  %2861 = vmatpush1.bf16.msra.mxu0 0
  %2862 = vmatprep.subr.bf16.mxu0 0
  %2863 = vmatpush1.bf16.msra.mxu0 0
  %2864 = vmatprep.subr.bf16.mxu0 0
  %2865 = vmatpush1.bf16.msra.mxu0 0
  %2866 = vmatprep.subr.bf16.mxu0 0
  %2867 = vmatpush1.bf16.msra.mxu0 0
  %2868 = vmatprep.subr.bf16.mxu0 0
  %2869 = vmatpush1.bf16.msra.mxu0 0
  %2870 = vmatprep.mubr.bf16.mxu0 0
  %2871 = vmatmul.mubr.bf16.gmra.mrb[0].mxu0 %v2815
  %v2872 = vpop.f32.mrb[0].mxu0
  %v2873 = vadd.f32 0.0, %v2872
  %v2874 = vpop.f32.mrb[0].mxu0
  %v2875 = vpop.f32.mrb[0].mxu0
  %v2876 = vadd.f32 0.0, %v2875
  %v2877 = vpop.f32.mrb[0].mxu0
  %2878 = vmatprep.mubr.bf16.mxu0 0
  %2879 = vmatmul.mubr.bf16.gmra.mrb[0].mxu0 %v2818
  %v2880 = vpop.f32.mrb[0].mxu0
  %v2881 = vadd.f32 0.0, %v2880
  %v2882 = vpop.f32.mrb[0].mxu0
  %v2883 = vpop.f32.mrb[0].mxu0
  %v2884 = vadd.f32 0.0, %v2883
  %v2885 = vpop.f32.mrb[0].mxu0
  %2886 = vmatprep.mubr.bf16.mxu0 0
  %2887 = vmatmul.mubr.bf16.gmra.mrb[0].mxu0 %v2821
  %v2888 = vpop.f32.mrb[0].mxu0
  %v2889 = vadd.f32 0.0, %v2888
  %v2890 = vpop.f32.mrb[0].mxu0
  %v2891 = vpop.f32.mrb[0].mxu0
  %v2892 = vadd.f32 0.0, %v2891
  %v2893 = vpop.f32.mrb[0].mxu0
  %2894 = vmatprep.mubr.bf16.mxu0 0
  %2895 = vmatmul.mubr.bf16.gmra.mrb[0].mxu0 %v2824
  %v2896 = vpop.f32.mrb[0].mxu0
  %v2897 = vadd.f32 0.0, %v2896
  %v2898 = vpop.f32.mrb[0].mxu0
  %v2899 = vpop.f32.mrb[0].mxu0
  %v2900 = vadd.f32 0.0, %v2899
  %v2901 = vpop.f32.mrb[0].mxu0
  %2902 = vmatprep.mubr.bf16.mxu0 0
  %2903 = vmatmul.mubr.bf16.gmra.mrb[0].mxu0 %v2827
  %v2904 = vpop.f32.mrb[0].mxu0
  %v2905 = vadd.f32 0.0, %v2904
  %v2906 = vpop.f32.mrb[0].mxu0
  %v2907 = vpop.f32.mrb[0].mxu0
  %v2908 = vadd.f32 0.0, %v2907
  %v2909 = vpop.f32.mrb[0].mxu0
  %2910 = vmatprep.mubr.bf16.mxu0 0
  %2911 = vmatmul.mubr.bf16.gmra.mrb[0].mxu0 %v2830
  %v2912 = vpop.f32.mrb[0].mxu0
  %v2913 = vadd.f32 0.0, %v2912
  %v2914 = vpop.f32.mrb[0].mxu0
  %v2915 = vpop.f32.mrb[0].mxu0
  %v2916 = vadd.f32 0.0, %v2915
  %v2917 = vpop.f32.mrb[0].mxu0
  %2918 = vmatprep.mubr.bf16.mxu0 0
  %2919 = vmatmul.mubr.bf16.gmra.mrb[0].mxu0 %v2833
  %v2920 = vpop.f32.mrb[0].mxu0
  %v2921 = vadd.f32 0.0, %v2920
  %v2922 = vpop.f32.mrb[0].mxu0
  %v2923 = vpop.f32.mrb[0].mxu0
  %v2924 = vadd.f32 0.0, %v2923
  %v2925 = vpop.f32.mrb[0].mxu0
  %2926 = vmatprep.mubr.bf16.mxu0 0
  %2927 = vmatmul.mubr.bf16.gmra.mrb[0].mxu0 %v2836
  %v2928 = vpop.f32.mrb[0].mxu0
  %v2929 = vadd.f32 0.0, %v2928
  %v2930 = vpop.f32.mrb[0].mxu0
  %v2931 = vpop.f32.mrb[0].mxu0
  %v2932 = vadd.f32 0.0, %v2931
  %v2933 = vpop.f32.mrb[0].mxu0
  %2934 = vdwg.mxu0
  %v2936 = vsel %vm763, %v2790, 0
  %v2939 = vsel %vm763, %v2791, 0
  %v2942 = vsel %vm763, %v2792, 0
  %v2945 = vsel %vm763, %v2793, 0
  %v2948 = vsel %vm763, %v2794, 0
  %v2951 = vsel %vm763, %v2795, 0
  %v2954 = vsel %vm763, %v2796, 0
  %v2957 = vsel %vm763, %v2797, 0
  %2959 = vmatprep.subr.bf16.mxu0 0
  %2960 = vmatpush1.bf16.msra.mxu0 %v2798
  %2961 = vmatprep.subr.bf16.mxu0 0
  %2962 = vmatpush1.bf16.msra.mxu0 %v2799
  %2963 = vmatprep.subr.bf16.mxu0 0
  %2964 = vmatpush1.bf16.msra.mxu0 %v2800
  %2965 = vmatprep.subr.bf16.mxu0 0
  %2966 = vmatpush1.bf16.msra.mxu0 %v2801
  %2967 = vmatprep.subr.bf16.mxu0 0
  %2968 = vmatpush1.bf16.msra.mxu0 0
  %2969 = vmatprep.subr.bf16.mxu0 0
  %2970 = vmatpush1.bf16.msra.mxu0 0
  %2971 = vmatprep.subr.bf16.mxu0 0
  %2972 = vmatpush1.bf16.msra.mxu0 0
  %2973 = vmatprep.subr.bf16.mxu0 0
  %2974 = vmatpush1.bf16.msra.mxu0 0
  %2975 = vmatprep.subr.bf16.mxu0 0
  %2976 = vmatpush1.bf16.msra.mxu0 0
  %2977 = vmatprep.subr.bf16.mxu0 0
  %2978 = vmatpush1.bf16.msra.mxu0 0
  %2979 = vmatprep.subr.bf16.mxu0 0
  %2980 = vmatpush1.bf16.msra.mxu0 0
  %2981 = vmatprep.subr.bf16.mxu0 0
  %2982 = vmatpush1.bf16.msra.mxu0 0
  %2983 = vmatprep.subr.bf16.mxu0 0
  %2984 = vmatpush1.bf16.msra.mxu0 0
  %2985 = vmatprep.subr.bf16.mxu0 0
  %2986 = vmatpush1.bf16.msra.mxu0 0
  %2987 = vmatprep.subr.bf16.mxu0 0
  %2988 = vmatpush1.bf16.msra.mxu0 0
  %2989 = vmatprep.subr.bf16.mxu0 0
  %2990 = vmatpush1.bf16.msra.mxu0 0
  %2991 = vmatprep.mubr.bf16.mxu0 0
  %2992 = vmatmul.mubr.bf16.gmra.mrb[0].mxu0 %v2936
  %v2993 = vpop.f32.mrb[0].mxu0
  %v2994 = vadd.f32 %v2873, %v2993
  %v2995 = vpop.f32.mrb[0].mxu0
  %v2996 = vpop.f32.mrb[0].mxu0
  %v2997 = vadd.f32 %v2876, %v2996
  %v2998 = vpop.f32.mrb[0].mxu0
  %2999 = vmatprep.mubr.bf16.mxu0 0
  %3000 = vmatmul.mubr.bf16.gmra.mrb[0].mxu0 %v2939
  %v3001 = vpop.f32.mrb[0].mxu0
  %v3002 = vadd.f32 %v2881, %v3001
  %v3003 = vpop.f32.mrb[0].mxu0
  %v3004 = vpop.f32.mrb[0].mxu0
  %v3005 = vadd.f32 %v2884, %v3004
  %v3006 = vpop.f32.mrb[0].mxu0
  %3007 = vmatprep.mubr.bf16.mxu0 0
  %3008 = vmatmul.mubr.bf16.gmra.mrb[0].mxu0 %v2942
  %v3009 = vpop.f32.mrb[0].mxu0
  %v3010 = vadd.f32 %v2889, %v3009
  %v3011 = vpop.f32.mrb[0].mxu0
  %v3012 = vpop.f32.mrb[0].mxu0
  %v3013 = vadd.f32 %v2892, %v3012
  %v3014 = vpop.f32.mrb[0].mxu0
  %3015 = vmatprep.mubr.bf16.mxu0 0
  %3016 = vmatmul.mubr.bf16.gmra.mrb[0].mxu0 %v2945
  %v3017 = vpop.f32.mrb[0].mxu0
  %v3018 = vadd.f32 %v2897, %v3017
  %v3019 = vpop.f32.mrb[0].mxu0
  %v3020 = vpop.f32.mrb[0].mxu0
  %v3021 = vadd.f32 %v2900, %v3020
  %v3022 = vpop.f32.mrb[0].mxu0
  %3023 = vmatprep.mubr.bf16.mxu0 0
  %3024 = vmatmul.mubr.bf16.gmra.mrb[0].mxu0 %v2948
  %v3025 = vpop.f32.mrb[0].mxu0
  %v3026 = vadd.f32 %v2905, %v3025
  %v3027 = vpop.f32.mrb[0].mxu0
  %v3028 = vpop.f32.mrb[0].mxu0
  %v3029 = vadd.f32 %v2908, %v3028
  %v3030 = vpop.f32.mrb[0].mxu0
  %3031 = vmatprep.mubr.bf16.mxu0 0
  %3032 = vmatmul.mubr.bf16.gmra.mrb[0].mxu0 %v2951
  %v3033 = vpop.f32.mrb[0].mxu0
  %v3034 = vadd.f32 %v2913, %v3033
  %v3035 = vpop.f32.mrb[0].mxu0
  %v3036 = vpop.f32.mrb[0].mxu0
  %v3037 = vadd.f32 %v2916, %v3036
  %v3038 = vpop.f32.mrb[0].mxu0
  %3039 = vmatprep.mubr.bf16.mxu0 0
  %3040 = vmatmul.mubr.bf16.gmra.mrb[0].mxu0 %v2954
  %v3041 = vpop.f32.mrb[0].mxu0
  %v3042 = vadd.f32 %v2921, %v3041
  %v3043 = vpop.f32.mrb[0].mxu0
  %v3044 = vpop.f32.mrb[0].mxu0
  %v3045 = vadd.f32 %v2924, %v3044
  %v3046 = vpop.f32.mrb[0].mxu0
  %3047 = vmatprep.mubr.bf16.mxu0 0
  %3048 = vmatmul.mubr.bf16.gmra.mrb[0].mxu0 %v2957
  %v3049 = vpop.f32.mrb[0].mxu0
  %v3050 = vadd.f32 %v2929, %v3049
  %v3051 = vpop.f32.mrb[0].mxu0
  %v3052 = vpop.f32.mrb[0].mxu0
  %v3053 = vadd.f32 %v2932, %v3052
  %v3054 = vpop.f32.mrb[0].mxu0
  %3055 = vdwg.mxu0
  %v3056 = vpack.c.bf16 0.0, %v2762
  %v3057 = vpack.c.bf16 %v2781, %v2780
  %v3058 = vpack.c.bf16 %v2783, %v2782
  %v3059 = vpack.c.bf16 %v2785, %v2784
  %v3060 = vpack.c.bf16 %v2787, %v2786
  %v3062 = vsel %vm763, %v3056, 0
  %3064 = vmatprep.subr.bf16.mxu0 0
  %3065 = vmatpush1.bf16.msra.mxu0 %v3057
  %3066 = vmatprep.subr.bf16.mxu0 0
  %3067 = vmatpush1.bf16.msra.mxu0 %v3058
  %3068 = vmatprep.subr.bf16.mxu0 0
  %3069 = vmatpush1.bf16.msra.mxu0 %v3059
  %3070 = vmatprep.subr.bf16.mxu0 0
  %3071 = vmatpush1.bf16.msra.mxu0 %v3060
  %3072 = vmatprep.subr.bf16.mxu0 0
  %3073 = vmatpush1.bf16.msra.mxu0 0
  %3074 = vmatprep.subr.bf16.mxu0 0
  %3075 = vmatpush1.bf16.msra.mxu0 0
  %3076 = vmatprep.subr.bf16.mxu0 0
  %3077 = vmatpush1.bf16.msra.mxu0 0
  %3078 = vmatprep.subr.bf16.mxu0 0
  %3079 = vmatpush1.bf16.msra.mxu0 0
  %3080 = vmatprep.subr.bf16.mxu0 0
  %3081 = vmatpush1.bf16.msra.mxu0 0
  %3082 = vmatprep.subr.bf16.mxu0 0
  %3083 = vmatpush1.bf16.msra.mxu0 0
  %3084 = vmatprep.subr.bf16.mxu0 0
  %3085 = vmatpush1.bf16.msra.mxu0 0
  %3086 = vmatprep.subr.bf16.mxu0 0
  %3087 = vmatpush1.bf16.msra.mxu0 0
  %3088 = vmatprep.subr.bf16.mxu0 0
  %3089 = vmatpush1.bf16.msra.mxu0 0
  %3090 = vmatprep.subr.bf16.mxu0 0
  %3091 = vmatpush1.bf16.msra.mxu0 0
  %3092 = vmatprep.subr.bf16.mxu0 0
  %3093 = vmatpush1.bf16.msra.mxu0 0
  %3094 = vmatprep.subr.bf16.mxu0 0
  %3095 = vmatpush1.bf16.msra.mxu0 0
  %3096 = vmatprep.mubr.bf16.mxu0 0
  %3097 = vmatmul.mubr.bf16.gmra.mrb[0].mxu0 %v2939
  %v3098 = vpop.f32.mrb[0].mxu0
  %v3099 = vadd.f32 0.0, %v3098
  %v3100 = vpop.f32.mrb[0].mxu0
  %v3101 = vpop.f32.mrb[0].mxu0
  %v3102 = vadd.f32 0.0, %v3101
  %v3103 = vpop.f32.mrb[0].mxu0
  %3104 = vmatprep.mubr.bf16.mxu0 0
  %3105 = vmatmul.mubr.bf16.gmra.mrb[0].mxu0 %v2942
  %v3106 = vpop.f32.mrb[0].mxu0
  %v3107 = vadd.f32 0.0, %v3106
  %v3108 = vpop.f32.mrb[0].mxu0
  %v3109 = vpop.f32.mrb[0].mxu0
  %v3110 = vadd.f32 0.0, %v3109
  %v3111 = vpop.f32.mrb[0].mxu0
  %3112 = vmatprep.mubr.bf16.mxu0 0
  %3113 = vmatmul.mubr.bf16.gmra.mrb[0].mxu0 %v2945
  %v3114 = vpop.f32.mrb[0].mxu0
  %v3115 = vadd.f32 0.0, %v3114
  %v3116 = vpop.f32.mrb[0].mxu0
  %v3117 = vpop.f32.mrb[0].mxu0
  %v3118 = vadd.f32 0.0, %v3117
  %v3119 = vpop.f32.mrb[0].mxu0
  %3120 = vmatprep.mubr.bf16.mxu0 0
  %3121 = vmatmul.mubr.bf16.gmra.mrb[0].mxu0 %v2948
  %v3122 = vpop.f32.mrb[0].mxu0
  %v3123 = vadd.f32 0.0, %v3122
  %v3124 = vpop.f32.mrb[0].mxu0
  %v3125 = vpop.f32.mrb[0].mxu0
  %v3126 = vadd.f32 0.0, %v3125
  %v3127 = vpop.f32.mrb[0].mxu0
  %3128 = vmatprep.mubr.bf16.mxu0 0
  %3129 = vmatmul.mubr.bf16.gmra.mrb[0].mxu0 %v2951
  %v3130 = vpop.f32.mrb[0].mxu0
  %v3131 = vadd.f32 0.0, %v3130
  %v3132 = vpop.f32.mrb[0].mxu0
  %v3133 = vpop.f32.mrb[0].mxu0
  %v3134 = vadd.f32 0.0, %v3133
  %v3135 = vpop.f32.mrb[0].mxu0
  %3136 = vmatprep.mubr.bf16.mxu0 0
  %3137 = vmatmul.mubr.bf16.gmra.mrb[0].mxu0 %v2954
  %v3138 = vpop.f32.mrb[0].mxu0
  %v3139 = vadd.f32 0.0, %v3138
  %v3140 = vpop.f32.mrb[0].mxu0
  %v3141 = vpop.f32.mrb[0].mxu0
  %v3142 = vadd.f32 0.0, %v3141
  %v3143 = vpop.f32.mrb[0].mxu0
  %3144 = vmatprep.mubr.bf16.mxu0 0
  %3145 = vmatmul.mubr.bf16.gmra.mrb[0].mxu0 %v2957
  %v3146 = vpop.f32.mrb[0].mxu0
  %v3147 = vadd.f32 0.0, %v3146
  %v3148 = vpop.f32.mrb[0].mxu0
  %v3149 = vpop.f32.mrb[0].mxu0
  %v3150 = vadd.f32 0.0, %v3149
  %v3151 = vpop.f32.mrb[0].mxu0
  %3152 = vmatprep.mubr.bf16.mxu0 0
  %3153 = vmatmul.mubr.bf16.gmra.mrb[0].mxu0 %v3062
  %v3154 = vpop.f32.mrb[0].mxu0
  %v3155 = vadd.f32 0.0, %v3154
  %v3156 = vpop.f32.mrb[0].mxu0
  %v3157 = vpop.f32.mrb[0].mxu0
  %v3158 = vadd.f32 0.0, %v3157
  %v3159 = vpop.f32.mrb[0].mxu0
  %3160 = vdwg.mxu0
  %v3161 = vadd.f32 %v2994, %v3099
  %v3162 = vadd.f32 %v2997, %v3102
  %v3163 = vadd.f32 %v3002, %v3107
  %v3164 = vadd.f32 %v3005, %v3110
  %v3165 = vadd.f32 %v3010, %v3115
  %v3166 = vadd.f32 %v3013, %v3118
  %v3167 = vadd.f32 %v3018, %v3123
  %v3168 = vadd.f32 %v3021, %v3126
  %v3169 = vadd.f32 %v3026, %v3131
  %v3170 = vadd.f32 %v3029, %v3134
  %v3171 = vadd.f32 %v3034, %v3139
  %v3172 = vadd.f32 %v3037, %v3142
  %v3173 = vadd.f32 %v3042, %v3147
  %v3174 = vadd.f32 %v3045, %v3150
  %v3175 = vadd.f32 %v3050, %v3155
  %v3176 = vadd.f32 %v3053, %v3158
  %v3178 = vlaneseq
  %v3179 = vshrl.u32 %v3178, 7
  %v3180 = vsub.s32 0, %v3179
  %v3181 = vrot.slane %v2789, %v3180
  %v3183 = vadd.f32 %v3161, %v3181
  %v3184 = vadd.f32 %v3162, %v3181
  %v3185 = vadd.f32 %v3163, %v3181
  %v3186 = vadd.f32 %v3164, %v3181
  %v3187 = vadd.f32 %v3165, %v3181
  %v3188 = vadd.f32 %v3166, %v3181
  %v3189 = vadd.f32 %v3167, %v3181
  %v3190 = vadd.f32 %v3168, %v3181
  %v3191 = vadd.f32 %v3169, %v3181
  %v3192 = vadd.f32 %v3170, %v3181
  %v3193 = vadd.f32 %v3171, %v3181
  %v3194 = vadd.f32 %v3172, %v3181
  %v3195 = vadd.f32 %v3173, %v3181
  %v3196 = vadd.f32 %v3174, %v3181
  %v3197 = vadd.f32 %v3175, %v3181
  %v3198 = vadd.f32 %v3176, %v3181
  %v3199 = vmul.f32 %v3183, 0.5
  %v3200 = vmul.f32 %v3184, 0.5
  %v3201 = vmul.f32 %v3185, 0.5
  %v3202 = vmul.f32 %v3186, 0.5
  %v3203 = vmul.f32 %v3187, 0.5
  %v3204 = vmul.f32 %v3188, 0.5
  %v3205 = vmul.f32 %v3189, 0.5
  %v3206 = vmul.f32 %v3190, 0.5
  %v3207 = vmul.f32 %v3191, 0.5
  %v3208 = vmul.f32 %v3192, 0.5
  %v3209 = vmul.f32 %v3193, 0.5
  %v3210 = vmul.f32 %v3194, 0.5
  %v3211 = vmul.f32 %v3195, 0.5
  %v3212 = vmul.f32 %v3196, 0.5
  %v3213 = vmul.f32 %v3197, 0.5
  %v3214 = vmul.f32 %v3198, 0.5
  %v3215 = vmul.f32 %v3183, 0.044715
  %v3216 = vmul.f32 %v3184, 0.044715
  %v3217 = vmul.f32 %v3185, 0.044715
  %v3218 = vmul.f32 %v3186, 0.044715
  %v3219 = vmul.f32 %v3187, 0.044715
  %v3220 = vmul.f32 %v3188, 0.044715
  %v3221 = vmul.f32 %v3189, 0.044715
  %v3222 = vmul.f32 %v3190, 0.044715
  %v3223 = vmul.f32 %v3191, 0.044715
  %v3224 = vmul.f32 %v3192, 0.044715
  %v3225 = vmul.f32 %v3193, 0.044715
  %v3226 = vmul.f32 %v3194, 0.044715
  %v3227 = vmul.f32 %v3195, 0.044715
  %v3228 = vmul.f32 %v3196, 0.044715
  %v3229 = vmul.f32 %v3197, 0.044715
  %v3230 = vmul.f32 %v3198, 0.044715
  %v3231 = vmul.f32 %v3215, %v3183
  %v3232 = vmul.f32 %v3216, %v3184
  %v3233 = vmul.f32 %v3217, %v3185
  %v3234 = vmul.f32 %v3218, %v3186
  %v3235 = vmul.f32 %v3219, %v3187
  %v3236 = vmul.f32 %v3220, %v3188
  %v3237 = vmul.f32 %v3221, %v3189
  %v3238 = vmul.f32 %v3222, %v3190
  %v3239 = vmul.f32 %v3223, %v3191
  %v3240 = vmul.f32 %v3224, %v3192
  %v3241 = vmul.f32 %v3225, %v3193
  %v3242 = vmul.f32 %v3226, %v3194
  %v3243 = vmul.f32 %v3227, %v3195
  %v3244 = vmul.f32 %v3228, %v3196
  %v3245 = vmul.f32 %v3229, %v3197
  %v3246 = vmul.f32 %v3230, %v3198
  %v3247 = vmul.f32 %v3231, %v3183
  %v3248 = vmul.f32 %v3232, %v3184
  %v3249 = vmul.f32 %v3233, %v3185
  %v3250 = vmul.f32 %v3234, %v3186
  %v3251 = vmul.f32 %v3235, %v3187
  %v3252 = vmul.f32 %v3236, %v3188
  %v3253 = vmul.f32 %v3237, %v3189
  %v3254 = vmul.f32 %v3238, %v3190
  %v3255 = vmul.f32 %v3239, %v3191
  %v3256 = vmul.f32 %v3240, %v3192
  %v3257 = vmul.f32 %v3241, %v3193
  %v3258 = vmul.f32 %v3242, %v3194
  %v3259 = vmul.f32 %v3243, %v3195
  %v3260 = vmul.f32 %v3244, %v3196
  %v3261 = vmul.f32 %v3245, %v3197
  %v3262 = vmul.f32 %v3246, %v3198
  %v3263 = vadd.f32 %v3183, %v3247
  %v3264 = vadd.f32 %v3184, %v3248
  %v3265 = vadd.f32 %v3185, %v3249
  %v3266 = vadd.f32 %v3186, %v3250
  %v3267 = vadd.f32 %v3187, %v3251
  %v3268 = vadd.f32 %v3188, %v3252
  %v3269 = vadd.f32 %v3189, %v3253
  %v3270 = vadd.f32 %v3190, %v3254
  %v3271 = vadd.f32 %v3191, %v3255
  %v3272 = vadd.f32 %v3192, %v3256
  %v3273 = vadd.f32 %v3193, %v3257
  %v3274 = vadd.f32 %v3194, %v3258
  %v3275 = vadd.f32 %v3195, %v3259
  %v3276 = vadd.f32 %v3196, %v3260
  %v3277 = vadd.f32 %v3197, %v3261
  %v3278 = vadd.f32 %v3198, %v3262
  %v3279 = vmul.f32 %v3263, 0.7978846
  %v3280 = vmul.f32 %v3264, 0.7978846
  %v3281 = vmul.f32 %v3265, 0.7978846
  %v3282 = vmul.f32 %v3266, 0.7978846
  %v3283 = vmul.f32 %v3267, 0.7978846
  %v3284 = vmul.f32 %v3268, 0.7978846
  %v3285 = vmul.f32 %v3269, 0.7978846
  %v3286 = vmul.f32 %v3270, 0.7978846
  %v3287 = vmul.f32 %v3271, 0.7978846
  %v3288 = vmul.f32 %v3272, 0.7978846
  %v3289 = vmul.f32 %v3273, 0.7978846
  %v3290 = vmul.f32 %v3274, 0.7978846
  %v3291 = vmul.f32 %v3275, 0.7978846
  %v3292 = vmul.f32 %v3276, 0.7978846
  %v3293 = vmul.f32 %v3277, 0.7978846
  %v3294 = vmul.f32 %v3278, 0.7978846
  %v3295 = vtanh.pop %v3279
  %v3296 = vtanh.pop %v3280
  %v3297 = vtanh.pop %v3281
  %v3298 = vtanh.pop %v3282
  %v3299 = vtanh.pop %v3283
  %v3300 = vtanh.pop %v3284
  %v3301 = vtanh.pop %v3285
  %v3302 = vtanh.pop %v3286
  %v3303 = vtanh.pop %v3287
  %v3304 = vtanh.pop %v3288
  %v3305 = vtanh.pop %v3289
  %v3306 = vtanh.pop %v3290
  %v3307 = vtanh.pop %v3291
  %v3308 = vtanh.pop %v3292
  %v3309 = vtanh.pop %v3293
  %v3310 = vtanh.pop %v3294
  %v3311 = vadd.f32 %v3295, 1.0
  %v3312 = vadd.f32 %v3296, 1.0
  %v3313 = vadd.f32 %v3297, 1.0
  %v3314 = vadd.f32 %v3298, 1.0
  %v3315 = vadd.f32 %v3299, 1.0
  %v3316 = vadd.f32 %v3300, 1.0
  %v3317 = vadd.f32 %v3301, 1.0
  %v3318 = vadd.f32 %v3302, 1.0
  %v3319 = vadd.f32 %v3303, 1.0
  %v3320 = vadd.f32 %v3304, 1.0
  %v3321 = vadd.f32 %v3305, 1.0
  %v3322 = vadd.f32 %v3306, 1.0
  %v3323 = vadd.f32 %v3307, 1.0
  %v3324 = vadd.f32 %v3308, 1.0
  %v3325 = vadd.f32 %v3309, 1.0
  %v3326 = vadd.f32 %v3310, 1.0
  %v3327 = vmul.f32 %v3199, %v3311
  %v3328 = vmul.f32 %v3200, %v3312
  %v3329 = vmul.f32 %v3201, %v3313
  %v3330 = vmul.f32 %v3202, %v3314
  %v3331 = vmul.f32 %v3203, %v3315
  %v3332 = vmul.f32 %v3204, %v3316
  %v3333 = vmul.f32 %v3205, %v3317
  %v3334 = vmul.f32 %v3206, %v3318
  %v3335 = vmul.f32 %v3207, %v3319
  %v3336 = vmul.f32 %v3208, %v3320
  %v3337 = vmul.f32 %v3209, %v3321
  %v3338 = vmul.f32 %v3210, %v3322
  %v3339 = vmul.f32 %v3211, %v3323
  %v3340 = vmul.f32 %v3212, %v3324
  %v3341 = vmul.f32 %v3213, %v3325
  %v3342 = vmul.f32 %v3214, %v3326
  %s3343 = scalar_lea.vmem %s13, 192
  %v3344 = vld [vmem:[%s3343] sm:$0xff]
  %v3345 = vld [vmem:[%s3343 + $0x8] sm:$0xff]
  %v3346 = vld [vmem:[%s3343 + $0x10] sm:$0xff]
  %v3347 = vld [vmem:[%s3343 + $0x18] sm:$0xff]
  %v3348 = vld [vmem:[%s3343 + $0x20] sm:$0xff]
  %v3349 = vld [vmem:[%s3343 + $0x28] sm:$0xff]
  %v3350 = vld [vmem:[%s3343 + $0x30] sm:$0xff]
  %v3351 = vld [vmem:[%s3343 + $0x38] sm:$0xff]
  %v3352 = vld [vmem:[%s3343 + $0x40] sm:$0xff]
  %v3353 = vld [vmem:[%s3343 + $0x48] sm:$0xff]
  %v3354 = vld [vmem:[%s3343 + $0x50] sm:$0xff]
  %v3355 = vld [vmem:[%s3343 + $0x58] sm:$0xff]
  %v3356 = vld [vmem:[%s3343 + $0x60] sm:$0xff]
  %v3357 = vld [vmem:[%s3343 + $0x68] sm:$0xff]
  %v3358 = vld [vmem:[%s3343 + $0x70] sm:$0xff]
  %v3359 = vld [vmem:[%s3343 + $0x78] sm:$0xff]
  %v3360 = vld [vmem:[%s3343 + $0x80] sm:$0xff]
  %v3361 = vld [vmem:[%s3343 + $0x88] sm:$0xff]
  %v3362 = vld [vmem:[%s3343 + $0x90] sm:$0xff]
  %v3363 = vld [vmem:[%s3343 + $0x98] sm:$0xff]
  %v3364 = vld [vmem:[%s3343 + $0xa0] sm:$0xff]
  %v3365 = vld [vmem:[%s3343 + $0xa8] sm:$0xff]
  %v3366 = vld [vmem:[%s3343 + $0xb0] sm:$0xff]
  %v3367 = vld [vmem:[%s3343 + $0xb8] sm:$0xff]
  %s3368 = scalar_lea.vmem %s15, 1
  %v3369 = vld [vmem:[%s3368] sm:$0x1]
  %v3370 = vpack.c.bf16 %v3328, 0.0
  %v3371 = vpack.c.bf16 %v3332, %v3330
  %v3372 = vpack.c.bf16 %v3336, %v3334
  %v3373 = vpack.c.bf16 %v3340, %v3338
  %v3374 = vpack.c.bf16 %v3345, %v3344
  %v3375 = vpack.c.bf16 %v3347, %v3346
  %v3376 = vpack.c.bf16 %v3349, %v3348
  %v3377 = vpack.c.bf16 %v3351, %v3350
  %v3378 = vpack.c.bf16 %v3329, %v3327
  %v3379 = vpack.c.bf16 %v3333, %v3331
  %v3380 = vpack.c.bf16 %v3337, %v3335
  %v3381 = vpack.c.bf16 %v3341, %v3339
  %v3382 = vpack.c.bf16 %v3353, %v3352
  %v3383 = vpack.c.bf16 %v3355, %v3354
  %v3384 = vpack.c.bf16 %v3357, %v3356
  %v3385 = vpack.c.bf16 %v3359, %v3358
  %v3387 = vsel %vm763, %v3378, 0
  %v3390 = vsel %vm763, %v3379, 0
  %v3393 = vsel %vm763, %v3380, 0
  %v3396 = vsel %vm763, %v3381, 0
  %3398 = vmatprep.subr.bf16.mxu0 0
  %3399 = vmatpush1.bf16.msra.mxu0 %v3382
  %3400 = vmatprep.subr.bf16.mxu0 0
  %3401 = vmatpush1.bf16.msra.mxu0 %v3383
  %3402 = vmatprep.subr.bf16.mxu0 0
  %3403 = vmatpush1.bf16.msra.mxu0 %v3384
  %3404 = vmatprep.subr.bf16.mxu0 0
  %3405 = vmatpush1.bf16.msra.mxu0 %v3385
  %3406 = vmatprep.subr.bf16.mxu0 0
  %3407 = vmatpush1.bf16.msra.mxu0 0
  %3408 = vmatprep.subr.bf16.mxu0 0
  %3409 = vmatpush1.bf16.msra.mxu0 0
  %3410 = vmatprep.subr.bf16.mxu0 0
  %3411 = vmatpush1.bf16.msra.mxu0 0
  %3412 = vmatprep.subr.bf16.mxu0 0
  %3413 = vmatpush1.bf16.msra.mxu0 0
  %3414 = vmatprep.subr.bf16.mxu0 0
  %3415 = vmatpush1.bf16.msra.mxu0 0
  %3416 = vmatprep.subr.bf16.mxu0 0
  %3417 = vmatpush1.bf16.msra.mxu0 0
  %3418 = vmatprep.subr.bf16.mxu0 0
  %3419 = vmatpush1.bf16.msra.mxu0 0
  %3420 = vmatprep.subr.bf16.mxu0 0
  %3421 = vmatpush1.bf16.msra.mxu0 0
  %3422 = vmatprep.subr.bf16.mxu0 0
  %3423 = vmatpush1.bf16.msra.mxu0 0
  %3424 = vmatprep.subr.bf16.mxu0 0
  %3425 = vmatpush1.bf16.msra.mxu0 0
  %3426 = vmatprep.subr.bf16.mxu0 0
  %3427 = vmatpush1.bf16.msra.mxu0 0
  %3428 = vmatprep.subr.bf16.mxu0 0
  %3429 = vmatpush1.bf16.msra.mxu0 0
  %3430 = vmatprep.mubr.bf16.mxu0 0
  %3431 = vmatmul.mubr.bf16.gmra.mrb[0].mxu0 %v3387
  %v3432 = vpop.f32.mrb[0].mxu0
  %v3433 = vadd.f32 0.0, %v3432
  %v3434 = vpop.f32.mrb[0].mxu0
  %v3435 = vpop.f32.mrb[0].mxu0
  %v3436 = vadd.f32 0.0, %v3435
  %v3437 = vpop.f32.mrb[0].mxu0
  %3438 = vmatprep.mubr.bf16.mxu0 0
  %3439 = vmatmul.mubr.bf16.gmra.mrb[0].mxu0 %v3390
  %v3440 = vpop.f32.mrb[0].mxu0
  %v3441 = vadd.f32 0.0, %v3440
  %v3442 = vpop.f32.mrb[0].mxu0
  %v3443 = vpop.f32.mrb[0].mxu0
  %v3444 = vadd.f32 0.0, %v3443
  %v3445 = vpop.f32.mrb[0].mxu0
  %3446 = vmatprep.mubr.bf16.mxu0 0
  %3447 = vmatmul.mubr.bf16.gmra.mrb[0].mxu0 %v3393
  %v3448 = vpop.f32.mrb[0].mxu0
  %v3449 = vadd.f32 0.0, %v3448
  %v3450 = vpop.f32.mrb[0].mxu0
  %v3451 = vpop.f32.mrb[0].mxu0
  %v3452 = vadd.f32 0.0, %v3451
  %v3453 = vpop.f32.mrb[0].mxu0
  %3454 = vmatprep.mubr.bf16.mxu0 0
  %3455 = vmatmul.mubr.bf16.gmra.mrb[0].mxu0 %v3396
  %v3456 = vpop.f32.mrb[0].mxu0
  %v3457 = vadd.f32 0.0, %v3456
  %v3458 = vpop.f32.mrb[0].mxu0
  %v3459 = vpop.f32.mrb[0].mxu0
  %v3460 = vadd.f32 0.0, %v3459
  %v3461 = vpop.f32.mrb[0].mxu0
  %3462 = vdwg.mxu0
  %v3464 = vsel %vm763, %v3370, 0
  %v3467 = vsel %vm763, %v3371, 0
  %v3470 = vsel %vm763, %v3372, 0
  %v3473 = vsel %vm763, %v3373, 0
  %3475 = vmatprep.subr.bf16.mxu0 0
  %3476 = vmatpush1.bf16.msra.mxu0 %v3374
  %3477 = vmatprep.subr.bf16.mxu0 0
  %3478 = vmatpush1.bf16.msra.mxu0 %v3375
  %3479 = vmatprep.subr.bf16.mxu0 0
  %3480 = vmatpush1.bf16.msra.mxu0 %v3376
  %3481 = vmatprep.subr.bf16.mxu0 0
  %3482 = vmatpush1.bf16.msra.mxu0 %v3377
  %3483 = vmatprep.subr.bf16.mxu0 0
  %3484 = vmatpush1.bf16.msra.mxu0 0
  %3485 = vmatprep.subr.bf16.mxu0 0
  %3486 = vmatpush1.bf16.msra.mxu0 0
  %3487 = vmatprep.subr.bf16.mxu0 0
  %3488 = vmatpush1.bf16.msra.mxu0 0
  %3489 = vmatprep.subr.bf16.mxu0 0
  %3490 = vmatpush1.bf16.msra.mxu0 0
  %3491 = vmatprep.subr.bf16.mxu0 0
  %3492 = vmatpush1.bf16.msra.mxu0 0
  %3493 = vmatprep.subr.bf16.mxu0 0
  %3494 = vmatpush1.bf16.msra.mxu0 0
  %3495 = vmatprep.subr.bf16.mxu0 0
  %3496 = vmatpush1.bf16.msra.mxu0 0
  %3497 = vmatprep.subr.bf16.mxu0 0
  %3498 = vmatpush1.bf16.msra.mxu0 0
  %3499 = vmatprep.subr.bf16.mxu0 0
  %3500 = vmatpush1.bf16.msra.mxu0 0
  %3501 = vmatprep.subr.bf16.mxu0 0
  %3502 = vmatpush1.bf16.msra.mxu0 0
  %3503 = vmatprep.subr.bf16.mxu0 0
  %3504 = vmatpush1.bf16.msra.mxu0 0
  %3505 = vmatprep.subr.bf16.mxu0 0
  %3506 = vmatpush1.bf16.msra.mxu0 0
  %3507 = vmatprep.mubr.bf16.mxu0 0
  %3508 = vmatmul.mubr.bf16.gmra.mrb[0].mxu0 %v3464
  %v3509 = vpop.f32.mrb[0].mxu0
  %v3510 = vadd.f32 %v3433, %v3509
  %v3511 = vpop.f32.mrb[0].mxu0
  %v3512 = vpop.f32.mrb[0].mxu0
  %v3513 = vadd.f32 %v3436, %v3512
  %v3514 = vpop.f32.mrb[0].mxu0
  %3515 = vmatprep.mubr.bf16.mxu0 0
  %3516 = vmatmul.mubr.bf16.gmra.mrb[0].mxu0 %v3467
  %v3517 = vpop.f32.mrb[0].mxu0
  %v3518 = vadd.f32 %v3441, %v3517
  %v3519 = vpop.f32.mrb[0].mxu0
  %v3520 = vpop.f32.mrb[0].mxu0
  %v3521 = vadd.f32 %v3444, %v3520
  %v3522 = vpop.f32.mrb[0].mxu0
  %3523 = vmatprep.mubr.bf16.mxu0 0
  %3524 = vmatmul.mubr.bf16.gmra.mrb[0].mxu0 %v3470
  %v3525 = vpop.f32.mrb[0].mxu0
  %v3526 = vadd.f32 %v3449, %v3525
  %v3527 = vpop.f32.mrb[0].mxu0
  %v3528 = vpop.f32.mrb[0].mxu0
  %v3529 = vadd.f32 %v3452, %v3528
  %v3530 = vpop.f32.mrb[0].mxu0
  %3531 = vmatprep.mubr.bf16.mxu0 0
  %3532 = vmatmul.mubr.bf16.gmra.mrb[0].mxu0 %v3473
  %v3533 = vpop.f32.mrb[0].mxu0
  %v3534 = vadd.f32 %v3457, %v3533
  %v3535 = vpop.f32.mrb[0].mxu0
  %v3536 = vpop.f32.mrb[0].mxu0
  %v3537 = vadd.f32 %v3460, %v3536
  %v3538 = vpop.f32.mrb[0].mxu0
  %3539 = vdwg.mxu0
  %v3540 = vpack.c.bf16 %v3330, %v3328
  %v3541 = vpack.c.bf16 %v3334, %v3332
  %v3542 = vpack.c.bf16 %v3338, %v3336
  %v3543 = vpack.c.bf16 %v3342, %v3340
  %v3544 = vpack.c.bf16 %v3361, %v3360
  %v3545 = vpack.c.bf16 %v3363, %v3362
  %v3546 = vpack.c.bf16 %v3365, %v3364
  %v3547 = vpack.c.bf16 %v3367, %v3366
  %v3549 = vsel %vm763, %v3540, 0
  %v3552 = vsel %vm763, %v3541, 0
  %v3555 = vsel %vm763, %v3542, 0
  %v3558 = vsel %vm763, %v3543, 0
  %3560 = vmatprep.subr.bf16.mxu0 0
  %3561 = vmatpush1.bf16.msra.mxu0 %v3544
  %3562 = vmatprep.subr.bf16.mxu0 0
  %3563 = vmatpush1.bf16.msra.mxu0 %v3545
  %3564 = vmatprep.subr.bf16.mxu0 0
  %3565 = vmatpush1.bf16.msra.mxu0 %v3546
  %3566 = vmatprep.subr.bf16.mxu0 0
  %3567 = vmatpush1.bf16.msra.mxu0 %v3547
  %3568 = vmatprep.subr.bf16.mxu0 0
  %3569 = vmatpush1.bf16.msra.mxu0 0
  %3570 = vmatprep.subr.bf16.mxu0 0
  %3571 = vmatpush1.bf16.msra.mxu0 0
  %3572 = vmatprep.subr.bf16.mxu0 0
  %3573 = vmatpush1.bf16.msra.mxu0 0
  %3574 = vmatprep.subr.bf16.mxu0 0
  %3575 = vmatpush1.bf16.msra.mxu0 0
  %3576 = vmatprep.subr.bf16.mxu0 0
  %3577 = vmatpush1.bf16.msra.mxu0 0
  %3578 = vmatprep.subr.bf16.mxu0 0
  %3579 = vmatpush1.bf16.msra.mxu0 0
  %3580 = vmatprep.subr.bf16.mxu0 0
  %3581 = vmatpush1.bf16.msra.mxu0 0
  %3582 = vmatprep.subr.bf16.mxu0 0
  %3583 = vmatpush1.bf16.msra.mxu0 0
  %3584 = vmatprep.subr.bf16.mxu0 0
  %3585 = vmatpush1.bf16.msra.mxu0 0
  %3586 = vmatprep.subr.bf16.mxu0 0
  %3587 = vmatpush1.bf16.msra.mxu0 0
  %3588 = vmatprep.subr.bf16.mxu0 0
  %3589 = vmatpush1.bf16.msra.mxu0 0
  %3590 = vmatprep.subr.bf16.mxu0 0
  %3591 = vmatpush1.bf16.msra.mxu0 0
  %3592 = vmatprep.mubr.bf16.mxu0 0
  %3593 = vmatmul.mubr.bf16.gmra.mrb[0].mxu0 %v3549
  %v3594 = vpop.f32.mrb[0].mxu0
  %v3595 = vadd.f32 0.0, %v3594
  %v3596 = vpop.f32.mrb[0].mxu0
  %v3597 = vpop.f32.mrb[0].mxu0
  %v3598 = vadd.f32 0.0, %v3597
  %v3599 = vpop.f32.mrb[0].mxu0
  %3600 = vmatprep.mubr.bf16.mxu0 0
  %3601 = vmatmul.mubr.bf16.gmra.mrb[0].mxu0 %v3552
  %v3602 = vpop.f32.mrb[0].mxu0
  %v3603 = vadd.f32 0.0, %v3602
  %v3604 = vpop.f32.mrb[0].mxu0
  %v3605 = vpop.f32.mrb[0].mxu0
  %v3606 = vadd.f32 0.0, %v3605
  %v3607 = vpop.f32.mrb[0].mxu0
  %3608 = vmatprep.mubr.bf16.mxu0 0
  %3609 = vmatmul.mubr.bf16.gmra.mrb[0].mxu0 %v3555
  %v3610 = vpop.f32.mrb[0].mxu0
  %v3611 = vadd.f32 0.0, %v3610
  %v3612 = vpop.f32.mrb[0].mxu0
  %v3613 = vpop.f32.mrb[0].mxu0
  %v3614 = vadd.f32 0.0, %v3613
  %v3615 = vpop.f32.mrb[0].mxu0
  %3616 = vmatprep.mubr.bf16.mxu0 0
  %3617 = vmatmul.mubr.bf16.gmra.mrb[0].mxu0 %v3558
  %v3618 = vpop.f32.mrb[0].mxu0
  %v3619 = vadd.f32 0.0, %v3618
  %v3620 = vpop.f32.mrb[0].mxu0
  %v3621 = vpop.f32.mrb[0].mxu0
  %v3622 = vadd.f32 0.0, %v3621
  %v3623 = vpop.f32.mrb[0].mxu0
  %3624 = vdwg.mxu0
  %v3625 = vadd.f32 %v3510, %v3595
  %v3626 = vadd.f32 %v3513, %v3598
  %v3627 = vadd.f32 %v3518, %v3603
  %v3628 = vadd.f32 %v3521, %v3606
  %v3629 = vadd.f32 %v3526, %v3611
  %v3630 = vadd.f32 %v3529, %v3614
  %v3631 = vadd.f32 %v3534, %v3619
  %v3632 = vadd.f32 %v3537, %v3622
  %v3634 = vlaneseq
  %v3635 = vshrl.u32 %v3634, 7
  %v3636 = vsub.s32 0, %v3635
  %v3637 = vrot.slane %v3369, %v3636
  %v3639 = vadd.f32 %v3625, %v3637
  %v3640 = vadd.f32 %v3626, %v3637
  %v3641 = vadd.f32 %v3627, %v3637
  %v3642 = vadd.f32 %v3628, %v3637
  %v3643 = vadd.f32 %v3629, %v3637
  %v3644 = vadd.f32 %v3630, %v3637
  %v3645 = vadd.f32 %v3631, %v3637
  %v3646 = vadd.f32 %v3632, %v3637
  %v3647 = vmul.f32 %v3639, 0.5
  %v3648 = vmul.f32 %v3640, 0.5
  %v3649 = vmul.f32 %v3641, 0.5
  %v3650 = vmul.f32 %v3642, 0.5
  %v3651 = vmul.f32 %v3643, 0.5
  %v3652 = vmul.f32 %v3644, 0.5
  %v3653 = vmul.f32 %v3645, 0.5
  %v3654 = vmul.f32 %v3646, 0.5
  %v3655 = vmul.f32 %v3639, 0.044715
  %v3656 = vmul.f32 %v3640, 0.044715
  %v3657 = vmul.f32 %v3641, 0.044715
  %v3658 = vmul.f32 %v3642, 0.044715
  %v3659 = vmul.f32 %v3643, 0.044715
  %v3660 = vmul.f32 %v3644, 0.044715
  %v3661 = vmul.f32 %v3645, 0.044715
  %v3662 = vmul.f32 %v3646, 0.044715
  %v3663 = vmul.f32 %v3655, %v3639
  %v3664 = vmul.f32 %v3656, %v3640
  %v3665 = vmul.f32 %v3657, %v3641
  %v3666 = vmul.f32 %v3658, %v3642
  %v3667 = vmul.f32 %v3659, %v3643
  %v3668 = vmul.f32 %v3660, %v3644
  %v3669 = vmul.f32 %v3661, %v3645
  %v3670 = vmul.f32 %v3662, %v3646
  %v3671 = vmul.f32 %v3663, %v3639
  %v3672 = vmul.f32 %v3664, %v3640
  %v3673 = vmul.f32 %v3665, %v3641
  %v3674 = vmul.f32 %v3666, %v3642
  %v3675 = vmul.f32 %v3667, %v3643
  %v3676 = vmul.f32 %v3668, %v3644
  %v3677 = vmul.f32 %v3669, %v3645
  %v3678 = vmul.f32 %v3670, %v3646
  %v3679 = vadd.f32 %v3639, %v3671
  %v3680 = vadd.f32 %v3640, %v3672
  %v3681 = vadd.f32 %v3641, %v3673
  %v3682 = vadd.f32 %v3642, %v3674
  %v3683 = vadd.f32 %v3643, %v3675
  %v3684 = vadd.f32 %v3644, %v3676
  %v3685 = vadd.f32 %v3645, %v3677
  %v3686 = vadd.f32 %v3646, %v3678
  %v3687 = vmul.f32 %v3679, 0.7978846
  %v3688 = vmul.f32 %v3680, 0.7978846
  %v3689 = vmul.f32 %v3681, 0.7978846
  %v3690 = vmul.f32 %v3682, 0.7978846
  %v3691 = vmul.f32 %v3683, 0.7978846
  %v3692 = vmul.f32 %v3684, 0.7978846
  %v3693 = vmul.f32 %v3685, 0.7978846
  %v3694 = vmul.f32 %v3686, 0.7978846
  %v3695 = vtanh.pop %v3687
  %v3696 = vtanh.pop %v3688
  %v3697 = vtanh.pop %v3689
  %v3698 = vtanh.pop %v3690
  %v3699 = vtanh.pop %v3691
  %v3700 = vtanh.pop %v3692
  %v3701 = vtanh.pop %v3693
  %v3702 = vtanh.pop %v3694
  %v3703 = vadd.f32 %v3695, 1.0
  %v3704 = vadd.f32 %v3696, 1.0
  %v3705 = vadd.f32 %v3697, 1.0
  %v3706 = vadd.f32 %v3698, 1.0
  %v3707 = vadd.f32 %v3699, 1.0
  %v3708 = vadd.f32 %v3700, 1.0
  %v3709 = vadd.f32 %v3701, 1.0
  %v3710 = vadd.f32 %v3702, 1.0
  %v3711 = vmul.f32 %v3647, %v3703
  %v3712 = vmul.f32 %v3648, %v3704
  %v3713 = vmul.f32 %v3649, %v3705
  %v3714 = vmul.f32 %v3650, %v3706
  %v3715 = vmul.f32 %v3651, %v3707
  %v3716 = vmul.f32 %v3652, %v3708
  %v3717 = vmul.f32 %v3653, %v3709
  %v3718 = vmul.f32 %v3654, %v3710
  %s3719 = scalar_lea.vmem %s17, 96
  %v3720 = vld [vmem:[%s3719] sm:$0xff]
  %v3721 = vld [vmem:[%s3719 + $0x8] sm:$0xff]
  %v3722 = vld [vmem:[%s3719 + $0x10] sm:$0xff]
  %v3723 = vld [vmem:[%s3719 + $0x18] sm:$0xff]
  %v3724 = vld [vmem:[%s3719 + $0x20] sm:$0xff]
  %v3725 = vld [vmem:[%s3719 + $0x28] sm:$0xff]
  %v3726 = vld [vmem:[%s3719 + $0x30] sm:$0xff]
  %v3727 = vld [vmem:[%s3719 + $0x38] sm:$0xff]
  %v3728 = vld [vmem:[%s3719 + $0x40] sm:$0xff]
  %v3729 = vld [vmem:[%s3719 + $0x48] sm:$0xff]
  %v3730 = vld [vmem:[%s3719 + $0x50] sm:$0xff]
  %v3731 = vld [vmem:[%s3719 + $0x58] sm:$0xff]
  %s3732 = scalar_lea.vmem %s19, 1
  %v3733 = vld [vmem:[%s3732] sm:$0x1]
  %v3734 = vpack.c.bf16 %v3712, 0.0
  %v3735 = vpack.c.bf16 %v3716, %v3714
  %v3736 = vpack.c.bf16 %v3721, %v3720
  %v3737 = vpack.c.bf16 %v3723, %v3722
  %v3738 = vpack.c.bf16 %v3713, %v3711
  %v3739 = vpack.c.bf16 %v3717, %v3715
  %v3740 = vpack.c.bf16 %v3725, %v3724
  %v3741 = vpack.c.bf16 %v3727, %v3726
  %v3743 = vsel %vm1688, %v3738, 0
  %v3746 = vsel %vm1688, %v3739, 0
  %3748 = vmatprep.subr.bf16.mxu0 0
  %3749 = vmatpush1.bf16.msra.mxu0 %v3740
  %3750 = vmatprep.subr.bf16.mxu0 0
  %3751 = vmatpush1.bf16.msra.mxu0 %v3741
  %3752 = vmatprep.subr.bf16.mxu0 0
  %3753 = vmatpush1.bf16.msra.mxu0 0
  %3754 = vmatprep.subr.bf16.mxu0 0
  %3755 = vmatpush1.bf16.msra.mxu0 0
  %3756 = vmatprep.subr.bf16.mxu0 0
  %3757 = vmatpush1.bf16.msra.mxu0 0
  %3758 = vmatprep.subr.bf16.mxu0 0
  %3759 = vmatpush1.bf16.msra.mxu0 0
  %3760 = vmatprep.subr.bf16.mxu0 0
  %3761 = vmatpush1.bf16.msra.mxu0 0
  %3762 = vmatprep.subr.bf16.mxu0 0
  %3763 = vmatpush1.bf16.msra.mxu0 0
  %3764 = vmatprep.subr.bf16.mxu0 0
  %3765 = vmatpush1.bf16.msra.mxu0 0
  %3766 = vmatprep.subr.bf16.mxu0 0
  %3767 = vmatpush1.bf16.msra.mxu0 0
  %3768 = vmatprep.subr.bf16.mxu0 0
  %3769 = vmatpush1.bf16.msra.mxu0 0
  %3770 = vmatprep.subr.bf16.mxu0 0
  %3771 = vmatpush1.bf16.msra.mxu0 0
  %3772 = vmatprep.subr.bf16.mxu0 0
  %3773 = vmatpush1.bf16.msra.mxu0 0
  %3774 = vmatprep.subr.bf16.mxu0 0
  %3775 = vmatpush1.bf16.msra.mxu0 0
  %3776 = vmatprep.subr.bf16.mxu0 0
  %3777 = vmatpush1.bf16.msra.mxu0 0
  %3778 = vmatprep.subr.bf16.mxu0 0
  %3779 = vmatpush1.bf16.msra.mxu0 0
  %3780 = vmatprep.mubr.bf16.mxu0 0
  %3781 = vmatmul.mubr.bf16.gmra.mrb[0].mxu0 %v3743
  %v3782 = vpop.f32.mrb[0].mxu0
  %v3783 = vadd.f32 0.0, %v3782
  %v3784 = vpop.f32.mrb[0].mxu0
  %v3785 = vpop.f32.mrb[0].mxu0
  %v3786 = vadd.f32 0.0, %v3785
  %v3787 = vpop.f32.mrb[0].mxu0
  %3788 = vmatprep.mubr.bf16.mxu0 0
  %3789 = vmatmul.mubr.bf16.gmra.mrb[0].mxu0 %v3746
  %v3790 = vpop.f32.mrb[0].mxu0
  %v3791 = vadd.f32 0.0, %v3790
  %v3792 = vpop.f32.mrb[0].mxu0
  %v3793 = vpop.f32.mrb[0].mxu0
  %v3794 = vadd.f32 0.0, %v3793
  %v3795 = vpop.f32.mrb[0].mxu0
  %3796 = vdwg.mxu0
  %v3798 = vsel %vm1688, %v3734, 0
  %v3801 = vsel %vm1688, %v3735, 0
  %3803 = vmatprep.subr.bf16.mxu0 0
  %3804 = vmatpush1.bf16.msra.mxu0 %v3736
  %3805 = vmatprep.subr.bf16.mxu0 0
  %3806 = vmatpush1.bf16.msra.mxu0 %v3737
  %3807 = vmatprep.subr.bf16.mxu0 0
  %3808 = vmatpush1.bf16.msra.mxu0 0
  %3809 = vmatprep.subr.bf16.mxu0 0
  %3810 = vmatpush1.bf16.msra.mxu0 0
  %3811 = vmatprep.subr.bf16.mxu0 0
  %3812 = vmatpush1.bf16.msra.mxu0 0
  %3813 = vmatprep.subr.bf16.mxu0 0
  %3814 = vmatpush1.bf16.msra.mxu0 0
  %3815 = vmatprep.subr.bf16.mxu0 0
  %3816 = vmatpush1.bf16.msra.mxu0 0
  %3817 = vmatprep.subr.bf16.mxu0 0
  %3818 = vmatpush1.bf16.msra.mxu0 0
  %3819 = vmatprep.subr.bf16.mxu0 0
  %3820 = vmatpush1.bf16.msra.mxu0 0
  %3821 = vmatprep.subr.bf16.mxu0 0
  %3822 = vmatpush1.bf16.msra.mxu0 0
  %3823 = vmatprep.subr.bf16.mxu0 0
  %3824 = vmatpush1.bf16.msra.mxu0 0
  %3825 = vmatprep.subr.bf16.mxu0 0
  %3826 = vmatpush1.bf16.msra.mxu0 0
  %3827 = vmatprep.subr.bf16.mxu0 0
  %3828 = vmatpush1.bf16.msra.mxu0 0
  %3829 = vmatprep.subr.bf16.mxu0 0
  %3830 = vmatpush1.bf16.msra.mxu0 0
  %3831 = vmatprep.subr.bf16.mxu0 0
  %3832 = vmatpush1.bf16.msra.mxu0 0
  %3833 = vmatprep.subr.bf16.mxu0 0
  %3834 = vmatpush1.bf16.msra.mxu0 0
  %3835 = vmatprep.mubr.bf16.mxu0 0
  %3836 = vmatmul.mubr.bf16.gmra.mrb[0].mxu0 %v3798
  %v3837 = vpop.f32.mrb[0].mxu0
  %v3838 = vadd.f32 %v3783, %v3837
  %v3839 = vpop.f32.mrb[0].mxu0
  %v3840 = vpop.f32.mrb[0].mxu0
  %v3841 = vadd.f32 %v3786, %v3840
  %v3842 = vpop.f32.mrb[0].mxu0
  %3843 = vmatprep.mubr.bf16.mxu0 0
  %3844 = vmatmul.mubr.bf16.gmra.mrb[0].mxu0 %v3801
  %v3845 = vpop.f32.mrb[0].mxu0
  %v3846 = vadd.f32 %v3791, %v3845
  %v3847 = vpop.f32.mrb[0].mxu0
  %v3848 = vpop.f32.mrb[0].mxu0
  %v3849 = vadd.f32 %v3794, %v3848
  %v3850 = vpop.f32.mrb[0].mxu0
  %3851 = vdwg.mxu0
  %v3852 = vpack.c.bf16 %v3714, %v3712
  %v3853 = vpack.c.bf16 %v3718, %v3716
  %v3854 = vpack.c.bf16 %v3729, %v3728
  %v3855 = vpack.c.bf16 %v3731, %v3730
  %v3857 = vsel %vm1688, %v3852, 0
  %v3860 = vsel %vm1688, %v3853, 0
  %3862 = vmatprep.subr.bf16.mxu0 0
  %3863 = vmatpush1.bf16.msra.mxu0 %v3854
  %3864 = vmatprep.subr.bf16.mxu0 0
  %3865 = vmatpush1.bf16.msra.mxu0 %v3855
  %3866 = vmatprep.subr.bf16.mxu0 0
  %3867 = vmatpush1.bf16.msra.mxu0 0
  %3868 = vmatprep.subr.bf16.mxu0 0
  %3869 = vmatpush1.bf16.msra.mxu0 0
  %3870 = vmatprep.subr.bf16.mxu0 0
  %3871 = vmatpush1.bf16.msra.mxu0 0
  %3872 = vmatprep.subr.bf16.mxu0 0
  %3873 = vmatpush1.bf16.msra.mxu0 0
  %3874 = vmatprep.subr.bf16.mxu0 0
  %3875 = vmatpush1.bf16.msra.mxu0 0
  %3876 = vmatprep.subr.bf16.mxu0 0
  %3877 = vmatpush1.bf16.msra.mxu0 0
  %3878 = vmatprep.subr.bf16.mxu0 0
  %3879 = vmatpush1.bf16.msra.mxu0 0
  %3880 = vmatprep.subr.bf16.mxu0 0
  %3881 = vmatpush1.bf16.msra.mxu0 0
  %3882 = vmatprep.subr.bf16.mxu0 0
  %3883 = vmatpush1.bf16.msra.mxu0 0
  %3884 = vmatprep.subr.bf16.mxu0 0
  %3885 = vmatpush1.bf16.msra.mxu0 0
  %3886 = vmatprep.subr.bf16.mxu0 0
  %3887 = vmatpush1.bf16.msra.mxu0 0
  %3888 = vmatprep.subr.bf16.mxu0 0
  %3889 = vmatpush1.bf16.msra.mxu0 0
  %3890 = vmatprep.subr.bf16.mxu0 0
  %3891 = vmatpush1.bf16.msra.mxu0 0
  %3892 = vmatprep.subr.bf16.mxu0 0
  %3893 = vmatpush1.bf16.msra.mxu0 0
  %3894 = vmatprep.mubr.bf16.mxu0 0
  %3895 = vmatmul.mubr.bf16.gmra.mrb[0].mxu0 %v3857
  %v3896 = vpop.f32.mrb[0].mxu0
  %v3897 = vadd.f32 0.0, %v3896
  %v3898 = vpop.f32.mrb[0].mxu0
  %v3899 = vpop.f32.mrb[0].mxu0
  %v3900 = vadd.f32 0.0, %v3899
  %v3901 = vpop.f32.mrb[0].mxu0
  %3902 = vmatprep.mubr.bf16.mxu0 0
  %3903 = vmatmul.mubr.bf16.gmra.mrb[0].mxu0 %v3860
  %v3904 = vpop.f32.mrb[0].mxu0
  %v3905 = vadd.f32 0.0, %v3904
  %v3906 = vpop.f32.mrb[0].mxu0
  %v3907 = vpop.f32.mrb[0].mxu0
  %v3908 = vadd.f32 0.0, %v3907
  %v3909 = vpop.f32.mrb[0].mxu0
  %3910 = vdwg.mxu0
  %v3911 = vadd.f32 %v3838, %v3897
  %v3912 = vadd.f32 %v3841, %v3900
  %v3913 = vadd.f32 %v3846, %v3905
  %v3914 = vadd.f32 %v3849, %v3908
  %v3916 = vlaneseq
  %v3917 = vshrl.u32 %v3916, 7
  %v3918 = vsub.s32 0, %v3917
  %v3919 = vrot.slane %v3733, %v3918
  %v3921 = vadd.f32 %v3911, %v3919
  %v3922 = vadd.f32 %v3912, %v3919
  %v3923 = vadd.f32 %v3913, %v3919
  %v3924 = vadd.f32 %v3914, %v3919
  %v3925 = vmul.f32 %v3921, 0.5
  %v3926 = vmul.f32 %v3922, 0.5
  %v3927 = vmul.f32 %v3923, 0.5
  %v3928 = vmul.f32 %v3924, 0.5
  %v3929 = vmul.f32 %v3921, 0.044715
  %v3930 = vmul.f32 %v3922, 0.044715
  %v3931 = vmul.f32 %v3923, 0.044715
  %v3932 = vmul.f32 %v3924, 0.044715
  %v3933 = vmul.f32 %v3929, %v3921
  %v3934 = vmul.f32 %v3930, %v3922
  %v3935 = vmul.f32 %v3931, %v3923
  %v3936 = vmul.f32 %v3932, %v3924
  %v3937 = vmul.f32 %v3933, %v3921
  %v3938 = vmul.f32 %v3934, %v3922
  %v3939 = vmul.f32 %v3935, %v3923
  %v3940 = vmul.f32 %v3936, %v3924
  %v3941 = vadd.f32 %v3921, %v3937
  %v3942 = vadd.f32 %v3922, %v3938
  %v3943 = vadd.f32 %v3923, %v3939
  %v3944 = vadd.f32 %v3924, %v3940
  %v3945 = vmul.f32 %v3941, 0.7978846
  %v3946 = vmul.f32 %v3942, 0.7978846
  %v3947 = vmul.f32 %v3943, 0.7978846
  %v3948 = vmul.f32 %v3944, 0.7978846
  %v3949 = vtanh.pop %v3945
  %v3950 = vtanh.pop %v3946
  %v3951 = vtanh.pop %v3947
  %v3952 = vtanh.pop %v3948
  %v3953 = vadd.f32 %v3949, 1.0
  %v3954 = vadd.f32 %v3950, 1.0
  %v3955 = vadd.f32 %v3951, 1.0
  %v3956 = vadd.f32 %v3952, 1.0
  %v3957 = vmul.f32 %v3925, %v3953
  %v3958 = vmul.f32 %v3926, %v3954
  %v3959 = vmul.f32 %v3927, %v3955
  %v3960 = vmul.f32 %v3928, %v3956
  %s3961 = scalar_lea.vmem %s21, 64
  %v3962 = vld [vmem:[%s3961] sm:$0xff]
  %v3963 = vld [vmem:[%s3961 + $0x8] sm:$0xff]
  %v3964 = vld [vmem:[%s3961 + $0x10] sm:$0xff]
  %v3965 = vld [vmem:[%s3961 + $0x18] sm:$0xff]
  %v3966 = vld [vmem:[%s3961 + $0x20] sm:$0xff]
  %v3967 = vld [vmem:[%s3961 + $0x28] sm:$0xff]
  %v3968 = vld [vmem:[%s3961 + $0x30] sm:$0xff]
  %v3969 = vld [vmem:[%s3961 + $0x38] sm:$0xff]
  %s3970 = scalar_lea.vmem %s23, 1
  %v3971 = vld [vmem:[%s3970] sm:$0x1]
  %v3972 = vpack.c.bf16 %v3957, %v3957
  %v3973 = vpack.c.bf16 %v3963, %v3962
  %v3975 = vsel %vm187, %v3972, 0
  %3977 = vmatprep.subr.bf16.mxu0 0
  %3978 = vmatpush1.bf16.msra.mxu0 %v3973
  %3979 = vmatprep.subr.bf16.mxu0 0
  %3980 = vmatpush1.bf16.msra.mxu0 0
  %3981 = vmatprep.subr.bf16.mxu0 0
  %3982 = vmatpush1.bf16.msra.mxu0 0
  %3983 = vmatprep.subr.bf16.mxu0 0
  %3984 = vmatpush1.bf16.msra.mxu0 0
  %3985 = vmatprep.subr.bf16.mxu0 0
  %3986 = vmatpush1.bf16.msra.mxu0 0
  %3987 = vmatprep.subr.bf16.mxu0 0
  %3988 = vmatpush1.bf16.msra.mxu0 0
  %3989 = vmatprep.subr.bf16.mxu0 0
  %3990 = vmatpush1.bf16.msra.mxu0 0
  %3991 = vmatprep.subr.bf16.mxu0 0
  %3992 = vmatpush1.bf16.msra.mxu0 0
  %3993 = vmatprep.subr.bf16.mxu0 0
  %3994 = vmatpush1.bf16.msra.mxu0 0
  %3995 = vmatprep.subr.bf16.mxu0 0
  %3996 = vmatpush1.bf16.msra.mxu0 0
  %3997 = vmatprep.subr.bf16.mxu0 0
  %3998 = vmatpush1.bf16.msra.mxu0 0
  %3999 = vmatprep.subr.bf16.mxu0 0
  %4000 = vmatpush1.bf16.msra.mxu0 0
  %4001 = vmatprep.subr.bf16.mxu0 0
  %4002 = vmatpush1.bf16.msra.mxu0 0
  %4003 = vmatprep.subr.bf16.mxu0 0
  %4004 = vmatpush1.bf16.msra.mxu0 0
  %4005 = vmatprep.subr.bf16.mxu0 0
  %4006 = vmatpush1.bf16.msra.mxu0 0
  %4007 = vmatprep.subr.bf16.mxu0 0
  %4008 = vmatpush1.bf16.msra.mxu0 0
  %4009 = vmatprep.mubr.bf16.mxu0 0
  %4010 = vmatmul.mubr.bf16.gmra.mrb[0].mxu0 %v3975
  %v4011 = vpop.f32.mrb[0].mxu0
  %v4012 = vadd.f32 0.0, %v4011
  %v4013 = vpop.f32.mrb[0].mxu0
  %v4014 = vpop.f32.mrb[0].mxu0
  %v4015 = vpop.f32.mrb[0].mxu0
  %4016 = vdwg.mxu0
  %v4018 = vlaneseq
  %v4019 = vshrl.u32 %v4018, 7
  %v4020 = vsub.s32 0, %v4019
  %v4021 = vrot.slane %v3971, %v4020
  %v4023 = vadd.f32 %v4021, %v4012
  %v4024 = vpack.c.bf16 %v3958, %v3958
  %v4025 = vpack.c.bf16 %v3965, %v3964
  %v4027 = vsel %vm187, %v4024, 0
  %4029 = vmatprep.subr.bf16.mxu0 0
  %4030 = vmatpush1.bf16.msra.mxu0 %v4025
  %4031 = vmatprep.subr.bf16.mxu0 0
  %4032 = vmatpush1.bf16.msra.mxu0 0
  %4033 = vmatprep.subr.bf16.mxu0 0
  %4034 = vmatpush1.bf16.msra.mxu0 0
  %4035 = vmatprep.subr.bf16.mxu0 0
  %4036 = vmatpush1.bf16.msra.mxu0 0
  %4037 = vmatprep.subr.bf16.mxu0 0
  %4038 = vmatpush1.bf16.msra.mxu0 0
  %4039 = vmatprep.subr.bf16.mxu0 0
  %4040 = vmatpush1.bf16.msra.mxu0 0
  %4041 = vmatprep.subr.bf16.mxu0 0
  %4042 = vmatpush1.bf16.msra.mxu0 0
  %4043 = vmatprep.subr.bf16.mxu0 0
  %4044 = vmatpush1.bf16.msra.mxu0 0
  %4045 = vmatprep.subr.bf16.mxu0 0
  %4046 = vmatpush1.bf16.msra.mxu0 0
  %4047 = vmatprep.subr.bf16.mxu0 0
  %4048 = vmatpush1.bf16.msra.mxu0 0
  %4049 = vmatprep.subr.bf16.mxu0 0
  %4050 = vmatpush1.bf16.msra.mxu0 0
  %4051 = vmatprep.subr.bf16.mxu0 0
  %4052 = vmatpush1.bf16.msra.mxu0 0
  %4053 = vmatprep.subr.bf16.mxu0 0
  %4054 = vmatpush1.bf16.msra.mxu0 0
  %4055 = vmatprep.subr.bf16.mxu0 0
  %4056 = vmatpush1.bf16.msra.mxu0 0
  %4057 = vmatprep.subr.bf16.mxu0 0
  %4058 = vmatpush1.bf16.msra.mxu0 0
  %4059 = vmatprep.subr.bf16.mxu0 0
  %4060 = vmatpush1.bf16.msra.mxu0 0
  %4061 = vmatprep.mubr.bf16.mxu0 0
  %4062 = vmatmul.mubr.bf16.gmra.mrb[0].mxu0 %v4027
  %v4063 = vpop.f32.mrb[0].mxu0
  %v4064 = vadd.f32 0.0, %v4063
  %v4065 = vpop.f32.mrb[0].mxu0
  %v4066 = vpop.f32.mrb[0].mxu0
  %v4067 = vpop.f32.mrb[0].mxu0
  %4068 = vdwg.mxu0
  %v4069 = vadd.f32 %v4023, %v4064
  %v4070 = vpack.c.bf16 %v3959, %v3959
  %v4071 = vpack.c.bf16 %v3967, %v3966
  %v4073 = vsel %vm187, %v4070, 0
  %4075 = vmatprep.subr.bf16.mxu0 0
  %4076 = vmatpush1.bf16.msra.mxu0 %v4071
  %4077 = vmatprep.subr.bf16.mxu0 0
  %4078 = vmatpush1.bf16.msra.mxu0 0
  %4079 = vmatprep.subr.bf16.mxu0 0
  %4080 = vmatpush1.bf16.msra.mxu0 0
  %4081 = vmatprep.subr.bf16.mxu0 0
  %4082 = vmatpush1.bf16.msra.mxu0 0
  %4083 = vmatprep.subr.bf16.mxu0 0
  %4084 = vmatpush1.bf16.msra.mxu0 0
  %4085 = vmatprep.subr.bf16.mxu0 0
  %4086 = vmatpush1.bf16.msra.mxu0 0
  %4087 = vmatprep.subr.bf16.mxu0 0
  %4088 = vmatpush1.bf16.msra.mxu0 0
  %4089 = vmatprep.subr.bf16.mxu0 0
  %4090 = vmatpush1.bf16.msra.mxu0 0
  %4091 = vmatprep.subr.bf16.mxu0 0
  %4092 = vmatpush1.bf16.msra.mxu0 0
  %4093 = vmatprep.subr.bf16.mxu0 0
  %4094 = vmatpush1.bf16.msra.mxu0 0
  %4095 = vmatprep.subr.bf16.mxu0 0
  %4096 = vmatpush1.bf16.msra.mxu0 0
  %4097 = vmatprep.subr.bf16.mxu0 0
  %4098 = vmatpush1.bf16.msra.mxu0 0
  %4099 = vmatprep.subr.bf16.mxu0 0
  %4100 = vmatpush1.bf16.msra.mxu0 0
  %4101 = vmatprep.subr.bf16.mxu0 0
  %4102 = vmatpush1.bf16.msra.mxu0 0
  %4103 = vmatprep.subr.bf16.mxu0 0
  %4104 = vmatpush1.bf16.msra.mxu0 0
  %4105 = vmatprep.subr.bf16.mxu0 0
  %4106 = vmatpush1.bf16.msra.mxu0 0
  %4107 = vmatprep.mubr.bf16.mxu0 0
  %4108 = vmatmul.mubr.bf16.gmra.mrb[0].mxu0 %v4073
  %v4109 = vpop.f32.mrb[0].mxu0
  %v4110 = vadd.f32 0.0, %v4109
  %v4111 = vpop.f32.mrb[0].mxu0
  %v4112 = vpop.f32.mrb[0].mxu0
  %v4113 = vpop.f32.mrb[0].mxu0
  %4114 = vdwg.mxu0
  %v4115 = vadd.f32 %v4069, %v4110
  %v4116 = vpack.c.bf16 %v3960, %v3960
  %v4117 = vpack.c.bf16 %v3969, %v3968
  %v4119 = vsel %vm187, %v4116, 0
  %4121 = vmatprep.subr.bf16.mxu0 0
  %4122 = vmatpush1.bf16.msra.mxu0 %v4117
  %4123 = vmatprep.subr.bf16.mxu0 0
  %4124 = vmatpush1.bf16.msra.mxu0 0
  %4125 = vmatprep.subr.bf16.mxu0 0
  %4126 = vmatpush1.bf16.msra.mxu0 0
  %4127 = vmatprep.subr.bf16.mxu0 0
  %4128 = vmatpush1.bf16.msra.mxu0 0
  %4129 = vmatprep.subr.bf16.mxu0 0
  %4130 = vmatpush1.bf16.msra.mxu0 0
  %4131 = vmatprep.subr.bf16.mxu0 0
  %4132 = vmatpush1.bf16.msra.mxu0 0
  %4133 = vmatprep.subr.bf16.mxu0 0
  %4134 = vmatpush1.bf16.msra.mxu0 0
  %4135 = vmatprep.subr.bf16.mxu0 0
  %4136 = vmatpush1.bf16.msra.mxu0 0
  %4137 = vmatprep.subr.bf16.mxu0 0
  %4138 = vmatpush1.bf16.msra.mxu0 0
  %4139 = vmatprep.subr.bf16.mxu0 0
  %4140 = vmatpush1.bf16.msra.mxu0 0
  %4141 = vmatprep.subr.bf16.mxu0 0
  %4142 = vmatpush1.bf16.msra.mxu0 0
  %4143 = vmatprep.subr.bf16.mxu0 0
  %4144 = vmatpush1.bf16.msra.mxu0 0
  %4145 = vmatprep.subr.bf16.mxu0 0
  %4146 = vmatpush1.bf16.msra.mxu0 0
  %4147 = vmatprep.subr.bf16.mxu0 0
  %4148 = vmatpush1.bf16.msra.mxu0 0
  %4149 = vmatprep.subr.bf16.mxu0 0
  %4150 = vmatpush1.bf16.msra.mxu0 0
  %4151 = vmatprep.subr.bf16.mxu0 0
  %4152 = vmatpush1.bf16.msra.mxu0 0
  %4153 = vmatprep.mubr.bf16.mxu0 0
  %4154 = vmatmul.mubr.bf16.gmra.mrb[0].mxu0 %v4119
  %v4155 = vpop.f32.mrb[0].mxu0
  %v4156 = vadd.f32 0.0, %v4155
  %v4157 = vpop.f32.mrb[0].mxu0
  %v4158 = vpop.f32.mrb[0].mxu0
  %v4159 = vpop.f32.mrb[0].mxu0
  %4160 = vdwg.mxu0
  %v4161 = vadd.f32 %v4115, %v4156
  %v4162 = vsel %vm187, %v4161, 0.0
  %4163 = vadd.xlane.f32.xlu0 %v4162
  %v4164 = vpop.xlane.xlu0 %4163
  %v4165 = vmul.f32 %v4164, %v2110
  %v4166 = vsub.f32 %v4161, %v4165
  %v4167 = vmul.f32 %v4166, %v4166
  %v4168 = vsel %vm187, %v4167, 0.0
  %4169 = vadd.xlane.f32.xlu0 %v4168
  %v4170 = vpop.xlane.xlu0 %4169
  %v4171 = vmul.f32 %v4170, %v2110
  %v4172 = vadd.f32 %v4171, 1e-05
  %v4173 = vrsqrt.pop %v4172
  %v4174 = vmul.f32 %v4166, %v4173
  %v4175 = vmul.f32 %v4174, 0.5
  %v4176 = vmul.f32 %v4174, 0.044715
  %v4177 = vmul.f32 %v4176, %v4174
  %v4178 = vmul.f32 %v4177, %v4174
  %v4179 = vadd.f32 %v4174, %v4178
  %v4180 = vmul.f32 %v4179, 0.7978846
  %v4181 = vtanh.pop %v4180
  %v4182 = vadd.f32 %v4181, 1.0
  %v4183 = vmul.f32 %v4175, %v4182
  %s4184 = scalar_lea.vmem %s25, 16
  %v4185 = vld [vmem:[%s4184] sm:$0xff]
  %v4186 = vld [vmem:[%s4184 + $0x8] sm:$0xff]
  %v4187 = vpack.c.bf16 %v4183, %v4183
  %v4188 = vpack.c.bf16 %v4186, %v4185
  %s4189 = scalar_lea.vmem %s27, 1
  %v4190 = vld [vmem:[%s4189] sm:$0x1]
  %v4192 = vlaneseq
  %v4193 = vshrl.u32 %v4192, 7
  %v4194 = vsub.s32 0, %v4193
  %v4195 = vrot.slane %v4190, %v4194
  %v4198 = vsel %vm187, %v4187, 0
  %4200 = vmatprep.subr.bf16.mxu0 0
  %4201 = vmatpush1.bf16.msra.mxu0 %v4188
  %4202 = vmatprep.subr.bf16.mxu0 0
  %4203 = vmatpush1.bf16.msra.mxu0 0
  %4204 = vmatprep.subr.bf16.mxu0 0
  %4205 = vmatpush1.bf16.msra.mxu0 0
  %4206 = vmatprep.subr.bf16.mxu0 0
  %4207 = vmatpush1.bf16.msra.mxu0 0
  %4208 = vmatprep.subr.bf16.mxu0 0
  %4209 = vmatpush1.bf16.msra.mxu0 0
  %4210 = vmatprep.subr.bf16.mxu0 0
  %4211 = vmatpush1.bf16.msra.mxu0 0
  %4212 = vmatprep.subr.bf16.mxu0 0
  %4213 = vmatpush1.bf16.msra.mxu0 0
  %4214 = vmatprep.subr.bf16.mxu0 0
  %4215 = vmatpush1.bf16.msra.mxu0 0
  %4216 = vmatprep.subr.bf16.mxu0 0
  %4217 = vmatpush1.bf16.msra.mxu0 0
  %4218 = vmatprep.subr.bf16.mxu0 0
  %4219 = vmatpush1.bf16.msra.mxu0 0
  %4220 = vmatprep.subr.bf16.mxu0 0
  %4221 = vmatpush1.bf16.msra.mxu0 0
  %4222 = vmatprep.subr.bf16.mxu0 0
  %4223 = vmatpush1.bf16.msra.mxu0 0
  %4224 = vmatprep.subr.bf16.mxu0 0
  %4225 = vmatpush1.bf16.msra.mxu0 0
  %4226 = vmatprep.subr.bf16.mxu0 0
  %4227 = vmatpush1.bf16.msra.mxu0 0
  %4228 = vmatprep.subr.bf16.mxu0 0
  %4229 = vmatpush1.bf16.msra.mxu0 0
  %4230 = vmatprep.subr.bf16.mxu0 0
  %4231 = vmatpush1.bf16.msra.mxu0 0
  %4232 = vmatprep.mubr.bf16.mxu0 0
  %4233 = vmatmul.mubr.bf16.gmra.mrb[0].mxu0 %v4198
  %v4234 = vpop.f32.mrb[0].mxu0
  %v4235 = vadd.f32 %v4195, %v4234
  %v4236 = vpop.f32.mrb[0].mxu0
  %v4237 = vpop.f32.mrb[0].mxu0
  %v4238 = vpop.f32.mrb[0].mxu0
  %4239 = vdwg.mxu0
  %v4240 = vmul.f32 %v4235, 0.5
  %v4241 = vmul.f32 %v4235, 0.044715
  %v4242 = vmul.f32 %v4241, %v4235
  %v4243 = vmul.f32 %v4242, %v4235
  %v4244 = vadd.f32 %v4235, %v4243
  %v4245 = vmul.f32 %v4244, 0.7978846
  %v4246 = vtanh.pop %v4245
  %v4247 = vadd.f32 %v4246, 1.0
  %v4248 = vmul.f32 %v4240, %v4247
  %v4249 = vld [vmem:[%s3] sm:$0xff]
  %v4250 = vld [vmem:[%s29] sm:$0xff]
  %v4251 = vpack.c.bf16 %v4249, %v4249
  %v4252 = vpack.c.bf16 %v4250, %v4250
  %v4253 = vld [vmem:[%s31] sm:$0x1]
  %v4255 = vlaneseq
  %v4256 = vshrl.u32 %v4255, 7
  %v4257 = vsub.s32 0, %v4256
  %v4258 = vrot.slane %v4253, %v4257
  %vm4260 = vcmask 64512
  %v4262 = vsel %vm4260, %v4251, 0
  %vm4264 = vcmask 1043456
  %v4266 = vsel %vm4264, %v4252, 0
  %4268 = vmatprep.subr.bf16.mxu0 0
  %4269 = vmatpush1.bf16.msra.mxu0 %v4266
  %4270 = vmatprep.subr.bf16.mxu0 0
  %4271 = vmatpush1.bf16.msra.mxu0 0
  %4272 = vmatprep.subr.bf16.mxu0 0
  %4273 = vmatpush1.bf16.msra.mxu0 0
  %4274 = vmatprep.subr.bf16.mxu0 0
  %4275 = vmatpush1.bf16.msra.mxu0 0
  %4276 = vmatprep.subr.bf16.mxu0 0
  %4277 = vmatpush1.bf16.msra.mxu0 0
  %4278 = vmatprep.subr.bf16.mxu0 0
  %4279 = vmatpush1.bf16.msra.mxu0 0
  %4280 = vmatprep.subr.bf16.mxu0 0
  %4281 = vmatpush1.bf16.msra.mxu0 0
  %4282 = vmatprep.subr.bf16.mxu0 0
  %4283 = vmatpush1.bf16.msra.mxu0 0
  %4284 = vmatprep.subr.bf16.mxu0 0
  %4285 = vmatpush1.bf16.msra.mxu0 0
  %4286 = vmatprep.subr.bf16.mxu0 0
  %4287 = vmatpush1.bf16.msra.mxu0 0
  %4288 = vmatprep.subr.bf16.mxu0 0
  %4289 = vmatpush1.bf16.msra.mxu0 0
  %4290 = vmatprep.subr.bf16.mxu0 0
  %4291 = vmatpush1.bf16.msra.mxu0 0
  %4292 = vmatprep.subr.bf16.mxu0 0
  %4293 = vmatpush1.bf16.msra.mxu0 0
  %4294 = vmatprep.subr.bf16.mxu0 0
  %4295 = vmatpush1.bf16.msra.mxu0 0
  %4296 = vmatprep.subr.bf16.mxu0 0
  %4297 = vmatpush1.bf16.msra.mxu0 0
  %4298 = vmatprep.subr.bf16.mxu0 0
  %4299 = vmatpush1.bf16.msra.mxu0 0
  %4300 = vmatprep.mubr.bf16.mxu0 0
  %4301 = vmatmul.mubr.bf16.gmra.mrb[0].mxu0 %v4262
  %v4302 = vpop.f32.mrb[0].mxu0
  %v4303 = vadd.f32 %v4258, %v4302
  %v4304 = vpop.f32.mrb[0].mxu0
  %v4305 = vpop.f32.mrb[0].mxu0
  %v4306 = vpop.f32.mrb[0].mxu0
  %4307 = vdwg.mxu0
  %v4308 = vsel %vm187, %v4303, 0.0
  %4309 = vadd.xlane.f32.xlu0 %v4308
  %v4310 = vpop.xlane.xlu0 %4309
  %v4311 = vmul.f32 %v4310, %v2110
  %v4312 = vsub.f32 %v4303, %v4311
  %v4313 = vmul.f32 %v4312, %v4312
  %v4314 = vsel %vm187, %v4313, 0.0
  %4315 = vadd.xlane.f32.xlu0 %v4314
  %v4316 = vpop.xlane.xlu0 %4315
  %v4317 = vmul.f32 %v4316, %v2110
  %v4318 = vadd.f32 %v4317, 1e-05
  %v4319 = vrsqrt.pop %v4318
  %v4320 = vmul.f32 %v4312, %v4319
  %v4321 = vmul.f32 %v4320, 0.5
  %v4322 = vmul.f32 %v4320, 0.044715
  %v4323 = vmul.f32 %v4322, %v4320
  %v4324 = vmul.f32 %v4323, %v4320
  %v4325 = vadd.f32 %v4320, %v4324
  %v4326 = vmul.f32 %v4325, 0.7978846
  %v4327 = vtanh.pop %v4326
  %v4328 = vadd.f32 %v4327, 1.0
  %v4329 = vmul.f32 %v4321, %v4328
  %v4330 = vld [vmem:[%s33] sm:$0xff]
  %v4331 = vld [vmem:[%s33 + $0x8] sm:$0xff]
  %v4332 = vpack.c.bf16 %v4329, %v4329
  %v4333 = vpack.c.bf16 %v4331, %v4330
  %v4334 = vld [vmem:[%s35] sm:$0x1]
  %v4336 = vlaneseq
  %v4337 = vshrl.u32 %v4336, 7
  %v4338 = vsub.s32 0, %v4337
  %v4339 = vrot.slane %v4334, %v4338
  %v4342 = vsel %vm187, %v4332, 0
  %4344 = vmatprep.subr.bf16.mxu0 0
  %4345 = vmatpush1.bf16.msra.mxu0 %v4333
  %4346 = vmatprep.subr.bf16.mxu0 0
  %4347 = vmatpush1.bf16.msra.mxu0 0
  %4348 = vmatprep.subr.bf16.mxu0 0
  %4349 = vmatpush1.bf16.msra.mxu0 0
  %4350 = vmatprep.subr.bf16.mxu0 0
  %4351 = vmatpush1.bf16.msra.mxu0 0
  %4352 = vmatprep.subr.bf16.mxu0 0
  %4353 = vmatpush1.bf16.msra.mxu0 0
  %4354 = vmatprep.subr.bf16.mxu0 0
  %4355 = vmatpush1.bf16.msra.mxu0 0
  %4356 = vmatprep.subr.bf16.mxu0 0
  %4357 = vmatpush1.bf16.msra.mxu0 0
  %4358 = vmatprep.subr.bf16.mxu0 0
  %4359 = vmatpush1.bf16.msra.mxu0 0
  %4360 = vmatprep.subr.bf16.mxu0 0
  %4361 = vmatpush1.bf16.msra.mxu0 0
  %4362 = vmatprep.subr.bf16.mxu0 0
  %4363 = vmatpush1.bf16.msra.mxu0 0
  %4364 = vmatprep.subr.bf16.mxu0 0
  %4365 = vmatpush1.bf16.msra.mxu0 0
  %4366 = vmatprep.subr.bf16.mxu0 0
  %4367 = vmatpush1.bf16.msra.mxu0 0
  %4368 = vmatprep.subr.bf16.mxu0 0
  %4369 = vmatpush1.bf16.msra.mxu0 0
  %4370 = vmatprep.subr.bf16.mxu0 0
  %4371 = vmatpush1.bf16.msra.mxu0 0
  %4372 = vmatprep.subr.bf16.mxu0 0
  %4373 = vmatpush1.bf16.msra.mxu0 0
  %4374 = vmatprep.subr.bf16.mxu0 0
  %4375 = vmatpush1.bf16.msra.mxu0 0
  %4376 = vmatprep.mubr.bf16.mxu0 0
  %4377 = vmatmul.mubr.bf16.gmra.mrb[0].mxu0 %v4342
  %v4378 = vpop.f32.mrb[0].mxu0
  %v4379 = vadd.f32 %v4339, %v4378
  %v4380 = vpop.f32.mrb[0].mxu0
  %v4381 = vpop.f32.mrb[0].mxu0
  %v4382 = vpop.f32.mrb[0].mxu0
  %4383 = vdwg.mxu0
  %v4384 = vsel %vm187, %v4379, 0.0
  %4385 = vadd.xlane.f32.xlu0 %v4384
  %v4386 = vpop.xlane.xlu0 %4385
  %v4387 = vmul.f32 %v4386, %v2110
  %v4388 = vsub.f32 %v4379, %v4387
  %v4389 = vmul.f32 %v4388, %v4388
  %v4390 = vsel %vm187, %v4389, 0.0
  %4391 = vadd.xlane.f32.xlu0 %v4390
  %v4392 = vpop.xlane.xlu0 %4391
  %v4393 = vmul.f32 %v4392, %v2110
  %v4394 = vadd.f32 %v4393, 1e-05
  %v4395 = vrsqrt.pop %v4394
  %v4396 = vmul.f32 %v4388, %v4395
  %v4397 = vmul.f32 %v4396, 0.5
  %v4398 = vmul.f32 %v4396, 0.044715
  %v4399 = vmul.f32 %v4398, %v4396
  %v4400 = vmul.f32 %v4399, %v4396
  %v4401 = vadd.f32 %v4396, %v4400
  %v4402 = vmul.f32 %v4401, 0.7978846
  %v4403 = vtanh.pop %v4402
  %v4404 = vadd.f32 %v4403, 1.0
  %v4405 = vmul.f32 %v4397, %v4404
  %v4406 = vld [vmem:[%s37] sm:$0xff]
  %v4407 = vld [vmem:[%s37 + $0x8] sm:$0xff]
  %v4408 = vpack.c.bf16 %v4405, %v4405
  %v4409 = vpack.c.bf16 %v4407, %v4406
  %v4410 = vld [vmem:[%s39] sm:$0x1]
  %v4412 = vlaneseq
  %v4413 = vshrl.u32 %v4412, 7
  %v4414 = vsub.s32 0, %v4413
  %v4415 = vrot.slane %v4410, %v4414
  %v4418 = vsel %vm187, %v4408, 0
  %4420 = vmatprep.subr.bf16.mxu0 0
  %4421 = vmatpush1.bf16.msra.mxu0 %v4409
  %4422 = vmatprep.subr.bf16.mxu0 0
  %4423 = vmatpush1.bf16.msra.mxu0 0
  %4424 = vmatprep.subr.bf16.mxu0 0
  %4425 = vmatpush1.bf16.msra.mxu0 0
  %4426 = vmatprep.subr.bf16.mxu0 0
  %4427 = vmatpush1.bf16.msra.mxu0 0
  %4428 = vmatprep.subr.bf16.mxu0 0
  %4429 = vmatpush1.bf16.msra.mxu0 0
  %4430 = vmatprep.subr.bf16.mxu0 0
  %4431 = vmatpush1.bf16.msra.mxu0 0
  %4432 = vmatprep.subr.bf16.mxu0 0
  %4433 = vmatpush1.bf16.msra.mxu0 0
  %4434 = vmatprep.subr.bf16.mxu0 0
  %4435 = vmatpush1.bf16.msra.mxu0 0
  %4436 = vmatprep.subr.bf16.mxu0 0
  %4437 = vmatpush1.bf16.msra.mxu0 0
  %4438 = vmatprep.subr.bf16.mxu0 0
  %4439 = vmatpush1.bf16.msra.mxu0 0
  %4440 = vmatprep.subr.bf16.mxu0 0
  %4441 = vmatpush1.bf16.msra.mxu0 0
  %4442 = vmatprep.subr.bf16.mxu0 0
  %4443 = vmatpush1.bf16.msra.mxu0 0
  %4444 = vmatprep.subr.bf16.mxu0 0
  %4445 = vmatpush1.bf16.msra.mxu0 0
  %4446 = vmatprep.subr.bf16.mxu0 0
  %4447 = vmatpush1.bf16.msra.mxu0 0
  %4448 = vmatprep.subr.bf16.mxu0 0
  %4449 = vmatpush1.bf16.msra.mxu0 0
  %4450 = vmatprep.subr.bf16.mxu0 0
  %4451 = vmatpush1.bf16.msra.mxu0 0
  %4452 = vmatprep.mubr.bf16.mxu0 0
  %4453 = vmatmul.mubr.bf16.gmra.mrb[0].mxu0 %v4418
  %v4454 = vpop.f32.mrb[0].mxu0
  %v4455 = vadd.f32 %v4415, %v4454
  %v4456 = vpop.f32.mrb[0].mxu0
  %v4457 = vpop.f32.mrb[0].mxu0
  %v4458 = vpop.f32.mrb[0].mxu0
  %4459 = vdwg.mxu0
  %v4460 = vmul.f32 %v4455, 0.5
  %v4461 = vmul.f32 %v4455, 0.044715
  %v4462 = vmul.f32 %v4461, %v4455
  %v4463 = vmul.f32 %v4462, %v4455
  %v4464 = vadd.f32 %v4455, %v4463
  %v4465 = vmul.f32 %v4464, 0.7978846
  %v4466 = vtanh.pop %v4465
  %v4467 = vadd.f32 %v4466, 1.0
  %v4468 = vmul.f32 %v4460, %v4467
  %v4469 = vld [vmem:[%s41] sm:$0xff]
  %v4470 = vld [vmem:[%s41 + $0x8] sm:$0xff]
  %v4471 = vld [vmem:[%s41 + $0x10] sm:$0xff]
  %v4472 = vpack.c.bf16 %v4468, %v4468
  %v4473 = vpack.c.bf16 %v4469, %v4469
  %v4474 = vpack.c.bf16 %v2192, %v2192
  %v4475 = vpack.c.bf16 %v4470, %v4470
  %v4477 = vsel %vm4260, %v4474, 0
  %v4480 = vsel %vm4264, %v4475, 0
  %4482 = vmatprep.subr.bf16.mxu0 0
  %4483 = vmatpush1.bf16.msra.mxu0 %v4480
  %4484 = vmatprep.subr.bf16.mxu0 0
  %4485 = vmatpush1.bf16.msra.mxu0 0
  %4486 = vmatprep.subr.bf16.mxu0 0
  %4487 = vmatpush1.bf16.msra.mxu0 0
  %4488 = vmatprep.subr.bf16.mxu0 0
  %4489 = vmatpush1.bf16.msra.mxu0 0
  %4490 = vmatprep.subr.bf16.mxu0 0
  %4491 = vmatpush1.bf16.msra.mxu0 0
  %4492 = vmatprep.subr.bf16.mxu0 0
  %4493 = vmatpush1.bf16.msra.mxu0 0
  %4494 = vmatprep.subr.bf16.mxu0 0
  %4495 = vmatpush1.bf16.msra.mxu0 0
  %4496 = vmatprep.subr.bf16.mxu0 0
  %4497 = vmatpush1.bf16.msra.mxu0 0
  %4498 = vmatprep.subr.bf16.mxu0 0
  %4499 = vmatpush1.bf16.msra.mxu0 0
  %4500 = vmatprep.subr.bf16.mxu0 0
  %4501 = vmatpush1.bf16.msra.mxu0 0
  %4502 = vmatprep.subr.bf16.mxu0 0
  %4503 = vmatpush1.bf16.msra.mxu0 0
  %4504 = vmatprep.subr.bf16.mxu0 0
  %4505 = vmatpush1.bf16.msra.mxu0 0
  %4506 = vmatprep.subr.bf16.mxu0 0
  %4507 = vmatpush1.bf16.msra.mxu0 0
  %4508 = vmatprep.subr.bf16.mxu0 0
  %4509 = vmatpush1.bf16.msra.mxu0 0
  %4510 = vmatprep.subr.bf16.mxu0 0
  %4511 = vmatpush1.bf16.msra.mxu0 0
  %4512 = vmatprep.subr.bf16.mxu0 0
  %4513 = vmatpush1.bf16.msra.mxu0 0
  %4514 = vmatprep.mubr.bf16.mxu0 0
  %4515 = vmatmul.mubr.bf16.gmra.mrb[0].mxu0 %v4477
  %v4516 = vpop.f32.mrb[0].mxu0
  %v4517 = vadd.f32 0.0, %v4516
  %v4518 = vpop.f32.mrb[0].mxu0
  %v4519 = vpop.f32.mrb[0].mxu0
  %v4520 = vpop.f32.mrb[0].mxu0
  %4521 = vdwg.mxu0
  %v4523 = vsel %vm4260, %v4472, 0
  %v4526 = vsel %vm4264, %v4473, 0
  %4528 = vmatprep.subr.bf16.mxu0 0
  %4529 = vmatpush1.bf16.msra.mxu0 %v4526
  %4530 = vmatprep.subr.bf16.mxu0 0
  %4531 = vmatpush1.bf16.msra.mxu0 0
  %4532 = vmatprep.subr.bf16.mxu0 0
  %4533 = vmatpush1.bf16.msra.mxu0 0
  %4534 = vmatprep.subr.bf16.mxu0 0
  %4535 = vmatpush1.bf16.msra.mxu0 0
  %4536 = vmatprep.subr.bf16.mxu0 0
  %4537 = vmatpush1.bf16.msra.mxu0 0
  %4538 = vmatprep.subr.bf16.mxu0 0
  %4539 = vmatpush1.bf16.msra.mxu0 0
  %4540 = vmatprep.subr.bf16.mxu0 0
  %4541 = vmatpush1.bf16.msra.mxu0 0
  %4542 = vmatprep.subr.bf16.mxu0 0
  %4543 = vmatpush1.bf16.msra.mxu0 0
  %4544 = vmatprep.subr.bf16.mxu0 0
  %4545 = vmatpush1.bf16.msra.mxu0 0
  %4546 = vmatprep.subr.bf16.mxu0 0
  %4547 = vmatpush1.bf16.msra.mxu0 0
  %4548 = vmatprep.subr.bf16.mxu0 0
  %4549 = vmatpush1.bf16.msra.mxu0 0
  %4550 = vmatprep.subr.bf16.mxu0 0
  %4551 = vmatpush1.bf16.msra.mxu0 0
  %4552 = vmatprep.subr.bf16.mxu0 0
  %4553 = vmatpush1.bf16.msra.mxu0 0
  %4554 = vmatprep.subr.bf16.mxu0 0
  %4555 = vmatpush1.bf16.msra.mxu0 0
  %4556 = vmatprep.subr.bf16.mxu0 0
  %4557 = vmatpush1.bf16.msra.mxu0 0
  %4558 = vmatprep.subr.bf16.mxu0 0
  %4559 = vmatpush1.bf16.msra.mxu0 0
  %4560 = vmatprep.mubr.bf16.mxu0 0
  %4561 = vmatmul.mubr.bf16.gmra.mrb[0].mxu0 %v4523
  %v4562 = vpop.f32.mrb[0].mxu0
  %v4563 = vadd.f32 %v4517, %v4562
  %v4564 = vpop.f32.mrb[0].mxu0
  %v4565 = vpop.f32.mrb[0].mxu0
  %v4566 = vpop.f32.mrb[0].mxu0
  %4567 = vdwg.mxu0
  %v4568 = vpack.c.bf16 %v4248, %v4248
  %v4569 = vpack.c.bf16 %v4471, %v4471
  %v4571 = vsel %vm4260, %v4568, 0
  %v4574 = vsel %vm4264, %v4569, 0
  %4576 = vmatprep.subr.bf16.mxu0 0
  %4577 = vmatpush1.bf16.msra.mxu0 %v4574
  %4578 = vmatprep.subr.bf16.mxu0 0
  %4579 = vmatpush1.bf16.msra.mxu0 0
  %4580 = vmatprep.subr.bf16.mxu0 0
  %4581 = vmatpush1.bf16.msra.mxu0 0
  %4582 = vmatprep.subr.bf16.mxu0 0
  %4583 = vmatpush1.bf16.msra.mxu0 0
  %4584 = vmatprep.subr.bf16.mxu0 0
  %4585 = vmatpush1.bf16.msra.mxu0 0
  %4586 = vmatprep.subr.bf16.mxu0 0
  %4587 = vmatpush1.bf16.msra.mxu0 0
  %4588 = vmatprep.subr.bf16.mxu0 0
  %4589 = vmatpush1.bf16.msra.mxu0 0
  %4590 = vmatprep.subr.bf16.mxu0 0
  %4591 = vmatpush1.bf16.msra.mxu0 0
  %4592 = vmatprep.subr.bf16.mxu0 0
  %4593 = vmatpush1.bf16.msra.mxu0 0
  %4594 = vmatprep.subr.bf16.mxu0 0
  %4595 = vmatpush1.bf16.msra.mxu0 0
  %4596 = vmatprep.subr.bf16.mxu0 0
  %4597 = vmatpush1.bf16.msra.mxu0 0
  %4598 = vmatprep.subr.bf16.mxu0 0
  %4599 = vmatpush1.bf16.msra.mxu0 0
  %4600 = vmatprep.subr.bf16.mxu0 0
  %4601 = vmatpush1.bf16.msra.mxu0 0
  %4602 = vmatprep.subr.bf16.mxu0 0
  %4603 = vmatpush1.bf16.msra.mxu0 0
  %4604 = vmatprep.subr.bf16.mxu0 0
  %4605 = vmatpush1.bf16.msra.mxu0 0
  %4606 = vmatprep.subr.bf16.mxu0 0
  %4607 = vmatpush1.bf16.msra.mxu0 0
  %4608 = vmatprep.mubr.bf16.mxu0 0
  %4609 = vmatmul.mubr.bf16.gmra.mrb[0].mxu0 %v4571
  %v4610 = vpop.f32.mrb[0].mxu0
  %v4611 = vadd.f32 0.0, %v4610
  %v4612 = vpop.f32.mrb[0].mxu0
  %v4613 = vpop.f32.mrb[0].mxu0
  %v4614 = vpop.f32.mrb[0].mxu0
  %4615 = vdwg.mxu0
  %v4616 = vadd.f32 %v4563, %v4611
  %v4617 = vld [vmem:[%s43] sm:$0x1]
  %v4619 = vlaneseq
  %v4620 = vshrl.u32 %v4619, 7
  %v4621 = vsub.s32 0, %v4620
  %v4622 = vrot.slane %v4617, %v4621
  %v4624 = vadd.f32 %v4616, %v4622
  %v4625 = vmul.f32 %v4624, 0.5
  %v4626 = vmul.f32 %v4624, 0.044715
  %v4627 = vmul.f32 %v4626, %v4624
  %v4628 = vmul.f32 %v4627, %v4624
  %v4629 = vadd.f32 %v4624, %v4628
  %v4630 = vmul.f32 %v4629, 0.7978846
  %v4631 = vtanh.pop %v4630
  %v4632 = vadd.f32 %v4631, 1.0
  %v4633 = vmul.f32 %v4625, %v4632
  %v4634 = vld [vmem:[%s45] sm:$0xff]
  %v4635 = vld [vmem:[%s45 + $0x8] sm:$0xff]
  %v4636 = vld [vmem:[%s47] sm:$0x1]
  %v4637 = vpack.c.bf16 %v4633, %v4633
  %v4638 = vpack.c.bf16 %v4635, %v4634
  %v4640 = vlaneseq
  %v4641 = vshrl.u32 %v4640, 7
  %v4642 = vsub.s32 0, %v4641
  %v4643 = vrot.slane %v4636, %v4642
  %v4646 = vsel %vm187, %v4637, 0
  %4648 = vmatprep.subr.bf16.mxu0 0
  %4649 = vmatpush1.bf16.msra.mxu0 %v4638
  %4650 = vmatprep.subr.bf16.mxu0 0
  %4651 = vmatpush1.bf16.msra.mxu0 0
  %4652 = vmatprep.subr.bf16.mxu0 0
  %4653 = vmatpush1.bf16.msra.mxu0 0
  %4654 = vmatprep.subr.bf16.mxu0 0
  %4655 = vmatpush1.bf16.msra.mxu0 0
  %4656 = vmatprep.subr.bf16.mxu0 0
  %4657 = vmatpush1.bf16.msra.mxu0 0
  %4658 = vmatprep.subr.bf16.mxu0 0
  %4659 = vmatpush1.bf16.msra.mxu0 0
  %4660 = vmatprep.subr.bf16.mxu0 0
  %4661 = vmatpush1.bf16.msra.mxu0 0
  %4662 = vmatprep.subr.bf16.mxu0 0
  %4663 = vmatpush1.bf16.msra.mxu0 0
  %4664 = vmatprep.subr.bf16.mxu0 0
  %4665 = vmatpush1.bf16.msra.mxu0 0
  %4666 = vmatprep.subr.bf16.mxu0 0
  %4667 = vmatpush1.bf16.msra.mxu0 0
  %4668 = vmatprep.subr.bf16.mxu0 0
  %4669 = vmatpush1.bf16.msra.mxu0 0
  %4670 = vmatprep.subr.bf16.mxu0 0
  %4671 = vmatpush1.bf16.msra.mxu0 0
  %4672 = vmatprep.subr.bf16.mxu0 0
  %4673 = vmatpush1.bf16.msra.mxu0 0
  %4674 = vmatprep.subr.bf16.mxu0 0
  %4675 = vmatpush1.bf16.msra.mxu0 0
  %4676 = vmatprep.subr.bf16.mxu0 0
  %4677 = vmatpush1.bf16.msra.mxu0 0
  %4678 = vmatprep.subr.bf16.mxu0 0
  %4679 = vmatpush1.bf16.msra.mxu0 0
  %4680 = vmatprep.mubr.bf16.mxu0 0
  %4681 = vmatmul.mubr.bf16.gmra.mrb[0].mxu0 %v4646
  %v4682 = vpop.f32.mrb[0].mxu0
  %v4683 = vadd.f32 %v4643, %v4682
  %v4684 = vpop.f32.mrb[0].mxu0
  %v4685 = vpop.f32.mrb[0].mxu0
  %v4686 = vpop.f32.mrb[0].mxu0
  %4687 = vdwg.mxu0
  %v4688 = vmul.f32 %v4683, 0.5
  %v4689 = vmul.f32 %v4683, 0.044715
  %v4690 = vmul.f32 %v4689, %v4683
  %v4691 = vmul.f32 %v4690, %v4683
  %v4692 = vadd.f32 %v4683, %v4691
  %v4693 = vmul.f32 %v4692, 0.7978846
  %v4694 = vtanh.pop %v4693
  %v4695 = vadd.f32 %v4694, 1.0
  %v4696 = vmul.f32 %v4688, %v4695
  %v4697 = vld [vmem:[%s49] sm:$0xff]
  %v4698 = vld [vmem:[%s49 + $0x8] sm:$0xff]
  %v4699 = vld [vmem:[%s49 + $0x10] sm:$0xff]
  %v4700 = vld [vmem:[%s49 + $0x18] sm:$0xff]
  %v4701 = vld [vmem:[%s51] sm:$0x1]
  %v4702 = vpack.c.bf16 %v4696, %v4696
  %v4703 = vpack.c.bf16 %v4698, %v4697
  %v4704 = vpack.c.bf16 %v4700, %v4699
  %v4706 = vlaneseq
  %v4707 = vshrl.u32 %v4706, 7
  %v4708 = vsub.s32 0, %v4707
  %v4709 = vrot.slane %v4701, %v4708
  %v4712 = vsel %vm1688, %v4702, 0
  %4714 = vmatprep.subr.bf16.mxu0 0
  %4715 = vmatpush1.bf16.msra.mxu0 %v4703
  %4716 = vmatprep.subr.bf16.mxu0 0
  %4717 = vmatpush1.bf16.msra.mxu0 %v4704
  %4718 = vmatprep.subr.bf16.mxu0 0
  %4719 = vmatpush1.bf16.msra.mxu0 0
  %4720 = vmatprep.subr.bf16.mxu0 0
  %4721 = vmatpush1.bf16.msra.mxu0 0
  %4722 = vmatprep.subr.bf16.mxu0 0
  %4723 = vmatpush1.bf16.msra.mxu0 0
  %4724 = vmatprep.subr.bf16.mxu0 0
  %4725 = vmatpush1.bf16.msra.mxu0 0
  %4726 = vmatprep.subr.bf16.mxu0 0
  %4727 = vmatpush1.bf16.msra.mxu0 0
  %4728 = vmatprep.subr.bf16.mxu0 0
  %4729 = vmatpush1.bf16.msra.mxu0 0
  %4730 = vmatprep.subr.bf16.mxu0 0
  %4731 = vmatpush1.bf16.msra.mxu0 0
  %4732 = vmatprep.subr.bf16.mxu0 0
  %4733 = vmatpush1.bf16.msra.mxu0 0
  %4734 = vmatprep.subr.bf16.mxu0 0
  %4735 = vmatpush1.bf16.msra.mxu0 0
  %4736 = vmatprep.subr.bf16.mxu0 0
  %4737 = vmatpush1.bf16.msra.mxu0 0
  %4738 = vmatprep.subr.bf16.mxu0 0
  %4739 = vmatpush1.bf16.msra.mxu0 0
  %4740 = vmatprep.subr.bf16.mxu0 0
  %4741 = vmatpush1.bf16.msra.mxu0 0
  %4742 = vmatprep.subr.bf16.mxu0 0
  %4743 = vmatpush1.bf16.msra.mxu0 0
  %4744 = vmatprep.subr.bf16.mxu0 0
  %4745 = vmatpush1.bf16.msra.mxu0 0
  %4746 = vmatprep.mubr.bf16.mxu0 0
  %4747 = vmatmul.mubr.bf16.gmra.mrb[0].mxu0 %v4712
  %v4748 = vpop.f32.mrb[0].mxu0
  %v4749 = vadd.f32 %v4709, %v4748
  %v4750 = vpop.f32.mrb[0].mxu0
  %v4751 = vpop.f32.mrb[0].mxu0
  %v4752 = vpop.f32.mrb[0].mxu0
  %4753 = vdwg.mxu0
  %v4754 = vld [vmem:[%s53] sm:$0xff]
  %v4755 = vld [vmem:[%s53 + $0x8] sm:$0xff]
  %v4756 = vld [vmem:[%s53 + $0x10] sm:$0xff]
  %v4757 = vpack.c.bf16 %v4754, %v4754
  %v4758 = vpack.c.bf16 %v4755, %v4755
  %v4760 = vsel %vm4264, %v4758, 0
  %4762 = vmatprep.subr.bf16.mxu0 0
  %4763 = vmatpush1.bf16.msra.mxu0 %v4760
  %4764 = vmatprep.subr.bf16.mxu0 0
  %4765 = vmatpush1.bf16.msra.mxu0 0
  %4766 = vmatprep.subr.bf16.mxu0 0
  %4767 = vmatpush1.bf16.msra.mxu0 0
  %4768 = vmatprep.subr.bf16.mxu0 0
  %4769 = vmatpush1.bf16.msra.mxu0 0
  %4770 = vmatprep.subr.bf16.mxu0 0
  %4771 = vmatpush1.bf16.msra.mxu0 0
  %4772 = vmatprep.subr.bf16.mxu0 0
  %4773 = vmatpush1.bf16.msra.mxu0 0
  %4774 = vmatprep.subr.bf16.mxu0 0
  %4775 = vmatpush1.bf16.msra.mxu0 0
  %4776 = vmatprep.subr.bf16.mxu0 0
  %4777 = vmatpush1.bf16.msra.mxu0 0
  %4778 = vmatprep.subr.bf16.mxu0 0
  %4779 = vmatpush1.bf16.msra.mxu0 0
  %4780 = vmatprep.subr.bf16.mxu0 0
  %4781 = vmatpush1.bf16.msra.mxu0 0
  %4782 = vmatprep.subr.bf16.mxu0 0
  %4783 = vmatpush1.bf16.msra.mxu0 0
  %4784 = vmatprep.subr.bf16.mxu0 0
  %4785 = vmatpush1.bf16.msra.mxu0 0
  %4786 = vmatprep.subr.bf16.mxu0 0
  %4787 = vmatpush1.bf16.msra.mxu0 0
  %4788 = vmatprep.subr.bf16.mxu0 0
  %4789 = vmatpush1.bf16.msra.mxu0 0
  %4790 = vmatprep.subr.bf16.mxu0 0
  %4791 = vmatpush1.bf16.msra.mxu0 0
  %4792 = vmatprep.subr.bf16.mxu0 0
  %4793 = vmatpush1.bf16.msra.mxu0 0
  %4794 = vmatprep.mubr.bf16.mxu0 0
  %4795 = vmatmul.mubr.bf16.gmra.mrb[0].mxu0 %v4477
  %v4796 = vpop.f32.mrb[0].mxu0
  %v4797 = vadd.f32 0.0, %v4796
  %v4798 = vpop.f32.mrb[0].mxu0
  %v4799 = vpop.f32.mrb[0].mxu0
  %v4800 = vpop.f32.mrb[0].mxu0
  %4801 = vdwg.mxu0
  %v4803 = vsel %vm4264, %v4757, 0
  %4805 = vmatprep.subr.bf16.mxu0 0
  %4806 = vmatpush1.bf16.msra.mxu0 %v4803
  %4807 = vmatprep.subr.bf16.mxu0 0
  %4808 = vmatpush1.bf16.msra.mxu0 0
  %4809 = vmatprep.subr.bf16.mxu0 0
  %4810 = vmatpush1.bf16.msra.mxu0 0
  %4811 = vmatprep.subr.bf16.mxu0 0
  %4812 = vmatpush1.bf16.msra.mxu0 0
  %4813 = vmatprep.subr.bf16.mxu0 0
  %4814 = vmatpush1.bf16.msra.mxu0 0
  %4815 = vmatprep.subr.bf16.mxu0 0
  %4816 = vmatpush1.bf16.msra.mxu0 0
  %4817 = vmatprep.subr.bf16.mxu0 0
  %4818 = vmatpush1.bf16.msra.mxu0 0
  %4819 = vmatprep.subr.bf16.mxu0 0
  %4820 = vmatpush1.bf16.msra.mxu0 0
  %4821 = vmatprep.subr.bf16.mxu0 0
  %4822 = vmatpush1.bf16.msra.mxu0 0
  %4823 = vmatprep.subr.bf16.mxu0 0
  %4824 = vmatpush1.bf16.msra.mxu0 0
  %4825 = vmatprep.subr.bf16.mxu0 0
  %4826 = vmatpush1.bf16.msra.mxu0 0
  %4827 = vmatprep.subr.bf16.mxu0 0
  %4828 = vmatpush1.bf16.msra.mxu0 0
  %4829 = vmatprep.subr.bf16.mxu0 0
  %4830 = vmatpush1.bf16.msra.mxu0 0
  %4831 = vmatprep.subr.bf16.mxu0 0
  %4832 = vmatpush1.bf16.msra.mxu0 0
  %4833 = vmatprep.subr.bf16.mxu0 0
  %4834 = vmatpush1.bf16.msra.mxu0 0
  %4835 = vmatprep.subr.bf16.mxu0 0
  %4836 = vmatpush1.bf16.msra.mxu0 0
  %4837 = vmatprep.mubr.bf16.mxu0 0
  %4838 = vmatmul.mubr.bf16.gmra.mrb[0].mxu0 %v4523
  %v4839 = vpop.f32.mrb[0].mxu0
  %v4840 = vadd.f32 %v4797, %v4839
  %v4841 = vpop.f32.mrb[0].mxu0
  %v4842 = vpop.f32.mrb[0].mxu0
  %v4843 = vpop.f32.mrb[0].mxu0
  %4844 = vdwg.mxu0
  %v4845 = vpack.c.bf16 %v4756, %v4756
  %v4847 = vsel %vm4264, %v4845, 0
  %4849 = vmatprep.subr.bf16.mxu0 0
  %4850 = vmatpush1.bf16.msra.mxu0 %v4847
  %4851 = vmatprep.subr.bf16.mxu0 0
  %4852 = vmatpush1.bf16.msra.mxu0 0
  %4853 = vmatprep.subr.bf16.mxu0 0
  %4854 = vmatpush1.bf16.msra.mxu0 0
  %4855 = vmatprep.subr.bf16.mxu0 0
  %4856 = vmatpush1.bf16.msra.mxu0 0
  %4857 = vmatprep.subr.bf16.mxu0 0
  %4858 = vmatpush1.bf16.msra.mxu0 0
  %4859 = vmatprep.subr.bf16.mxu0 0
  %4860 = vmatpush1.bf16.msra.mxu0 0
  %4861 = vmatprep.subr.bf16.mxu0 0
  %4862 = vmatpush1.bf16.msra.mxu0 0
  %4863 = vmatprep.subr.bf16.mxu0 0
  %4864 = vmatpush1.bf16.msra.mxu0 0
  %4865 = vmatprep.subr.bf16.mxu0 0
  %4866 = vmatpush1.bf16.msra.mxu0 0
  %4867 = vmatprep.subr.bf16.mxu0 0
  %4868 = vmatpush1.bf16.msra.mxu0 0
  %4869 = vmatprep.subr.bf16.mxu0 0
  %4870 = vmatpush1.bf16.msra.mxu0 0
  %4871 = vmatprep.subr.bf16.mxu0 0
  %4872 = vmatpush1.bf16.msra.mxu0 0
  %4873 = vmatprep.subr.bf16.mxu0 0
  %4874 = vmatpush1.bf16.msra.mxu0 0
  %4875 = vmatprep.subr.bf16.mxu0 0
  %4876 = vmatpush1.bf16.msra.mxu0 0
  %4877 = vmatprep.subr.bf16.mxu0 0
  %4878 = vmatpush1.bf16.msra.mxu0 0
  %4879 = vmatprep.subr.bf16.mxu0 0
  %4880 = vmatpush1.bf16.msra.mxu0 0
  %4881 = vmatprep.mubr.bf16.mxu0 0
  %4882 = vmatmul.mubr.bf16.gmra.mrb[0].mxu0 %v4571
  %v4883 = vpop.f32.mrb[0].mxu0
  %v4884 = vadd.f32 0.0, %v4883
  %v4885 = vpop.f32.mrb[0].mxu0
  %v4886 = vpop.f32.mrb[0].mxu0
  %v4887 = vpop.f32.mrb[0].mxu0
  %4888 = vdwg.mxu0
  %v4889 = vadd.f32 %v4840, %v4884
  %v4890 = vld [vmem:[%s55] sm:$0x1]
  %v4892 = vlaneseq
  %v4893 = vshrl.u32 %v4892, 7
  %v4894 = vsub.s32 0, %v4893
  %v4895 = vrot.slane %v4890, %v4894
  %v4897 = vadd.f32 %v4889, %v4895
  %v4898 = vmul.f32 %v4897, 0.5
  %v4899 = vmul.f32 %v4897, 0.044715
  %v4900 = vmul.f32 %v4899, %v4897
  %v4901 = vmul.f32 %v4900, %v4897
  %v4902 = vadd.f32 %v4897, %v4901
  %v4903 = vmul.f32 %v4902, 0.7978846
  %v4904 = vtanh.pop %v4903
  %v4905 = vadd.f32 %v4904, 1.0
  %v4906 = vmul.f32 %v4898, %v4905
  %v4907 = vld [vmem:[%s57] sm:$0xff]
  %v4908 = vld [vmem:[%s57 + $0x8] sm:$0xff]
  %v4909 = vld [vmem:[%s59] sm:$0x1]
  %v4910 = vpack.c.bf16 %v4906, %v4906
  %v4911 = vpack.c.bf16 %v4908, %v4907
  %v4913 = vlaneseq
  %v4914 = vshrl.u32 %v4913, 7
  %v4915 = vsub.s32 0, %v4914
  %v4916 = vrot.slane %v4909, %v4915
  %v4919 = vsel %vm187, %v4910, 0
  %4921 = vmatprep.subr.bf16.mxu0 0
  %4922 = vmatpush1.bf16.msra.mxu0 %v4911
  %4923 = vmatprep.subr.bf16.mxu0 0
  %4924 = vmatpush1.bf16.msra.mxu0 0
  %4925 = vmatprep.subr.bf16.mxu0 0
  %4926 = vmatpush1.bf16.msra.mxu0 0
  %4927 = vmatprep.subr.bf16.mxu0 0
  %4928 = vmatpush1.bf16.msra.mxu0 0
  %4929 = vmatprep.subr.bf16.mxu0 0
  %4930 = vmatpush1.bf16.msra.mxu0 0
  %4931 = vmatprep.subr.bf16.mxu0 0
  %4932 = vmatpush1.bf16.msra.mxu0 0
  %4933 = vmatprep.subr.bf16.mxu0 0
  %4934 = vmatpush1.bf16.msra.mxu0 0
  %4935 = vmatprep.subr.bf16.mxu0 0
  %4936 = vmatpush1.bf16.msra.mxu0 0
  %4937 = vmatprep.subr.bf16.mxu0 0
  %4938 = vmatpush1.bf16.msra.mxu0 0
  %4939 = vmatprep.subr.bf16.mxu0 0
  %4940 = vmatpush1.bf16.msra.mxu0 0
  %4941 = vmatprep.subr.bf16.mxu0 0
  %4942 = vmatpush1.bf16.msra.mxu0 0
  %4943 = vmatprep.subr.bf16.mxu0 0
  %4944 = vmatpush1.bf16.msra.mxu0 0
  %4945 = vmatprep.subr.bf16.mxu0 0
  %4946 = vmatpush1.bf16.msra.mxu0 0
  %4947 = vmatprep.subr.bf16.mxu0 0
  %4948 = vmatpush1.bf16.msra.mxu0 0
  %4949 = vmatprep.subr.bf16.mxu0 0
  %4950 = vmatpush1.bf16.msra.mxu0 0
  %4951 = vmatprep.subr.bf16.mxu0 0
  %4952 = vmatpush1.bf16.msra.mxu0 0
  %4953 = vmatprep.mubr.bf16.mxu0 0
  %4954 = vmatmul.mubr.bf16.gmra.mrb[0].mxu0 %v4919
  %v4955 = vpop.f32.mrb[0].mxu0
  %v4956 = vadd.f32 %v4916, %v4955
  %v4957 = vpop.f32.mrb[0].mxu0
  %v4958 = vpop.f32.mrb[0].mxu0
  %v4959 = vpop.f32.mrb[0].mxu0
  %4960 = vdwg.mxu0
  %v4961 = vmul.f32 %v4956, 0.5
  %v4962 = vmul.f32 %v4956, 0.044715
  %v4963 = vmul.f32 %v4962, %v4956
  %v4964 = vmul.f32 %v4963, %v4956
  %v4965 = vadd.f32 %v4956, %v4964
  %v4966 = vmul.f32 %v4965, 0.7978846
  %v4967 = vtanh.pop %v4966
  %v4968 = vadd.f32 %v4967, 1.0
  %v4969 = vmul.f32 %v4961, %v4968
  %v4970 = vld [vmem:[%s61] sm:$0xff]
  %v4971 = vld [vmem:[%s61 + $0x8] sm:$0xff]
  %v4972 = vld [vmem:[%s61 + $0x10] sm:$0xff]
  %v4973 = vld [vmem:[%s61 + $0x18] sm:$0xff]
  %v4974 = vld [vmem:[%s63] sm:$0x1]
  %v4976 = vlaneseq
  %v4977 = vshrl.u32 %v4976, 7
  %v4978 = vsub.s32 0, %v4977
  %v4979 = vrot.slane %v4974, %v4978
  %v4982 = vsel %vm1688, %v4969, 0
  %4984 = vmatprep.subr.mxu0 0.0
  %4985 = vmatpush1.msra.mxu0 %v4970
  %4986 = vmatprep.subr.mxu0 0.0
  %4987 = vmatpush1.msra.mxu0 %v4971
  %4988 = vmatprep.subr.mxu0 0.0
  %4989 = vmatpush1.msra.mxu0 %v4972
  %4990 = vmatprep.subr.mxu0 0.0
  %4991 = vmatpush1.msra.mxu0 %v4973
  %4992 = vmatprep.subr.mxu0 0.0
  %4993 = vmatpush1.msra.mxu0 0.0
  %4994 = vmatprep.subr.mxu0 0.0
  %4995 = vmatpush1.msra.mxu0 0.0
  %4996 = vmatprep.subr.mxu0 0.0
  %4997 = vmatpush1.msra.mxu0 0.0
  %4998 = vmatprep.subr.mxu0 0.0
  %4999 = vmatpush1.msra.mxu0 0.0
  %5000 = vmatprep.subr.mxu0 0.0
  %5001 = vmatpush1.msra.mxu0 0.0
  %5002 = vmatprep.subr.mxu0 0.0
  %5003 = vmatpush1.msra.mxu0 0.0
  %5004 = vmatprep.subr.mxu0 0.0
  %5005 = vmatpush1.msra.mxu0 0.0
  %5006 = vmatprep.subr.mxu0 0.0
  %5007 = vmatpush1.msra.mxu0 0.0
  %5008 = vmatprep.subr.mxu0 0.0
  %5009 = vmatpush1.msra.mxu0 0.0
  %5010 = vmatprep.subr.mxu0 0.0
  %5011 = vmatpush1.msra.mxu0 0.0
  %5012 = vmatprep.subr.mxu0 0.0
  %5013 = vmatpush1.msra.mxu0 0.0
  %5014 = vmatprep.subr.mxu0 0.0
  %5015 = vmatpush1.msra.mxu0 0.0
  %5016 = vmatprep.subr.mxu0 0.0
  %5017 = vmatpush1.msra.mxu0 0.0
  %5018 = vmatprep.subr.mxu0 0.0
  %5019 = vmatpush1.msra.mxu0 0.0
  %5020 = vmatprep.subr.mxu0 0.0
  %5021 = vmatpush1.msra.mxu0 0.0
  %5022 = vmatprep.subr.mxu0 0.0
  %5023 = vmatpush1.msra.mxu0 0.0
  %5024 = vmatprep.subr.mxu0 0.0
  %5025 = vmatpush1.msra.mxu0 0.0
  %5026 = vmatprep.subr.mxu0 0.0
  %5027 = vmatpush1.msra.mxu0 0.0
  %5028 = vmatprep.subr.mxu0 0.0
  %5029 = vmatpush1.msra.mxu0 0.0
  %5030 = vmatprep.subr.mxu0 0.0
  %5031 = vmatpush1.msra.mxu0 0.0
  %5032 = vmatprep.subr.mxu0 0.0
  %5033 = vmatpush1.msra.mxu0 0.0
  %5034 = vmatprep.subr.mxu0 0.0
  %5035 = vmatpush1.msra.mxu0 0.0
  %5036 = vmatprep.subr.mxu0 0.0
  %5037 = vmatpush1.msra.mxu0 0.0
  %5038 = vmatprep.subr.mxu0 0.0
  %5039 = vmatpush1.msra.mxu0 0.0
  %5040 = vmatprep.subr.mxu0 0.0
  %5041 = vmatpush1.msra.mxu0 0.0
  %5042 = vmatprep.subr.mxu0 0.0
  %5043 = vmatpush1.msra.mxu0 0.0
  %5044 = vmatprep.subr.mxu0 0.0
  %5045 = vmatpush1.msra.mxu0 0.0
  %5046 = vmatprep.subr.mxu0 0.0
  %5047 = vmatpush1.msra.mxu0 0.0
  %5048 = vmatprep.mubr.f32.mxu0 0.0
  %5049 = vmatmul.mubr.f32.gmra.mrb[0].mxu0 %v4982
  %v5050 = vpop.f32.mrb[0].mxu0
  %v5051 = vadd.f32 %v4979, %v5050
  %v5052 = vpop.f32.mrb[0].mxu0
  %5053 = vdwg.mxu0
  %v5054 = vld [vmem:[%s65] sm:$0xff]
  %v5055 = vld [vmem:[%s65 + $0x8] sm:$0xff]
  %v5056 = vld [vmem:[%s65 + $0x10] sm:$0x1f]
  %vm5057 = vcmask 171008
  %v5059 = vsel %vm5057, %v5051, 0
  %vm5061 = vcmask 1044480
  %v5063 = vsel %vm5061, %v5056, 0
  %5065 = vmatprep.subr.mxu0 0.0
  %5066 = vmatpush1.msra.mxu0 %v5054
  %5067 = vmatprep.subr.mxu0 0.0
  %5068 = vmatpush1.msra.mxu0 %v5055
  %5069 = vmatprep.subr.mxu0 0.0
  %5070 = vmatpush1.msra.mxu0 %v5063
  %5071 = vmatprep.subr.mxu0 0.0
  %5072 = vmatpush1.msra.mxu0 0.0
  %5073 = vmatprep.subr.mxu0 0.0
  %5074 = vmatpush1.msra.mxu0 0.0
  %5075 = vmatprep.subr.mxu0 0.0
  %5076 = vmatpush1.msra.mxu0 0.0
  %5077 = vmatprep.subr.mxu0 0.0
  %5078 = vmatpush1.msra.mxu0 0.0
  %5079 = vmatprep.subr.mxu0 0.0
  %5080 = vmatpush1.msra.mxu0 0.0
  %5081 = vmatprep.subr.mxu0 0.0
  %5082 = vmatpush1.msra.mxu0 0.0
  %5083 = vmatprep.subr.mxu0 0.0
  %5084 = vmatpush1.msra.mxu0 0.0
  %5085 = vmatprep.subr.mxu0 0.0
  %5086 = vmatpush1.msra.mxu0 0.0
  %5087 = vmatprep.subr.mxu0 0.0
  %5088 = vmatpush1.msra.mxu0 0.0
  %5089 = vmatprep.subr.mxu0 0.0
  %5090 = vmatpush1.msra.mxu0 0.0
  %5091 = vmatprep.subr.mxu0 0.0
  %5092 = vmatpush1.msra.mxu0 0.0
  %5093 = vmatprep.subr.mxu0 0.0
  %5094 = vmatpush1.msra.mxu0 0.0
  %5095 = vmatprep.subr.mxu0 0.0
  %5096 = vmatpush1.msra.mxu0 0.0
  %5097 = vmatprep.subr.mxu0 0.0
  %5098 = vmatpush1.msra.mxu0 0.0
  %5099 = vmatprep.subr.mxu0 0.0
  %5100 = vmatpush1.msra.mxu0 0.0
  %5101 = vmatprep.subr.mxu0 0.0
  %5102 = vmatpush1.msra.mxu0 0.0
  %5103 = vmatprep.subr.mxu0 0.0
  %5104 = vmatpush1.msra.mxu0 0.0
  %5105 = vmatprep.subr.mxu0 0.0
  %5106 = vmatpush1.msra.mxu0 0.0
  %5107 = vmatprep.subr.mxu0 0.0
  %5108 = vmatpush1.msra.mxu0 0.0
  %5109 = vmatprep.subr.mxu0 0.0
  %5110 = vmatpush1.msra.mxu0 0.0
  %5111 = vmatprep.subr.mxu0 0.0
  %5112 = vmatpush1.msra.mxu0 0.0
  %5113 = vmatprep.subr.mxu0 0.0
  %5114 = vmatpush1.msra.mxu0 0.0
  %5115 = vmatprep.subr.mxu0 0.0
  %5116 = vmatpush1.msra.mxu0 0.0
  %5117 = vmatprep.subr.mxu0 0.0
  %5118 = vmatpush1.msra.mxu0 0.0
  %5119 = vmatprep.subr.mxu0 0.0
  %5120 = vmatpush1.msra.mxu0 0.0
  %5121 = vmatprep.subr.mxu0 0.0
  %5122 = vmatpush1.msra.mxu0 0.0
  %5123 = vmatprep.subr.mxu0 0.0
  %5124 = vmatpush1.msra.mxu0 0.0
  %5125 = vmatprep.subr.mxu0 0.0
  %5126 = vmatpush1.msra.mxu0 0.0
  %5127 = vmatprep.subr.mxu0 0.0
  %5128 = vmatpush1.msra.mxu0 0.0
  %5129 = vmatprep.mubr.f32.mxu0 0.0
  %5130 = vmatmul.mubr.f32.gmra.mrb[0].mxu0 %v5059
  %v5131 = vpop.f32.mrb[0].mxu0
  %v5132 = vadd.f32 0.0, %v5131
  %v5133 = vpop.f32.mrb[0].mxu0
  %5134 = vdwg.mxu0
  %v5135 = vld [vmem:[%s67] sm:$0x1]
  %vm5136 = vcmp.gt.f32.partialorder %v5135, 0.5
  %v5137 = vmax.f32 %v5132, 0.0
  %v5138 = vand.u32 2147483647, %v5132
  %v5139 = vsub.f32 0.0, %v5138
  %v5140 = vmul.f32 %v5139, 1.442695
  %v5141 = vpow.pop %v5140
  %v5142 = vadd.f32 %v5141, 1.0
  %v5143 = vlog2.pop %v5142
  %v5144 = vmul.f32 %v5143, 0.6931472
  %v5145 = vmul.f32 -0.5, %v5141
  %v5146 = vadd.f32 %v5145, 1.0
  %v5147 = vmul.f32 %v5146, %v5141
  %v5148 = vand.u32 2147483647, %v5141
  %vm5149 = vcmp.lt.f32.partialorder %v5148, 0.0004427343
  %v5150 = vsel %vm5149, %v5147, %v5144
  %v5151 = vadd.f32 %v5137, %v5150
  %v5152 = vadd.f32 %v5151, 1e-06
  %v5153 = vsel %vm5136, 1, 0
  %v5154 = vlaneseq
  %v5155 = vshrl.u32 %v5154, 7
  %v5156 = vsub.s32 0, %v5155
  %v5157 = vrot.slane %v5153, %v5156
  %vm5158 = vcmp.eq.s32.totalorder %v5157, 1
  %v5159 = vsel %vm5158, %v5152, %v5132
  %5161 = vrot.lane.b32.xlu0 %v5159, 122
  %v5162 = vpop.permute.xlu0 %5161
  %5164 = vrot.lane.b32.xlu0 %v5159, 116
  %v5165 = vpop.permute.xlu0 %5164
  %5167 = vrot.lane.b32.xlu0 %v5159, 110
  %v5168 = vpop.permute.xlu0 %5167
  %5170 = vrot.lane.b32.xlu0 %v5159, 104
  %v5171 = vpop.permute.xlu0 %5170
  %5173 = vrot.lane.b32.xlu0 %v5159, 98
  %v5174 = vpop.permute.xlu0 %5173
  %v5176 = vcombine.low %v5159, %v5165
  %v5177 = vcombine.high %v5159, %v5165
  %v5179 = vunpack.c.l.s4 1983009808
  %v5180 = vunpack.c.0.s8 %v5179
  %v5181 = vlaneseq
  %v5182 = vshrl.u32 %v5181, 7
  %v5183 = vsub.s32 %v5180, %v5182
  %v5184 = vrot.slane %v5176, %v5183
  %v5186 = vunpack.c.l.s4 1983009808
  %v5187 = vunpack.c.0.s8 %v5186
  %v5188 = vlaneseq
  %v5189 = vshrl.u32 %v5188, 7
  %v5190 = vsub.s32 %v5187, %v5189
  %v5191 = vrot.slane %v5177, %v5190
  %v5192 = vcombine.low %v5162, %v5168
  %v5193 = vcombine.high %v5162, %v5168
  %v5195 = vunpack.c.l.s4 1983009808
  %v5196 = vunpack.c.0.s8 %v5195
  %v5197 = vlaneseq
  %v5198 = vshrl.u32 %v5197, 7
  %v5199 = vsub.s32 %v5196, %v5198
  %v5200 = vrot.slane %v5192, %v5199
  %v5202 = vunpack.c.l.s4 1983009808
  %v5203 = vunpack.c.0.s8 %v5202
  %v5204 = vlaneseq
  %v5205 = vshrl.u32 %v5204, 7
  %v5206 = vsub.s32 %v5203, %v5205
  %v5207 = vrot.slane %v5193, %v5206
  %v5208 = vcombine.high %v5171, 0.0
  %v5210 = vunpack.c.l.s4 1983009808
  %v5211 = vunpack.c.0.s8 %v5210
  %v5212 = vlaneseq
  %v5213 = vshrl.u32 %v5212, 7
  %v5214 = vsub.s32 %v5211, %v5213
  %v5215 = vrot.slane %v5171, %v5214
  %v5217 = vunpack.c.l.s4 1983009808
  %v5218 = vunpack.c.0.s8 %v5217
  %v5219 = vlaneseq
  %v5220 = vshrl.u32 %v5219, 7
  %v5221 = vsub.s32 %v5218, %v5220
  %v5222 = vrot.slane %v5208, %v5221
  %v5223 = vcombine.high %v5174, 0.0
  %v5225 = vunpack.c.l.s4 1983009808
  %v5226 = vunpack.c.0.s8 %v5225
  %v5227 = vlaneseq
  %v5228 = vshrl.u32 %v5227, 7
  %v5229 = vsub.s32 %v5226, %v5228
  %v5230 = vrot.slane %v5174, %v5229
  %v5232 = vunpack.c.l.s4 1983009808
  %v5233 = vunpack.c.0.s8 %v5232
  %v5234 = vlaneseq
  %v5235 = vshrl.u32 %v5234, 7
  %v5236 = vsub.s32 %v5233, %v5235
  %v5237 = vrot.slane %v5223, %v5236
  %v5238 = vcombine.low %v5184, %v5200
  %v5239 = vcombine.high %v5184, %v5200
  %v5241 = vunpack.c.l.s4 1934713408
  %v5242 = vunpack.c.0.s8 %v5241
  %v5243 = vlaneseq
  %v5244 = vshrl.u32 %v5243, 7
  %v5245 = vsub.s32 %v5242, %v5244
  %v5246 = vrot.slane %v5238, %v5245
  %v5248 = vunpack.c.l.s4 1934713408
  %v5249 = vunpack.c.0.s8 %v5248
  %v5250 = vlaneseq
  %v5251 = vshrl.u32 %v5250, 7
  %v5252 = vsub.s32 %v5249, %v5251
  %v5253 = vrot.slane %v5239, %v5252
  %v5254 = vcombine.low %v5191, %v5207
  %v5255 = vcombine.high %v5191, %v5207
  %v5257 = vunpack.c.l.s4 1934713408
  %v5258 = vunpack.c.0.s8 %v5257
  %v5259 = vlaneseq
  %v5260 = vshrl.u32 %v5259, 7
  %v5261 = vsub.s32 %v5258, %v5260
  %v5262 = vrot.slane %v5254, %v5261
  %v5264 = vunpack.c.l.s4 1934713408
  %v5265 = vunpack.c.0.s8 %v5264
  %v5266 = vlaneseq
  %v5267 = vshrl.u32 %v5266, 7
  %v5268 = vsub.s32 %v5265, %v5267
  %v5269 = vrot.slane %v5255, %v5268
  %v5270 = vcombine.low %v5215, %v5230
  %v5271 = vcombine.high %v5215, %v5230
  %v5273 = vunpack.c.l.s4 1934713408
  %v5274 = vunpack.c.0.s8 %v5273
  %v5275 = vlaneseq
  %v5276 = vshrl.u32 %v5275, 7
  %v5277 = vsub.s32 %v5274, %v5276
  %v5278 = vrot.slane %v5270, %v5277
  %v5280 = vunpack.c.l.s4 1934713408
  %v5281 = vunpack.c.0.s8 %v5280
  %v5282 = vlaneseq
  %v5283 = vshrl.u32 %v5282, 7
  %v5284 = vsub.s32 %v5281, %v5283
  %v5285 = vrot.slane %v5271, %v5284
  %v5286 = vcombine.low %v5222, %v5237
  %v5287 = vcombine.high %v5222, %v5237
  %v5289 = vunpack.c.l.s4 1934713408
  %v5290 = vunpack.c.0.s8 %v5289
  %v5291 = vlaneseq
  %v5292 = vshrl.u32 %v5291, 7
  %v5293 = vsub.s32 %v5290, %v5292
  %v5294 = vrot.slane %v5286, %v5293
  %v5296 = vunpack.c.l.s4 1934713408
  %v5297 = vunpack.c.0.s8 %v5296
  %v5298 = vlaneseq
  %v5299 = vshrl.u32 %v5298, 7
  %v5300 = vsub.s32 %v5297, %v5299
  %v5301 = vrot.slane %v5287, %v5300
  %v5302 = vcombine.low %v5246, %v5278
  %v5303 = vcombine.high %v5246, %v5278
  %v5304 = vcombine.low %v5253, %v5285
  %v5305 = vcombine.high %v5253, %v5285
  %v5306 = vcombine.low %v5262, %v5294
  %v5307 = vcombine.high %v5262, %v5294
  %v5308 = vcombine.low %v5269, %v5301
  %v5309 = vcombine.high %v5269, %v5301
  %vm5310 = vcmask 48128
  %v5312 = vsel %vm5310, %v5302, 0
  %5314 = vmatprep.subr.mxu0 0.0
  %5315 = vmatpush1.xpose.msra.mxu0 %v5312
  %5316 = vmatprep.subr.mxu0 0.0
  %5317 = vmatpush1.xpose.msra.mxu0 0.0
  %5318 = vmatprep.subr.mxu0 0.0
  %5319 = vmatpush1.xpose.msra.mxu0 0.0
  %5320 = vmatprep.subr.mxu0 0.0
  %5321 = vmatpush1.xpose.msra.mxu0 0.0
  %5322 = vmatprep.subr.mxu0 0.0
  %5323 = vmatpush1.xpose.msra.mxu0 0.0
  %5324 = vmatprep.subr.mxu0 0.0
  %5325 = vmatpush1.xpose.msra.mxu0 0.0
  %5326 = vmatprep.subr.mxu0 0.0
  %5327 = vmatpush1.xpose.msra.mxu0 0.0
  %5328 = vmatprep.subr.mxu0 0.0
  %5329 = vmatpush1.xpose.msra.mxu0 0.0
  %5330 = vmatprep.subr.mxu0 0.0
  %5331 = vmatpush1.xpose.msra.mxu0 0.0
  %5332 = vmatprep.subr.mxu0 0.0
  %5333 = vmatpush1.xpose.msra.mxu0 0.0
  %5334 = vmatprep.subr.mxu0 0.0
  %5335 = vmatpush1.xpose.msra.mxu0 0.0
  %5336 = vmatprep.subr.mxu0 0.0
  %5337 = vmatpush1.xpose.msra.mxu0 0.0
  %5338 = vmatprep.subr.mxu0 0.0
  %5339 = vmatpush1.xpose.msra.mxu0 0.0
  %5340 = vmatprep.subr.mxu0 0.0
  %5341 = vmatpush1.xpose.msra.mxu0 0.0
  %5342 = vmatprep.subr.mxu0 0.0
  %5343 = vmatpush1.xpose.msra.mxu0 0.0
  %5344 = vmatprep.subr.mxu0 0.0
  %5345 = vmatpush1.xpose.msra.mxu0 0.0
  %5346 = vmatprep.subr.mxu0 0.0
  %5347 = vmatpush1.xpose.msra.mxu0 0.0
  %5348 = vmatprep.subr.mxu0 0.0
  %5349 = vmatpush1.xpose.msra.mxu0 0.0
  %5350 = vmatprep.subr.mxu0 0.0
  %5351 = vmatpush1.xpose.msra.mxu0 0.0
  %5352 = vmatprep.subr.mxu0 0.0
  %5353 = vmatpush1.xpose.msra.mxu0 0.0
  %5354 = vmatprep.subr.mxu0 0.0
  %5355 = vmatpush1.xpose.msra.mxu0 0.0
  %5356 = vmatprep.subr.mxu0 0.0
  %5357 = vmatpush1.xpose.msra.mxu0 0.0
  %5358 = vmatprep.subr.mxu0 0.0
  %5359 = vmatpush1.xpose.msra.mxu0 0.0
  %5360 = vmatprep.subr.mxu0 0.0
  %5361 = vmatpush1.xpose.msra.mxu0 0.0
  %5362 = vmatprep.subr.mxu0 0.0
  %5363 = vmatpush1.xpose.msra.mxu0 0.0
  %5364 = vmatprep.subr.mxu0 0.0
  %5365 = vmatpush1.xpose.msra.mxu0 0.0
  %5366 = vmatprep.subr.mxu0 0.0
  %5367 = vmatpush1.xpose.msra.mxu0 0.0
  %5368 = vmatprep.subr.mxu0 0.0
  %5369 = vmatpush1.xpose.msra.mxu0 0.0
  %5370 = vmatprep.subr.mxu0 0.0
  %5371 = vmatpush1.xpose.msra.mxu0 0.0
  %5372 = vmatprep.subr.mxu0 0.0
  %5373 = vmatpush1.xpose.msra.mxu0 0.0
  %5374 = vmatprep.subr.mxu0 0.0
  %5375 = vmatpush1.xpose.msra.mxu0 0.0
  %5376 = vmatprep.subr.mxu0 0.0
  %5377 = vmatpush1.xpose.msra.mxu0 0.0
  %5378 = vmatprep.mubr.f32.mxu0 0.0
  %5379 = vmatmul.mubr.f32.gmra.mrb[0].mxu0 %v5312
  %v5380 = vpop.f32.mrb[0].mxu0
  %v5381 = vadd.f32 0.0, %v5380
  %v5382 = vpop.f32.mrb[0].mxu0
  %5383 = vdwg.mxu0
  %v5385 = vsel %vm5310, %v5303, 0
  %5387 = vmatprep.subr.mxu0 0.0
  %5388 = vmatpush1.xpose.msra.mxu0 %v5385
  %5389 = vmatprep.subr.mxu0 0.0
  %5390 = vmatpush1.xpose.msra.mxu0 0.0
  %5391 = vmatprep.subr.mxu0 0.0
  %5392 = vmatpush1.xpose.msra.mxu0 0.0
  %5393 = vmatprep.subr.mxu0 0.0
  %5394 = vmatpush1.xpose.msra.mxu0 0.0
  %5395 = vmatprep.subr.mxu0 0.0
  %5396 = vmatpush1.xpose.msra.mxu0 0.0
  %5397 = vmatprep.subr.mxu0 0.0
  %5398 = vmatpush1.xpose.msra.mxu0 0.0
  %5399 = vmatprep.subr.mxu0 0.0
  %5400 = vmatpush1.xpose.msra.mxu0 0.0
  %5401 = vmatprep.subr.mxu0 0.0
  %5402 = vmatpush1.xpose.msra.mxu0 0.0
  %5403 = vmatprep.subr.mxu0 0.0
  %5404 = vmatpush1.xpose.msra.mxu0 0.0
  %5405 = vmatprep.subr.mxu0 0.0
  %5406 = vmatpush1.xpose.msra.mxu0 0.0
  %5407 = vmatprep.subr.mxu0 0.0
  %5408 = vmatpush1.xpose.msra.mxu0 0.0
  %5409 = vmatprep.subr.mxu0 0.0
  %5410 = vmatpush1.xpose.msra.mxu0 0.0
  %5411 = vmatprep.subr.mxu0 0.0
  %5412 = vmatpush1.xpose.msra.mxu0 0.0
  %5413 = vmatprep.subr.mxu0 0.0
  %5414 = vmatpush1.xpose.msra.mxu0 0.0
  %5415 = vmatprep.subr.mxu0 0.0
  %5416 = vmatpush1.xpose.msra.mxu0 0.0
  %5417 = vmatprep.subr.mxu0 0.0
  %5418 = vmatpush1.xpose.msra.mxu0 0.0
  %5419 = vmatprep.subr.mxu0 0.0
  %5420 = vmatpush1.xpose.msra.mxu0 0.0
  %5421 = vmatprep.subr.mxu0 0.0
  %5422 = vmatpush1.xpose.msra.mxu0 0.0
  %5423 = vmatprep.subr.mxu0 0.0
  %5424 = vmatpush1.xpose.msra.mxu0 0.0
  %5425 = vmatprep.subr.mxu0 0.0
  %5426 = vmatpush1.xpose.msra.mxu0 0.0
  %5427 = vmatprep.subr.mxu0 0.0
  %5428 = vmatpush1.xpose.msra.mxu0 0.0
  %5429 = vmatprep.subr.mxu0 0.0
  %5430 = vmatpush1.xpose.msra.mxu0 0.0
  %5431 = vmatprep.subr.mxu0 0.0
  %5432 = vmatpush1.xpose.msra.mxu0 0.0
  %5433 = vmatprep.subr.mxu0 0.0
  %5434 = vmatpush1.xpose.msra.mxu0 0.0
  %5435 = vmatprep.subr.mxu0 0.0
  %5436 = vmatpush1.xpose.msra.mxu0 0.0
  %5437 = vmatprep.subr.mxu0 0.0
  %5438 = vmatpush1.xpose.msra.mxu0 0.0
  %5439 = vmatprep.subr.mxu0 0.0
  %5440 = vmatpush1.xpose.msra.mxu0 0.0
  %5441 = vmatprep.subr.mxu0 0.0
  %5442 = vmatpush1.xpose.msra.mxu0 0.0
  %5443 = vmatprep.subr.mxu0 0.0
  %5444 = vmatpush1.xpose.msra.mxu0 0.0
  %5445 = vmatprep.subr.mxu0 0.0
  %5446 = vmatpush1.xpose.msra.mxu0 0.0
  %5447 = vmatprep.subr.mxu0 0.0
  %5448 = vmatpush1.xpose.msra.mxu0 0.0
  %5449 = vmatprep.subr.mxu0 0.0
  %5450 = vmatpush1.xpose.msra.mxu0 0.0
  %5451 = vmatprep.mubr.f32.mxu0 0.0
  %5452 = vmatmul.mubr.f32.gmra.mrb[0].mxu0 %v5385
  %v5453 = vpop.f32.mrb[0].mxu0
  %v5454 = vadd.f32 0.0, %v5453
  %v5455 = vpop.f32.mrb[0].mxu0
  %5456 = vdwg.mxu0
  %v5458 = vsel %vm5310, %v5304, 0
  %5460 = vmatprep.subr.mxu0 0.0
  %5461 = vmatpush1.xpose.msra.mxu0 %v5458
  %5462 = vmatprep.subr.mxu0 0.0
  %5463 = vmatpush1.xpose.msra.mxu0 0.0
  %5464 = vmatprep.subr.mxu0 0.0
  %5465 = vmatpush1.xpose.msra.mxu0 0.0
  %5466 = vmatprep.subr.mxu0 0.0
  %5467 = vmatpush1.xpose.msra.mxu0 0.0
  %5468 = vmatprep.subr.mxu0 0.0
  %5469 = vmatpush1.xpose.msra.mxu0 0.0
  %5470 = vmatprep.subr.mxu0 0.0
  %5471 = vmatpush1.xpose.msra.mxu0 0.0
  %5472 = vmatprep.subr.mxu0 0.0
  %5473 = vmatpush1.xpose.msra.mxu0 0.0
  %5474 = vmatprep.subr.mxu0 0.0
  %5475 = vmatpush1.xpose.msra.mxu0 0.0
  %5476 = vmatprep.subr.mxu0 0.0
  %5477 = vmatpush1.xpose.msra.mxu0 0.0
  %5478 = vmatprep.subr.mxu0 0.0
  %5479 = vmatpush1.xpose.msra.mxu0 0.0
  %5480 = vmatprep.subr.mxu0 0.0
  %5481 = vmatpush1.xpose.msra.mxu0 0.0
  %5482 = vmatprep.subr.mxu0 0.0
  %5483 = vmatpush1.xpose.msra.mxu0 0.0
  %5484 = vmatprep.subr.mxu0 0.0
  %5485 = vmatpush1.xpose.msra.mxu0 0.0
  %5486 = vmatprep.subr.mxu0 0.0
  %5487 = vmatpush1.xpose.msra.mxu0 0.0
  %5488 = vmatprep.subr.mxu0 0.0
  %5489 = vmatpush1.xpose.msra.mxu0 0.0
  %5490 = vmatprep.subr.mxu0 0.0
  %5491 = vmatpush1.xpose.msra.mxu0 0.0
  %5492 = vmatprep.subr.mxu0 0.0
  %5493 = vmatpush1.xpose.msra.mxu0 0.0
  %5494 = vmatprep.subr.mxu0 0.0
  %5495 = vmatpush1.xpose.msra.mxu0 0.0
  %5496 = vmatprep.subr.mxu0 0.0
  %5497 = vmatpush1.xpose.msra.mxu0 0.0
  %5498 = vmatprep.subr.mxu0 0.0
  %5499 = vmatpush1.xpose.msra.mxu0 0.0
  %5500 = vmatprep.subr.mxu0 0.0
  %5501 = vmatpush1.xpose.msra.mxu0 0.0
  %5502 = vmatprep.subr.mxu0 0.0
  %5503 = vmatpush1.xpose.msra.mxu0 0.0
  %5504 = vmatprep.subr.mxu0 0.0
  %5505 = vmatpush1.xpose.msra.mxu0 0.0
  %5506 = vmatprep.subr.mxu0 0.0
  %5507 = vmatpush1.xpose.msra.mxu0 0.0
  %5508 = vmatprep.subr.mxu0 0.0
  %5509 = vmatpush1.xpose.msra.mxu0 0.0
  %5510 = vmatprep.subr.mxu0 0.0
  %5511 = vmatpush1.xpose.msra.mxu0 0.0
  %5512 = vmatprep.subr.mxu0 0.0
  %5513 = vmatpush1.xpose.msra.mxu0 0.0
  %5514 = vmatprep.subr.mxu0 0.0
  %5515 = vmatpush1.xpose.msra.mxu0 0.0
  %5516 = vmatprep.subr.mxu0 0.0
  %5517 = vmatpush1.xpose.msra.mxu0 0.0
  %5518 = vmatprep.subr.mxu0 0.0
  %5519 = vmatpush1.xpose.msra.mxu0 0.0
  %5520 = vmatprep.subr.mxu0 0.0
  %5521 = vmatpush1.xpose.msra.mxu0 0.0
  %5522 = vmatprep.subr.mxu0 0.0
  %5523 = vmatpush1.xpose.msra.mxu0 0.0
  %5524 = vmatprep.mubr.f32.mxu0 0.0
  %5525 = vmatmul.mubr.f32.gmra.mrb[0].mxu0 %v5458
  %v5526 = vpop.f32.mrb[0].mxu0
  %v5527 = vadd.f32 0.0, %v5526
  %v5528 = vpop.f32.mrb[0].mxu0
  %5529 = vdwg.mxu0
  %v5531 = vsel %vm5310, %v5305, 0
  %5533 = vmatprep.subr.mxu0 0.0
  %5534 = vmatpush1.xpose.msra.mxu0 %v5531
  %5535 = vmatprep.subr.mxu0 0.0
  %5536 = vmatpush1.xpose.msra.mxu0 0.0
  %5537 = vmatprep.subr.mxu0 0.0
  %5538 = vmatpush1.xpose.msra.mxu0 0.0
  %5539 = vmatprep.subr.mxu0 0.0
  %5540 = vmatpush1.xpose.msra.mxu0 0.0
  %5541 = vmatprep.subr.mxu0 0.0
  %5542 = vmatpush1.xpose.msra.mxu0 0.0
  %5543 = vmatprep.subr.mxu0 0.0
  %5544 = vmatpush1.xpose.msra.mxu0 0.0
  %5545 = vmatprep.subr.mxu0 0.0
  %5546 = vmatpush1.xpose.msra.mxu0 0.0
  %5547 = vmatprep.subr.mxu0 0.0
  %5548 = vmatpush1.xpose.msra.mxu0 0.0
  %5549 = vmatprep.subr.mxu0 0.0
  %5550 = vmatpush1.xpose.msra.mxu0 0.0
  %5551 = vmatprep.subr.mxu0 0.0
  %5552 = vmatpush1.xpose.msra.mxu0 0.0
  %5553 = vmatprep.subr.mxu0 0.0
  %5554 = vmatpush1.xpose.msra.mxu0 0.0
  %5555 = vmatprep.subr.mxu0 0.0
  %5556 = vmatpush1.xpose.msra.mxu0 0.0
  %5557 = vmatprep.subr.mxu0 0.0
  %5558 = vmatpush1.xpose.msra.mxu0 0.0
  %5559 = vmatprep.subr.mxu0 0.0
  %5560 = vmatpush1.xpose.msra.mxu0 0.0
  %5561 = vmatprep.subr.mxu0 0.0
  %5562 = vmatpush1.xpose.msra.mxu0 0.0
  %5563 = vmatprep.subr.mxu0 0.0
  %5564 = vmatpush1.xpose.msra.mxu0 0.0
  %5565 = vmatprep.subr.mxu0 0.0
  %5566 = vmatpush1.xpose.msra.mxu0 0.0
  %5567 = vmatprep.subr.mxu0 0.0
  %5568 = vmatpush1.xpose.msra.mxu0 0.0
  %5569 = vmatprep.subr.mxu0 0.0
  %5570 = vmatpush1.xpose.msra.mxu0 0.0
  %5571 = vmatprep.subr.mxu0 0.0
  %5572 = vmatpush1.xpose.msra.mxu0 0.0
  %5573 = vmatprep.subr.mxu0 0.0
  %5574 = vmatpush1.xpose.msra.mxu0 0.0
  %5575 = vmatprep.subr.mxu0 0.0
  %5576 = vmatpush1.xpose.msra.mxu0 0.0
  %5577 = vmatprep.subr.mxu0 0.0
  %5578 = vmatpush1.xpose.msra.mxu0 0.0
  %5579 = vmatprep.subr.mxu0 0.0
  %5580 = vmatpush1.xpose.msra.mxu0 0.0
  %5581 = vmatprep.subr.mxu0 0.0
  %5582 = vmatpush1.xpose.msra.mxu0 0.0
  %5583 = vmatprep.subr.mxu0 0.0
  %5584 = vmatpush1.xpose.msra.mxu0 0.0
  %5585 = vmatprep.subr.mxu0 0.0
  %5586 = vmatpush1.xpose.msra.mxu0 0.0
  %5587 = vmatprep.subr.mxu0 0.0
  %5588 = vmatpush1.xpose.msra.mxu0 0.0
  %5589 = vmatprep.subr.mxu0 0.0
  %5590 = vmatpush1.xpose.msra.mxu0 0.0
  %5591 = vmatprep.subr.mxu0 0.0
  %5592 = vmatpush1.xpose.msra.mxu0 0.0
  %5593 = vmatprep.subr.mxu0 0.0
  %5594 = vmatpush1.xpose.msra.mxu0 0.0
  %5595 = vmatprep.subr.mxu0 0.0
  %5596 = vmatpush1.xpose.msra.mxu0 0.0
  %5597 = vmatprep.mubr.f32.mxu0 0.0
  %5598 = vmatmul.mubr.f32.gmra.mrb[0].mxu0 %v5531
  %v5599 = vpop.f32.mrb[0].mxu0
  %v5600 = vadd.f32 0.0, %v5599
  %v5601 = vpop.f32.mrb[0].mxu0
  %5602 = vdwg.mxu0
  %v5604 = vsel %vm5310, %v5306, 0
  %5606 = vmatprep.subr.mxu0 0.0
  %5607 = vmatpush1.xpose.msra.mxu0 %v5604
  %5608 = vmatprep.subr.mxu0 0.0
  %5609 = vmatpush1.xpose.msra.mxu0 0.0
  %5610 = vmatprep.subr.mxu0 0.0
  %5611 = vmatpush1.xpose.msra.mxu0 0.0
  %5612 = vmatprep.subr.mxu0 0.0
  %5613 = vmatpush1.xpose.msra.mxu0 0.0
  %5614 = vmatprep.subr.mxu0 0.0
  %5615 = vmatpush1.xpose.msra.mxu0 0.0
  %5616 = vmatprep.subr.mxu0 0.0
  %5617 = vmatpush1.xpose.msra.mxu0 0.0
  %5618 = vmatprep.subr.mxu0 0.0
  %5619 = vmatpush1.xpose.msra.mxu0 0.0
  %5620 = vmatprep.subr.mxu0 0.0
  %5621 = vmatpush1.xpose.msra.mxu0 0.0
  %5622 = vmatprep.subr.mxu0 0.0
  %5623 = vmatpush1.xpose.msra.mxu0 0.0
  %5624 = vmatprep.subr.mxu0 0.0
  %5625 = vmatpush1.xpose.msra.mxu0 0.0
  %5626 = vmatprep.subr.mxu0 0.0
  %5627 = vmatpush1.xpose.msra.mxu0 0.0
  %5628 = vmatprep.subr.mxu0 0.0
  %5629 = vmatpush1.xpose.msra.mxu0 0.0
  %5630 = vmatprep.subr.mxu0 0.0
  %5631 = vmatpush1.xpose.msra.mxu0 0.0
  %5632 = vmatprep.subr.mxu0 0.0
  %5633 = vmatpush1.xpose.msra.mxu0 0.0
  %5634 = vmatprep.subr.mxu0 0.0
  %5635 = vmatpush1.xpose.msra.mxu0 0.0
  %5636 = vmatprep.subr.mxu0 0.0
  %5637 = vmatpush1.xpose.msra.mxu0 0.0
  %5638 = vmatprep.subr.mxu0 0.0
  %5639 = vmatpush1.xpose.msra.mxu0 0.0
  %5640 = vmatprep.subr.mxu0 0.0
  %5641 = vmatpush1.xpose.msra.mxu0 0.0
  %5642 = vmatprep.subr.mxu0 0.0
  %5643 = vmatpush1.xpose.msra.mxu0 0.0
  %5644 = vmatprep.subr.mxu0 0.0
  %5645 = vmatpush1.xpose.msra.mxu0 0.0
  %5646 = vmatprep.subr.mxu0 0.0
  %5647 = vmatpush1.xpose.msra.mxu0 0.0
  %5648 = vmatprep.subr.mxu0 0.0
  %5649 = vmatpush1.xpose.msra.mxu0 0.0
  %5650 = vmatprep.subr.mxu0 0.0
  %5651 = vmatpush1.xpose.msra.mxu0 0.0
  %5652 = vmatprep.subr.mxu0 0.0
  %5653 = vmatpush1.xpose.msra.mxu0 0.0
  %5654 = vmatprep.subr.mxu0 0.0
  %5655 = vmatpush1.xpose.msra.mxu0 0.0
  %5656 = vmatprep.subr.mxu0 0.0
  %5657 = vmatpush1.xpose.msra.mxu0 0.0
  %5658 = vmatprep.subr.mxu0 0.0
  %5659 = vmatpush1.xpose.msra.mxu0 0.0
  %5660 = vmatprep.subr.mxu0 0.0
  %5661 = vmatpush1.xpose.msra.mxu0 0.0
  %5662 = vmatprep.subr.mxu0 0.0
  %5663 = vmatpush1.xpose.msra.mxu0 0.0
  %5664 = vmatprep.subr.mxu0 0.0
  %5665 = vmatpush1.xpose.msra.mxu0 0.0
  %5666 = vmatprep.subr.mxu0 0.0
  %5667 = vmatpush1.xpose.msra.mxu0 0.0
  %5668 = vmatprep.subr.mxu0 0.0
  %5669 = vmatpush1.xpose.msra.mxu0 0.0
  %5670 = vmatprep.mubr.f32.mxu0 0.0
  %5671 = vmatmul.mubr.f32.gmra.mrb[0].mxu0 %v5604
  %v5672 = vpop.f32.mrb[0].mxu0
  %v5673 = vadd.f32 0.0, %v5672
  %v5674 = vpop.f32.mrb[0].mxu0
  %5675 = vdwg.mxu0
  %v5677 = vsel %vm5310, %v5307, 0
  %5679 = vmatprep.subr.mxu0 0.0
  %5680 = vmatpush1.xpose.msra.mxu0 %v5677
  %5681 = vmatprep.subr.mxu0 0.0
  %5682 = vmatpush1.xpose.msra.mxu0 0.0
  %5683 = vmatprep.subr.mxu0 0.0
  %5684 = vmatpush1.xpose.msra.mxu0 0.0
  %5685 = vmatprep.subr.mxu0 0.0
  %5686 = vmatpush1.xpose.msra.mxu0 0.0
  %5687 = vmatprep.subr.mxu0 0.0
  %5688 = vmatpush1.xpose.msra.mxu0 0.0
  %5689 = vmatprep.subr.mxu0 0.0
  %5690 = vmatpush1.xpose.msra.mxu0 0.0
  %5691 = vmatprep.subr.mxu0 0.0
  %5692 = vmatpush1.xpose.msra.mxu0 0.0
  %5693 = vmatprep.subr.mxu0 0.0
  %5694 = vmatpush1.xpose.msra.mxu0 0.0
  %5695 = vmatprep.subr.mxu0 0.0
  %5696 = vmatpush1.xpose.msra.mxu0 0.0
  %5697 = vmatprep.subr.mxu0 0.0
  %5698 = vmatpush1.xpose.msra.mxu0 0.0
  %5699 = vmatprep.subr.mxu0 0.0
  %5700 = vmatpush1.xpose.msra.mxu0 0.0
  %5701 = vmatprep.subr.mxu0 0.0
  %5702 = vmatpush1.xpose.msra.mxu0 0.0
  %5703 = vmatprep.subr.mxu0 0.0
  %5704 = vmatpush1.xpose.msra.mxu0 0.0
  %5705 = vmatprep.subr.mxu0 0.0
  %5706 = vmatpush1.xpose.msra.mxu0 0.0
  %5707 = vmatprep.subr.mxu0 0.0
  %5708 = vmatpush1.xpose.msra.mxu0 0.0
  %5709 = vmatprep.subr.mxu0 0.0
  %5710 = vmatpush1.xpose.msra.mxu0 0.0
  %5711 = vmatprep.subr.mxu0 0.0
  %5712 = vmatpush1.xpose.msra.mxu0 0.0
  %5713 = vmatprep.subr.mxu0 0.0
  %5714 = vmatpush1.xpose.msra.mxu0 0.0
  %5715 = vmatprep.subr.mxu0 0.0
  %5716 = vmatpush1.xpose.msra.mxu0 0.0
  %5717 = vmatprep.subr.mxu0 0.0
  %5718 = vmatpush1.xpose.msra.mxu0 0.0
  %5719 = vmatprep.subr.mxu0 0.0
  %5720 = vmatpush1.xpose.msra.mxu0 0.0
  %5721 = vmatprep.subr.mxu0 0.0
  %5722 = vmatpush1.xpose.msra.mxu0 0.0
  %5723 = vmatprep.subr.mxu0 0.0
  %5724 = vmatpush1.xpose.msra.mxu0 0.0
  %5725 = vmatprep.subr.mxu0 0.0
  %5726 = vmatpush1.xpose.msra.mxu0 0.0
  %5727 = vmatprep.subr.mxu0 0.0
  %5728 = vmatpush1.xpose.msra.mxu0 0.0
  %5729 = vmatprep.subr.mxu0 0.0
  %5730 = vmatpush1.xpose.msra.mxu0 0.0
  %5731 = vmatprep.subr.mxu0 0.0
  %5732 = vmatpush1.xpose.msra.mxu0 0.0
  %5733 = vmatprep.subr.mxu0 0.0
  %5734 = vmatpush1.xpose.msra.mxu0 0.0
  %5735 = vmatprep.subr.mxu0 0.0
  %5736 = vmatpush1.xpose.msra.mxu0 0.0
  %5737 = vmatprep.subr.mxu0 0.0
  %5738 = vmatpush1.xpose.msra.mxu0 0.0
  %5739 = vmatprep.subr.mxu0 0.0
  %5740 = vmatpush1.xpose.msra.mxu0 0.0
  %5741 = vmatprep.subr.mxu0 0.0
  %5742 = vmatpush1.xpose.msra.mxu0 0.0
  %5743 = vmatprep.mubr.f32.mxu0 0.0
  %5744 = vmatmul.mubr.f32.gmra.mrb[0].mxu0 %v5677
  %v5745 = vpop.f32.mrb[0].mxu0
  %v5746 = vadd.f32 0.0, %v5745
  %v5747 = vpop.f32.mrb[0].mxu0
  %5748 = vdwg.mxu0
  %v5750 = vsel %vm5310, %v5308, 0
  %5752 = vmatprep.subr.mxu0 0.0
  %5753 = vmatpush1.xpose.msra.mxu0 %v5750
  %5754 = vmatprep.subr.mxu0 0.0
  %5755 = vmatpush1.xpose.msra.mxu0 0.0
  %5756 = vmatprep.subr.mxu0 0.0
  %5757 = vmatpush1.xpose.msra.mxu0 0.0
  %5758 = vmatprep.subr.mxu0 0.0
  %5759 = vmatpush1.xpose.msra.mxu0 0.0
  %5760 = vmatprep.subr.mxu0 0.0
  %5761 = vmatpush1.xpose.msra.mxu0 0.0
  %5762 = vmatprep.subr.mxu0 0.0
  %5763 = vmatpush1.xpose.msra.mxu0 0.0
  %5764 = vmatprep.subr.mxu0 0.0
  %5765 = vmatpush1.xpose.msra.mxu0 0.0
  %5766 = vmatprep.subr.mxu0 0.0
  %5767 = vmatpush1.xpose.msra.mxu0 0.0
  %5768 = vmatprep.subr.mxu0 0.0
  %5769 = vmatpush1.xpose.msra.mxu0 0.0
  %5770 = vmatprep.subr.mxu0 0.0
  %5771 = vmatpush1.xpose.msra.mxu0 0.0
  %5772 = vmatprep.subr.mxu0 0.0
  %5773 = vmatpush1.xpose.msra.mxu0 0.0
  %5774 = vmatprep.subr.mxu0 0.0
  %5775 = vmatpush1.xpose.msra.mxu0 0.0
  %5776 = vmatprep.subr.mxu0 0.0
  %5777 = vmatpush1.xpose.msra.mxu0 0.0
  %5778 = vmatprep.subr.mxu0 0.0
  %5779 = vmatpush1.xpose.msra.mxu0 0.0
  %5780 = vmatprep.subr.mxu0 0.0
  %5781 = vmatpush1.xpose.msra.mxu0 0.0
  %5782 = vmatprep.subr.mxu0 0.0
  %5783 = vmatpush1.xpose.msra.mxu0 0.0
  %5784 = vmatprep.subr.mxu0 0.0
  %5785 = vmatpush1.xpose.msra.mxu0 0.0
  %5786 = vmatprep.subr.mxu0 0.0
  %5787 = vmatpush1.xpose.msra.mxu0 0.0
  %5788 = vmatprep.subr.mxu0 0.0
  %5789 = vmatpush1.xpose.msra.mxu0 0.0
  %5790 = vmatprep.subr.mxu0 0.0
  %5791 = vmatpush1.xpose.msra.mxu0 0.0
  %5792 = vmatprep.subr.mxu0 0.0
  %5793 = vmatpush1.xpose.msra.mxu0 0.0
  %5794 = vmatprep.subr.mxu0 0.0
  %5795 = vmatpush1.xpose.msra.mxu0 0.0
  %5796 = vmatprep.subr.mxu0 0.0
  %5797 = vmatpush1.xpose.msra.mxu0 0.0
  %5798 = vmatprep.subr.mxu0 0.0
  %5799 = vmatpush1.xpose.msra.mxu0 0.0
  %5800 = vmatprep.subr.mxu0 0.0
  %5801 = vmatpush1.xpose.msra.mxu0 0.0
  %5802 = vmatprep.subr.mxu0 0.0
  %5803 = vmatpush1.xpose.msra.mxu0 0.0
  %5804 = vmatprep.subr.mxu0 0.0
  %5805 = vmatpush1.xpose.msra.mxu0 0.0
  %5806 = vmatprep.subr.mxu0 0.0
  %5807 = vmatpush1.xpose.msra.mxu0 0.0
  %5808 = vmatprep.subr.mxu0 0.0
  %5809 = vmatpush1.xpose.msra.mxu0 0.0
  %5810 = vmatprep.subr.mxu0 0.0
  %5811 = vmatpush1.xpose.msra.mxu0 0.0
  %5812 = vmatprep.subr.mxu0 0.0
  %5813 = vmatpush1.xpose.msra.mxu0 0.0
  %5814 = vmatprep.subr.mxu0 0.0
  %5815 = vmatpush1.xpose.msra.mxu0 0.0
  %5816 = vmatprep.mubr.f32.mxu0 0.0
  %5817 = vmatmul.mubr.f32.gmra.mrb[0].mxu0 %v5750
  %v5818 = vpop.f32.mrb[0].mxu0
  %v5819 = vadd.f32 0.0, %v5818
  %v5820 = vpop.f32.mrb[0].mxu0
  %5821 = vdwg.mxu0
  %v5823 = vsel %vm5310, %v5309, 0
  %5825 = vmatprep.subr.mxu0 0.0
  %5826 = vmatpush1.xpose.msra.mxu0 %v5823
  %5827 = vmatprep.subr.mxu0 0.0
  %5828 = vmatpush1.xpose.msra.mxu0 0.0
  %5829 = vmatprep.subr.mxu0 0.0
  %5830 = vmatpush1.xpose.msra.mxu0 0.0
  %5831 = vmatprep.subr.mxu0 0.0
  %5832 = vmatpush1.xpose.msra.mxu0 0.0
  %5833 = vmatprep.subr.mxu0 0.0
  %5834 = vmatpush1.xpose.msra.mxu0 0.0
  %5835 = vmatprep.subr.mxu0 0.0
  %5836 = vmatpush1.xpose.msra.mxu0 0.0
  %5837 = vmatprep.subr.mxu0 0.0
  %5838 = vmatpush1.xpose.msra.mxu0 0.0
  %5839 = vmatprep.subr.mxu0 0.0
  %5840 = vmatpush1.xpose.msra.mxu0 0.0
  %5841 = vmatprep.subr.mxu0 0.0
  %5842 = vmatpush1.xpose.msra.mxu0 0.0
  %5843 = vmatprep.subr.mxu0 0.0
  %5844 = vmatpush1.xpose.msra.mxu0 0.0
  %5845 = vmatprep.subr.mxu0 0.0
  %5846 = vmatpush1.xpose.msra.mxu0 0.0
  %5847 = vmatprep.subr.mxu0 0.0
  %5848 = vmatpush1.xpose.msra.mxu0 0.0
  %5849 = vmatprep.subr.mxu0 0.0
  %5850 = vmatpush1.xpose.msra.mxu0 0.0
  %5851 = vmatprep.subr.mxu0 0.0
  %5852 = vmatpush1.xpose.msra.mxu0 0.0
  %5853 = vmatprep.subr.mxu0 0.0
  %5854 = vmatpush1.xpose.msra.mxu0 0.0
  %5855 = vmatprep.subr.mxu0 0.0
  %5856 = vmatpush1.xpose.msra.mxu0 0.0
  %5857 = vmatprep.subr.mxu0 0.0
  %5858 = vmatpush1.xpose.msra.mxu0 0.0
  %5859 = vmatprep.subr.mxu0 0.0
  %5860 = vmatpush1.xpose.msra.mxu0 0.0
  %5861 = vmatprep.subr.mxu0 0.0
  %5862 = vmatpush1.xpose.msra.mxu0 0.0
  %5863 = vmatprep.subr.mxu0 0.0
  %5864 = vmatpush1.xpose.msra.mxu0 0.0
  %5865 = vmatprep.subr.mxu0 0.0
  %5866 = vmatpush1.xpose.msra.mxu0 0.0
  %5867 = vmatprep.subr.mxu0 0.0
  %5868 = vmatpush1.xpose.msra.mxu0 0.0
  %5869 = vmatprep.subr.mxu0 0.0
  %5870 = vmatpush1.xpose.msra.mxu0 0.0
  %5871 = vmatprep.subr.mxu0 0.0
  %5872 = vmatpush1.xpose.msra.mxu0 0.0
  %5873 = vmatprep.subr.mxu0 0.0
  %5874 = vmatpush1.xpose.msra.mxu0 0.0
  %5875 = vmatprep.subr.mxu0 0.0
  %5876 = vmatpush1.xpose.msra.mxu0 0.0
  %5877 = vmatprep.subr.mxu0 0.0
  %5878 = vmatpush1.xpose.msra.mxu0 0.0
  %5879 = vmatprep.subr.mxu0 0.0
  %5880 = vmatpush1.xpose.msra.mxu0 0.0
  %5881 = vmatprep.subr.mxu0 0.0
  %5882 = vmatpush1.xpose.msra.mxu0 0.0
  %5883 = vmatprep.subr.mxu0 0.0
  %5884 = vmatpush1.xpose.msra.mxu0 0.0
  %5885 = vmatprep.subr.mxu0 0.0
  %5886 = vmatpush1.xpose.msra.mxu0 0.0
  %5887 = vmatprep.subr.mxu0 0.0
  %5888 = vmatpush1.xpose.msra.mxu0 0.0
  %5889 = vmatprep.mubr.f32.mxu0 0.0
  %5890 = vmatmul.mubr.f32.gmra.mrb[0].mxu0 %v5823
  %v5891 = vpop.f32.mrb[0].mxu0
  %v5892 = vadd.f32 0.0, %v5891
  %v5893 = vpop.f32.mrb[0].mxu0
  %5894 = vdwg.mxu0
  %5895 = vst.msk [vmem:[%s69] sm:$0xff] %vm5310, %v4749
  %vm5896 = vcmask 46080
  %5897 = vst.msk [vmem:[%s71] sm:$0x3f] %vm5896, %v5381
  %5898 = vst.msk [vmem:[%s71 + $0x8] sm:$0x3f] %vm5896, %v5454
  %5899 = vst.msk [vmem:[%s71 + $0x10] sm:$0x3f] %vm5896, %v5527
  %5900 = vst.msk [vmem:[%s71 + $0x18] sm:$0x3f] %vm5896, %v5600
  %5901 = vst.msk [vmem:[%s71 + $0x20] sm:$0x3f] %vm5896, %v5673
  %5902 = vst.msk [vmem:[%s71 + $0x28] sm:$0x3f] %vm5896, %v5746
  %5903 = vst.msk [vmem:[%s71 + $0x30] sm:$0x3f] %vm5896, %v5819
  %5904 = vst.msk [vmem:[%s71 + $0x38] sm:$0x3f] %vm5896, %v5892
  // Predicated region
  $region138: #{_lambda_.1} parent=0 // pred_check
    _
  $region139: #{_lambda_.1} parent=0 // pred_check_branch
    %5906 = sbr.rel (0) target = $region141
  $region140: #{_lambda_.1} parent=0 // pred_region
    _
  $region141: #{_lambda_.1} parent=0 // pred_fallthru
    _
  // Predicated region
  $region142: #{_lambda_.1} parent=0 // pred_check
    _
  $region143: #{_lambda_.1} parent=0 // pred_check_branch
    %5908 = sbr.rel (0) target = $region145
  $region144: #{_lambda_.1} parent=0 // pred_region
    _
  $region145: #{_lambda_.1} parent=0 // pred_fallthru
    _
  // Predicated region
  $region146: #{_lambda_.1} parent=0 // pred_check
    _
  $region147: #{_lambda_.1} parent=0 // pred_check_branch
    %5910 = sbr.rel (0) target = $region149
  $region148: #{_lambda_.1} parent=0 // pred_region
    _
  $region149: #{_lambda_.1} parent=0 // pred_fallthru
    _
  // Predicated region
  $region150: #{_lambda_.1} parent=0 // pred_check
    _
  $region151: #{_lambda_.1} parent=0 // pred_check_branch
    %5912 = sbr.rel (0) target = $region153
  $region152: #{_lambda_.1} parent=0 // pred_region
    _
  $region153: #{_lambda_.1} parent=0 // pred_fallthru
    _

</llo_original>
